<compile_context>
chip_gen: v6e
topology: v6e:2x2x1
jax: 0.10.0
libtpu: 0.0.40
codegen_flags: <defaults>
</compile_context>

<pallas_src>
import functools

import jax
import jax.numpy as jnp
from jax.experimental import pallas as pl
from jax.experimental.pallas import tpu as pltpu

LANES = 128          # channel padding target -> lane-dense stores
NEG_SLOPE = 0.2


# ----------------------------------------------------------------------------
# Kernel 1: fused (rows, K) @ (K, Coutp) matmul + bias + LeakyReLU.
# Used for all three convs; the im2col layout is prepared wrapper-side.
# ----------------------------------------------------------------------------
def _matmul_bias_lrelu_kernel(x_ref, w_ref, b_ref, o_ref):
    acc = jnp.dot(x_ref[...], w_ref[...], preferred_element_type=jnp.float32)
    acc = acc + b_ref[...]
    o_ref[...] = jnp.where(acc > 0, acc, NEG_SLOPE * acc).astype(o_ref.dtype)


def conv_as_matmul_lrelu(x2d, w, b, *, blk=1024):
    """x2d: (R, K) bf16 im2col rows; w: (K, Coutp) bf16; b: (1, Coutp) f32."""
    R, K = x2d.shape
    Coutp = w.shape[1]
    blk = min(blk, R)
    Rp = -(-R // blk) * blk
    if Rp != R:
        x2d = jnp.pad(x2d, ((0, Rp - R), (0, 0)))
    out = pl.pallas_call(
        _matmul_bias_lrelu_kernel,
        out_shape=jax.ShapeDtypeStruct((Rp, Coutp), jnp.bfloat16),
        grid_spec=pltpu.PrefetchScalarGridSpec(
            num_scalar_prefetch=0,
            grid=(Rp // blk,),
            in_specs=[
                pl.BlockSpec((blk, K), lambda i: (i, 0)),
                pl.BlockSpec((K, Coutp), lambda i: (0, 0)),
                pl.BlockSpec((1, Coutp), lambda i: (0, 0)),
            ],
            out_specs=pl.BlockSpec((blk, Coutp), lambda i: (i, 0)),
        ),
        compiler_params=pltpu.CompilerParams(
            dimension_semantics=("parallel",)),
    )(x2d, w, b)
    return out if Rp == R else out[:R]


# ----------------------------------------------------------------------------
# Kernel 2: fused fc1 (K-tiled) + LeakyReLU + fc2 (lane-padded output).
# Output block is resident across the K grid; init at k==0, epilogue at k==last.
# ----------------------------------------------------------------------------
def _fc_fused_kernel(x_ref, w1_ref, b1_ref, w2_ref, b2_ref, o_ref, acc_ref):
    @pl.when(pl.program_id(0) == 0)
    def _():
        acc_ref[...] = jnp.zeros_like(acc_ref)

    acc_ref[...] += jnp.dot(x_ref[...], w1_ref[...],
                            preferred_element_type=jnp.float32)

    @pl.when(pl.program_id(0) == pl.num_programs(0) - 1)
    def _():
        h = acc_ref[...] + b1_ref[...]
        h = jnp.where(h > 0, h, NEG_SLOPE * h)
        logits = jnp.dot(h.astype(w2_ref.dtype), w2_ref[...],
                         preferred_element_type=jnp.float32) + b2_ref[...]
        o_ref[...] = logits.astype(o_ref.dtype)


def fc_fused(x, w1, b1, w2, b2, *, tk=4096):
    Bp, K = x.shape
    H1 = w1.shape[1]          # 256
    Np = w2.shape[1]          # num_classes padded to 128 lanes
    assert K % tk == 0
    return pl.pallas_call(
        _fc_fused_kernel,
        out_shape=jax.ShapeDtypeStruct((Bp, Np), jnp.float32),
        grid_spec=pltpu.PrefetchScalarGridSpec(
            num_scalar_prefetch=0,
            grid=(K // tk,),
            in_specs=[
                pl.BlockSpec((Bp, tk), lambda k: (0, k)),
                pl.BlockSpec((tk, H1), lambda k: (k, 0)),
                pl.BlockSpec((1, H1), lambda k: (0, 0)),
                pl.BlockSpec((H1, Np), lambda k: (0, 0)),
                pl.BlockSpec((1, Np), lambda k: (0, 0)),
            ],
            out_specs=pl.BlockSpec((Bp, Np), lambda k: (0, 0)),
            scratch_shapes=[pltpu.VMEM((Bp, H1), jnp.float32)],
        ),
        compiler_params=pltpu.CompilerParams(
            dimension_semantics=("arbitrary",)),
    )(x, w1, b1, w2, b2)


# ----------------------------------------------------------------------------
# Wrapper-side layout plumbing (no FLOPs, ~2.25x of the activation size).
# ----------------------------------------------------------------------------
def im2col_3x3_s2(x_nhwc, k_pad=None):
    """3x3 / stride-2 / pad-1 patches: (B,H,W,C) -> (B*(H//2)*(W//2), 9*C [-> k_pad])."""
    B, H, W, C = x_nhwc.shape
    OH, OW = H // 2, W // 2
    xp = jnp.pad(x_nhwc, ((0, 0), (1, 1), (1, 1), (0, 0)))
    taps = [xp[:, kh:kh + 2 * OH:2, kw:kw + 2 * OW:2, :]
            for kh in range(3) for kw in range(3)]
    p = jnp.concatenate(taps, axis=-1)                       # (B, OH, OW, 9*C)
    if k_pad is not None and k_pad > 9 * C:
        p = jnp.pad(p, ((0, 0), (0, 0), (0, 0), (0, k_pad - 9 * C)))
    return p.reshape(B * OH * OW, p.shape[-1])


def _pack_conv(w_pt, b_pt, cin_carry, cout_carry, k_pad=None):
    """PyTorch Conv2d weight (Cout,Cin,3,3) -> im2col weight (9*cin_carry[,k_pad], cout_carry).

    Row index = (kh*3 + kw)*cin_carry + cin, matching the im2col concat order.
    """
    co, ci, kh, kw = w_pt.shape
    w = jnp.transpose(w_pt, (2, 3, 1, 0))                       # (3,3,Cin,Cout)
    w = jnp.pad(w, ((0, 0), (0, 0), (0, cin_carry - ci), (0, cout_carry - co)))
    w = w.reshape(9 * cin_carry, cout_carry)
    if k_pad is not None and k_pad > 9 * cin_carry:
        w = jnp.pad(w, ((0, k_pad - 9 * cin_carry), (0, 0)))
    b = jnp.pad(b_pt, (0, cout_carry - co)).reshape(1, cout_carry)
    return w.astype(jnp.bfloat16), b.astype(jnp.float32)


def init_params(key, num_classes=4):
    ks = jax.random.split(key, 10)

    def nrm(k, shape, fan_in):
        return jax.random.normal(k, shape, jnp.float32) / jnp.sqrt(float(fan_in))

    # Synthetic weights generated in PyTorch layouts, then repacked exactly as a
    # real checkpoint would be (documents the weight mapping).
    c1_w, c1_b = nrm(ks[0], (32, 3, 3, 3), 3 * 9), 0.01 * jax.random.normal(ks[1], (32,))
    c2_w, c2_b = nrm(ks[2], (64, 32, 3, 3), 32 * 9), 0.01 * jax.random.normal(ks[3], (64,))
    c3_w, c3_b = nrm(ks[4], (128, 64, 3, 3), 64 * 9), 0.01 * jax.random.normal(ks[5], (128,))
    fc1_w = nrm(ks[6], (256, 128 * 8 * 8), 128 * 8 * 8)
    fc1_b = 0.01 * jax.random.normal(ks[7], (256,))
    fc2_w = nrm(ks[8], (num_classes, 256), 256)
    fc2_b = 0.01 * jax.random.normal(ks[9], (num_classes,))

    p = {}
    # conv1: real Cin=3 (K = 27 -> padded 32), Cout 32 -> 128 lanes.
    p["c1_w"], p["c1_b"] = _pack_conv(c1_w, c1_b, 3, LANES, k_pad=32)
    # conv2/conv3: inputs carry 128 lanes (extra channels are exactly zero), K = 1152.
    p["c2_w"], p["c2_b"] = _pack_conv(c2_w, c2_b, LANES, LANES)
    p["c3_w"], p["c3_b"] = _pack_conv(c3_w, c3_b, LANES, LANES)

    # fc1: fold PyTorch's NCHW flatten order (c*64 + h*8 + w) into the weight rows so
    # the NHWC conv output flattens directly ((h*8 + w)*128 + c) — no runtime transpose.
    w1 = fc1_w.reshape(256, 128, 8, 8).transpose(2, 3, 1, 0).reshape(8 * 8 * 128, 256)
    p["fc1_w"] = w1.astype(jnp.bfloat16)
    p["fc1_b"] = fc1_b.reshape(1, 256).astype(jnp.float32)

    # fc2: transpose and pad num_classes -> 128 lanes (zero cols/bias, sliced off later).
    w2 = jnp.pad(fc2_w.T, ((0, 0), (0, LANES - num_classes)))
    p["fc2_w"] = w2.astype(jnp.bfloat16)
    p["fc2_b"] = jnp.pad(fc2_b, (0, LANES - num_classes)).reshape(1, LANES).astype(jnp.float32)
    return p


@functools.partial(jax.jit, static_argnames=("num_classes",))
def discriminator_forward(params, x_nchw, num_classes=4):
    B = x_nchw.shape[0]
    x = jnp.transpose(x_nchw, (0, 2, 3, 1)).astype(jnp.bfloat16)         # (B,64,64,3)

    # conv1: single (B*1024, 32) @ (32, 128) matmul + bias + LeakyReLU
    y = conv_as_matmul_lrelu(im2col_3x3_s2(x, k_pad=32),
                             params["c1_w"], params["c1_b"])             # (B*1024,128)
    # conv2: K = 9*128 = 1152 fills the MXU contraction depth
    y = conv_as_matmul_lrelu(im2col_3x3_s2(y.reshape(B, 32, 32, LANES)),
                             params["c2_w"], params["c2_b"])             # (B*256,128)
    # conv3
    y = conv_as_matmul_lrelu(im2col_3x3_s2(y.reshape(B, 16, 16, LANES)),
                             params["c3_w"], params["c3_b"])             # (B*64,128)

    # Flatten in (h, w, c) order (fc1_w rows permuted at init to match PyTorch view).
    h = y.reshape(B, 8 * 8 * LANES)                                      # (B, 8192)
    Bp = ((B + 15) // 16) * 16                                           # bf16 sublane tile
    h = jnp.pad(h, ((0, Bp - B), (0, 0)))
    logits = fc_fused(h, params["fc1_w"], params["fc1_b"],
                      params["fc2_w"], params["fc2_b"], tk=4096)         # (Bp, 128) f32
    return logits[:B, :num_classes]


if __name__ == "__main__":
    key = jax.random.PRNGKey(0)
    k_param, k_x = jax.random.split(key)

    params = init_params(k_param, num_classes=4)
    # Spatial size is pinned to 64x64 by the 128*8*8 FC layer.
    x = jax.random.normal(k_x, (2, 3, 64, 64), jnp.float32)              # NCHW

    out = discriminator_forward(params, x, num_classes=4)
    jax.block_until_ready(out)
    assert out.shape == (2, 4) and out.dtype == jnp.float32
    print("KERNEL_OK")
</pallas_src>

<mosaic_0001>
module attributes {stable_mosaic.version = 11 : i64} {
  func.func @_matmul_bias_lrelu_kernel(%arg0: i32, %arg1: memref<1024x32xbf16, #tpu.memory_space<vmem>>, %arg2: memref<32x128xbf16, #tpu.memory_space<vmem>>, %arg3: memref<1x128xf32, #tpu.memory_space<vmem>>, %arg4: memref<1024x128xbf16, #tpu.memory_space<vmem>>) attributes {dimension_semantics = [#tpu.dimension_semantics<parallel>], iteration_bounds = array<i64: 2>, scalar_prefetch = 0 : i64, scratch_operands = 0 : i64, tpu.core_type = #tpu.core_type<tc>, window_params = [{transform_indices = @transform_0, window_bounds = array<i64: 1024, 32>}, {pipeline_mode = #tpu.pipeline_mode<synchronous>, transform_indices = @transform_1, window_bounds = array<i64: 32, 128>}, {pipeline_mode = #tpu.pipeline_mode<synchronous>, transform_indices = @transform_2, window_bounds = array<i64: 1, 128>}, {transform_indices = @transform_3, window_bounds = array<i64: 1024, 128>}]} {
    %c0 = arith.constant 0 : index
    %c0_0 = arith.constant 0 : index
    %0 = vector.load %arg1[%c0, %c0_0] : memref<1024x32xbf16, #tpu.memory_space<vmem>>, vector<1024x32xbf16>
    %c0_1 = arith.constant 0 : index
    %c0_2 = arith.constant 0 : index
    %1 = vector.load %arg2[%c0_1, %c0_2] : memref<32x128xbf16, #tpu.memory_space<vmem>>, vector<32x128xbf16>
    %cst = arith.constant dense<0.000000e+00> : vector<1024x128xf32>
    %2 = tpu.matmul %0, %1, %cst {dimension_numbers = #tpu.dot_dimension_numbers<[1], [0], [0], [1], [0, 0, 1, 1], [], []>} : vector<1024x32xbf16>, vector<32x128xbf16>, vector<1024x128xf32> -> vector<1024x128xf32>
    %c0_3 = arith.constant 0 : index
    %c0_4 = arith.constant 0 : index
    %3 = vector.load %arg3[%c0_3, %c0_4] : memref<1x128xf32, #tpu.memory_space<vmem>>, vector<1x128xf32>
    %4 = vector.broadcast %3 : vector<1x128xf32> to vector<1024x128xf32>
    %5 = arith.addf %2, %4 : vector<1024x128xf32>
    %cst_5 = arith.constant 0.000000e+00 : f32
    %6 = vector.broadcast %cst_5 : f32 to vector<1024x128xf32>
    %7 = arith.cmpf ogt, %5, %6 : vector<1024x128xf32>
    %cst_6 = arith.constant 2.000000e-01 : f32
    %8 = vector.broadcast %cst_6 : f32 to vector<1024x128xf32>
    %9 = arith.mulf %8, %5 : vector<1024x128xf32>
    %10 = arith.select %7, %5, %9 : vector<1024x128xi1>, vector<1024x128xf32>
    %11 = arith.truncf %10 : vector<1024x128xf32> to vector<1024x128xbf16>
    %c0_7 = arith.constant 0 : index
    %c0_8 = arith.constant 0 : index
    %12 = vector.load %arg4[%c0_7, %c0_8] : memref<1024x128xbf16, #tpu.memory_space<vmem>>, vector<1024x128xbf16>
    tpu.vector_store %arg4[%c0_7, %c0_8], %11 {strides = array<i32>} : memref<1024x128xbf16, #tpu.memory_space<vmem>>, vector<1024x128xbf16>,
    return
  }
  func.func @transform_0(%arg0: i32) -> (i32, i32) {
    %c0_i32 = arith.constant 0 : i32
    %c0_i32_0 = arith.constant 0 : i32
    return %arg0, %c0_i32 : i32, i32
  }
  func.func @transform_1(%arg0: i32) -> (i32, i32) {
    %c0_i32 = arith.constant 0 : i32
    %c0_i32_0 = arith.constant 0 : i32
    %c0_i32_1 = arith.constant 0 : i32
    return %c0_i32, %c0_i32_0 : i32, i32
  }
  func.func @transform_2(%arg0: i32) -> (i32, i32) {
    %c0_i32 = arith.constant 0 : i32
    %c0_i32_0 = arith.constant 0 : i32
    %c0_i32_1 = arith.constant 0 : i32
    return %c0_i32, %c0_i32_0 : i32, i32
  }
  func.func @transform_3(%arg0: i32) -> (i32, i32) {
    %c0_i32 = arith.constant 0 : i32
    %c0_i32_0 = arith.constant 0 : i32
    return %arg0, %c0_i32 : i32, i32
  }
}

module attributes {stable_mosaic.version = 11 : i64} {
  func.func @_matmul_bias_lrelu_kernel(%arg0: i32, %arg1: memref<512x1152xbf16, #tpu.memory_space<vmem>>, %arg2: memref<1152x128xbf16, #tpu.memory_space<vmem>>, %arg3: memref<1x128xf32, #tpu.memory_space<vmem>>, %arg4: memref<512x128xbf16, #tpu.memory_space<vmem>>) attributes {dimension_semantics = [#tpu.dimension_semantics<parallel>], iteration_bounds = array<i64: 1>, scalar_prefetch = 0 : i64, scratch_operands = 0 : i64, tpu.core_type = #tpu.core_type<tc>, window_params = [{transform_indices = @transform_0, window_bounds = array<i64: 512, 1152>}, {pipeline_mode = #tpu.pipeline_mode<synchronous>, transform_indices = @transform_1, window_bounds = array<i64: 1152, 128>}, {pipeline_mode = #tpu.pipeline_mode<synchronous>, transform_indices = @transform_2, window_bounds = array<i64: 1, 128>}, {transform_indices = @transform_3, window_bounds = array<i64: 512, 128>}]} {
    %c0 = arith.constant 0 : index
    %c0_0 = arith.constant 0 : index
    %0 = vector.load %arg1[%c0, %c0_0] : memref<512x1152xbf16, #tpu.memory_space<vmem>>, vector<512x1152xbf16>
    %c0_1 = arith.constant 0 : index
    %c0_2 = arith.constant 0 : index
    %1 = vector.load %arg2[%c0_1, %c0_2] : memref<1152x128xbf16, #tpu.memory_space<vmem>>, vector<1152x128xbf16>
    %cst = arith.constant dense<0.000000e+00> : vector<512x128xf32>
    %2 = tpu.matmul %0, %1, %cst {dimension_numbers = #tpu.dot_dimension_numbers<[1], [0], [0], [1], [0, 0, 1, 1], [], []>} : vector<512x1152xbf16>, vector<1152x128xbf16>, vector<512x128xf32> -> vector<512x128xf32>
    %c0_3 = arith.constant 0 : index
    %c0_4 = arith.constant 0 : index
    %3 = vector.load %arg3[%c0_3, %c0_4] : memref<1x128xf32, #tpu.memory_space<vmem>>, vector<1x128xf32>
    %4 = vector.broadcast %3 : vector<1x128xf32> to vector<512x128xf32>
    %5 = arith.addf %2, %4 : vector<512x128xf32>
    %cst_5 = arith.constant 0.000000e+00 : f32
    %6 = vector.broadcast %cst_5 : f32 to vector<512x128xf32>
    %7 = arith.cmpf ogt, %5, %6 : vector<512x128xf32>
    %cst_6 = arith.constant 2.000000e-01 : f32
    %8 = vector.broadcast %cst_6 : f32 to vector<512x128xf32>
    %9 = arith.mulf %8, %5 : vector<512x128xf32>
    %10 = arith.select %7, %5, %9 : vector<512x128xi1>, vector<512x128xf32>
    %11 = arith.truncf %10 : vector<512x128xf32> to vector<512x128xbf16>
    %c0_7 = arith.constant 0 : index
    %c0_8 = arith.constant 0 : index
    %12 = vector.load %arg4[%c0_7, %c0_8] : memref<512x128xbf16, #tpu.memory_space<vmem>>, vector<512x128xbf16>
    tpu.vector_store %arg4[%c0_7, %c0_8], %11 {strides = array<i32>} : memref<512x128xbf16, #tpu.memory_space<vmem>>, vector<512x128xbf16>,
    return
  }
  func.func @transform_0(%arg0: i32) -> (i32, i32) {
    %c0_i32 = arith.constant 0 : i32
    %c0_i32_0 = arith.constant 0 : i32
    return %arg0, %c0_i32 : i32, i32
  }
  func.func @transform_1(%arg0: i32) -> (i32, i32) {
    %c0_i32 = arith.constant 0 : i32
    %c0_i32_0 = arith.constant 0 : i32
    %c0_i32_1 = arith.constant 0 : i32
    return %c0_i32, %c0_i32_0 : i32, i32
  }
  func.func @transform_2(%arg0: i32) -> (i32, i32) {
    %c0_i32 = arith.constant 0 : i32
    %c0_i32_0 = arith.constant 0 : i32
    %c0_i32_1 = arith.constant 0 : i32
    return %c0_i32, %c0_i32_0 : i32, i32
  }
  func.func @transform_3(%arg0: i32) -> (i32, i32) {
    %c0_i32 = arith.constant 0 : i32
    %c0_i32_0 = arith.constant 0 : i32
    return %arg0, %c0_i32 : i32, i32
  }
}

module attributes {stable_mosaic.version = 11 : i64} {
  func.func @_matmul_bias_lrelu_kernel(%arg0: i32, %arg1: memref<128x1152xbf16, #tpu.memory_space<vmem>>, %arg2: memref<1152x128xbf16, #tpu.memory_space<vmem>>, %arg3: memref<1x128xf32, #tpu.memory_space<vmem>>, %arg4: memref<128x128xbf16, #tpu.memory_space<vmem>>) attributes {dimension_semantics = [#tpu.dimension_semantics<parallel>], iteration_bounds = array<i64: 1>, scalar_prefetch = 0 : i64, scratch_operands = 0 : i64, tpu.core_type = #tpu.core_type<tc>, window_params = [{transform_indices = @transform_0, window_bounds = array<i64: 128, 1152>}, {pipeline_mode = #tpu.pipeline_mode<synchronous>, transform_indices = @transform_1, window_bounds = array<i64: 1152, 128>}, {pipeline_mode = #tpu.pipeline_mode<synchronous>, transform_indices = @transform_2, window_bounds = array<i64: 1, 128>}, {transform_indices = @transform_3, window_bounds = array<i64: 128, 128>}]} {
    %c0 = arith.constant 0 : index
    %c0_0 = arith.constant 0 : index
    %0 = vector.load %arg1[%c0, %c0_0] : memref<128x1152xbf16, #tpu.memory_space<vmem>>, vector<128x1152xbf16>
    %c0_1 = arith.constant 0 : index
    %c0_2 = arith.constant 0 : index
    %1 = vector.load %arg2[%c0_1, %c0_2] : memref<1152x128xbf16, #tpu.memory_space<vmem>>, vector<1152x128xbf16>
    %cst = arith.constant dense<0.000000e+00> : vector<128x128xf32>
    %2 = tpu.matmul %0, %1, %cst {dimension_numbers = #tpu.dot_dimension_numbers<[1], [0], [0], [1], [0, 0, 1, 1], [], []>} : vector<128x1152xbf16>, vector<1152x128xbf16>, vector<128x128xf32> -> vector<128x128xf32>
    %c0_3 = arith.constant 0 : index
    %c0_4 = arith.constant 0 : index
    %3 = vector.load %arg3[%c0_3, %c0_4] : memref<1x128xf32, #tpu.memory_space<vmem>>, vector<1x128xf32>
    %4 = vector.broadcast %3 : vector<1x128xf32> to vector<128x128xf32>
    %5 = arith.addf %2, %4 : vector<128x128xf32>
    %cst_5 = arith.constant 0.000000e+00 : f32
    %6 = vector.broadcast %cst_5 : f32 to vector<128x128xf32>
    %7 = arith.cmpf ogt, %5, %6 : vector<128x128xf32>
    %cst_6 = arith.constant 2.000000e-01 : f32
    %8 = vector.broadcast %cst_6 : f32 to vector<128x128xf32>
    %9 = arith.mulf %8, %5 : vector<128x128xf32>
    %10 = arith.select %7, %5, %9 : vector<128x128xi1>, vector<128x128xf32>
    %11 = arith.truncf %10 : vector<128x128xf32> to vector<128x128xbf16>
    %c0_7 = arith.constant 0 : index
    %c0_8 = arith.constant 0 : index
    %12 = vector.load %arg4[%c0_7, %c0_8] : memref<128x128xbf16, #tpu.memory_space<vmem>>, vector<128x128xbf16>
    tpu.vector_store %arg4[%c0_7, %c0_8], %11 {strides = array<i32>} : memref<128x128xbf16, #tpu.memory_space<vmem>>, vector<128x128xbf16>,
    return
  }
  func.func @transform_0(%arg0: i32) -> (i32, i32) {
    %c0_i32 = arith.constant 0 : i32
    %c0_i32_0 = arith.constant 0 : i32
    return %arg0, %c0_i32 : i32, i32
  }
  func.func @transform_1(%arg0: i32) -> (i32, i32) {
    %c0_i32 = arith.constant 0 : i32
    %c0_i32_0 = arith.constant 0 : i32
    %c0_i32_1 = arith.constant 0 : i32
    return %c0_i32, %c0_i32_0 : i32, i32
  }
  func.func @transform_2(%arg0: i32) -> (i32, i32) {
    %c0_i32 = arith.constant 0 : i32
    %c0_i32_0 = arith.constant 0 : i32
    %c0_i32_1 = arith.constant 0 : i32
    return %c0_i32, %c0_i32_0 : i32, i32
  }
  func.func @transform_3(%arg0: i32) -> (i32, i32) {
    %c0_i32 = arith.constant 0 : i32
    %c0_i32_0 = arith.constant 0 : i32
    return %arg0, %c0_i32 : i32, i32
  }
}

module attributes {stable_mosaic.version = 11 : i64} {
  func.func @_fc_fused_kernel(%arg0: i32, %arg1: memref<16x4096xbf16, #tpu.memory_space<vmem>>, %arg2: memref<4096x256xbf16, #tpu.memory_space<vmem>>, %arg3: memref<1x256xf32, #tpu.memory_space<vmem>>, %arg4: memref<256x128xbf16, #tpu.memory_space<vmem>>, %arg5: memref<1x128xf32, #tpu.memory_space<vmem>>, %arg6: memref<16x128xf32, #tpu.memory_space<vmem>>, %arg7: memref<16x256xf32, #tpu.memory_space<vmem>>) attributes {dimension_semantics = [#tpu.dimension_semantics<arbitrary>], iteration_bounds = array<i64: 2>, scalar_prefetch = 0 : i64, scratch_operands = 1 : i64, tpu.core_type = #tpu.core_type<tc>, window_params = [{transform_indices = @transform_0, window_bounds = array<i64: 16, 4096>}, {transform_indices = @transform_1, window_bounds = array<i64: 4096, 256>}, {pipeline_mode = #tpu.pipeline_mode<synchronous>, transform_indices = @transform_2, window_bounds = array<i64: 1, 256>}, {pipeline_mode = #tpu.pipeline_mode<synchronous>, transform_indices = @transform_3, window_bounds = array<i64: 256, 128>}, {pipeline_mode = #tpu.pipeline_mode<synchronous>, transform_indices = @transform_4, window_bounds = array<i64: 1, 128>}, {pipeline_mode = #tpu.pipeline_mode<synchronous>, transform_indices = @transform_5, window_bounds = array<i64: 16, 128>}]} {
    %c0_i32 = arith.constant 0 : i32
    %0 = arith.cmpi eq, %arg0, %c0_i32 : i32
    %1 = arith.extui %0 : i1 to i32
    %c0_i32_0 = arith.constant 0 : i32
    %2 = arith.cmpi ne, %1, %c0_i32_0 : i32
    scf.if %2 {
      %cst_9 = arith.constant 0.000000e+00 : f32
      %12 = vector.broadcast %cst_9 : f32 to vector<16x256xf32>
      %c0_10 = arith.constant 0 : index
      %c0_11 = arith.constant 0 : index
      %13 = vector.load %arg7[%c0_10, %c0_11] : memref<16x256xf32, #tpu.memory_space<vmem>>, vector<16x256xf32>
      tpu.vector_store %arg7[%c0_10, %c0_11], %12 {strides = array<i32>} : memref<16x256xf32, #tpu.memory_space<vmem>>, vector<16x256xf32>,
    } else {
    }
    %c0 = arith.constant 0 : index
    %c0_1 = arith.constant 0 : index
    %3 = vector.load %arg7[%c0, %c0_1] : memref<16x256xf32, #tpu.memory_space<vmem>>, vector<16x256xf32>
    %c0_2 = arith.constant 0 : index
    %c0_3 = arith.constant 0 : index
    %4 = vector.load %arg1[%c0_2, %c0_3] : memref<16x4096xbf16, #tpu.memory_space<vmem>>, vector<16x4096xbf16>
    %c0_4 = arith.constant 0 : index
    %c0_5 = arith.constant 0 : index
    %5 = vector.load %arg2[%c0_4, %c0_5] : memref<4096x256xbf16, #tpu.memory_space<vmem>>, vector<4096x256xbf16>
    %cst = arith.constant dense<0.000000e+00> : vector<16x256xf32>
    %6 = tpu.matmul %4, %5, %cst {dimension_numbers = #tpu.dot_dimension_numbers<[1], [0], [0], [1], [0, 0, 1, 1], [], []>} : vector<16x4096xbf16>, vector<4096x256xbf16>, vector<16x256xf32> -> vector<16x256xf32>
    %7 = arith.addf %3, %6 : vector<16x256xf32>
    %c0_6 = arith.constant 0 : index
    %c0_7 = arith.constant 0 : index
    %8 = vector.load %arg7[%c0_6, %c0_7] : memref<16x256xf32, #tpu.memory_space<vmem>>, vector<16x256xf32>
    tpu.vector_store %arg7[%c0_6, %c0_7], %7 {strides = array<i32>} : memref<16x256xf32, #tpu.memory_space<vmem>>, vector<16x256xf32>,
    %c1_i32 = arith.constant 1 : i32
    %9 = arith.cmpi eq, %arg0, %c1_i32 : i32
    %10 = arith.extui %9 : i1 to i32
    %c0_i32_8 = arith.constant 0 : i32
    %11 = arith.cmpi ne, %10, %c0_i32_8 : i32
    scf.if %11 {
      %c0_9 = arith.constant 0 : index
      %c0_10 = arith.constant 0 : index
      %12 = vector.load %arg7[%c0_9, %c0_10] : memref<16x256xf32, #tpu.memory_space<vmem>>, vector<16x256xf32>
      %c0_11 = arith.constant 0 : index
      %c0_12 = arith.constant 0 : index
      %13 = vector.load %arg3[%c0_11, %c0_12] : memref<1x256xf32, #tpu.memory_space<vmem>>, vector<1x256xf32>
      %14 = vector.broadcast %13 : vector<1x256xf32> to vector<16x256xf32>
      %15 = arith.addf %12, %14 : vector<16x256xf32>
      %cst_13 = arith.constant 0.000000e+00 : f32
      %16 = vector.broadcast %cst_13 : f32 to vector<16x256xf32>
      %17 = arith.cmpf ogt, %15, %16 : vector<16x256xf32>
      %cst_14 = arith.constant 2.000000e-01 : f32
      %18 = vector.broadcast %cst_14 : f32 to vector<16x256xf32>
      %19 = arith.mulf %18, %15 : vector<16x256xf32>
      %20 = arith.select %17, %15, %19 : vector<16x256xi1>, vector<16x256xf32>
      %21 = arith.truncf %20 : vector<16x256xf32> to vector<16x256xbf16>
      %c0_15 = arith.constant 0 : index
      %c0_16 = arith.constant 0 : index
      %22 = vector.load %arg4[%c0_15, %c0_16] : memref<256x128xbf16, #tpu.memory_space<vmem>>, vector<256x128xbf16>
      %cst_17 = arith.constant dense<0.000000e+00> : vector<16x128xf32>
      %23 = tpu.matmul %21, %22, %cst_17 {dimension_numbers = #tpu.dot_dimension_numbers<[1], [0], [0], [1], [0, 0, 1, 1], [], []>} : vector<16x256xbf16>, vector<256x128xbf16>, vector<16x128xf32> -> vector<16x128xf32>
      %c0_18 = arith.constant 0 : index
      %c0_19 = arith.constant 0 : index
      %24 = vector.load %arg5[%c0_18, %c0_19] : memref<1x128xf32, #tpu.memory_space<vmem>>, vector<1x128xf32>
      %25 = vector.broadcast %24 : vector<1x128xf32> to vector<16x128xf32>
      %26 = arith.addf %23, %25 : vector<16x128xf32>
      %c0_20 = arith.constant 0 : index
      %c0_21 = arith.constant 0 : index
      %27 = vector.load %arg6[%c0_20, %c0_21] : memref<16x128xf32, #tpu.memory_space<vmem>>, vector<16x128xf32>
      tpu.vector_store %arg6[%c0_20, %c0_21], %26 {strides = array<i32>} : memref<16x128xf32, #tpu.memory_space<vmem>>, vector<16x128xf32>,
    } else {
    }
    return
  }
  func.func @transform_0(%arg0: i32) -> (i32, i32) {
    %c0_i32 = arith.constant 0 : i32
    %c0_i32_0 = arith.constant 0 : i32
    return %c0_i32, %arg0 : i32, i32
  }
  func.func @transform_1(%arg0: i32) -> (i32, i32) {
    %c0_i32 = arith.constant 0 : i32
    %c0_i32_0 = arith.constant 0 : i32
    return %arg0, %c0_i32 : i32, i32
  }
  func.func @transform_2(%arg0: i32) -> (i32, i32) {
    %c0_i32 = arith.constant 0 : i32
    %c0_i32_0 = arith.constant 0 : i32
    %c0_i32_1 = arith.constant 0 : i32
    return %c0_i32, %c0_i32_0 : i32, i32
  }
  func.func @transform_3(%arg0: i32) -> (i32, i32) {
    %c0_i32 = arith.constant 0 : i32
    %c0_i32_0 = arith.constant 0 : i32
    %c0_i32_1 = arith.constant 0 : i32
    return %c0_i32, %c0_i32_0 : i32, i32
  }
  func.func @transform_4(%arg0: i32) -> (i32, i32) {
    %c0_i32 = arith.constant 0 : i32
    %c0_i32_0 = arith.constant 0 : i32
    %c0_i32_1 = arith.constant 0 : i32
    return %c0_i32, %c0_i32_0 : i32, i32
  }
  func.func @transform_5(%arg0: i32) -> (i32, i32) {
    %c0_i32 = arith.constant 0 : i32
    %c0_i32_0 = arith.constant 0 : i32
    %c0_i32_1 = arith.constant 0 : i32
    return %c0_i32, %c0_i32_0 : i32, i32
  }
}

</mosaic_0001>

<llo_original>
// kernel: discriminator_forward.4
$region0: #{discriminator_forward.4}
  #allocation0 [shape = 'u32[]', space=smem, size = 0x4, offset = 0x4, fixed_abs, tag = 'smem constant byte address 0x4 - core index']
  #allocation1 [shape = 'u32[144,128]{1,0:T(1,128)}', space=vmem, size = 0x12000, scoped, tag = 'internal scratch']
  %s0 = inlined_call_operand.vmem [shape: bf16[2048,32], index: 0, kind: input, shape index: {}]
  %s1 = inlined_call_operand.vmem [shape: bf16[32,128], index: 1, kind: input, shape index: {}]
  %s2 = inlined_call_operand.vmem [shape: f32[1,128], index: 2, kind: input, shape index: {}]
  %s3 = inlined_call_operand.vmem [shape: bf16[2048,128], index: 3, kind: output, shape index: {}]
  %s4 = sld [smem:[#allocation0]]
  $region45: #{discriminator_forward.4} parent=0
    _
  %s6 = ssub.s32 1, %s4
  %s7 = scalar_select 0, %s6, %s4
  loop: start=0, step=1, limit=4
  $region2: #{discriminator_forward.4} parent=0 // loop_pre_header
    _
  $region3: #{discriminator_forward.4} parent=0 // loop_header
    %s9 = sphi 0, %s13
    %p10 = scmp.ge.s32.totalorder %s9, 4
    %s19 = sphi 0, %s21
    %s22 = sphi 0, %s19
    %s23 = sphi 0, %s22
    %s39 = sphi 0, %s23
    %s43 = sphi 0, %s43
    %s45 = sphi 0, %s43
    %s46 = sphi 0, %s45
    %s60 = sphi 0, %s46
    %s64 = sphi 0, %s64
    %s66 = sphi 0, %s64
    %s67 = sphi 0, %s66
    %s81 = sphi 0, %s67
    %s87 = sphi 0, %s89
    %s90 = sphi 0, %s87
    %s91 = sphi 0, %s90
    %s107 = sphi 0, %s91
  $region4: #{discriminator_forward.4} parent=0 // loop_header_branch
    %12 = sbr.rel (%p10) target = $region8
  $region5: #{discriminator_forward.4} parent=0 // loop_body
    %s14 = ssub.s32 %s9, 1
    %s15 = ssub.s32 %s9, 2
    %s16 = sadd.s32 %s9, 1
    %s17 = ssub.s32 %s9, %s16
    %p18 = scmp.eq.s32.totalorder %s17, 0
    %s20 = sadd.s32 %s19, 1
    %s21 = scalar_select %p18, %s19, %s20
    %p24 = pneg %p18
    %p25 = scmp.eq.s32.totalorder %s9, 1
    %p26 = por %p24, %p25
    %p27 = scmp.ne.s32.totalorder %s19, %s22
    %p28 = scmp.eq.s32.totalorder %s9, 0
    %p29 = por %p27, %p28
    %p30 = scmp.ne.s32.totalorder %s19, %s22
    %p31 = scmp.eq.s32.totalorder %s14, 1
    %p32 = por %p30, %p31
    %p33 = scmp.ne.s32.totalorder %s22, %s23
    %p34 = scmp.eq.s32.totalorder %s14, 0
    %p35 = por %p33, %p34
    %p36 = scmp.ne.s32.totalorder %s22, %s23
    %p37 = scmp.eq.s32.totalorder %s15, 1
    %p38 = por %p36, %p37
    %p40 = scmp.ne.s32.totalorder %s23, %s39
    %p41 = scmp.eq.s32.totalorder %s15, 0
    %p42 = por %p40, %p41
    %s44 = sadd.s32 %s43, 1
    %p47 = scmp.eq.s32.totalorder %s9, 1
    %p48 = scmp.ne.s32.totalorder %s43, %s45
    %p49 = scmp.eq.s32.totalorder %s9, 0
    %p50 = por %p48, %p49
    %p51 = scmp.ne.s32.totalorder %s43, %s45
    %p52 = scmp.eq.s32.totalorder %s14, 1
    %p53 = por %p51, %p52
    %p54 = scmp.ne.s32.totalorder %s45, %s46
    %p55 = scmp.eq.s32.totalorder %s14, 0
    %p56 = por %p54, %p55
    %p57 = scmp.ne.s32.totalorder %s45, %s46
    %p58 = scmp.eq.s32.totalorder %s15, 1
    %p59 = por %p57, %p58
    %p61 = scmp.ne.s32.totalorder %s46, %s60
    %p62 = scmp.eq.s32.totalorder %s15, 0
    %p63 = por %p61, %p62
    %s65 = sadd.s32 %s64, 1
    %p68 = scmp.eq.s32.totalorder %s9, 1
    %p69 = scmp.ne.s32.totalorder %s64, %s66
    %p70 = scmp.eq.s32.totalorder %s9, 0
    %p71 = por %p69, %p70
    %p72 = scmp.ne.s32.totalorder %s64, %s66
    %p73 = scmp.eq.s32.totalorder %s14, 1
    %p74 = por %p72, %p73
    %p75 = scmp.ne.s32.totalorder %s66, %s67
    %p76 = scmp.eq.s32.totalorder %s14, 0
    %p77 = por %p75, %p76
    %p78 = scmp.ne.s32.totalorder %s66, %s67
    %p79 = scmp.eq.s32.totalorder %s15, 1
    %p80 = por %p78, %p79
    %p82 = scmp.ne.s32.totalorder %s67, %s81
    %p83 = scmp.eq.s32.totalorder %s15, 0
    %p84 = por %p82, %p83
    %s85 = ssub.s32 %s9, %s16
    %p86 = scmp.eq.s32.totalorder %s85, 0
    %s88 = sadd.s32 %s87, 1
    %s89 = scalar_select %p86, %s87, %s88
    %p92 = pneg %p86
    %p93 = scmp.eq.s32.totalorder %s9, 1
    %p94 = por %p92, %p93
    %p95 = scmp.ne.s32.totalorder %s87, %s90
    %p96 = scmp.eq.s32.totalorder %s9, 0
    %p97 = por %p95, %p96
    %p98 = scmp.ne.s32.totalorder %s87, %s90
    %p99 = scmp.eq.s32.totalorder %s14, 1
    %p100 = por %p98, %p99
    %p101 = scmp.ne.s32.totalorder %s90, %s91
    %p102 = scmp.eq.s32.totalorder %s14, 0
    %p103 = por %p101, %p102
    %p104 = scmp.ne.s32.totalorder %s90, %s91
    %p105 = scmp.eq.s32.totalorder %s15, 1
    %p106 = por %p104, %p105
    %p108 = scmp.ne.s32.totalorder %s91, %s107
    %p109 = scmp.eq.s32.totalorder %s15, 0
    %p110 = por %p108, %p109
    %p111 = scmp.le.s32.totalorder 1, %s9
    %p112 = scmp.lt.s32.totalorder %s9, 3
    %p113 = pnand %p111, %p112
    %p114 = pneg %p113
    // Predicated region
    $region9: #{discriminator_forward.4} parent=5 // pred_check
      _
    $region10: #{discriminator_forward.4} parent=5 // pred_check_branch
      %116 = sbr.rel (%p113) target = $region12
    $region11: #{discriminator_forward.4} parent=5 // pred_region
      %s117 = ssub.s32 %s9, 1
      // Predicated region
      $region13: #{discriminator_forward.4} parent=11 // pred_check
        %p118 = pneg %p56
      $region14: #{discriminator_forward.4} parent=11 // pred_check_branch
        %120 = sbr.rel (%p118) target = $region16
      $region15: #{discriminator_forward.4} parent=11 // pred_region
        _
      $region16: #{discriminator_forward.4} parent=11 // pred_fallthru
        _
      // Predicated region
      $region17: #{discriminator_forward.4} parent=11 // pred_check
        %p121 = pneg %p77
      $region18: #{discriminator_forward.4} parent=11 // pred_check_branch
        %123 = sbr.rel (%p121) target = $region20
      $region19: #{discriminator_forward.4} parent=11 // pred_region
        _
      $region20: #{discriminator_forward.4} parent=11 // pred_fallthru
        _
    $region12: #{discriminator_forward.4} parent=5 // pred_fallthru
      _
    %p124 = scmp.lt.s32.totalorder %s9, 2
    // Predicated region
    $region21: #{discriminator_forward.4} parent=5 // pred_check
      %p125 = pneg %p124
    $region22: #{discriminator_forward.4} parent=5 // pred_check_branch
      %127 = sbr.rel (%p125) target = $region24
    $region23: #{discriminator_forward.4} parent=5 // pred_region
      // Predicated region
      $region25: #{discriminator_forward.4} parent=23 // pred_check
        %p128 = pneg %p29
      $region26: #{discriminator_forward.4} parent=23 // pred_check_branch
        %130 = sbr.rel (%p128) target = $region28
      $region27: #{discriminator_forward.4} parent=23 // pred_region
        %s131 = smul.u32 128, %s9
        %p132 = scmp.lt.s32.totalorder %s131, 255
        %s133 = scalar_select %p132, %s131, 255
        %s134 = smul.addr %s133, 4
        %s135 = scalar_lea.vmem %s0, %s134
        %s136 = smul.u32 128, %s9
      $region28: #{discriminator_forward.4} parent=23 // pred_fallthru
        _
    $region24: #{discriminator_forward.4} parent=5 // pred_fallthru
      _
    %p137 = scmp.le.s32.totalorder 1, %s9
    %p138 = scmp.lt.s32.totalorder %s9, 3
    %p139 = pnand %p137, %p138
    %p140 = pneg %p139
    // Predicated region
    $region29: #{discriminator_forward.4} parent=5 // pred_check
      _
    $region30: #{discriminator_forward.4} parent=5 // pred_check_branch
      %142 = sbr.rel (%p139) target = $region32
    $region31: #{discriminator_forward.4} parent=5 // pred_region
      %s143 = ssub.s32 %s9, 1
      %s144 = smul.u32 128, %s14
      %p145 = scmp.lt.s32.totalorder %s144, 255
      %s146 = scalar_select %p145, %s144, 255
      %s147 = smul.addr %s146, 4
      %s148 = scalar_lea.vmem %s0, %s147
      %p149 = pneg %p35
      %p150 = pneg %p32
      %p151 = pneg %p56
      %p152 = pneg %p53
      %p153 = pneg %p77
      %p154 = pneg %p74
      %p155 = pneg %p103
      %p156 = pneg %p100
      %s157 = smul.u32 128, %s14
      %p158 = scmp.lt.s32.totalorder %s157, 255
      %s159 = scalar_select %p158, %s157, 255
      %s160 = smul.addr %s159, 4
      %s161 = scalar_lea.vmem %s3, %s160
      %s162 = smul.u32 128, %s14
      %p163 = scmp.lt.s32.totalorder %s162, 255
      %s164 = scalar_select %p163, %s162, 255
      %s165 = smul.addr %s164, 4
      %s166 = scalar_lea.vmem %s0, %s165
      %s167 = smul.u32 128, %s14
      %s168 = smul.u32 128, %s14
      %p169 = scmp.lt.s32.totalorder %s168, 255
      %s170 = scalar_select %p169, %s168, 255
      %s171 = smul.addr %s170, 4
      %s172 = scalar_lea.vmem %s3, %s171
      %s173 = smul.u32 128, %s14
      %v175 = vld [vmem:[%s166] sm:$0xf]
      %v176 = vld [vmem:[%s166 + $0x4] sm:$0xf]
      %v177 = vld [vmem:[%s166 + $0x8] sm:$0xf]
      %v178 = vld [vmem:[%s166 + $0xc] sm:$0xf]
      %v179 = vld [vmem:[%s166 + $0x10] sm:$0xf]
      %v180 = vld [vmem:[%s166 + $0x14] sm:$0xf]
      %v181 = vld [vmem:[%s166 + $0x18] sm:$0xf]
      %v182 = vld [vmem:[%s166 + $0x1c] sm:$0xf]
      %v183 = vld [vmem:[%s166 + $0x20] sm:$0xf]
      %v184 = vld [vmem:[%s166 + $0x24] sm:$0xf]
      %v185 = vld [vmem:[%s166 + $0x28] sm:$0xf]
      %v186 = vld [vmem:[%s166 + $0x2c] sm:$0xf]
      %v187 = vld [vmem:[%s166 + $0x30] sm:$0xf]
      %v188 = vld [vmem:[%s166 + $0x34] sm:$0xf]
      %v189 = vld [vmem:[%s166 + $0x38] sm:$0xf]
      %v190 = vld [vmem:[%s166 + $0x3c] sm:$0xf]
      %v191 = vld [vmem:[%s166 + $0x40] sm:$0xf]
      %v192 = vld [vmem:[%s166 + $0x44] sm:$0xf]
      %v193 = vld [vmem:[%s166 + $0x48] sm:$0xf]
      %v194 = vld [vmem:[%s166 + $0x4c] sm:$0xf]
      %v195 = vld [vmem:[%s166 + $0x50] sm:$0xf]
      %v196 = vld [vmem:[%s166 + $0x54] sm:$0xf]
      %v197 = vld [vmem:[%s166 + $0x58] sm:$0xf]
      %v198 = vld [vmem:[%s166 + $0x5c] sm:$0xf]
      %v199 = vld [vmem:[%s166 + $0x60] sm:$0xf]
      %v200 = vld [vmem:[%s166 + $0x64] sm:$0xf]
      %v201 = vld [vmem:[%s166 + $0x68] sm:$0xf]
      %v202 = vld [vmem:[%s166 + $0x6c] sm:$0xf]
      %v203 = vld [vmem:[%s166 + $0x70] sm:$0xf]
      %v204 = vld [vmem:[%s166 + $0x74] sm:$0xf]
      %v205 = vld [vmem:[%s166 + $0x78] sm:$0xf]
      %v206 = vld [vmem:[%s166 + $0x7c] sm:$0xf]
      %v207 = vld [vmem:[%s166 + $0x80] sm:$0xf]
      %v208 = vld [vmem:[%s166 + $0x84] sm:$0xf]
      %v209 = vld [vmem:[%s166 + $0x88] sm:$0xf]
      %v210 = vld [vmem:[%s166 + $0x8c] sm:$0xf]
      %v211 = vld [vmem:[%s166 + $0x90] sm:$0xf]
      %v212 = vld [vmem:[%s166 + $0x94] sm:$0xf]
      %v213 = vld [vmem:[%s166 + $0x98] sm:$0xf]
      %v214 = vld [vmem:[%s166 + $0x9c] sm:$0xf]
      %v215 = vld [vmem:[%s166 + $0xa0] sm:$0xf]
      %v216 = vld [vmem:[%s166 + $0xa4] sm:$0xf]
      %v217 = vld [vmem:[%s166 + $0xa8] sm:$0xf]
      %v218 = vld [vmem:[%s166 + $0xac] sm:$0xf]
      %v219 = vld [vmem:[%s166 + $0xb0] sm:$0xf]
      %v220 = vld [vmem:[%s166 + $0xb4] sm:$0xf]
      %v221 = vld [vmem:[%s166 + $0xb8] sm:$0xf]
      %v222 = vld [vmem:[%s166 + $0xbc] sm:$0xf]
      %v223 = vld [vmem:[%s166 + $0xc0] sm:$0xf]
      %v224 = vld [vmem:[%s166 + $0xc4] sm:$0xf]
      %v225 = vld [vmem:[%s166 + $0xc8] sm:$0xf]
      %v226 = vld [vmem:[%s166 + $0xcc] sm:$0xf]
      %v227 = vld [vmem:[%s166 + $0xd0] sm:$0xf]
      %v228 = vld [vmem:[%s166 + $0xd4] sm:$0xf]
      %v229 = vld [vmem:[%s166 + $0xd8] sm:$0xf]
      %v230 = vld [vmem:[%s166 + $0xdc] sm:$0xf]
      %v231 = vld [vmem:[%s166 + $0xe0] sm:$0xf]
      %v232 = vld [vmem:[%s166 + $0xe4] sm:$0xf]
      %v233 = vld [vmem:[%s166 + $0xe8] sm:$0xf]
      %v234 = vld [vmem:[%s166 + $0xec] sm:$0xf]
      %v235 = vld [vmem:[%s166 + $0xf0] sm:$0xf]
      %v236 = vld [vmem:[%s166 + $0xf4] sm:$0xf]
      %v237 = vld [vmem:[%s166 + $0xf8] sm:$0xf]
      %v238 = vld [vmem:[%s166 + $0xfc] sm:$0xf]
      %v239 = vld [vmem:[%s166 + $0x100] sm:$0xf]
      %v240 = vld [vmem:[%s166 + $0x104] sm:$0xf]
      %v241 = vld [vmem:[%s166 + $0x108] sm:$0xf]
      %v242 = vld [vmem:[%s166 + $0x10c] sm:$0xf]
      %v243 = vld [vmem:[%s166 + $0x110] sm:$0xf]
      %v244 = vld [vmem:[%s166 + $0x114] sm:$0xf]
      %v245 = vld [vmem:[%s166 + $0x118] sm:$0xf]
      %v246 = vld [vmem:[%s166 + $0x11c] sm:$0xf]
      %v247 = vld [vmem:[%s166 + $0x120] sm:$0xf]
      %v248 = vld [vmem:[%s166 + $0x124] sm:$0xf]
      %v249 = vld [vmem:[%s166 + $0x128] sm:$0xf]
      %v250 = vld [vmem:[%s166 + $0x12c] sm:$0xf]
      %v251 = vld [vmem:[%s166 + $0x130] sm:$0xf]
      %v252 = vld [vmem:[%s166 + $0x134] sm:$0xf]
      %v253 = vld [vmem:[%s166 + $0x138] sm:$0xf]
      %v254 = vld [vmem:[%s166 + $0x13c] sm:$0xf]
      %v255 = vld [vmem:[%s166 + $0x140] sm:$0xf]
      %v256 = vld [vmem:[%s166 + $0x144] sm:$0xf]
      %v257 = vld [vmem:[%s166 + $0x148] sm:$0xf]
      %v258 = vld [vmem:[%s166 + $0x14c] sm:$0xf]
      %v259 = vld [vmem:[%s166 + $0x150] sm:$0xf]
      %v260 = vld [vmem:[%s166 + $0x154] sm:$0xf]
      %v261 = vld [vmem:[%s166 + $0x158] sm:$0xf]
      %v262 = vld [vmem:[%s166 + $0x15c] sm:$0xf]
      %v263 = vld [vmem:[%s166 + $0x160] sm:$0xf]
      %v264 = vld [vmem:[%s166 + $0x164] sm:$0xf]
      %v265 = vld [vmem:[%s166 + $0x168] sm:$0xf]
      %v266 = vld [vmem:[%s166 + $0x16c] sm:$0xf]
      %v267 = vld [vmem:[%s166 + $0x170] sm:$0xf]
      %v268 = vld [vmem:[%s166 + $0x174] sm:$0xf]
      %v269 = vld [vmem:[%s166 + $0x178] sm:$0xf]
      %v270 = vld [vmem:[%s166 + $0x17c] sm:$0xf]
      %v271 = vld [vmem:[%s166 + $0x180] sm:$0xf]
      %v272 = vld [vmem:[%s166 + $0x184] sm:$0xf]
      %v273 = vld [vmem:[%s166 + $0x188] sm:$0xf]
      %v274 = vld [vmem:[%s166 + $0x18c] sm:$0xf]
      %v275 = vld [vmem:[%s166 + $0x190] sm:$0xf]
      %v276 = vld [vmem:[%s166 + $0x194] sm:$0xf]
      %v277 = vld [vmem:[%s166 + $0x198] sm:$0xf]
      %v278 = vld [vmem:[%s166 + $0x19c] sm:$0xf]
      %v279 = vld [vmem:[%s166 + $0x1a0] sm:$0xf]
      %v280 = vld [vmem:[%s166 + $0x1a4] sm:$0xf]
      %v281 = vld [vmem:[%s166 + $0x1a8] sm:$0xf]
      %v282 = vld [vmem:[%s166 + $0x1ac] sm:$0xf]
      %v283 = vld [vmem:[%s166 + $0x1b0] sm:$0xf]
      %v284 = vld [vmem:[%s166 + $0x1b4] sm:$0xf]
      %v285 = vld [vmem:[%s166 + $0x1b8] sm:$0xf]
      %v286 = vld [vmem:[%s166 + $0x1bc] sm:$0xf]
      %v287 = vld [vmem:[%s166 + $0x1c0] sm:$0xf]
      %v288 = vld [vmem:[%s166 + $0x1c4] sm:$0xf]
      %v289 = vld [vmem:[%s166 + $0x1c8] sm:$0xf]
      %v290 = vld [vmem:[%s166 + $0x1cc] sm:$0xf]
      %v291 = vld [vmem:[%s166 + $0x1d0] sm:$0xf]
      %v292 = vld [vmem:[%s166 + $0x1d4] sm:$0xf]
      %v293 = vld [vmem:[%s166 + $0x1d8] sm:$0xf]
      %v294 = vld [vmem:[%s166 + $0x1dc] sm:$0xf]
      %v295 = vld [vmem:[%s166 + $0x1e0] sm:$0xf]
      %v296 = vld [vmem:[%s166 + $0x1e4] sm:$0xf]
      %v297 = vld [vmem:[%s166 + $0x1e8] sm:$0xf]
      %v298 = vld [vmem:[%s166 + $0x1ec] sm:$0xf]
      %v299 = vld [vmem:[%s166 + $0x1f0] sm:$0xf]
      %v300 = vld [vmem:[%s166 + $0x1f4] sm:$0xf]
      %v301 = vld [vmem:[%s166 + $0x1f8] sm:$0xf]
      %v302 = vld [vmem:[%s166 + $0x1fc] sm:$0xf]
      %v303 = vld [vmem:[%s1] sm:$0xf]
      %v304 = vld [vmem:[%s1 + $0x4] sm:$0xf]
      %v305 = vld [vmem:[%s1 + $0x8] sm:$0xf]
      %v306 = vld [vmem:[%s1 + $0xc] sm:$0xf]
      %v307 = vld [vmem:[%s2] sm:$0x1]
      %v309 = vlaneseq
      %v310 = vshrl.u32 %v309, 7
      %v311 = vsub.s32 0, %v310
      %v312 = vrot.slane %v307, %v311
      %v442 = vunpack.c.l.b16 %v175
      %v443 = vunpack.c.l.b16 %v176
      %v444 = vunpack.c.l.b16 %v177
      %v445 = vunpack.c.l.b16 %v178
      %v446 = vunpack.c.l.b16 %v179
      %v447 = vunpack.c.l.b16 %v180
      %v448 = vunpack.c.l.b16 %v181
      %v449 = vunpack.c.l.b16 %v182
      %v450 = vunpack.c.l.b16 %v183
      %v451 = vunpack.c.l.b16 %v184
      %v452 = vunpack.c.l.b16 %v185
      %v453 = vunpack.c.l.b16 %v186
      %v454 = vunpack.c.l.b16 %v187
      %v455 = vunpack.c.l.b16 %v188
      %v456 = vunpack.c.l.b16 %v189
      %v457 = vunpack.c.l.b16 %v190
      %v458 = vunpack.c.l.b16 %v191
      %v459 = vunpack.c.l.b16 %v192
      %v460 = vunpack.c.l.b16 %v193
      %v461 = vunpack.c.l.b16 %v194
      %v462 = vunpack.c.l.b16 %v195
      %v463 = vunpack.c.l.b16 %v196
      %v464 = vunpack.c.l.b16 %v197
      %v465 = vunpack.c.l.b16 %v198
      %v466 = vunpack.c.l.b16 %v199
      %v467 = vunpack.c.l.b16 %v200
      %v468 = vunpack.c.l.b16 %v201
      %v469 = vunpack.c.l.b16 %v202
      %v470 = vunpack.c.l.b16 %v203
      %v471 = vunpack.c.l.b16 %v204
      %v472 = vunpack.c.l.b16 %v205
      %v473 = vunpack.c.l.b16 %v206
      %v474 = vunpack.c.l.b16 %v207
      %v475 = vunpack.c.l.b16 %v208
      %v476 = vunpack.c.l.b16 %v209
      %v477 = vunpack.c.l.b16 %v210
      %v478 = vunpack.c.l.b16 %v211
      %v479 = vunpack.c.l.b16 %v212
      %v480 = vunpack.c.l.b16 %v213
      %v481 = vunpack.c.l.b16 %v214
      %v482 = vunpack.c.l.b16 %v215
      %v483 = vunpack.c.l.b16 %v216
      %v484 = vunpack.c.l.b16 %v217
      %v485 = vunpack.c.l.b16 %v218
      %v486 = vunpack.c.l.b16 %v219
      %v487 = vunpack.c.l.b16 %v220
      %v488 = vunpack.c.l.b16 %v221
      %v489 = vunpack.c.l.b16 %v222
      %v490 = vunpack.c.l.b16 %v223
      %v491 = vunpack.c.l.b16 %v224
      %v492 = vunpack.c.l.b16 %v225
      %v493 = vunpack.c.l.b16 %v226
      %v494 = vunpack.c.l.b16 %v227
      %v495 = vunpack.c.l.b16 %v228
      %v496 = vunpack.c.l.b16 %v229
      %v497 = vunpack.c.l.b16 %v230
      %v498 = vunpack.c.l.b16 %v231
      %v499 = vunpack.c.l.b16 %v232
      %v500 = vunpack.c.l.b16 %v233
      %v501 = vunpack.c.l.b16 %v234
      %v502 = vunpack.c.l.b16 %v235
      %v503 = vunpack.c.l.b16 %v236
      %v504 = vunpack.c.l.b16 %v237
      %v505 = vunpack.c.l.b16 %v238
      %v506 = vunpack.c.l.b16 %v239
      %v507 = vunpack.c.l.b16 %v240
      %v508 = vunpack.c.l.b16 %v241
      %v509 = vunpack.c.l.b16 %v242
      %v510 = vunpack.c.l.b16 %v243
      %v511 = vunpack.c.l.b16 %v244
      %v512 = vunpack.c.l.b16 %v245
      %v513 = vunpack.c.l.b16 %v246
      %v514 = vunpack.c.l.b16 %v247
      %v515 = vunpack.c.l.b16 %v248
      %v516 = vunpack.c.l.b16 %v249
      %v517 = vunpack.c.l.b16 %v250
      %v518 = vunpack.c.l.b16 %v251
      %v519 = vunpack.c.l.b16 %v252
      %v520 = vunpack.c.l.b16 %v253
      %v521 = vunpack.c.l.b16 %v254
      %v522 = vunpack.c.l.b16 %v255
      %v523 = vunpack.c.l.b16 %v256
      %v524 = vunpack.c.l.b16 %v257
      %v525 = vunpack.c.l.b16 %v258
      %v526 = vunpack.c.l.b16 %v259
      %v527 = vunpack.c.l.b16 %v260
      %v528 = vunpack.c.l.b16 %v261
      %v529 = vunpack.c.l.b16 %v262
      %v530 = vunpack.c.l.b16 %v263
      %v531 = vunpack.c.l.b16 %v264
      %v532 = vunpack.c.l.b16 %v265
      %v533 = vunpack.c.l.b16 %v266
      %v534 = vunpack.c.l.b16 %v267
      %v535 = vunpack.c.l.b16 %v268
      %v536 = vunpack.c.l.b16 %v269
      %v537 = vunpack.c.l.b16 %v270
      %v538 = vunpack.c.l.b16 %v271
      %v539 = vunpack.c.l.b16 %v272
      %v540 = vunpack.c.l.b16 %v273
      %v541 = vunpack.c.l.b16 %v274
      %v542 = vunpack.c.l.b16 %v275
      %v543 = vunpack.c.l.b16 %v276
      %v544 = vunpack.c.l.b16 %v277
      %v545 = vunpack.c.l.b16 %v278
      %v546 = vunpack.c.l.b16 %v279
      %v547 = vunpack.c.l.b16 %v280
      %v548 = vunpack.c.l.b16 %v281
      %v549 = vunpack.c.l.b16 %v282
      %v550 = vunpack.c.l.b16 %v283
      %v551 = vunpack.c.l.b16 %v284
      %v552 = vunpack.c.l.b16 %v285
      %v553 = vunpack.c.l.b16 %v286
      %v554 = vunpack.c.l.b16 %v287
      %v555 = vunpack.c.l.b16 %v288
      %v556 = vunpack.c.l.b16 %v289
      %v557 = vunpack.c.l.b16 %v290
      %v558 = vunpack.c.l.b16 %v291
      %v559 = vunpack.c.l.b16 %v292
      %v560 = vunpack.c.l.b16 %v293
      %v561 = vunpack.c.l.b16 %v294
      %v562 = vunpack.c.l.b16 %v295
      %v563 = vunpack.c.l.b16 %v296
      %v564 = vunpack.c.l.b16 %v297
      %v565 = vunpack.c.l.b16 %v298
      %v566 = vunpack.c.l.b16 %v299
      %v567 = vunpack.c.l.b16 %v300
      %v568 = vunpack.c.l.b16 %v301
      %v569 = vunpack.c.l.b16 %v302
      %v570 = vpack.c.b16 %v443, %v442
      %v571 = vpack.c.b16 %v445, %v444
      %v572 = vpack.c.b16 %v447, %v446
      %v573 = vpack.c.b16 %v449, %v448
      %v574 = vpack.c.b16 %v451, %v450
      %v575 = vpack.c.b16 %v453, %v452
      %v576 = vpack.c.b16 %v455, %v454
      %v577 = vpack.c.b16 %v457, %v456
      %v578 = vpack.c.b16 %v459, %v458
      %v579 = vpack.c.b16 %v461, %v460
      %v580 = vpack.c.b16 %v463, %v462
      %v581 = vpack.c.b16 %v465, %v464
      %v582 = vpack.c.b16 %v467, %v466
      %v583 = vpack.c.b16 %v469, %v468
      %v584 = vpack.c.b16 %v471, %v470
      %v585 = vpack.c.b16 %v473, %v472
      %v586 = vpack.c.b16 %v475, %v474
      %v587 = vpack.c.b16 %v477, %v476
      %v588 = vpack.c.b16 %v479, %v478
      %v589 = vpack.c.b16 %v481, %v480
      %v590 = vpack.c.b16 %v483, %v482
      %v591 = vpack.c.b16 %v485, %v484
      %v592 = vpack.c.b16 %v487, %v486
      %v593 = vpack.c.b16 %v489, %v488
      %v594 = vpack.c.b16 %v491, %v490
      %v595 = vpack.c.b16 %v493, %v492
      %v596 = vpack.c.b16 %v495, %v494
      %v597 = vpack.c.b16 %v497, %v496
      %v598 = vpack.c.b16 %v499, %v498
      %v599 = vpack.c.b16 %v501, %v500
      %v600 = vpack.c.b16 %v503, %v502
      %v601 = vpack.c.b16 %v505, %v504
      %v602 = vpack.c.b16 %v507, %v506
      %v603 = vpack.c.b16 %v509, %v508
      %v604 = vpack.c.b16 %v511, %v510
      %v605 = vpack.c.b16 %v513, %v512
      %v606 = vpack.c.b16 %v515, %v514
      %v607 = vpack.c.b16 %v517, %v516
      %v608 = vpack.c.b16 %v519, %v518
      %v609 = vpack.c.b16 %v521, %v520
      %v610 = vpack.c.b16 %v523, %v522
      %v611 = vpack.c.b16 %v525, %v524
      %v612 = vpack.c.b16 %v527, %v526
      %v613 = vpack.c.b16 %v529, %v528
      %v614 = vpack.c.b16 %v531, %v530
      %v615 = vpack.c.b16 %v533, %v532
      %v616 = vpack.c.b16 %v535, %v534
      %v617 = vpack.c.b16 %v537, %v536
      %v618 = vpack.c.b16 %v539, %v538
      %v619 = vpack.c.b16 %v541, %v540
      %v620 = vpack.c.b16 %v543, %v542
      %v621 = vpack.c.b16 %v545, %v544
      %v622 = vpack.c.b16 %v547, %v546
      %v623 = vpack.c.b16 %v549, %v548
      %v624 = vpack.c.b16 %v551, %v550
      %v625 = vpack.c.b16 %v553, %v552
      %v626 = vpack.c.b16 %v555, %v554
      %v627 = vpack.c.b16 %v557, %v556
      %v628 = vpack.c.b16 %v559, %v558
      %v629 = vpack.c.b16 %v561, %v560
      %v630 = vpack.c.b16 %v563, %v562
      %v631 = vpack.c.b16 %v565, %v564
      %v632 = vpack.c.b16 %v567, %v566
      %v633 = vpack.c.b16 %v569, %v568
      %v638 = vunpack.c.l.b16 %v303
      %v639 = vunpack.c.l.b16 %v304
      %v640 = vunpack.c.l.b16 %v305
      %v641 = vunpack.c.l.b16 %v306
      %v642 = vpack.c.b16 %v639, %v638
      %v643 = vpack.c.b16 %v641, %v640
      %vm646 = vcmask 261120
      %v648 = vsel %vm646, %v570, 0
      %v651 = vsel %vm646, %v571, 0
      %v654 = vsel %vm646, %v572, 0
      %v657 = vsel %vm646, %v573, 0
      %v660 = vsel %vm646, %v574, 0
      %v663 = vsel %vm646, %v575, 0
      %v666 = vsel %vm646, %v576, 0
      %v669 = vsel %vm646, %v577, 0
      %v672 = vsel %vm646, %v578, 0
      %v675 = vsel %vm646, %v579, 0
      %v678 = vsel %vm646, %v580, 0
      %v681 = vsel %vm646, %v581, 0
      %v684 = vsel %vm646, %v582, 0
      %v687 = vsel %vm646, %v583, 0
      %v690 = vsel %vm646, %v584, 0
      %v693 = vsel %vm646, %v585, 0
      %v696 = vsel %vm646, %v586, 0
      %v699 = vsel %vm646, %v587, 0
      %v702 = vsel %vm646, %v588, 0
      %v705 = vsel %vm646, %v589, 0
      %v708 = vsel %vm646, %v590, 0
      %v711 = vsel %vm646, %v591, 0
      %v714 = vsel %vm646, %v592, 0
      %v717 = vsel %vm646, %v593, 0
      %v720 = vsel %vm646, %v594, 0
      %v723 = vsel %vm646, %v595, 0
      %v726 = vsel %vm646, %v596, 0
      %v729 = vsel %vm646, %v597, 0
      %v732 = vsel %vm646, %v598, 0
      %v735 = vsel %vm646, %v599, 0
      %v738 = vsel %vm646, %v600, 0
      %v741 = vsel %vm646, %v601, 0
      %v744 = vsel %vm646, %v602, 0
      %v747 = vsel %vm646, %v603, 0
      %v750 = vsel %vm646, %v604, 0
      %v753 = vsel %vm646, %v605, 0
      %v756 = vsel %vm646, %v606, 0
      %v759 = vsel %vm646, %v607, 0
      %v762 = vsel %vm646, %v608, 0
      %v765 = vsel %vm646, %v609, 0
      %v768 = vsel %vm646, %v610, 0
      %v771 = vsel %vm646, %v611, 0
      %v774 = vsel %vm646, %v612, 0
      %v777 = vsel %vm646, %v613, 0
      %v780 = vsel %vm646, %v614, 0
      %v783 = vsel %vm646, %v615, 0
      %v786 = vsel %vm646, %v616, 0
      %v789 = vsel %vm646, %v617, 0
      %v792 = vsel %vm646, %v618, 0
      %v795 = vsel %vm646, %v619, 0
      %v798 = vsel %vm646, %v620, 0
      %v801 = vsel %vm646, %v621, 0
      %v804 = vsel %vm646, %v622, 0
      %v807 = vsel %vm646, %v623, 0
      %v810 = vsel %vm646, %v624, 0
      %v813 = vsel %vm646, %v625, 0
      %v816 = vsel %vm646, %v626, 0
      %v819 = vsel %vm646, %v627, 0
      %v822 = vsel %vm646, %v628, 0
      %v825 = vsel %vm646, %v629, 0
      %v828 = vsel %vm646, %v630, 0
      %v831 = vsel %vm646, %v631, 0
      %v834 = vsel %vm646, %v632, 0
      %v837 = vsel %vm646, %v633, 0
      %839 = vmatprep.subr.bf16.mxu0 0
      %840 = vmatpush1.bf16.msra.mxu0 0
      %841 = vmatprep.subr.bf16.mxu0 0
      %842 = vmatpush1.bf16.msra.mxu0 0
      %843 = vmatprep.subr.bf16.mxu0 0
      %844 = vmatpush1.bf16.msra.mxu0 0
      %845 = vmatprep.subr.bf16.mxu0 0
      %846 = vmatpush1.bf16.msra.mxu0 0
      %847 = vmatprep.subr.bf16.mxu0 0
      %848 = vmatpush1.bf16.msra.mxu0 0
      %849 = vmatprep.subr.bf16.mxu0 0
      %850 = vmatpush1.bf16.msra.mxu0 0
      %851 = vmatprep.subr.bf16.mxu0 0
      %852 = vmatpush1.bf16.msra.mxu0 %v643
      %853 = vmatprep.subr.bf16.mxu0 0
      %854 = vmatpush1.bf16.msra.mxu0 %v642
      %855 = vmatprep.subr.bf16.mxu0 0
      %856 = vmatpush2.bf16.msra.mxu0 0
      %857 = vmatprep.subr.bf16.mxu0 0
      %858 = vmatpush2.bf16.msra.mxu0 0
      %859 = vmatprep.subr.bf16.mxu0 0
      %860 = vmatpush2.bf16.msra.mxu0 0
      %861 = vmatprep.subr.bf16.mxu0 0
      %862 = vmatpush2.bf16.msra.mxu0 0
      %863 = vmatprep.subr.bf16.mxu0 0
      %864 = vmatpush2.bf16.msra.mxu0 0
      %865 = vmatprep.subr.bf16.mxu0 0
      %866 = vmatpush2.bf16.msra.mxu0 0
      %867 = vmatprep.subr.bf16.mxu0 0
      %868 = vmatpush2.bf16.msra.mxu0 0
      %869 = vmatprep.subr.bf16.mxu0 0
      %870 = vmatpush2.bf16.msra.mxu0 0
      %871 = vmatprep.mubr.bf16.mxu0 0
      %872 = vmatmul.mubr.bf16.gmra.mxu0 %v648
      %v873 = vpop.f32.mrf.mxu0
      %v874 = vadd.f32 %v312, %v873
      %v875 = vpop.f32.mrf.mxu0
      %v876 = vpop.f32.mrf.mxu0
      %v877 = vadd.f32 %v312, %v876
      %v878 = vpop.f32.mrf.mxu0
      %879 = vmatprep.mubr.bf16.mxu0 0
      %880 = vmatmul.mubr.bf16.gmra.mxu0 %v651
      %v881 = vpop.f32.mrf.mxu0
      %v882 = vadd.f32 %v312, %v881
      %v883 = vpop.f32.mrf.mxu0
      %v884 = vpop.f32.mrf.mxu0
      %v885 = vadd.f32 %v312, %v884
      %v886 = vpop.f32.mrf.mxu0
      %887 = vmatprep.mubr.bf16.mxu0 0
      %888 = vmatmul.mubr.bf16.gmra.mxu0 %v654
      %v889 = vpop.f32.mrf.mxu0
      %v890 = vadd.f32 %v312, %v889
      %v891 = vpop.f32.mrf.mxu0
      %v892 = vpop.f32.mrf.mxu0
      %v893 = vadd.f32 %v312, %v892
      %v894 = vpop.f32.mrf.mxu0
      %895 = vmatprep.mubr.bf16.mxu0 0
      %896 = vmatmul.mubr.bf16.gmra.mxu0 %v657
      %v897 = vpop.f32.mrf.mxu0
      %v898 = vadd.f32 %v312, %v897
      %v899 = vpop.f32.mrf.mxu0
      %v900 = vpop.f32.mrf.mxu0
      %v901 = vadd.f32 %v312, %v900
      %v902 = vpop.f32.mrf.mxu0
      %903 = vmatprep.mubr.bf16.mxu0 0
      %904 = vmatmul.mubr.bf16.gmra.mxu0 %v660
      %v905 = vpop.f32.mrf.mxu0
      %v906 = vadd.f32 %v312, %v905
      %v907 = vpop.f32.mrf.mxu0
      %v908 = vpop.f32.mrf.mxu0
      %v909 = vadd.f32 %v312, %v908
      %v910 = vpop.f32.mrf.mxu0
      %911 = vmatprep.mubr.bf16.mxu0 0
      %912 = vmatmul.mubr.bf16.gmra.mxu0 %v663
      %v913 = vpop.f32.mrf.mxu0
      %v914 = vadd.f32 %v312, %v913
      %v915 = vpop.f32.mrf.mxu0
      %v916 = vpop.f32.mrf.mxu0
      %v917 = vadd.f32 %v312, %v916
      %v918 = vpop.f32.mrf.mxu0
      %919 = vmatprep.mubr.bf16.mxu0 0
      %920 = vmatmul.mubr.bf16.gmra.mxu0 %v666
      %v921 = vpop.f32.mrf.mxu0
      %v922 = vadd.f32 %v312, %v921
      %v923 = vpop.f32.mrf.mxu0
      %v924 = vpop.f32.mrf.mxu0
      %v925 = vadd.f32 %v312, %v924
      %v926 = vpop.f32.mrf.mxu0
      %927 = vmatprep.mubr.bf16.mxu0 0
      %928 = vmatmul.mubr.bf16.gmra.mxu0 %v669
      %v929 = vpop.f32.mrf.mxu0
      %v930 = vadd.f32 %v312, %v929
      %v931 = vpop.f32.mrf.mxu0
      %v932 = vpop.f32.mrf.mxu0
      %v933 = vadd.f32 %v312, %v932
      %v934 = vpop.f32.mrf.mxu0
      %935 = vmatprep.mubr.bf16.mxu0 0
      %936 = vmatmul.mubr.bf16.gmra.mxu0 %v672
      %v937 = vpop.f32.mrf.mxu0
      %v938 = vadd.f32 %v312, %v937
      %v939 = vpop.f32.mrf.mxu0
      %v940 = vpop.f32.mrf.mxu0
      %v941 = vadd.f32 %v312, %v940
      %v942 = vpop.f32.mrf.mxu0
      %943 = vmatprep.mubr.bf16.mxu0 0
      %944 = vmatmul.mubr.bf16.gmra.mxu0 %v675
      %v945 = vpop.f32.mrf.mxu0
      %v946 = vadd.f32 %v312, %v945
      %v947 = vpop.f32.mrf.mxu0
      %v948 = vpop.f32.mrf.mxu0
      %v949 = vadd.f32 %v312, %v948
      %v950 = vpop.f32.mrf.mxu0
      %951 = vmatprep.mubr.bf16.mxu0 0
      %952 = vmatmul.mubr.bf16.gmra.mxu0 %v678
      %v953 = vpop.f32.mrf.mxu0
      %v954 = vadd.f32 %v312, %v953
      %v955 = vpop.f32.mrf.mxu0
      %v956 = vpop.f32.mrf.mxu0
      %v957 = vadd.f32 %v312, %v956
      %v958 = vpop.f32.mrf.mxu0
      %959 = vmatprep.mubr.bf16.mxu0 0
      %960 = vmatmul.mubr.bf16.gmra.mxu0 %v681
      %v961 = vpop.f32.mrf.mxu0
      %v962 = vadd.f32 %v312, %v961
      %v963 = vpop.f32.mrf.mxu0
      %v964 = vpop.f32.mrf.mxu0
      %v965 = vadd.f32 %v312, %v964
      %v966 = vpop.f32.mrf.mxu0
      %967 = vmatprep.mubr.bf16.mxu0 0
      %968 = vmatmul.mubr.bf16.gmra.mxu0 %v684
      %v969 = vpop.f32.mrf.mxu0
      %v970 = vadd.f32 %v312, %v969
      %v971 = vpop.f32.mrf.mxu0
      %v972 = vpop.f32.mrf.mxu0
      %v973 = vadd.f32 %v312, %v972
      %v974 = vpop.f32.mrf.mxu0
      %975 = vmatprep.mubr.bf16.mxu0 0
      %976 = vmatmul.mubr.bf16.gmra.mxu0 %v687
      %v977 = vpop.f32.mrf.mxu0
      %v978 = vadd.f32 %v312, %v977
      %v979 = vpop.f32.mrf.mxu0
      %v980 = vpop.f32.mrf.mxu0
      %v981 = vadd.f32 %v312, %v980
      %v982 = vpop.f32.mrf.mxu0
      %983 = vmatprep.mubr.bf16.mxu0 0
      %984 = vmatmul.mubr.bf16.gmra.mxu0 %v690
      %v985 = vpop.f32.mrf.mxu0
      %v986 = vadd.f32 %v312, %v985
      %v987 = vpop.f32.mrf.mxu0
      %v988 = vpop.f32.mrf.mxu0
      %v989 = vadd.f32 %v312, %v988
      %v990 = vpop.f32.mrf.mxu0
      %991 = vmatprep.mubr.bf16.mxu0 0
      %992 = vmatmul.mubr.bf16.gmra.mxu0 %v693
      %v993 = vpop.f32.mrf.mxu0
      %v994 = vadd.f32 %v312, %v993
      %v995 = vpop.f32.mrf.mxu0
      %v996 = vpop.f32.mrf.mxu0
      %v997 = vadd.f32 %v312, %v996
      %v998 = vpop.f32.mrf.mxu0
      %999 = vmatprep.mubr.bf16.mxu0 0
      %1000 = vmatmul.mubr.bf16.gmra.mxu0 %v696
      %v1001 = vpop.f32.mrf.mxu0
      %v1002 = vadd.f32 %v312, %v1001
      %v1003 = vpop.f32.mrf.mxu0
      %v1004 = vpop.f32.mrf.mxu0
      %v1005 = vadd.f32 %v312, %v1004
      %v1006 = vpop.f32.mrf.mxu0
      %1007 = vmatprep.mubr.bf16.mxu0 0
      %1008 = vmatmul.mubr.bf16.gmra.mxu0 %v699
      %v1009 = vpop.f32.mrf.mxu0
      %v1010 = vadd.f32 %v312, %v1009
      %v1011 = vpop.f32.mrf.mxu0
      %v1012 = vpop.f32.mrf.mxu0
      %v1013 = vadd.f32 %v312, %v1012
      %v1014 = vpop.f32.mrf.mxu0
      %1015 = vmatprep.mubr.bf16.mxu0 0
      %1016 = vmatmul.mubr.bf16.gmra.mxu0 %v702
      %v1017 = vpop.f32.mrf.mxu0
      %v1018 = vadd.f32 %v312, %v1017
      %v1019 = vpop.f32.mrf.mxu0
      %v1020 = vpop.f32.mrf.mxu0
      %v1021 = vadd.f32 %v312, %v1020
      %v1022 = vpop.f32.mrf.mxu0
      %1023 = vmatprep.mubr.bf16.mxu0 0
      %1024 = vmatmul.mubr.bf16.gmra.mxu0 %v705
      %v1025 = vpop.f32.mrf.mxu0
      %v1026 = vadd.f32 %v312, %v1025
      %v1027 = vpop.f32.mrf.mxu0
      %v1028 = vpop.f32.mrf.mxu0
      %v1029 = vadd.f32 %v312, %v1028
      %v1030 = vpop.f32.mrf.mxu0
      %1031 = vmatprep.mubr.bf16.mxu0 0
      %1032 = vmatmul.mubr.bf16.gmra.mxu0 %v708
      %v1033 = vpop.f32.mrf.mxu0
      %v1034 = vadd.f32 %v312, %v1033
      %v1035 = vpop.f32.mrf.mxu0
      %v1036 = vpop.f32.mrf.mxu0
      %v1037 = vadd.f32 %v312, %v1036
      %v1038 = vpop.f32.mrf.mxu0
      %1039 = vmatprep.mubr.bf16.mxu0 0
      %1040 = vmatmul.mubr.bf16.gmra.mxu0 %v711
      %v1041 = vpop.f32.mrf.mxu0
      %v1042 = vadd.f32 %v312, %v1041
      %v1043 = vpop.f32.mrf.mxu0
      %v1044 = vpop.f32.mrf.mxu0
      %v1045 = vadd.f32 %v312, %v1044
      %v1046 = vpop.f32.mrf.mxu0
      %1047 = vmatprep.mubr.bf16.mxu0 0
      %1048 = vmatmul.mubr.bf16.gmra.mxu0 %v714
      %v1049 = vpop.f32.mrf.mxu0
      %v1050 = vadd.f32 %v312, %v1049
      %v1051 = vpop.f32.mrf.mxu0
      %v1052 = vpop.f32.mrf.mxu0
      %v1053 = vadd.f32 %v312, %v1052
      %v1054 = vpop.f32.mrf.mxu0
      %1055 = vmatprep.mubr.bf16.mxu0 0
      %1056 = vmatmul.mubr.bf16.gmra.mxu0 %v717
      %v1057 = vpop.f32.mrf.mxu0
      %v1058 = vadd.f32 %v312, %v1057
      %v1059 = vpop.f32.mrf.mxu0
      %v1060 = vpop.f32.mrf.mxu0
      %v1061 = vadd.f32 %v312, %v1060
      %v1062 = vpop.f32.mrf.mxu0
      %1063 = vmatprep.mubr.bf16.mxu0 0
      %1064 = vmatmul.mubr.bf16.gmra.mxu0 %v720
      %v1065 = vpop.f32.mrf.mxu0
      %v1066 = vadd.f32 %v312, %v1065
      %v1067 = vpop.f32.mrf.mxu0
      %v1068 = vpop.f32.mrf.mxu0
      %v1069 = vadd.f32 %v312, %v1068
      %v1070 = vpop.f32.mrf.mxu0
      %1071 = vmatprep.mubr.bf16.mxu0 0
      %1072 = vmatmul.mubr.bf16.gmra.mxu0 %v723
      %v1073 = vpop.f32.mrf.mxu0
      %v1074 = vadd.f32 %v312, %v1073
      %v1075 = vpop.f32.mrf.mxu0
      %v1076 = vpop.f32.mrf.mxu0
      %v1077 = vadd.f32 %v312, %v1076
      %v1078 = vpop.f32.mrf.mxu0
      %1079 = vmatprep.mubr.bf16.mxu0 0
      %1080 = vmatmul.mubr.bf16.gmra.mxu0 %v726
      %v1081 = vpop.f32.mrf.mxu0
      %v1082 = vadd.f32 %v312, %v1081
      %v1083 = vpop.f32.mrf.mxu0
      %v1084 = vpop.f32.mrf.mxu0
      %v1085 = vadd.f32 %v312, %v1084
      %v1086 = vpop.f32.mrf.mxu0
      %1087 = vmatprep.mubr.bf16.mxu0 0
      %1088 = vmatmul.mubr.bf16.gmra.mxu0 %v729
      %v1089 = vpop.f32.mrf.mxu0
      %v1090 = vadd.f32 %v312, %v1089
      %v1091 = vpop.f32.mrf.mxu0
      %v1092 = vpop.f32.mrf.mxu0
      %v1093 = vadd.f32 %v312, %v1092
      %v1094 = vpop.f32.mrf.mxu0
      %1095 = vmatprep.mubr.bf16.mxu0 0
      %1096 = vmatmul.mubr.bf16.gmra.mxu0 %v732
      %v1097 = vpop.f32.mrf.mxu0
      %v1098 = vadd.f32 %v312, %v1097
      %v1099 = vpop.f32.mrf.mxu0
      %v1100 = vpop.f32.mrf.mxu0
      %v1101 = vadd.f32 %v312, %v1100
      %v1102 = vpop.f32.mrf.mxu0
      %1103 = vmatprep.mubr.bf16.mxu0 0
      %1104 = vmatmul.mubr.bf16.gmra.mxu0 %v735
      %v1105 = vpop.f32.mrf.mxu0
      %v1106 = vadd.f32 %v312, %v1105
      %v1107 = vpop.f32.mrf.mxu0
      %v1108 = vpop.f32.mrf.mxu0
      %v1109 = vadd.f32 %v312, %v1108
      %v1110 = vpop.f32.mrf.mxu0
      %1111 = vmatprep.mubr.bf16.mxu0 0
      %1112 = vmatmul.mubr.bf16.gmra.mxu0 %v738
      %v1113 = vpop.f32.mrf.mxu0
      %v1114 = vadd.f32 %v312, %v1113
      %v1115 = vpop.f32.mrf.mxu0
      %v1116 = vpop.f32.mrf.mxu0
      %v1117 = vadd.f32 %v312, %v1116
      %v1118 = vpop.f32.mrf.mxu0
      %1119 = vmatprep.mubr.bf16.mxu0 0
      %1120 = vmatmul.mubr.bf16.gmra.mxu0 %v741
      %v1121 = vpop.f32.mrf.mxu0
      %v1122 = vadd.f32 %v312, %v1121
      %v1123 = vpop.f32.mrf.mxu0
      %v1124 = vpop.f32.mrf.mxu0
      %v1125 = vadd.f32 %v312, %v1124
      %v1126 = vpop.f32.mrf.mxu0
      %1127 = vmatprep.mubr.bf16.mxu0 0
      %1128 = vmatmul.mubr.bf16.gmra.mxu0 %v744
      %v1129 = vpop.f32.mrf.mxu0
      %v1130 = vadd.f32 %v312, %v1129
      %v1131 = vpop.f32.mrf.mxu0
      %v1132 = vpop.f32.mrf.mxu0
      %v1133 = vadd.f32 %v312, %v1132
      %v1134 = vpop.f32.mrf.mxu0
      %1135 = vmatprep.mubr.bf16.mxu0 0
      %1136 = vmatmul.mubr.bf16.gmra.mxu0 %v747
      %v1137 = vpop.f32.mrf.mxu0
      %v1138 = vadd.f32 %v312, %v1137
      %v1139 = vpop.f32.mrf.mxu0
      %v1140 = vpop.f32.mrf.mxu0
      %v1141 = vadd.f32 %v312, %v1140
      %v1142 = vpop.f32.mrf.mxu0
      %1143 = vmatprep.mubr.bf16.mxu0 0
      %1144 = vmatmul.mubr.bf16.gmra.mxu0 %v750
      %v1145 = vpop.f32.mrf.mxu0
      %v1146 = vadd.f32 %v312, %v1145
      %v1147 = vpop.f32.mrf.mxu0
      %v1148 = vpop.f32.mrf.mxu0
      %v1149 = vadd.f32 %v312, %v1148
      %v1150 = vpop.f32.mrf.mxu0
      %1151 = vmatprep.mubr.bf16.mxu0 0
      %1152 = vmatmul.mubr.bf16.gmra.mxu0 %v753
      %v1153 = vpop.f32.mrf.mxu0
      %v1154 = vadd.f32 %v312, %v1153
      %v1155 = vpop.f32.mrf.mxu0
      %v1156 = vpop.f32.mrf.mxu0
      %v1157 = vadd.f32 %v312, %v1156
      %v1158 = vpop.f32.mrf.mxu0
      %1159 = vmatprep.mubr.bf16.mxu0 0
      %1160 = vmatmul.mubr.bf16.gmra.mxu0 %v756
      %v1161 = vpop.f32.mrf.mxu0
      %v1162 = vadd.f32 %v312, %v1161
      %v1163 = vpop.f32.mrf.mxu0
      %v1164 = vpop.f32.mrf.mxu0
      %v1165 = vadd.f32 %v312, %v1164
      %v1166 = vpop.f32.mrf.mxu0
      %1167 = vmatprep.mubr.bf16.mxu0 0
      %1168 = vmatmul.mubr.bf16.gmra.mxu0 %v759
      %v1169 = vpop.f32.mrf.mxu0
      %v1170 = vadd.f32 %v312, %v1169
      %v1171 = vpop.f32.mrf.mxu0
      %v1172 = vpop.f32.mrf.mxu0
      %v1173 = vadd.f32 %v312, %v1172
      %v1174 = vpop.f32.mrf.mxu0
      %1175 = vmatprep.mubr.bf16.mxu0 0
      %1176 = vmatmul.mubr.bf16.gmra.mxu0 %v762
      %v1177 = vpop.f32.mrf.mxu0
      %v1178 = vadd.f32 %v312, %v1177
      %v1179 = vpop.f32.mrf.mxu0
      %v1180 = vpop.f32.mrf.mxu0
      %v1181 = vadd.f32 %v312, %v1180
      %v1182 = vpop.f32.mrf.mxu0
      %1183 = vmatprep.mubr.bf16.mxu0 0
      %1184 = vmatmul.mubr.bf16.gmra.mxu0 %v765
      %v1185 = vpop.f32.mrf.mxu0
      %v1186 = vadd.f32 %v312, %v1185
      %v1187 = vpop.f32.mrf.mxu0
      %v1188 = vpop.f32.mrf.mxu0
      %v1189 = vadd.f32 %v312, %v1188
      %v1190 = vpop.f32.mrf.mxu0
      %1191 = vmatprep.mubr.bf16.mxu0 0
      %1192 = vmatmul.mubr.bf16.gmra.mxu0 %v768
      %v1193 = vpop.f32.mrf.mxu0
      %v1194 = vadd.f32 %v312, %v1193
      %v1195 = vpop.f32.mrf.mxu0
      %v1196 = vpop.f32.mrf.mxu0
      %v1197 = vadd.f32 %v312, %v1196
      %v1198 = vpop.f32.mrf.mxu0
      %1199 = vmatprep.mubr.bf16.mxu0 0
      %1200 = vmatmul.mubr.bf16.gmra.mxu0 %v771
      %v1201 = vpop.f32.mrf.mxu0
      %v1202 = vadd.f32 %v312, %v1201
      %v1203 = vpop.f32.mrf.mxu0
      %v1204 = vpop.f32.mrf.mxu0
      %v1205 = vadd.f32 %v312, %v1204
      %v1206 = vpop.f32.mrf.mxu0
      %1207 = vmatprep.mubr.bf16.mxu0 0
      %1208 = vmatmul.mubr.bf16.gmra.mxu0 %v774
      %v1209 = vpop.f32.mrf.mxu0
      %v1210 = vadd.f32 %v312, %v1209
      %v1211 = vpop.f32.mrf.mxu0
      %v1212 = vpop.f32.mrf.mxu0
      %v1213 = vadd.f32 %v312, %v1212
      %v1214 = vpop.f32.mrf.mxu0
      %1215 = vmatprep.mubr.bf16.mxu0 0
      %1216 = vmatmul.mubr.bf16.gmra.mxu0 %v777
      %v1217 = vpop.f32.mrf.mxu0
      %v1218 = vadd.f32 %v312, %v1217
      %v1219 = vpop.f32.mrf.mxu0
      %v1220 = vpop.f32.mrf.mxu0
      %v1221 = vadd.f32 %v312, %v1220
      %v1222 = vpop.f32.mrf.mxu0
      %1223 = vmatprep.mubr.bf16.mxu0 0
      %1224 = vmatmul.mubr.bf16.gmra.mxu0 %v780
      %v1225 = vpop.f32.mrf.mxu0
      %v1226 = vadd.f32 %v312, %v1225
      %v1227 = vpop.f32.mrf.mxu0
      %v1228 = vpop.f32.mrf.mxu0
      %v1229 = vadd.f32 %v312, %v1228
      %v1230 = vpop.f32.mrf.mxu0
      %1231 = vmatprep.mubr.bf16.mxu0 0
      %1232 = vmatmul.mubr.bf16.gmra.mxu0 %v783
      %v1233 = vpop.f32.mrf.mxu0
      %v1234 = vadd.f32 %v312, %v1233
      %v1235 = vpop.f32.mrf.mxu0
      %v1236 = vpop.f32.mrf.mxu0
      %v1237 = vadd.f32 %v312, %v1236
      %v1238 = vpop.f32.mrf.mxu0
      %1239 = vmatprep.mubr.bf16.mxu0 0
      %1240 = vmatmul.mubr.bf16.gmra.mxu0 %v786
      %v1241 = vpop.f32.mrf.mxu0
      %v1242 = vadd.f32 %v312, %v1241
      %v1243 = vpop.f32.mrf.mxu0
      %v1244 = vpop.f32.mrf.mxu0
      %v1245 = vadd.f32 %v312, %v1244
      %v1246 = vpop.f32.mrf.mxu0
      %1247 = vmatprep.mubr.bf16.mxu0 0
      %1248 = vmatmul.mubr.bf16.gmra.mxu0 %v789
      %v1249 = vpop.f32.mrf.mxu0
      %v1250 = vadd.f32 %v312, %v1249
      %v1251 = vpop.f32.mrf.mxu0
      %v1252 = vpop.f32.mrf.mxu0
      %v1253 = vadd.f32 %v312, %v1252
      %v1254 = vpop.f32.mrf.mxu0
      %1255 = vmatprep.mubr.bf16.mxu0 0
      %1256 = vmatmul.mubr.bf16.gmra.mxu0 %v792
      %v1257 = vpop.f32.mrf.mxu0
      %v1258 = vadd.f32 %v312, %v1257
      %v1259 = vpop.f32.mrf.mxu0
      %v1260 = vpop.f32.mrf.mxu0
      %v1261 = vadd.f32 %v312, %v1260
      %v1262 = vpop.f32.mrf.mxu0
      %1263 = vmatprep.mubr.bf16.mxu0 0
      %1264 = vmatmul.mubr.bf16.gmra.mxu0 %v795
      %v1265 = vpop.f32.mrf.mxu0
      %v1266 = vadd.f32 %v312, %v1265
      %v1267 = vpop.f32.mrf.mxu0
      %v1268 = vpop.f32.mrf.mxu0
      %v1269 = vadd.f32 %v312, %v1268
      %v1270 = vpop.f32.mrf.mxu0
      %1271 = vmatprep.mubr.bf16.mxu0 0
      %1272 = vmatmul.mubr.bf16.gmra.mxu0 %v798
      %v1273 = vpop.f32.mrf.mxu0
      %v1274 = vadd.f32 %v312, %v1273
      %v1275 = vpop.f32.mrf.mxu0
      %v1276 = vpop.f32.mrf.mxu0
      %v1277 = vadd.f32 %v312, %v1276
      %v1278 = vpop.f32.mrf.mxu0
      %1279 = vmatprep.mubr.bf16.mxu0 0
      %1280 = vmatmul.mubr.bf16.gmra.mxu0 %v801
      %v1281 = vpop.f32.mrf.mxu0
      %v1282 = vadd.f32 %v312, %v1281
      %v1283 = vpop.f32.mrf.mxu0
      %v1284 = vpop.f32.mrf.mxu0
      %v1285 = vadd.f32 %v312, %v1284
      %v1286 = vpop.f32.mrf.mxu0
      %1287 = vmatprep.mubr.bf16.mxu0 0
      %1288 = vmatmul.mubr.bf16.gmra.mxu0 %v804
      %v1289 = vpop.f32.mrf.mxu0
      %v1290 = vadd.f32 %v312, %v1289
      %v1291 = vpop.f32.mrf.mxu0
      %v1292 = vpop.f32.mrf.mxu0
      %v1293 = vadd.f32 %v312, %v1292
      %v1294 = vpop.f32.mrf.mxu0
      %1295 = vmatprep.mubr.bf16.mxu0 0
      %1296 = vmatmul.mubr.bf16.gmra.mxu0 %v807
      %v1297 = vpop.f32.mrf.mxu0
      %v1298 = vadd.f32 %v312, %v1297
      %v1299 = vpop.f32.mrf.mxu0
      %v1300 = vpop.f32.mrf.mxu0
      %v1301 = vadd.f32 %v312, %v1300
      %v1302 = vpop.f32.mrf.mxu0
      %1303 = vmatprep.mubr.bf16.mxu0 0
      %1304 = vmatmul.mubr.bf16.gmra.mxu0 %v810
      %v1305 = vpop.f32.mrf.mxu0
      %v1306 = vadd.f32 %v312, %v1305
      %v1307 = vpop.f32.mrf.mxu0
      %v1308 = vpop.f32.mrf.mxu0
      %v1309 = vadd.f32 %v312, %v1308
      %v1310 = vpop.f32.mrf.mxu0
      %1311 = vmatprep.mubr.bf16.mxu0 0
      %1312 = vmatmul.mubr.bf16.gmra.mxu0 %v813
      %v1313 = vpop.f32.mrf.mxu0
      %v1314 = vadd.f32 %v312, %v1313
      %v1315 = vpop.f32.mrf.mxu0
      %v1316 = vpop.f32.mrf.mxu0
      %v1317 = vadd.f32 %v312, %v1316
      %v1318 = vpop.f32.mrf.mxu0
      %1319 = vmatprep.mubr.bf16.mxu0 0
      %1320 = vmatmul.mubr.bf16.gmra.mxu0 %v816
      %v1321 = vpop.f32.mrf.mxu0
      %v1322 = vadd.f32 %v312, %v1321
      %v1323 = vpop.f32.mrf.mxu0
      %v1324 = vpop.f32.mrf.mxu0
      %v1325 = vadd.f32 %v312, %v1324
      %v1326 = vpop.f32.mrf.mxu0
      %1327 = vmatprep.mubr.bf16.mxu0 0
      %1328 = vmatmul.mubr.bf16.gmra.mxu0 %v819
      %v1329 = vpop.f32.mrf.mxu0
      %v1330 = vadd.f32 %v312, %v1329
      %v1331 = vpop.f32.mrf.mxu0
      %v1332 = vpop.f32.mrf.mxu0
      %v1333 = vadd.f32 %v312, %v1332
      %v1334 = vpop.f32.mrf.mxu0
      %1335 = vmatprep.mubr.bf16.mxu0 0
      %1336 = vmatmul.mubr.bf16.gmra.mxu0 %v822
      %v1337 = vpop.f32.mrf.mxu0
      %v1338 = vadd.f32 %v312, %v1337
      %v1339 = vpop.f32.mrf.mxu0
      %v1340 = vpop.f32.mrf.mxu0
      %v1341 = vadd.f32 %v312, %v1340
      %v1342 = vpop.f32.mrf.mxu0
      %1343 = vmatprep.mubr.bf16.mxu0 0
      %1344 = vmatmul.mubr.bf16.gmra.mxu0 %v825
      %v1345 = vpop.f32.mrf.mxu0
      %v1346 = vadd.f32 %v312, %v1345
      %v1347 = vpop.f32.mrf.mxu0
      %v1348 = vpop.f32.mrf.mxu0
      %v1349 = vadd.f32 %v312, %v1348
      %v1350 = vpop.f32.mrf.mxu0
      %1351 = vmatprep.mubr.bf16.mxu0 0
      %1352 = vmatmul.mubr.bf16.gmra.mxu0 %v828
      %v1353 = vpop.f32.mrf.mxu0
      %v1354 = vadd.f32 %v312, %v1353
      %v1355 = vpop.f32.mrf.mxu0
      %v1356 = vpop.f32.mrf.mxu0
      %v1357 = vadd.f32 %v312, %v1356
      %v1358 = vpop.f32.mrf.mxu0
      %1359 = vmatprep.mubr.bf16.mxu0 0
      %1360 = vmatmul.mubr.bf16.gmra.mxu0 %v831
      %v1361 = vpop.f32.mrf.mxu0
      %v1362 = vadd.f32 %v312, %v1361
      %v1363 = vpop.f32.mrf.mxu0
      %v1364 = vpop.f32.mrf.mxu0
      %v1365 = vadd.f32 %v312, %v1364
      %v1366 = vpop.f32.mrf.mxu0
      %1367 = vmatprep.mubr.bf16.mxu0 0
      %1368 = vmatmul.mubr.bf16.gmra.mxu0 %v834
      %v1369 = vpop.f32.mrf.mxu0
      %v1370 = vadd.f32 %v312, %v1369
      %v1371 = vpop.f32.mrf.mxu0
      %v1372 = vpop.f32.mrf.mxu0
      %v1373 = vadd.f32 %v312, %v1372
      %v1374 = vpop.f32.mrf.mxu0
      %1375 = vmatprep.mubr.bf16.mxu0 0
      %1376 = vmatmul.mubr.bf16.gmra.mxu0 %v837
      %v1377 = vpop.f32.mrf.mxu0
      %v1378 = vadd.f32 %v312, %v1377
      %v1379 = vpop.f32.mrf.mxu0
      %v1380 = vpop.f32.mrf.mxu0
      %v1381 = vadd.f32 %v312, %v1380
      %v1382 = vpop.f32.mrf.mxu0
      %1383 = vdwg.mxu0
      %vm1384 = vcmp.gt.f32.partialorder %v874, 0.0
      %vm1385 = vcmp.gt.f32.partialorder %v877, 0.0
      %vm1386 = vcmp.gt.f32.partialorder %v882, 0.0
      %vm1387 = vcmp.gt.f32.partialorder %v885, 0.0
      %vm1388 = vcmp.gt.f32.partialorder %v890, 0.0
      %vm1389 = vcmp.gt.f32.partialorder %v893, 0.0
      %vm1390 = vcmp.gt.f32.partialorder %v898, 0.0
      %vm1391 = vcmp.gt.f32.partialorder %v901, 0.0
      %vm1392 = vcmp.gt.f32.partialorder %v906, 0.0
      %vm1393 = vcmp.gt.f32.partialorder %v909, 0.0
      %vm1394 = vcmp.gt.f32.partialorder %v914, 0.0
      %vm1395 = vcmp.gt.f32.partialorder %v917, 0.0
      %vm1396 = vcmp.gt.f32.partialorder %v922, 0.0
      %vm1397 = vcmp.gt.f32.partialorder %v925, 0.0
      %vm1398 = vcmp.gt.f32.partialorder %v930, 0.0
      %vm1399 = vcmp.gt.f32.partialorder %v933, 0.0
      %vm1400 = vcmp.gt.f32.partialorder %v938, 0.0
      %vm1401 = vcmp.gt.f32.partialorder %v941, 0.0
      %vm1402 = vcmp.gt.f32.partialorder %v946, 0.0
      %vm1403 = vcmp.gt.f32.partialorder %v949, 0.0
      %vm1404 = vcmp.gt.f32.partialorder %v954, 0.0
      %vm1405 = vcmp.gt.f32.partialorder %v957, 0.0
      %vm1406 = vcmp.gt.f32.partialorder %v962, 0.0
      %vm1407 = vcmp.gt.f32.partialorder %v965, 0.0
      %vm1408 = vcmp.gt.f32.partialorder %v970, 0.0
      %vm1409 = vcmp.gt.f32.partialorder %v973, 0.0
      %vm1410 = vcmp.gt.f32.partialorder %v978, 0.0
      %vm1411 = vcmp.gt.f32.partialorder %v981, 0.0
      %vm1412 = vcmp.gt.f32.partialorder %v986, 0.0
      %vm1413 = vcmp.gt.f32.partialorder %v989, 0.0
      %vm1414 = vcmp.gt.f32.partialorder %v994, 0.0
      %vm1415 = vcmp.gt.f32.partialorder %v997, 0.0
      %vm1416 = vcmp.gt.f32.partialorder %v1002, 0.0
      %vm1417 = vcmp.gt.f32.partialorder %v1005, 0.0
      %vm1418 = vcmp.gt.f32.partialorder %v1010, 0.0
      %vm1419 = vcmp.gt.f32.partialorder %v1013, 0.0
      %vm1420 = vcmp.gt.f32.partialorder %v1018, 0.0
      %vm1421 = vcmp.gt.f32.partialorder %v1021, 0.0
      %vm1422 = vcmp.gt.f32.partialorder %v1026, 0.0
      %vm1423 = vcmp.gt.f32.partialorder %v1029, 0.0
      %vm1424 = vcmp.gt.f32.partialorder %v1034, 0.0
      %vm1425 = vcmp.gt.f32.partialorder %v1037, 0.0
      %vm1426 = vcmp.gt.f32.partialorder %v1042, 0.0
      %vm1427 = vcmp.gt.f32.partialorder %v1045, 0.0
      %vm1428 = vcmp.gt.f32.partialorder %v1050, 0.0
      %vm1429 = vcmp.gt.f32.partialorder %v1053, 0.0
      %vm1430 = vcmp.gt.f32.partialorder %v1058, 0.0
      %vm1431 = vcmp.gt.f32.partialorder %v1061, 0.0
      %vm1432 = vcmp.gt.f32.partialorder %v1066, 0.0
      %vm1433 = vcmp.gt.f32.partialorder %v1069, 0.0
      %vm1434 = vcmp.gt.f32.partialorder %v1074, 0.0
      %vm1435 = vcmp.gt.f32.partialorder %v1077, 0.0
      %vm1436 = vcmp.gt.f32.partialorder %v1082, 0.0
      %vm1437 = vcmp.gt.f32.partialorder %v1085, 0.0
      %vm1438 = vcmp.gt.f32.partialorder %v1090, 0.0
      %vm1439 = vcmp.gt.f32.partialorder %v1093, 0.0
      %vm1440 = vcmp.gt.f32.partialorder %v1098, 0.0
      %vm1441 = vcmp.gt.f32.partialorder %v1101, 0.0
      %vm1442 = vcmp.gt.f32.partialorder %v1106, 0.0
      %vm1443 = vcmp.gt.f32.partialorder %v1109, 0.0
      %vm1444 = vcmp.gt.f32.partialorder %v1114, 0.0
      %vm1445 = vcmp.gt.f32.partialorder %v1117, 0.0
      %vm1446 = vcmp.gt.f32.partialorder %v1122, 0.0
      %vm1447 = vcmp.gt.f32.partialorder %v1125, 0.0
      %vm1448 = vcmp.gt.f32.partialorder %v1130, 0.0
      %vm1449 = vcmp.gt.f32.partialorder %v1133, 0.0
      %vm1450 = vcmp.gt.f32.partialorder %v1138, 0.0
      %vm1451 = vcmp.gt.f32.partialorder %v1141, 0.0
      %vm1452 = vcmp.gt.f32.partialorder %v1146, 0.0
      %vm1453 = vcmp.gt.f32.partialorder %v1149, 0.0
      %vm1454 = vcmp.gt.f32.partialorder %v1154, 0.0
      %vm1455 = vcmp.gt.f32.partialorder %v1157, 0.0
      %vm1456 = vcmp.gt.f32.partialorder %v1162, 0.0
      %vm1457 = vcmp.gt.f32.partialorder %v1165, 0.0
      %vm1458 = vcmp.gt.f32.partialorder %v1170, 0.0
      %vm1459 = vcmp.gt.f32.partialorder %v1173, 0.0
      %vm1460 = vcmp.gt.f32.partialorder %v1178, 0.0
      %vm1461 = vcmp.gt.f32.partialorder %v1181, 0.0
      %vm1462 = vcmp.gt.f32.partialorder %v1186, 0.0
      %vm1463 = vcmp.gt.f32.partialorder %v1189, 0.0
      %vm1464 = vcmp.gt.f32.partialorder %v1194, 0.0
      %vm1465 = vcmp.gt.f32.partialorder %v1197, 0.0
      %vm1466 = vcmp.gt.f32.partialorder %v1202, 0.0
      %vm1467 = vcmp.gt.f32.partialorder %v1205, 0.0
      %vm1468 = vcmp.gt.f32.partialorder %v1210, 0.0
      %vm1469 = vcmp.gt.f32.partialorder %v1213, 0.0
      %vm1470 = vcmp.gt.f32.partialorder %v1218, 0.0
      %vm1471 = vcmp.gt.f32.partialorder %v1221, 0.0
      %vm1472 = vcmp.gt.f32.partialorder %v1226, 0.0
      %vm1473 = vcmp.gt.f32.partialorder %v1229, 0.0
      %vm1474 = vcmp.gt.f32.partialorder %v1234, 0.0
      %vm1475 = vcmp.gt.f32.partialorder %v1237, 0.0
      %vm1476 = vcmp.gt.f32.partialorder %v1242, 0.0
      %vm1477 = vcmp.gt.f32.partialorder %v1245, 0.0
      %vm1478 = vcmp.gt.f32.partialorder %v1250, 0.0
      %vm1479 = vcmp.gt.f32.partialorder %v1253, 0.0
      %vm1480 = vcmp.gt.f32.partialorder %v1258, 0.0
      %vm1481 = vcmp.gt.f32.partialorder %v1261, 0.0
      %vm1482 = vcmp.gt.f32.partialorder %v1266, 0.0
      %vm1483 = vcmp.gt.f32.partialorder %v1269, 0.0
      %vm1484 = vcmp.gt.f32.partialorder %v1274, 0.0
      %vm1485 = vcmp.gt.f32.partialorder %v1277, 0.0
      %vm1486 = vcmp.gt.f32.partialorder %v1282, 0.0
      %vm1487 = vcmp.gt.f32.partialorder %v1285, 0.0
      %vm1488 = vcmp.gt.f32.partialorder %v1290, 0.0
      %vm1489 = vcmp.gt.f32.partialorder %v1293, 0.0
      %vm1490 = vcmp.gt.f32.partialorder %v1298, 0.0
      %vm1491 = vcmp.gt.f32.partialorder %v1301, 0.0
      %vm1492 = vcmp.gt.f32.partialorder %v1306, 0.0
      %vm1493 = vcmp.gt.f32.partialorder %v1309, 0.0
      %vm1494 = vcmp.gt.f32.partialorder %v1314, 0.0
      %vm1495 = vcmp.gt.f32.partialorder %v1317, 0.0
      %vm1496 = vcmp.gt.f32.partialorder %v1322, 0.0
      %vm1497 = vcmp.gt.f32.partialorder %v1325, 0.0
      %vm1498 = vcmp.gt.f32.partialorder %v1330, 0.0
      %vm1499 = vcmp.gt.f32.partialorder %v1333, 0.0
      %vm1500 = vcmp.gt.f32.partialorder %v1338, 0.0
      %vm1501 = vcmp.gt.f32.partialorder %v1341, 0.0
      %vm1502 = vcmp.gt.f32.partialorder %v1346, 0.0
      %vm1503 = vcmp.gt.f32.partialorder %v1349, 0.0
      %vm1504 = vcmp.gt.f32.partialorder %v1354, 0.0
      %vm1505 = vcmp.gt.f32.partialorder %v1357, 0.0
      %vm1506 = vcmp.gt.f32.partialorder %v1362, 0.0
      %vm1507 = vcmp.gt.f32.partialorder %v1365, 0.0
      %vm1508 = vcmp.gt.f32.partialorder %v1370, 0.0
      %vm1509 = vcmp.gt.f32.partialorder %v1373, 0.0
      %vm1510 = vcmp.gt.f32.partialorder %v1378, 0.0
      %vm1511 = vcmp.gt.f32.partialorder %v1381, 0.0
      %v1512 = vmul.f32 %v874, 0.2
      %v1513 = vmul.f32 %v877, 0.2
      %v1514 = vmul.f32 %v882, 0.2
      %v1515 = vmul.f32 %v885, 0.2
      %v1516 = vmul.f32 %v890, 0.2
      %v1517 = vmul.f32 %v893, 0.2
      %v1518 = vmul.f32 %v898, 0.2
      %v1519 = vmul.f32 %v901, 0.2
      %v1520 = vmul.f32 %v906, 0.2
      %v1521 = vmul.f32 %v909, 0.2
      %v1522 = vmul.f32 %v914, 0.2
      %v1523 = vmul.f32 %v917, 0.2
      %v1524 = vmul.f32 %v922, 0.2
      %v1525 = vmul.f32 %v925, 0.2
      %v1526 = vmul.f32 %v930, 0.2
      %v1527 = vmul.f32 %v933, 0.2
      %v1528 = vmul.f32 %v938, 0.2
      %v1529 = vmul.f32 %v941, 0.2
      %v1530 = vmul.f32 %v946, 0.2
      %v1531 = vmul.f32 %v949, 0.2
      %v1532 = vmul.f32 %v954, 0.2
      %v1533 = vmul.f32 %v957, 0.2
      %v1534 = vmul.f32 %v962, 0.2
      %v1535 = vmul.f32 %v965, 0.2
      %v1536 = vmul.f32 %v970, 0.2
      %v1537 = vmul.f32 %v973, 0.2
      %v1538 = vmul.f32 %v978, 0.2
      %v1539 = vmul.f32 %v981, 0.2
      %v1540 = vmul.f32 %v986, 0.2
      %v1541 = vmul.f32 %v989, 0.2
      %v1542 = vmul.f32 %v994, 0.2
      %v1543 = vmul.f32 %v997, 0.2
      %v1544 = vmul.f32 %v1002, 0.2
      %v1545 = vmul.f32 %v1005, 0.2
      %v1546 = vmul.f32 %v1010, 0.2
      %v1547 = vmul.f32 %v1013, 0.2
      %v1548 = vmul.f32 %v1018, 0.2
      %v1549 = vmul.f32 %v1021, 0.2
      %v1550 = vmul.f32 %v1026, 0.2
      %v1551 = vmul.f32 %v1029, 0.2
      %v1552 = vmul.f32 %v1034, 0.2
      %v1553 = vmul.f32 %v1037, 0.2
      %v1554 = vmul.f32 %v1042, 0.2
      %v1555 = vmul.f32 %v1045, 0.2
      %v1556 = vmul.f32 %v1050, 0.2
      %v1557 = vmul.f32 %v1053, 0.2
      %v1558 = vmul.f32 %v1058, 0.2
      %v1559 = vmul.f32 %v1061, 0.2
      %v1560 = vmul.f32 %v1066, 0.2
      %v1561 = vmul.f32 %v1069, 0.2
      %v1562 = vmul.f32 %v1074, 0.2
      %v1563 = vmul.f32 %v1077, 0.2
      %v1564 = vmul.f32 %v1082, 0.2
      %v1565 = vmul.f32 %v1085, 0.2
      %v1566 = vmul.f32 %v1090, 0.2
      %v1567 = vmul.f32 %v1093, 0.2
      %v1568 = vmul.f32 %v1098, 0.2
      %v1569 = vmul.f32 %v1101, 0.2
      %v1570 = vmul.f32 %v1106, 0.2
      %v1571 = vmul.f32 %v1109, 0.2
      %v1572 = vmul.f32 %v1114, 0.2
      %v1573 = vmul.f32 %v1117, 0.2
      %v1574 = vmul.f32 %v1122, 0.2
      %v1575 = vmul.f32 %v1125, 0.2
      %v1576 = vmul.f32 %v1130, 0.2
      %v1577 = vmul.f32 %v1133, 0.2
      %v1578 = vmul.f32 %v1138, 0.2
      %v1579 = vmul.f32 %v1141, 0.2
      %v1580 = vmul.f32 %v1146, 0.2
      %v1581 = vmul.f32 %v1149, 0.2
      %v1582 = vmul.f32 %v1154, 0.2
      %v1583 = vmul.f32 %v1157, 0.2
      %v1584 = vmul.f32 %v1162, 0.2
      %v1585 = vmul.f32 %v1165, 0.2
      %v1586 = vmul.f32 %v1170, 0.2
      %v1587 = vmul.f32 %v1173, 0.2
      %v1588 = vmul.f32 %v1178, 0.2
      %v1589 = vmul.f32 %v1181, 0.2
      %v1590 = vmul.f32 %v1186, 0.2
      %v1591 = vmul.f32 %v1189, 0.2
      %v1592 = vmul.f32 %v1194, 0.2
      %v1593 = vmul.f32 %v1197, 0.2
      %v1594 = vmul.f32 %v1202, 0.2
      %v1595 = vmul.f32 %v1205, 0.2
      %v1596 = vmul.f32 %v1210, 0.2
      %v1597 = vmul.f32 %v1213, 0.2
      %v1598 = vmul.f32 %v1218, 0.2
      %v1599 = vmul.f32 %v1221, 0.2
      %v1600 = vmul.f32 %v1226, 0.2
      %v1601 = vmul.f32 %v1229, 0.2
      %v1602 = vmul.f32 %v1234, 0.2
      %v1603 = vmul.f32 %v1237, 0.2
      %v1604 = vmul.f32 %v1242, 0.2
      %v1605 = vmul.f32 %v1245, 0.2
      %v1606 = vmul.f32 %v1250, 0.2
      %v1607 = vmul.f32 %v1253, 0.2
      %v1608 = vmul.f32 %v1258, 0.2
      %v1609 = vmul.f32 %v1261, 0.2
      %v1610 = vmul.f32 %v1266, 0.2
      %v1611 = vmul.f32 %v1269, 0.2
      %v1612 = vmul.f32 %v1274, 0.2
      %v1613 = vmul.f32 %v1277, 0.2
      %v1614 = vmul.f32 %v1282, 0.2
      %v1615 = vmul.f32 %v1285, 0.2
      %v1616 = vmul.f32 %v1290, 0.2
      %v1617 = vmul.f32 %v1293, 0.2
      %v1618 = vmul.f32 %v1298, 0.2
      %v1619 = vmul.f32 %v1301, 0.2
      %v1620 = vmul.f32 %v1306, 0.2
      %v1621 = vmul.f32 %v1309, 0.2
      %v1622 = vmul.f32 %v1314, 0.2
      %v1623 = vmul.f32 %v1317, 0.2
      %v1624 = vmul.f32 %v1322, 0.2
      %v1625 = vmul.f32 %v1325, 0.2
      %v1626 = vmul.f32 %v1330, 0.2
      %v1627 = vmul.f32 %v1333, 0.2
      %v1628 = vmul.f32 %v1338, 0.2
      %v1629 = vmul.f32 %v1341, 0.2
      %v1630 = vmul.f32 %v1346, 0.2
      %v1631 = vmul.f32 %v1349, 0.2
      %v1632 = vmul.f32 %v1354, 0.2
      %v1633 = vmul.f32 %v1357, 0.2
      %v1634 = vmul.f32 %v1362, 0.2
      %v1635 = vmul.f32 %v1365, 0.2
      %v1636 = vmul.f32 %v1370, 0.2
      %v1637 = vmul.f32 %v1373, 0.2
      %v1638 = vmul.f32 %v1378, 0.2
      %v1639 = vmul.f32 %v1381, 0.2
      %v1640 = vsel %vm1384, %v874, %v1512
      %v1641 = vsel %vm1385, %v877, %v1513
      %v1642 = vsel %vm1386, %v882, %v1514
      %v1643 = vsel %vm1387, %v885, %v1515
      %v1644 = vsel %vm1388, %v890, %v1516
      %v1645 = vsel %vm1389, %v893, %v1517
      %v1646 = vsel %vm1390, %v898, %v1518
      %v1647 = vsel %vm1391, %v901, %v1519
      %v1648 = vsel %vm1392, %v906, %v1520
      %v1649 = vsel %vm1393, %v909, %v1521
      %v1650 = vsel %vm1394, %v914, %v1522
      %v1651 = vsel %vm1395, %v917, %v1523
      %v1652 = vsel %vm1396, %v922, %v1524
      %v1653 = vsel %vm1397, %v925, %v1525
      %v1654 = vsel %vm1398, %v930, %v1526
      %v1655 = vsel %vm1399, %v933, %v1527
      %v1656 = vsel %vm1400, %v938, %v1528
      %v1657 = vsel %vm1401, %v941, %v1529
      %v1658 = vsel %vm1402, %v946, %v1530
      %v1659 = vsel %vm1403, %v949, %v1531
      %v1660 = vsel %vm1404, %v954, %v1532
      %v1661 = vsel %vm1405, %v957, %v1533
      %v1662 = vsel %vm1406, %v962, %v1534
      %v1663 = vsel %vm1407, %v965, %v1535
      %v1664 = vsel %vm1408, %v970, %v1536
      %v1665 = vsel %vm1409, %v973, %v1537
      %v1666 = vsel %vm1410, %v978, %v1538
      %v1667 = vsel %vm1411, %v981, %v1539
      %v1668 = vsel %vm1412, %v986, %v1540
      %v1669 = vsel %vm1413, %v989, %v1541
      %v1670 = vsel %vm1414, %v994, %v1542
      %v1671 = vsel %vm1415, %v997, %v1543
      %v1672 = vsel %vm1416, %v1002, %v1544
      %v1673 = vsel %vm1417, %v1005, %v1545
      %v1674 = vsel %vm1418, %v1010, %v1546
      %v1675 = vsel %vm1419, %v1013, %v1547
      %v1676 = vsel %vm1420, %v1018, %v1548
      %v1677 = vsel %vm1421, %v1021, %v1549
      %v1678 = vsel %vm1422, %v1026, %v1550
      %v1679 = vsel %vm1423, %v1029, %v1551
      %v1680 = vsel %vm1424, %v1034, %v1552
      %v1681 = vsel %vm1425, %v1037, %v1553
      %v1682 = vsel %vm1426, %v1042, %v1554
      %v1683 = vsel %vm1427, %v1045, %v1555
      %v1684 = vsel %vm1428, %v1050, %v1556
      %v1685 = vsel %vm1429, %v1053, %v1557
      %v1686 = vsel %vm1430, %v1058, %v1558
      %v1687 = vsel %vm1431, %v1061, %v1559
      %v1688 = vsel %vm1432, %v1066, %v1560
      %v1689 = vsel %vm1433, %v1069, %v1561
      %v1690 = vsel %vm1434, %v1074, %v1562
      %v1691 = vsel %vm1435, %v1077, %v1563
      %v1692 = vsel %vm1436, %v1082, %v1564
      %v1693 = vsel %vm1437, %v1085, %v1565
      %v1694 = vsel %vm1438, %v1090, %v1566
      %v1695 = vsel %vm1439, %v1093, %v1567
      %v1696 = vsel %vm1440, %v1098, %v1568
      %v1697 = vsel %vm1441, %v1101, %v1569
      %v1698 = vsel %vm1442, %v1106, %v1570
      %v1699 = vsel %vm1443, %v1109, %v1571
      %v1700 = vsel %vm1444, %v1114, %v1572
      %v1701 = vsel %vm1445, %v1117, %v1573
      %v1702 = vsel %vm1446, %v1122, %v1574
      %v1703 = vsel %vm1447, %v1125, %v1575
      %v1704 = vsel %vm1448, %v1130, %v1576
      %v1705 = vsel %vm1449, %v1133, %v1577
      %v1706 = vsel %vm1450, %v1138, %v1578
      %v1707 = vsel %vm1451, %v1141, %v1579
      %v1708 = vsel %vm1452, %v1146, %v1580
      %v1709 = vsel %vm1453, %v1149, %v1581
      %v1710 = vsel %vm1454, %v1154, %v1582
      %v1711 = vsel %vm1455, %v1157, %v1583
      %v1712 = vsel %vm1456, %v1162, %v1584
      %v1713 = vsel %vm1457, %v1165, %v1585
      %v1714 = vsel %vm1458, %v1170, %v1586
      %v1715 = vsel %vm1459, %v1173, %v1587
      %v1716 = vsel %vm1460, %v1178, %v1588
      %v1717 = vsel %vm1461, %v1181, %v1589
      %v1718 = vsel %vm1462, %v1186, %v1590
      %v1719 = vsel %vm1463, %v1189, %v1591
      %v1720 = vsel %vm1464, %v1194, %v1592
      %v1721 = vsel %vm1465, %v1197, %v1593
      %v1722 = vsel %vm1466, %v1202, %v1594
      %v1723 = vsel %vm1467, %v1205, %v1595
      %v1724 = vsel %vm1468, %v1210, %v1596
      %v1725 = vsel %vm1469, %v1213, %v1597
      %v1726 = vsel %vm1470, %v1218, %v1598
      %v1727 = vsel %vm1471, %v1221, %v1599
      %v1728 = vsel %vm1472, %v1226, %v1600
      %v1729 = vsel %vm1473, %v1229, %v1601
      %v1730 = vsel %vm1474, %v1234, %v1602
      %v1731 = vsel %vm1475, %v1237, %v1603
      %v1732 = vsel %vm1476, %v1242, %v1604
      %v1733 = vsel %vm1477, %v1245, %v1605
      %v1734 = vsel %vm1478, %v1250, %v1606
      %v1735 = vsel %vm1479, %v1253, %v1607
      %v1736 = vsel %vm1480, %v1258, %v1608
      %v1737 = vsel %vm1481, %v1261, %v1609
      %v1738 = vsel %vm1482, %v1266, %v1610
      %v1739 = vsel %vm1483, %v1269, %v1611
      %v1740 = vsel %vm1484, %v1274, %v1612
      %v1741 = vsel %vm1485, %v1277, %v1613
      %v1742 = vsel %vm1486, %v1282, %v1614
      %v1743 = vsel %vm1487, %v1285, %v1615
      %v1744 = vsel %vm1488, %v1290, %v1616
      %v1745 = vsel %vm1489, %v1293, %v1617
      %v1746 = vsel %vm1490, %v1298, %v1618
      %v1747 = vsel %vm1491, %v1301, %v1619
      %v1748 = vsel %vm1492, %v1306, %v1620
      %v1749 = vsel %vm1493, %v1309, %v1621
      %v1750 = vsel %vm1494, %v1314, %v1622
      %v1751 = vsel %vm1495, %v1317, %v1623
      %v1752 = vsel %vm1496, %v1322, %v1624
      %v1753 = vsel %vm1497, %v1325, %v1625
      %v1754 = vsel %vm1498, %v1330, %v1626
      %v1755 = vsel %vm1499, %v1333, %v1627
      %v1756 = vsel %vm1500, %v1338, %v1628
      %v1757 = vsel %vm1501, %v1341, %v1629
      %v1758 = vsel %vm1502, %v1346, %v1630
      %v1759 = vsel %vm1503, %v1349, %v1631
      %v1760 = vsel %vm1504, %v1354, %v1632
      %v1761 = vsel %vm1505, %v1357, %v1633
      %v1762 = vsel %vm1506, %v1362, %v1634
      %v1763 = vsel %vm1507, %v1365, %v1635
      %v1764 = vsel %vm1508, %v1370, %v1636
      %v1765 = vsel %vm1509, %v1373, %v1637
      %v1766 = vsel %vm1510, %v1378, %v1638
      %v1767 = vsel %vm1511, %v1381, %v1639
      %v1768 = vpack.c.bf16 %v1641, %v1640
      %v1769 = vpack.c.bf16 %v1643, %v1642
      %v1770 = vpack.c.bf16 %v1645, %v1644
      %v1771 = vpack.c.bf16 %v1647, %v1646
      %v1772 = vpack.c.bf16 %v1649, %v1648
      %v1773 = vpack.c.bf16 %v1651, %v1650
      %v1774 = vpack.c.bf16 %v1653, %v1652
      %v1775 = vpack.c.bf16 %v1655, %v1654
      %v1776 = vpack.c.bf16 %v1657, %v1656
      %v1777 = vpack.c.bf16 %v1659, %v1658
      %v1778 = vpack.c.bf16 %v1661, %v1660
      %v1779 = vpack.c.bf16 %v1663, %v1662
      %v1780 = vpack.c.bf16 %v1665, %v1664
      %v1781 = vpack.c.bf16 %v1667, %v1666
      %v1782 = vpack.c.bf16 %v1669, %v1668
      %v1783 = vpack.c.bf16 %v1671, %v1670
      %v1784 = vpack.c.bf16 %v1673, %v1672
      %v1785 = vpack.c.bf16 %v1675, %v1674
      %v1786 = vpack.c.bf16 %v1677, %v1676
      %v1787 = vpack.c.bf16 %v1679, %v1678
      %v1788 = vpack.c.bf16 %v1681, %v1680
      %v1789 = vpack.c.bf16 %v1683, %v1682
      %v1790 = vpack.c.bf16 %v1685, %v1684
      %v1791 = vpack.c.bf16 %v1687, %v1686
      %v1792 = vpack.c.bf16 %v1689, %v1688
      %v1793 = vpack.c.bf16 %v1691, %v1690
      %v1794 = vpack.c.bf16 %v1693, %v1692
      %v1795 = vpack.c.bf16 %v1695, %v1694
      %v1796 = vpack.c.bf16 %v1697, %v1696
      %v1797 = vpack.c.bf16 %v1699, %v1698
      %v1798 = vpack.c.bf16 %v1701, %v1700
      %v1799 = vpack.c.bf16 %v1703, %v1702
      %v1800 = vpack.c.bf16 %v1705, %v1704
      %v1801 = vpack.c.bf16 %v1707, %v1706
      %v1802 = vpack.c.bf16 %v1709, %v1708
      %v1803 = vpack.c.bf16 %v1711, %v1710
      %v1804 = vpack.c.bf16 %v1713, %v1712
      %v1805 = vpack.c.bf16 %v1715, %v1714
      %v1806 = vpack.c.bf16 %v1717, %v1716
      %v1807 = vpack.c.bf16 %v1719, %v1718
      %v1808 = vpack.c.bf16 %v1721, %v1720
      %v1809 = vpack.c.bf16 %v1723, %v1722
      %v1810 = vpack.c.bf16 %v1725, %v1724
      %v1811 = vpack.c.bf16 %v1727, %v1726
      %v1812 = vpack.c.bf16 %v1729, %v1728
      %v1813 = vpack.c.bf16 %v1731, %v1730
      %v1814 = vpack.c.bf16 %v1733, %v1732
      %v1815 = vpack.c.bf16 %v1735, %v1734
      %v1816 = vpack.c.bf16 %v1737, %v1736
      %v1817 = vpack.c.bf16 %v1739, %v1738
      %v1818 = vpack.c.bf16 %v1741, %v1740
      %v1819 = vpack.c.bf16 %v1743, %v1742
      %v1820 = vpack.c.bf16 %v1745, %v1744
      %v1821 = vpack.c.bf16 %v1747, %v1746
      %v1822 = vpack.c.bf16 %v1749, %v1748
      %v1823 = vpack.c.bf16 %v1751, %v1750
      %v1824 = vpack.c.bf16 %v1753, %v1752
      %v1825 = vpack.c.bf16 %v1755, %v1754
      %v1826 = vpack.c.bf16 %v1757, %v1756
      %v1827 = vpack.c.bf16 %v1759, %v1758
      %v1828 = vpack.c.bf16 %v1761, %v1760
      %v1829 = vpack.c.bf16 %v1763, %v1762
      %v1830 = vpack.c.bf16 %v1765, %v1764
      %v1831 = vpack.c.bf16 %v1767, %v1766
      %v1896 = vunpack.c.l.b16 %v1768
      %v1897 = vunpack.c.h.b16 %v1768
      %v1898 = vunpack.c.l.b16 %v1769
      %v1899 = vunpack.c.h.b16 %v1769
      %v1900 = vunpack.c.l.b16 %v1770
      %v1901 = vunpack.c.h.b16 %v1770
      %v1902 = vunpack.c.l.b16 %v1771
      %v1903 = vunpack.c.h.b16 %v1771
      %v1904 = vunpack.c.l.b16 %v1772
      %v1905 = vunpack.c.h.b16 %v1772
      %v1906 = vunpack.c.l.b16 %v1773
      %v1907 = vunpack.c.h.b16 %v1773
      %v1908 = vunpack.c.l.b16 %v1774
      %v1909 = vunpack.c.h.b16 %v1774
      %v1910 = vunpack.c.l.b16 %v1775
      %v1911 = vunpack.c.h.b16 %v1775
      %v1912 = vunpack.c.l.b16 %v1776
      %v1913 = vunpack.c.h.b16 %v1776
      %v1914 = vunpack.c.l.b16 %v1777
      %v1915 = vunpack.c.h.b16 %v1777
      %v1916 = vunpack.c.l.b16 %v1778
      %v1917 = vunpack.c.h.b16 %v1778
      %v1918 = vunpack.c.l.b16 %v1779
      %v1919 = vunpack.c.h.b16 %v1779
      %v1920 = vunpack.c.l.b16 %v1780
      %v1921 = vunpack.c.h.b16 %v1780
      %v1922 = vunpack.c.l.b16 %v1781
      %v1923 = vunpack.c.h.b16 %v1781
      %v1924 = vunpack.c.l.b16 %v1782
      %v1925 = vunpack.c.h.b16 %v1782
      %v1926 = vunpack.c.l.b16 %v1783
      %v1927 = vunpack.c.h.b16 %v1783
      %v1928 = vunpack.c.l.b16 %v1784
      %v1929 = vunpack.c.h.b16 %v1784
      %v1930 = vunpack.c.l.b16 %v1785
      %v1931 = vunpack.c.h.b16 %v1785
      %v1932 = vunpack.c.l.b16 %v1786
      %v1933 = vunpack.c.h.b16 %v1786
      %v1934 = vunpack.c.l.b16 %v1787
      %v1935 = vunpack.c.h.b16 %v1787
      %v1936 = vunpack.c.l.b16 %v1788
      %v1937 = vunpack.c.h.b16 %v1788
      %v1938 = vunpack.c.l.b16 %v1789
      %v1939 = vunpack.c.h.b16 %v1789
      %v1940 = vunpack.c.l.b16 %v1790
      %v1941 = vunpack.c.h.b16 %v1790
      %v1942 = vunpack.c.l.b16 %v1791
      %v1943 = vunpack.c.h.b16 %v1791
      %v1944 = vunpack.c.l.b16 %v1792
      %v1945 = vunpack.c.h.b16 %v1792
      %v1946 = vunpack.c.l.b16 %v1793
      %v1947 = vunpack.c.h.b16 %v1793
      %v1948 = vunpack.c.l.b16 %v1794
      %v1949 = vunpack.c.h.b16 %v1794
      %v1950 = vunpack.c.l.b16 %v1795
      %v1951 = vunpack.c.h.b16 %v1795
      %v1952 = vunpack.c.l.b16 %v1796
      %v1953 = vunpack.c.h.b16 %v1796
      %v1954 = vunpack.c.l.b16 %v1797
      %v1955 = vunpack.c.h.b16 %v1797
      %v1956 = vunpack.c.l.b16 %v1798
      %v1957 = vunpack.c.h.b16 %v1798
      %v1958 = vunpack.c.l.b16 %v1799
      %v1959 = vunpack.c.h.b16 %v1799
      %v1960 = vunpack.c.l.b16 %v1800
      %v1961 = vunpack.c.h.b16 %v1800
      %v1962 = vunpack.c.l.b16 %v1801
      %v1963 = vunpack.c.h.b16 %v1801
      %v1964 = vunpack.c.l.b16 %v1802
      %v1965 = vunpack.c.h.b16 %v1802
      %v1966 = vunpack.c.l.b16 %v1803
      %v1967 = vunpack.c.h.b16 %v1803
      %v1968 = vunpack.c.l.b16 %v1804
      %v1969 = vunpack.c.h.b16 %v1804
      %v1970 = vunpack.c.l.b16 %v1805
      %v1971 = vunpack.c.h.b16 %v1805
      %v1972 = vunpack.c.l.b16 %v1806
      %v1973 = vunpack.c.h.b16 %v1806
      %v1974 = vunpack.c.l.b16 %v1807
      %v1975 = vunpack.c.h.b16 %v1807
      %v1976 = vunpack.c.l.b16 %v1808
      %v1977 = vunpack.c.h.b16 %v1808
      %v1978 = vunpack.c.l.b16 %v1809
      %v1979 = vunpack.c.h.b16 %v1809
      %v1980 = vunpack.c.l.b16 %v1810
      %v1981 = vunpack.c.h.b16 %v1810
      %v1982 = vunpack.c.l.b16 %v1811
      %v1983 = vunpack.c.h.b16 %v1811
      %v1984 = vunpack.c.l.b16 %v1812
      %v1985 = vunpack.c.h.b16 %v1812
      %v1986 = vunpack.c.l.b16 %v1813
      %v1987 = vunpack.c.h.b16 %v1813
      %v1988 = vunpack.c.l.b16 %v1814
      %v1989 = vunpack.c.h.b16 %v1814
      %v1990 = vunpack.c.l.b16 %v1815
      %v1991 = vunpack.c.h.b16 %v1815
      %v1992 = vunpack.c.l.b16 %v1816
      %v1993 = vunpack.c.h.b16 %v1816
      %v1994 = vunpack.c.l.b16 %v1817
      %v1995 = vunpack.c.h.b16 %v1817
      %v1996 = vunpack.c.l.b16 %v1818
      %v1997 = vunpack.c.h.b16 %v1818
      %v1998 = vunpack.c.l.b16 %v1819
      %v1999 = vunpack.c.h.b16 %v1819
      %v2000 = vunpack.c.l.b16 %v1820
      %v2001 = vunpack.c.h.b16 %v1820
      %v2002 = vunpack.c.l.b16 %v1821
      %v2003 = vunpack.c.h.b16 %v1821
      %v2004 = vunpack.c.l.b16 %v1822
      %v2005 = vunpack.c.h.b16 %v1822
      %v2006 = vunpack.c.l.b16 %v1823
      %v2007 = vunpack.c.h.b16 %v1823
      %v2008 = vunpack.c.l.b16 %v1824
      %v2009 = vunpack.c.h.b16 %v1824
      %v2010 = vunpack.c.l.b16 %v1825
      %v2011 = vunpack.c.h.b16 %v1825
      %v2012 = vunpack.c.l.b16 %v1826
      %v2013 = vunpack.c.h.b16 %v1826
      %v2014 = vunpack.c.l.b16 %v1827
      %v2015 = vunpack.c.h.b16 %v1827
      %v2016 = vunpack.c.l.b16 %v1828
      %v2017 = vunpack.c.h.b16 %v1828
      %v2018 = vunpack.c.l.b16 %v1829
      %v2019 = vunpack.c.h.b16 %v1829
      %v2020 = vunpack.c.l.b16 %v1830
      %v2021 = vunpack.c.h.b16 %v1830
      %v2022 = vunpack.c.l.b16 %v1831
      %v2023 = vunpack.c.h.b16 %v1831
      %v2024 = vpack.c.b16 %v1896, %v1896
      %v2025 = vpack.c.b16 %v1897, %v1897
      %v2026 = vpack.c.b16 %v1898, %v1898
      %v2027 = vpack.c.b16 %v1899, %v1899
      %v2028 = vpack.c.b16 %v1900, %v1900
      %v2029 = vpack.c.b16 %v1901, %v1901
      %v2030 = vpack.c.b16 %v1902, %v1902
      %v2031 = vpack.c.b16 %v1903, %v1903
      %v2032 = vpack.c.b16 %v1904, %v1904
      %v2033 = vpack.c.b16 %v1905, %v1905
      %v2034 = vpack.c.b16 %v1906, %v1906
      %v2035 = vpack.c.b16 %v1907, %v1907
      %v2036 = vpack.c.b16 %v1908, %v1908
      %v2037 = vpack.c.b16 %v1909, %v1909
      %v2038 = vpack.c.b16 %v1910, %v1910
      %v2039 = vpack.c.b16 %v1911, %v1911
      %v2040 = vpack.c.b16 %v1912, %v1912
      %v2041 = vpack.c.b16 %v1913, %v1913
      %v2042 = vpack.c.b16 %v1914, %v1914
      %v2043 = vpack.c.b16 %v1915, %v1915
      %v2044 = vpack.c.b16 %v1916, %v1916
      %v2045 = vpack.c.b16 %v1917, %v1917
      %v2046 = vpack.c.b16 %v1918, %v1918
      %v2047 = vpack.c.b16 %v1919, %v1919
      %v2048 = vpack.c.b16 %v1920, %v1920
      %v2049 = vpack.c.b16 %v1921, %v1921
      %v2050 = vpack.c.b16 %v1922, %v1922
      %v2051 = vpack.c.b16 %v1923, %v1923
      %v2052 = vpack.c.b16 %v1924, %v1924
      %v2053 = vpack.c.b16 %v1925, %v1925
      %v2054 = vpack.c.b16 %v1926, %v1926
      %v2055 = vpack.c.b16 %v1927, %v1927
      %v2056 = vpack.c.b16 %v1928, %v1928
      %v2057 = vpack.c.b16 %v1929, %v1929
      %v2058 = vpack.c.b16 %v1930, %v1930
      %v2059 = vpack.c.b16 %v1931, %v1931
      %v2060 = vpack.c.b16 %v1932, %v1932
      %v2061 = vpack.c.b16 %v1933, %v1933
      %v2062 = vpack.c.b16 %v1934, %v1934
      %v2063 = vpack.c.b16 %v1935, %v1935
      %v2064 = vpack.c.b16 %v1936, %v1936
      %v2065 = vpack.c.b16 %v1937, %v1937
      %v2066 = vpack.c.b16 %v1938, %v1938
      %v2067 = vpack.c.b16 %v1939, %v1939
      %v2068 = vpack.c.b16 %v1940, %v1940
      %v2069 = vpack.c.b16 %v1941, %v1941
      %v2070 = vpack.c.b16 %v1942, %v1942
      %v2071 = vpack.c.b16 %v1943, %v1943
      %v2072 = vpack.c.b16 %v1944, %v1944
      %v2073 = vpack.c.b16 %v1945, %v1945
      %v2074 = vpack.c.b16 %v1946, %v1946
      %v2075 = vpack.c.b16 %v1947, %v1947
      %v2076 = vpack.c.b16 %v1948, %v1948
      %v2077 = vpack.c.b16 %v1949, %v1949
      %v2078 = vpack.c.b16 %v1950, %v1950
      %v2079 = vpack.c.b16 %v1951, %v1951
      %v2080 = vpack.c.b16 %v1952, %v1952
      %v2081 = vpack.c.b16 %v1953, %v1953
      %v2082 = vpack.c.b16 %v1954, %v1954
      %v2083 = vpack.c.b16 %v1955, %v1955
      %v2084 = vpack.c.b16 %v1956, %v1956
      %v2085 = vpack.c.b16 %v1957, %v1957
      %v2086 = vpack.c.b16 %v1958, %v1958
      %v2087 = vpack.c.b16 %v1959, %v1959
      %v2088 = vpack.c.b16 %v1960, %v1960
      %v2089 = vpack.c.b16 %v1961, %v1961
      %v2090 = vpack.c.b16 %v1962, %v1962
      %v2091 = vpack.c.b16 %v1963, %v1963
      %v2092 = vpack.c.b16 %v1964, %v1964
      %v2093 = vpack.c.b16 %v1965, %v1965
      %v2094 = vpack.c.b16 %v1966, %v1966
      %v2095 = vpack.c.b16 %v1967, %v1967
      %v2096 = vpack.c.b16 %v1968, %v1968
      %v2097 = vpack.c.b16 %v1969, %v1969
      %v2098 = vpack.c.b16 %v1970, %v1970
      %v2099 = vpack.c.b16 %v1971, %v1971
      %v2100 = vpack.c.b16 %v1972, %v1972
      %v2101 = vpack.c.b16 %v1973, %v1973
      %v2102 = vpack.c.b16 %v1974, %v1974
      %v2103 = vpack.c.b16 %v1975, %v1975
      %v2104 = vpack.c.b16 %v1976, %v1976
      %v2105 = vpack.c.b16 %v1977, %v1977
      %v2106 = vpack.c.b16 %v1978, %v1978
      %v2107 = vpack.c.b16 %v1979, %v1979
      %v2108 = vpack.c.b16 %v1980, %v1980
      %v2109 = vpack.c.b16 %v1981, %v1981
      %v2110 = vpack.c.b16 %v1982, %v1982
      %v2111 = vpack.c.b16 %v1983, %v1983
      %v2112 = vpack.c.b16 %v1984, %v1984
      %v2113 = vpack.c.b16 %v1985, %v1985
      %v2114 = vpack.c.b16 %v1986, %v1986
      %v2115 = vpack.c.b16 %v1987, %v1987
      %v2116 = vpack.c.b16 %v1988, %v1988
      %v2117 = vpack.c.b16 %v1989, %v1989
      %v2118 = vpack.c.b16 %v1990, %v1990
      %v2119 = vpack.c.b16 %v1991, %v1991
      %v2120 = vpack.c.b16 %v1992, %v1992
      %v2121 = vpack.c.b16 %v1993, %v1993
      %v2122 = vpack.c.b16 %v1994, %v1994
      %v2123 = vpack.c.b16 %v1995, %v1995
      %v2124 = vpack.c.b16 %v1996, %v1996
      %v2125 = vpack.c.b16 %v1997, %v1997
      %v2126 = vpack.c.b16 %v1998, %v1998
      %v2127 = vpack.c.b16 %v1999, %v1999
      %v2128 = vpack.c.b16 %v2000, %v2000
      %v2129 = vpack.c.b16 %v2001, %v2001
      %v2130 = vpack.c.b16 %v2002, %v2002
      %v2131 = vpack.c.b16 %v2003, %v2003
      %v2132 = vpack.c.b16 %v2004, %v2004
      %v2133 = vpack.c.b16 %v2005, %v2005
      %v2134 = vpack.c.b16 %v2006, %v2006
      %v2135 = vpack.c.b16 %v2007, %v2007
      %v2136 = vpack.c.b16 %v2008, %v2008
      %v2137 = vpack.c.b16 %v2009, %v2009
      %v2138 = vpack.c.b16 %v2010, %v2010
      %v2139 = vpack.c.b16 %v2011, %v2011
      %v2140 = vpack.c.b16 %v2012, %v2012
      %v2141 = vpack.c.b16 %v2013, %v2013
      %v2142 = vpack.c.b16 %v2014, %v2014
      %v2143 = vpack.c.b16 %v2015, %v2015
      %v2144 = vpack.c.b16 %v2016, %v2016
      %v2145 = vpack.c.b16 %v2017, %v2017
      %v2146 = vpack.c.b16 %v2018, %v2018
      %v2147 = vpack.c.b16 %v2019, %v2019
      %v2148 = vpack.c.b16 %v2020, %v2020
      %v2149 = vpack.c.b16 %v2021, %v2021
      %v2150 = vpack.c.b16 %v2022, %v2022
      %v2151 = vpack.c.b16 %v2023, %v2023
      %2280 = vst [vmem:[%s172] sm:$0xf] %v2024
      %2281 = vst [vmem:[%s172 + $0x4] sm:$0xf] %v2025
      %2282 = vst [vmem:[%s172 + $0x8] sm:$0xf] %v2026
      %2283 = vst [vmem:[%s172 + $0xc] sm:$0xf] %v2027
      %2284 = vst [vmem:[%s172 + $0x10] sm:$0xf] %v2028
      %2285 = vst [vmem:[%s172 + $0x14] sm:$0xf] %v2029
      %2286 = vst [vmem:[%s172 + $0x18] sm:$0xf] %v2030
      %2287 = vst [vmem:[%s172 + $0x1c] sm:$0xf] %v2031
      %2288 = vst [vmem:[%s172 + $0x20] sm:$0xf] %v2032
      %2289 = vst [vmem:[%s172 + $0x24] sm:$0xf] %v2033
      %2290 = vst [vmem:[%s172 + $0x28] sm:$0xf] %v2034
      %2291 = vst [vmem:[%s172 + $0x2c] sm:$0xf] %v2035
      %2292 = vst [vmem:[%s172 + $0x30] sm:$0xf] %v2036
      %2293 = vst [vmem:[%s172 + $0x34] sm:$0xf] %v2037
      %2294 = vst [vmem:[%s172 + $0x38] sm:$0xf] %v2038
      %2295 = vst [vmem:[%s172 + $0x3c] sm:$0xf] %v2039
      %2296 = vst [vmem:[%s172 + $0x40] sm:$0xf] %v2040
      %2297 = vst [vmem:[%s172 + $0x44] sm:$0xf] %v2041
      %2298 = vst [vmem:[%s172 + $0x48] sm:$0xf] %v2042
      %2299 = vst [vmem:[%s172 + $0x4c] sm:$0xf] %v2043
      %2300 = vst [vmem:[%s172 + $0x50] sm:$0xf] %v2044
      %2301 = vst [vmem:[%s172 + $0x54] sm:$0xf] %v2045
      %2302 = vst [vmem:[%s172 + $0x58] sm:$0xf] %v2046
      %2303 = vst [vmem:[%s172 + $0x5c] sm:$0xf] %v2047
      %2304 = vst [vmem:[%s172 + $0x60] sm:$0xf] %v2048
      %2305 = vst [vmem:[%s172 + $0x64] sm:$0xf] %v2049
      %2306 = vst [vmem:[%s172 + $0x68] sm:$0xf] %v2050
      %2307 = vst [vmem:[%s172 + $0x6c] sm:$0xf] %v2051
      %2308 = vst [vmem:[%s172 + $0x70] sm:$0xf] %v2052
      %2309 = vst [vmem:[%s172 + $0x74] sm:$0xf] %v2053
      %2310 = vst [vmem:[%s172 + $0x78] sm:$0xf] %v2054
      %2311 = vst [vmem:[%s172 + $0x7c] sm:$0xf] %v2055
      %2312 = vst [vmem:[%s172 + $0x80] sm:$0xf] %v2056
      %2313 = vst [vmem:[%s172 + $0x84] sm:$0xf] %v2057
      %2314 = vst [vmem:[%s172 + $0x88] sm:$0xf] %v2058
      %2315 = vst [vmem:[%s172 + $0x8c] sm:$0xf] %v2059
      %2316 = vst [vmem:[%s172 + $0x90] sm:$0xf] %v2060
      %2317 = vst [vmem:[%s172 + $0x94] sm:$0xf] %v2061
      %2318 = vst [vmem:[%s172 + $0x98] sm:$0xf] %v2062
      %2319 = vst [vmem:[%s172 + $0x9c] sm:$0xf] %v2063
      %2320 = vst [vmem:[%s172 + $0xa0] sm:$0xf] %v2064
      %2321 = vst [vmem:[%s172 + $0xa4] sm:$0xf] %v2065
      %2322 = vst [vmem:[%s172 + $0xa8] sm:$0xf] %v2066
      %2323 = vst [vmem:[%s172 + $0xac] sm:$0xf] %v2067
      %2324 = vst [vmem:[%s172 + $0xb0] sm:$0xf] %v2068
      %2325 = vst [vmem:[%s172 + $0xb4] sm:$0xf] %v2069
      %2326 = vst [vmem:[%s172 + $0xb8] sm:$0xf] %v2070
      %2327 = vst [vmem:[%s172 + $0xbc] sm:$0xf] %v2071
      %2328 = vst [vmem:[%s172 + $0xc0] sm:$0xf] %v2072
      %2329 = vst [vmem:[%s172 + $0xc4] sm:$0xf] %v2073
      %2330 = vst [vmem:[%s172 + $0xc8] sm:$0xf] %v2074
      %2331 = vst [vmem:[%s172 + $0xcc] sm:$0xf] %v2075
      %2332 = vst [vmem:[%s172 + $0xd0] sm:$0xf] %v2076
      %2333 = vst [vmem:[%s172 + $0xd4] sm:$0xf] %v2077
      %2334 = vst [vmem:[%s172 + $0xd8] sm:$0xf] %v2078
      %2335 = vst [vmem:[%s172 + $0xdc] sm:$0xf] %v2079
      %2336 = vst [vmem:[%s172 + $0xe0] sm:$0xf] %v2080
      %2337 = vst [vmem:[%s172 + $0xe4] sm:$0xf] %v2081
      %2338 = vst [vmem:[%s172 + $0xe8] sm:$0xf] %v2082
      %2339 = vst [vmem:[%s172 + $0xec] sm:$0xf] %v2083
      %2340 = vst [vmem:[%s172 + $0xf0] sm:$0xf] %v2084
      %2341 = vst [vmem:[%s172 + $0xf4] sm:$0xf] %v2085
      %2342 = vst [vmem:[%s172 + $0xf8] sm:$0xf] %v2086
      %2343 = vst [vmem:[%s172 + $0xfc] sm:$0xf] %v2087
      %2344 = vst [vmem:[%s172 + $0x100] sm:$0xf] %v2088
      %2345 = vst [vmem:[%s172 + $0x104] sm:$0xf] %v2089
      %2346 = vst [vmem:[%s172 + $0x108] sm:$0xf] %v2090
      %2347 = vst [vmem:[%s172 + $0x10c] sm:$0xf] %v2091
      %2348 = vst [vmem:[%s172 + $0x110] sm:$0xf] %v2092
      %2349 = vst [vmem:[%s172 + $0x114] sm:$0xf] %v2093
      %2350 = vst [vmem:[%s172 + $0x118] sm:$0xf] %v2094
      %2351 = vst [vmem:[%s172 + $0x11c] sm:$0xf] %v2095
      %2352 = vst [vmem:[%s172 + $0x120] sm:$0xf] %v2096
      %2353 = vst [vmem:[%s172 + $0x124] sm:$0xf] %v2097
      %2354 = vst [vmem:[%s172 + $0x128] sm:$0xf] %v2098
      %2355 = vst [vmem:[%s172 + $0x12c] sm:$0xf] %v2099
      %2356 = vst [vmem:[%s172 + $0x130] sm:$0xf] %v2100
      %2357 = vst [vmem:[%s172 + $0x134] sm:$0xf] %v2101
      %2358 = vst [vmem:[%s172 + $0x138] sm:$0xf] %v2102
      %2359 = vst [vmem:[%s172 + $0x13c] sm:$0xf] %v2103
      %2360 = vst [vmem:[%s172 + $0x140] sm:$0xf] %v2104
      %2361 = vst [vmem:[%s172 + $0x144] sm:$0xf] %v2105
      %2362 = vst [vmem:[%s172 + $0x148] sm:$0xf] %v2106
      %2363 = vst [vmem:[%s172 + $0x14c] sm:$0xf] %v2107
      %2364 = vst [vmem:[%s172 + $0x150] sm:$0xf] %v2108
      %2365 = vst [vmem:[%s172 + $0x154] sm:$0xf] %v2109
      %2366 = vst [vmem:[%s172 + $0x158] sm:$0xf] %v2110
      %2367 = vst [vmem:[%s172 + $0x15c] sm:$0xf] %v2111
      %2368 = vst [vmem:[%s172 + $0x160] sm:$0xf] %v2112
      %2369 = vst [vmem:[%s172 + $0x164] sm:$0xf] %v2113
      %2370 = vst [vmem:[%s172 + $0x168] sm:$0xf] %v2114
      %2371 = vst [vmem:[%s172 + $0x16c] sm:$0xf] %v2115
      %2372 = vst [vmem:[%s172 + $0x170] sm:$0xf] %v2116
      %2373 = vst [vmem:[%s172 + $0x174] sm:$0xf] %v2117
      %2374 = vst [vmem:[%s172 + $0x178] sm:$0xf] %v2118
      %2375 = vst [vmem:[%s172 + $0x17c] sm:$0xf] %v2119
      %2376 = vst [vmem:[%s172 + $0x180] sm:$0xf] %v2120
      %2377 = vst [vmem:[%s172 + $0x184] sm:$0xf] %v2121
      %2378 = vst [vmem:[%s172 + $0x188] sm:$0xf] %v2122
      %2379 = vst [vmem:[%s172 + $0x18c] sm:$0xf] %v2123
      %2380 = vst [vmem:[%s172 + $0x190] sm:$0xf] %v2124
      %2381 = vst [vmem:[%s172 + $0x194] sm:$0xf] %v2125
      %2382 = vst [vmem:[%s172 + $0x198] sm:$0xf] %v2126
      %2383 = vst [vmem:[%s172 + $0x19c] sm:$0xf] %v2127
      %2384 = vst [vmem:[%s172 + $0x1a0] sm:$0xf] %v2128
      %2385 = vst [vmem:[%s172 + $0x1a4] sm:$0xf] %v2129
      %2386 = vst [vmem:[%s172 + $0x1a8] sm:$0xf] %v2130
      %2387 = vst [vmem:[%s172 + $0x1ac] sm:$0xf] %v2131
      %2388 = vst [vmem:[%s172 + $0x1b0] sm:$0xf] %v2132
      %2389 = vst [vmem:[%s172 + $0x1b4] sm:$0xf] %v2133
      %2390 = vst [vmem:[%s172 + $0x1b8] sm:$0xf] %v2134
      %2391 = vst [vmem:[%s172 + $0x1bc] sm:$0xf] %v2135
      %2392 = vst [vmem:[%s172 + $0x1c0] sm:$0xf] %v2136
      %2393 = vst [vmem:[%s172 + $0x1c4] sm:$0xf] %v2137
      %2394 = vst [vmem:[%s172 + $0x1c8] sm:$0xf] %v2138
      %2395 = vst [vmem:[%s172 + $0x1cc] sm:$0xf] %v2139
      %2396 = vst [vmem:[%s172 + $0x1d0] sm:$0xf] %v2140
      %2397 = vst [vmem:[%s172 + $0x1d4] sm:$0xf] %v2141
      %2398 = vst [vmem:[%s172 + $0x1d8] sm:$0xf] %v2142
      %2399 = vst [vmem:[%s172 + $0x1dc] sm:$0xf] %v2143
      %2400 = vst [vmem:[%s172 + $0x1e0] sm:$0xf] %v2144
      %2401 = vst [vmem:[%s172 + $0x1e4] sm:$0xf] %v2145
      %2402 = vst [vmem:[%s172 + $0x1e8] sm:$0xf] %v2146
      %2403 = vst [vmem:[%s172 + $0x1ec] sm:$0xf] %v2147
      %2404 = vst [vmem:[%s172 + $0x1f0] sm:$0xf] %v2148
      %2405 = vst [vmem:[%s172 + $0x1f4] sm:$0xf] %v2149
      %2406 = vst [vmem:[%s172 + $0x1f8] sm:$0xf] %v2150
      %2407 = vst [vmem:[%s172 + $0x1fc] sm:$0xf] %v2151
      %s2408 = smul.u32 128, %s14
      %p2409 = scmp.lt.s32.totalorder %s2408, 255
      %s2410 = scalar_select %p2409, %s2408, 255
      %s2411 = smul.addr %s2410, 4
      %s2412 = scalar_lea.vmem %s3, %s2411
      // Predicated region
      $region33: #{discriminator_forward.4} parent=31 // pred_check
        %p2413 = pneg %p100
      $region34: #{discriminator_forward.4} parent=31 // pred_check_branch
        %2415 = sbr.rel (%p2413) target = $region36
      $region35: #{discriminator_forward.4} parent=31 // pred_region
        %s2416 = smul.u32 128, %s14
      $region36: #{discriminator_forward.4} parent=31 // pred_fallthru
        _
    $region32: #{discriminator_forward.4} parent=5 // pred_fallthru
      _
    %p2417 = scmp.le.s32.totalorder 2, %s9
    // Predicated region
    $region37: #{discriminator_forward.4} parent=5 // pred_check
      %p2418 = pneg %p2417
    $region38: #{discriminator_forward.4} parent=5 // pred_check_branch
      %2420 = sbr.rel (%p2418) target = $region40
    $region39: #{discriminator_forward.4} parent=5 // pred_region
      %s2421 = ssub.s32 %s9, 2
      // Predicated region
      $region41: #{discriminator_forward.4} parent=39 // pred_check
        %p2422 = pneg %p106
      $region42: #{discriminator_forward.4} parent=39 // pred_check_branch
        %2424 = sbr.rel (%p2422) target = $region44
      $region43: #{discriminator_forward.4} parent=39 // pred_region
        %s2425 = smul.u32 128, %s15
        %p2426 = scmp.lt.s32.totalorder %s2425, 255
        %s2427 = scalar_select %p2426, %s2425, 255
        %s2428 = smul.addr %s2427, 4
        %s2429 = scalar_lea.vmem %s3, %s2428
      $region44: #{discriminator_forward.4} parent=39 // pred_fallthru
        _
    $region40: #{discriminator_forward.4} parent=5 // pred_fallthru
      _
  $region6: #{discriminator_forward.4} parent=0 // loop_footer
    %s13 = sadd.s32 1, %s9
  $region7: #{discriminator_forward.4} parent=0 // loop_footer_branch
    %8 = sbr.rel target = $region3
  $region8: #{discriminator_forward.4} parent=0 // loop_exit
    _

// kernel: discriminator_forward.6
$region0: #{discriminator_forward.6}
  #allocation0 [shape = 'u32[]', space=smem, size = 0x4, offset = 0x4, fixed_abs, tag = 'smem constant byte address 0x4 - core index']
  #allocation1 [shape = 'u32[144,128]{1,0:T(1,128)}', space=vmem, size = 0x12000, scoped, tag = 'internal scratch']
  %s0 = inlined_call_operand.vmem [shape: bf16[128,1152], index: 0, kind: input, shape index: {}]
  %s1 = inlined_call_operand.vmem [shape: bf16[1152,128], index: 1, kind: input, shape index: {}]
  %s2 = inlined_call_operand.vmem [shape: f32[1,128], index: 2, kind: input, shape index: {}]
  %s3 = inlined_call_operand.vmem [shape: bf16[128,128], index: 3, kind: output, shape index: {}]
  %s4 = sld [smem:[#allocation0]]
  $region22: #{discriminator_forward.6} parent=0
    _
  %s6 = ssub.s32 1, %s4
  %s7 = scalar_select 0, %s6, %s4
  // Predicated region
  $region2: #{discriminator_forward.6} parent=0 // pred_check
    _
  $region3: #{discriminator_forward.6} parent=0 // pred_check_branch
    %9 = sbr.rel (0) target = $region5
  $region4: #{discriminator_forward.6} parent=0 // pred_region
    _
  $region5: #{discriminator_forward.6} parent=0 // pred_fallthru
    _
  // Predicated region
  $region6: #{discriminator_forward.6} parent=0 // pred_check
    _
  $region7: #{discriminator_forward.6} parent=0 // pred_check_branch
    %11 = sbr.rel (0) target = $region9
  $region8: #{discriminator_forward.6} parent=0 // pred_region
    _
  $region9: #{discriminator_forward.6} parent=0 // pred_fallthru
    _
  // Predicated region
  $region10: #{discriminator_forward.6} parent=0 // pred_check
    _
  $region11: #{discriminator_forward.6} parent=0 // pred_check_branch
    %13 = sbr.rel (0) target = $region13
  $region12: #{discriminator_forward.6} parent=0 // pred_region
    _
  $region13: #{discriminator_forward.6} parent=0 // pred_fallthru
    _
  %v15 = vld [vmem:[%s0] sm:$0xff]
  %v16 = vld [vmem:[%s0 + $0x8] sm:$0xff]
  %v17 = vld [vmem:[%s0 + $0x10] sm:$0xff]
  %v18 = vld [vmem:[%s0 + $0x18] sm:$0xff]
  %v19 = vld [vmem:[%s0 + $0x20] sm:$0xf]
  %v20 = vld [vmem:[%s0 + $0x24] sm:$0xff]
  %v21 = vld [vmem:[%s0 + $0x2c] sm:$0xff]
  %v22 = vld [vmem:[%s0 + $0x34] sm:$0xff]
  %v23 = vld [vmem:[%s0 + $0x3c] sm:$0xff]
  %v24 = vld [vmem:[%s0 + $0x44] sm:$0xf]
  %v25 = vld [vmem:[%s0 + $0x48] sm:$0xff]
  %v26 = vld [vmem:[%s0 + $0x50] sm:$0xff]
  %v27 = vld [vmem:[%s0 + $0x58] sm:$0xff]
  %v28 = vld [vmem:[%s0 + $0x60] sm:$0xff]
  %v29 = vld [vmem:[%s0 + $0x68] sm:$0xf]
  %v30 = vld [vmem:[%s0 + $0x6c] sm:$0xff]
  %v31 = vld [vmem:[%s0 + $0x74] sm:$0xff]
  %v32 = vld [vmem:[%s0 + $0x7c] sm:$0xff]
  %v33 = vld [vmem:[%s0 + $0x84] sm:$0xff]
  %v34 = vld [vmem:[%s0 + $0x8c] sm:$0xf]
  %v35 = vld [vmem:[%s0 + $0x90] sm:$0xff]
  %v36 = vld [vmem:[%s0 + $0x98] sm:$0xff]
  %v37 = vld [vmem:[%s0 + $0xa0] sm:$0xff]
  %v38 = vld [vmem:[%s0 + $0xa8] sm:$0xff]
  %v39 = vld [vmem:[%s0 + $0xb0] sm:$0xf]
  %v40 = vld [vmem:[%s0 + $0xb4] sm:$0xff]
  %v41 = vld [vmem:[%s0 + $0xbc] sm:$0xff]
  %v42 = vld [vmem:[%s0 + $0xc4] sm:$0xff]
  %v43 = vld [vmem:[%s0 + $0xcc] sm:$0xff]
  %v44 = vld [vmem:[%s0 + $0xd4] sm:$0xf]
  %v45 = vld [vmem:[%s0 + $0xd8] sm:$0xff]
  %v46 = vld [vmem:[%s0 + $0xe0] sm:$0xff]
  %v47 = vld [vmem:[%s0 + $0xe8] sm:$0xff]
  %v48 = vld [vmem:[%s0 + $0xf0] sm:$0xff]
  %v49 = vld [vmem:[%s0 + $0xf8] sm:$0xf]
  %v50 = vld [vmem:[%s0 + $0xfc] sm:$0xff]
  %v51 = vld [vmem:[%s0 + $0x104] sm:$0xff]
  %v52 = vld [vmem:[%s0 + $0x10c] sm:$0xff]
  %v53 = vld [vmem:[%s0 + $0x114] sm:$0xff]
  %v54 = vld [vmem:[%s0 + $0x11c] sm:$0xf]
  %v55 = vld [vmem:[%s0 + $0x120] sm:$0xff]
  %v56 = vld [vmem:[%s0 + $0x128] sm:$0xff]
  %v57 = vld [vmem:[%s0 + $0x130] sm:$0xff]
  %v58 = vld [vmem:[%s0 + $0x138] sm:$0xff]
  %v59 = vld [vmem:[%s0 + $0x140] sm:$0xf]
  %v60 = vld [vmem:[%s0 + $0x144] sm:$0xff]
  %v61 = vld [vmem:[%s0 + $0x14c] sm:$0xff]
  %v62 = vld [vmem:[%s0 + $0x154] sm:$0xff]
  %v63 = vld [vmem:[%s0 + $0x15c] sm:$0xff]
  %v64 = vld [vmem:[%s0 + $0x164] sm:$0xf]
  %v65 = vld [vmem:[%s0 + $0x168] sm:$0xff]
  %v66 = vld [vmem:[%s0 + $0x170] sm:$0xff]
  %v67 = vld [vmem:[%s0 + $0x178] sm:$0xff]
  %v68 = vld [vmem:[%s0 + $0x180] sm:$0xff]
  %v69 = vld [vmem:[%s0 + $0x188] sm:$0xf]
  %v70 = vld [vmem:[%s0 + $0x18c] sm:$0xff]
  %v71 = vld [vmem:[%s0 + $0x194] sm:$0xff]
  %v72 = vld [vmem:[%s0 + $0x19c] sm:$0xff]
  %v73 = vld [vmem:[%s0 + $0x1a4] sm:$0xff]
  %v74 = vld [vmem:[%s0 + $0x1ac] sm:$0xf]
  %v75 = vld [vmem:[%s0 + $0x1b0] sm:$0xff]
  %v76 = vld [vmem:[%s0 + $0x1b8] sm:$0xff]
  %v77 = vld [vmem:[%s0 + $0x1c0] sm:$0xff]
  %v78 = vld [vmem:[%s0 + $0x1c8] sm:$0xff]
  %v79 = vld [vmem:[%s0 + $0x1d0] sm:$0xf]
  %v80 = vld [vmem:[%s0 + $0x1d4] sm:$0xff]
  %v81 = vld [vmem:[%s0 + $0x1dc] sm:$0xff]
  %v82 = vld [vmem:[%s0 + $0x1e4] sm:$0xff]
  %v83 = vld [vmem:[%s0 + $0x1ec] sm:$0xff]
  %v84 = vld [vmem:[%s0 + $0x1f4] sm:$0xf]
  %v85 = vld [vmem:[%s0 + $0x1f8] sm:$0xff]
  %v86 = vld [vmem:[%s0 + $0x200] sm:$0xff]
  %v87 = vld [vmem:[%s0 + $0x208] sm:$0xff]
  %v88 = vld [vmem:[%s0 + $0x210] sm:$0xff]
  %v89 = vld [vmem:[%s0 + $0x218] sm:$0xf]
  %v90 = vld [vmem:[%s0 + $0x21c] sm:$0xff]
  %v91 = vld [vmem:[%s0 + $0x224] sm:$0xff]
  %v92 = vld [vmem:[%s0 + $0x22c] sm:$0xff]
  %v93 = vld [vmem:[%s0 + $0x234] sm:$0xff]
  %v94 = vld [vmem:[%s0 + $0x23c] sm:$0xf]
  %v95 = vld [vmem:[%s1] sm:$0xf]
  %v96 = vld [vmem:[%s1 + $0x4] sm:$0xf]
  %v97 = vld [vmem:[%s1 + $0x8] sm:$0xf]
  %v98 = vld [vmem:[%s1 + $0xc] sm:$0xf]
  %v99 = vld [vmem:[%s1 + $0x10] sm:$0xf]
  %v100 = vld [vmem:[%s1 + $0x14] sm:$0xf]
  %v101 = vld [vmem:[%s1 + $0x18] sm:$0xf]
  %v102 = vld [vmem:[%s1 + $0x1c] sm:$0xf]
  %v103 = vld [vmem:[%s1 + $0x20] sm:$0xf]
  %v104 = vld [vmem:[%s1 + $0x24] sm:$0xf]
  %v105 = vld [vmem:[%s1 + $0x28] sm:$0xf]
  %v106 = vld [vmem:[%s1 + $0x2c] sm:$0xf]
  %v107 = vld [vmem:[%s1 + $0x30] sm:$0xf]
  %v108 = vld [vmem:[%s1 + $0x34] sm:$0xf]
  %v109 = vld [vmem:[%s1 + $0x38] sm:$0xf]
  %v110 = vld [vmem:[%s1 + $0x3c] sm:$0xf]
  %v111 = vld [vmem:[%s1 + $0x40] sm:$0xf]
  %v112 = vld [vmem:[%s1 + $0x44] sm:$0xf]
  %v113 = vld [vmem:[%s1 + $0x48] sm:$0xf]
  %v114 = vld [vmem:[%s1 + $0x4c] sm:$0xf]
  %v115 = vld [vmem:[%s1 + $0x50] sm:$0xf]
  %v116 = vld [vmem:[%s1 + $0x54] sm:$0xf]
  %v117 = vld [vmem:[%s1 + $0x58] sm:$0xf]
  %v118 = vld [vmem:[%s1 + $0x5c] sm:$0xf]
  %v119 = vld [vmem:[%s1 + $0x60] sm:$0xf]
  %v120 = vld [vmem:[%s1 + $0x64] sm:$0xf]
  %v121 = vld [vmem:[%s1 + $0x68] sm:$0xf]
  %v122 = vld [vmem:[%s1 + $0x6c] sm:$0xf]
  %v123 = vld [vmem:[%s1 + $0x70] sm:$0xf]
  %v124 = vld [vmem:[%s1 + $0x74] sm:$0xf]
  %v125 = vld [vmem:[%s1 + $0x78] sm:$0xf]
  %v126 = vld [vmem:[%s1 + $0x7c] sm:$0xf]
  %v127 = vld [vmem:[%s1 + $0x80] sm:$0xf]
  %v128 = vld [vmem:[%s1 + $0x84] sm:$0xf]
  %v129 = vld [vmem:[%s1 + $0x88] sm:$0xf]
  %v130 = vld [vmem:[%s1 + $0x8c] sm:$0xf]
  %v131 = vld [vmem:[%s1 + $0x90] sm:$0xf]
  %v132 = vld [vmem:[%s1 + $0x94] sm:$0xf]
  %v133 = vld [vmem:[%s1 + $0x98] sm:$0xf]
  %v134 = vld [vmem:[%s1 + $0x9c] sm:$0xf]
  %v135 = vld [vmem:[%s1 + $0xa0] sm:$0xf]
  %v136 = vld [vmem:[%s1 + $0xa4] sm:$0xf]
  %v137 = vld [vmem:[%s1 + $0xa8] sm:$0xf]
  %v138 = vld [vmem:[%s1 + $0xac] sm:$0xf]
  %v139 = vld [vmem:[%s1 + $0xb0] sm:$0xf]
  %v140 = vld [vmem:[%s1 + $0xb4] sm:$0xf]
  %v141 = vld [vmem:[%s1 + $0xb8] sm:$0xf]
  %v142 = vld [vmem:[%s1 + $0xbc] sm:$0xf]
  %v143 = vld [vmem:[%s1 + $0xc0] sm:$0xf]
  %v144 = vld [vmem:[%s1 + $0xc4] sm:$0xf]
  %v145 = vld [vmem:[%s1 + $0xc8] sm:$0xf]
  %v146 = vld [vmem:[%s1 + $0xcc] sm:$0xf]
  %v147 = vld [vmem:[%s1 + $0xd0] sm:$0xf]
  %v148 = vld [vmem:[%s1 + $0xd4] sm:$0xf]
  %v149 = vld [vmem:[%s1 + $0xd8] sm:$0xf]
  %v150 = vld [vmem:[%s1 + $0xdc] sm:$0xf]
  %v151 = vld [vmem:[%s1 + $0xe0] sm:$0xf]
  %v152 = vld [vmem:[%s1 + $0xe4] sm:$0xf]
  %v153 = vld [vmem:[%s1 + $0xe8] sm:$0xf]
  %v154 = vld [vmem:[%s1 + $0xec] sm:$0xf]
  %v155 = vld [vmem:[%s1 + $0xf0] sm:$0xf]
  %v156 = vld [vmem:[%s1 + $0xf4] sm:$0xf]
  %v157 = vld [vmem:[%s1 + $0xf8] sm:$0xf]
  %v158 = vld [vmem:[%s1 + $0xfc] sm:$0xf]
  %v159 = vld [vmem:[%s1 + $0x100] sm:$0xf]
  %v160 = vld [vmem:[%s1 + $0x104] sm:$0xf]
  %v161 = vld [vmem:[%s1 + $0x108] sm:$0xf]
  %v162 = vld [vmem:[%s1 + $0x10c] sm:$0xf]
  %v163 = vld [vmem:[%s1 + $0x110] sm:$0xf]
  %v164 = vld [vmem:[%s1 + $0x114] sm:$0xf]
  %v165 = vld [vmem:[%s1 + $0x118] sm:$0xf]
  %v166 = vld [vmem:[%s1 + $0x11c] sm:$0xf]
  %v167 = vld [vmem:[%s1 + $0x120] sm:$0xf]
  %v168 = vld [vmem:[%s1 + $0x124] sm:$0xf]
  %v169 = vld [vmem:[%s1 + $0x128] sm:$0xf]
  %v170 = vld [vmem:[%s1 + $0x12c] sm:$0xf]
  %v171 = vld [vmem:[%s1 + $0x130] sm:$0xf]
  %v172 = vld [vmem:[%s1 + $0x134] sm:$0xf]
  %v173 = vld [vmem:[%s1 + $0x138] sm:$0xf]
  %v174 = vld [vmem:[%s1 + $0x13c] sm:$0xf]
  %v175 = vld [vmem:[%s1 + $0x140] sm:$0xf]
  %v176 = vld [vmem:[%s1 + $0x144] sm:$0xf]
  %v177 = vld [vmem:[%s1 + $0x148] sm:$0xf]
  %v178 = vld [vmem:[%s1 + $0x14c] sm:$0xf]
  %v179 = vld [vmem:[%s1 + $0x150] sm:$0xf]
  %v180 = vld [vmem:[%s1 + $0x154] sm:$0xf]
  %v181 = vld [vmem:[%s1 + $0x158] sm:$0xf]
  %v182 = vld [vmem:[%s1 + $0x15c] sm:$0xf]
  %v183 = vld [vmem:[%s1 + $0x160] sm:$0xf]
  %v184 = vld [vmem:[%s1 + $0x164] sm:$0xf]
  %v185 = vld [vmem:[%s1 + $0x168] sm:$0xf]
  %v186 = vld [vmem:[%s1 + $0x16c] sm:$0xf]
  %v187 = vld [vmem:[%s1 + $0x170] sm:$0xf]
  %v188 = vld [vmem:[%s1 + $0x174] sm:$0xf]
  %v189 = vld [vmem:[%s1 + $0x178] sm:$0xf]
  %v190 = vld [vmem:[%s1 + $0x17c] sm:$0xf]
  %v191 = vld [vmem:[%s1 + $0x180] sm:$0xf]
  %v192 = vld [vmem:[%s1 + $0x184] sm:$0xf]
  %v193 = vld [vmem:[%s1 + $0x188] sm:$0xf]
  %v194 = vld [vmem:[%s1 + $0x18c] sm:$0xf]
  %v195 = vld [vmem:[%s1 + $0x190] sm:$0xf]
  %v196 = vld [vmem:[%s1 + $0x194] sm:$0xf]
  %v197 = vld [vmem:[%s1 + $0x198] sm:$0xf]
  %v198 = vld [vmem:[%s1 + $0x19c] sm:$0xf]
  %v199 = vld [vmem:[%s1 + $0x1a0] sm:$0xf]
  %v200 = vld [vmem:[%s1 + $0x1a4] sm:$0xf]
  %v201 = vld [vmem:[%s1 + $0x1a8] sm:$0xf]
  %v202 = vld [vmem:[%s1 + $0x1ac] sm:$0xf]
  %v203 = vld [vmem:[%s1 + $0x1b0] sm:$0xf]
  %v204 = vld [vmem:[%s1 + $0x1b4] sm:$0xf]
  %v205 = vld [vmem:[%s1 + $0x1b8] sm:$0xf]
  %v206 = vld [vmem:[%s1 + $0x1bc] sm:$0xf]
  %v207 = vld [vmem:[%s1 + $0x1c0] sm:$0xf]
  %v208 = vld [vmem:[%s1 + $0x1c4] sm:$0xf]
  %v209 = vld [vmem:[%s1 + $0x1c8] sm:$0xf]
  %v210 = vld [vmem:[%s1 + $0x1cc] sm:$0xf]
  %v211 = vld [vmem:[%s1 + $0x1d0] sm:$0xf]
  %v212 = vld [vmem:[%s1 + $0x1d4] sm:$0xf]
  %v213 = vld [vmem:[%s1 + $0x1d8] sm:$0xf]
  %v214 = vld [vmem:[%s1 + $0x1dc] sm:$0xf]
  %v215 = vld [vmem:[%s1 + $0x1e0] sm:$0xf]
  %v216 = vld [vmem:[%s1 + $0x1e4] sm:$0xf]
  %v217 = vld [vmem:[%s1 + $0x1e8] sm:$0xf]
  %v218 = vld [vmem:[%s1 + $0x1ec] sm:$0xf]
  %v219 = vld [vmem:[%s1 + $0x1f0] sm:$0xf]
  %v220 = vld [vmem:[%s1 + $0x1f4] sm:$0xf]
  %v221 = vld [vmem:[%s1 + $0x1f8] sm:$0xf]
  %v222 = vld [vmem:[%s1 + $0x1fc] sm:$0xf]
  %v223 = vld [vmem:[%s1 + $0x200] sm:$0xf]
  %v224 = vld [vmem:[%s1 + $0x204] sm:$0xf]
  %v225 = vld [vmem:[%s1 + $0x208] sm:$0xf]
  %v226 = vld [vmem:[%s1 + $0x20c] sm:$0xf]
  %v227 = vld [vmem:[%s1 + $0x210] sm:$0xf]
  %v228 = vld [vmem:[%s1 + $0x214] sm:$0xf]
  %v229 = vld [vmem:[%s1 + $0x218] sm:$0xf]
  %v230 = vld [vmem:[%s1 + $0x21c] sm:$0xf]
  %v231 = vld [vmem:[%s1 + $0x220] sm:$0xf]
  %v232 = vld [vmem:[%s1 + $0x224] sm:$0xf]
  %v233 = vld [vmem:[%s1 + $0x228] sm:$0xf]
  %v234 = vld [vmem:[%s1 + $0x22c] sm:$0xf]
  %v235 = vld [vmem:[%s1 + $0x230] sm:$0xf]
  %v236 = vld [vmem:[%s1 + $0x234] sm:$0xf]
  %v237 = vld [vmem:[%s1 + $0x238] sm:$0xf]
  %v238 = vld [vmem:[%s1 + $0x23c] sm:$0xf]
  %v239 = vld [vmem:[%s2] sm:$0x1]
  %v241 = vlaneseq
  %v242 = vshrl.u32 %v241, 7
  %v243 = vsub.s32 0, %v242
  %v244 = vrot.slane %v239, %v243
  %v326 = vunpack.c.l.b16 %v15
  %v327 = vunpack.c.h.b16 %v15
  %v328 = vunpack.c.l.b16 %v16
  %v329 = vunpack.c.h.b16 %v16
  %v330 = vunpack.c.l.b16 %v17
  %v331 = vunpack.c.h.b16 %v17
  %v332 = vunpack.c.l.b16 %v18
  %v333 = vunpack.c.h.b16 %v18
  %v334 = vunpack.c.l.b16 %v19
  %v335 = vunpack.c.l.b16 %v20
  %v336 = vunpack.c.h.b16 %v20
  %v337 = vunpack.c.l.b16 %v21
  %v338 = vunpack.c.h.b16 %v21
  %v339 = vunpack.c.l.b16 %v22
  %v340 = vunpack.c.h.b16 %v22
  %v341 = vunpack.c.l.b16 %v23
  %v342 = vunpack.c.h.b16 %v23
  %v343 = vunpack.c.l.b16 %v24
  %v344 = vunpack.c.l.b16 %v25
  %v345 = vunpack.c.h.b16 %v25
  %v346 = vunpack.c.l.b16 %v26
  %v347 = vunpack.c.h.b16 %v26
  %v348 = vunpack.c.l.b16 %v27
  %v349 = vunpack.c.h.b16 %v27
  %v350 = vunpack.c.l.b16 %v28
  %v351 = vunpack.c.h.b16 %v28
  %v352 = vunpack.c.l.b16 %v29
  %v353 = vunpack.c.l.b16 %v30
  %v354 = vunpack.c.h.b16 %v30
  %v355 = vunpack.c.l.b16 %v31
  %v356 = vunpack.c.h.b16 %v31
  %v357 = vunpack.c.l.b16 %v32
  %v358 = vunpack.c.h.b16 %v32
  %v359 = vunpack.c.l.b16 %v33
  %v360 = vunpack.c.h.b16 %v33
  %v361 = vunpack.c.l.b16 %v34
  %v362 = vunpack.c.l.b16 %v35
  %v363 = vunpack.c.h.b16 %v35
  %v364 = vunpack.c.l.b16 %v36
  %v365 = vunpack.c.h.b16 %v36
  %v366 = vunpack.c.l.b16 %v37
  %v367 = vunpack.c.h.b16 %v37
  %v368 = vunpack.c.l.b16 %v38
  %v369 = vunpack.c.h.b16 %v38
  %v370 = vunpack.c.l.b16 %v39
  %v371 = vunpack.c.l.b16 %v40
  %v372 = vunpack.c.h.b16 %v40
  %v373 = vunpack.c.l.b16 %v41
  %v374 = vunpack.c.h.b16 %v41
  %v375 = vunpack.c.l.b16 %v42
  %v376 = vunpack.c.h.b16 %v42
  %v377 = vunpack.c.l.b16 %v43
  %v378 = vunpack.c.h.b16 %v43
  %v379 = vunpack.c.l.b16 %v44
  %v380 = vunpack.c.l.b16 %v45
  %v381 = vunpack.c.h.b16 %v45
  %v382 = vunpack.c.l.b16 %v46
  %v383 = vunpack.c.h.b16 %v46
  %v384 = vunpack.c.l.b16 %v47
  %v385 = vunpack.c.h.b16 %v47
  %v386 = vunpack.c.l.b16 %v48
  %v387 = vunpack.c.h.b16 %v48
  %v388 = vunpack.c.l.b16 %v49
  %v389 = vunpack.c.l.b16 %v50
  %v390 = vunpack.c.h.b16 %v50
  %v391 = vunpack.c.l.b16 %v51
  %v392 = vunpack.c.h.b16 %v51
  %v393 = vunpack.c.l.b16 %v52
  %v394 = vunpack.c.h.b16 %v52
  %v395 = vunpack.c.l.b16 %v53
  %v396 = vunpack.c.h.b16 %v53
  %v397 = vunpack.c.l.b16 %v54
  %v398 = vunpack.c.l.b16 %v55
  %v399 = vunpack.c.h.b16 %v55
  %v400 = vunpack.c.l.b16 %v56
  %v401 = vunpack.c.h.b16 %v56
  %v402 = vunpack.c.l.b16 %v57
  %v403 = vunpack.c.h.b16 %v57
  %v404 = vunpack.c.l.b16 %v58
  %v405 = vunpack.c.h.b16 %v58
  %v406 = vunpack.c.l.b16 %v59
  %v407 = vunpack.c.l.b16 %v60
  %v408 = vunpack.c.h.b16 %v60
  %v409 = vunpack.c.l.b16 %v61
  %v410 = vunpack.c.h.b16 %v61
  %v411 = vunpack.c.l.b16 %v62
  %v412 = vunpack.c.h.b16 %v62
  %v413 = vunpack.c.l.b16 %v63
  %v414 = vunpack.c.h.b16 %v63
  %v415 = vunpack.c.l.b16 %v64
  %v416 = vunpack.c.l.b16 %v65
  %v417 = vunpack.c.h.b16 %v65
  %v418 = vunpack.c.l.b16 %v66
  %v419 = vunpack.c.h.b16 %v66
  %v420 = vunpack.c.l.b16 %v67
  %v421 = vunpack.c.h.b16 %v67
  %v422 = vunpack.c.l.b16 %v68
  %v423 = vunpack.c.h.b16 %v68
  %v424 = vunpack.c.l.b16 %v69
  %v425 = vunpack.c.l.b16 %v70
  %v426 = vunpack.c.h.b16 %v70
  %v427 = vunpack.c.l.b16 %v71
  %v428 = vunpack.c.h.b16 %v71
  %v429 = vunpack.c.l.b16 %v72
  %v430 = vunpack.c.h.b16 %v72
  %v431 = vunpack.c.l.b16 %v73
  %v432 = vunpack.c.h.b16 %v73
  %v433 = vunpack.c.l.b16 %v74
  %v434 = vunpack.c.l.b16 %v75
  %v435 = vunpack.c.h.b16 %v75
  %v436 = vunpack.c.l.b16 %v76
  %v437 = vunpack.c.h.b16 %v76
  %v438 = vunpack.c.l.b16 %v77
  %v439 = vunpack.c.h.b16 %v77
  %v440 = vunpack.c.l.b16 %v78
  %v441 = vunpack.c.h.b16 %v78
  %v442 = vunpack.c.l.b16 %v79
  %v443 = vunpack.c.l.b16 %v80
  %v444 = vunpack.c.h.b16 %v80
  %v445 = vunpack.c.l.b16 %v81
  %v446 = vunpack.c.h.b16 %v81
  %v447 = vunpack.c.l.b16 %v82
  %v448 = vunpack.c.h.b16 %v82
  %v449 = vunpack.c.l.b16 %v83
  %v450 = vunpack.c.h.b16 %v83
  %v451 = vunpack.c.l.b16 %v84
  %v452 = vunpack.c.l.b16 %v85
  %v453 = vunpack.c.h.b16 %v85
  %v454 = vunpack.c.l.b16 %v86
  %v455 = vunpack.c.h.b16 %v86
  %v456 = vunpack.c.l.b16 %v87
  %v457 = vunpack.c.h.b16 %v87
  %v458 = vunpack.c.l.b16 %v88
  %v459 = vunpack.c.h.b16 %v88
  %v460 = vunpack.c.l.b16 %v89
  %v461 = vunpack.c.l.b16 %v90
  %v462 = vunpack.c.h.b16 %v90
  %v463 = vunpack.c.l.b16 %v91
  %v464 = vunpack.c.h.b16 %v91
  %v465 = vunpack.c.l.b16 %v92
  %v466 = vunpack.c.h.b16 %v92
  %v467 = vunpack.c.l.b16 %v93
  %v468 = vunpack.c.h.b16 %v93
  %v469 = vunpack.c.l.b16 %v94
  %v470 = vpack.c.b16 %v335, %v326
  %v471 = vpack.c.b16 %v336, %v327
  %v472 = vpack.c.b16 %v337, %v328
  %v473 = vpack.c.b16 %v338, %v329
  %v474 = vpack.c.b16 %v339, %v330
  %v475 = vpack.c.b16 %v340, %v331
  %v476 = vpack.c.b16 %v341, %v332
  %v477 = vpack.c.b16 %v342, %v333
  %v478 = vpack.c.b16 %v343, %v334
  %v479 = vpack.c.b16 %v353, %v344
  %v480 = vpack.c.b16 %v354, %v345
  %v481 = vpack.c.b16 %v355, %v346
  %v482 = vpack.c.b16 %v356, %v347
  %v483 = vpack.c.b16 %v357, %v348
  %v484 = vpack.c.b16 %v358, %v349
  %v485 = vpack.c.b16 %v359, %v350
  %v486 = vpack.c.b16 %v360, %v351
  %v487 = vpack.c.b16 %v361, %v352
  %v488 = vpack.c.b16 %v371, %v362
  %v489 = vpack.c.b16 %v372, %v363
  %v490 = vpack.c.b16 %v373, %v364
  %v491 = vpack.c.b16 %v374, %v365
  %v492 = vpack.c.b16 %v375, %v366
  %v493 = vpack.c.b16 %v376, %v367
  %v494 = vpack.c.b16 %v377, %v368
  %v495 = vpack.c.b16 %v378, %v369
  %v496 = vpack.c.b16 %v379, %v370
  %v497 = vpack.c.b16 %v389, %v380
  %v498 = vpack.c.b16 %v390, %v381
  %v499 = vpack.c.b16 %v391, %v382
  %v500 = vpack.c.b16 %v392, %v383
  %v501 = vpack.c.b16 %v393, %v384
  %v502 = vpack.c.b16 %v394, %v385
  %v503 = vpack.c.b16 %v395, %v386
  %v504 = vpack.c.b16 %v396, %v387
  %v505 = vpack.c.b16 %v397, %v388
  %v506 = vpack.c.b16 %v407, %v398
  %v507 = vpack.c.b16 %v408, %v399
  %v508 = vpack.c.b16 %v409, %v400
  %v509 = vpack.c.b16 %v410, %v401
  %v510 = vpack.c.b16 %v411, %v402
  %v511 = vpack.c.b16 %v412, %v403
  %v512 = vpack.c.b16 %v413, %v404
  %v513 = vpack.c.b16 %v414, %v405
  %v514 = vpack.c.b16 %v415, %v406
  %v515 = vpack.c.b16 %v425, %v416
  %v516 = vpack.c.b16 %v426, %v417
  %v517 = vpack.c.b16 %v427, %v418
  %v518 = vpack.c.b16 %v428, %v419
  %v519 = vpack.c.b16 %v429, %v420
  %v520 = vpack.c.b16 %v430, %v421
  %v521 = vpack.c.b16 %v431, %v422
  %v522 = vpack.c.b16 %v432, %v423
  %v523 = vpack.c.b16 %v433, %v424
  %v524 = vpack.c.b16 %v443, %v434
  %v525 = vpack.c.b16 %v444, %v435
  %v526 = vpack.c.b16 %v445, %v436
  %v527 = vpack.c.b16 %v446, %v437
  %v528 = vpack.c.b16 %v447, %v438
  %v529 = vpack.c.b16 %v448, %v439
  %v530 = vpack.c.b16 %v449, %v440
  %v531 = vpack.c.b16 %v450, %v441
  %v532 = vpack.c.b16 %v451, %v442
  %v533 = vpack.c.b16 %v461, %v452
  %v534 = vpack.c.b16 %v462, %v453
  %v535 = vpack.c.b16 %v463, %v454
  %v536 = vpack.c.b16 %v464, %v455
  %v537 = vpack.c.b16 %v465, %v456
  %v538 = vpack.c.b16 %v466, %v457
  %v539 = vpack.c.b16 %v467, %v458
  %v540 = vpack.c.b16 %v468, %v459
  %v541 = vpack.c.b16 %v469, %v460
  %v758 = vunpack.c.l.b16 %v95
  %v759 = vunpack.c.l.b16 %v96
  %v760 = vunpack.c.l.b16 %v97
  %v761 = vunpack.c.l.b16 %v98
  %v762 = vunpack.c.l.b16 %v99
  %v763 = vunpack.c.l.b16 %v100
  %v764 = vunpack.c.l.b16 %v101
  %v765 = vunpack.c.l.b16 %v102
  %v766 = vunpack.c.l.b16 %v103
  %v767 = vunpack.c.l.b16 %v104
  %v768 = vunpack.c.l.b16 %v105
  %v769 = vunpack.c.l.b16 %v106
  %v770 = vunpack.c.l.b16 %v107
  %v771 = vunpack.c.l.b16 %v108
  %v772 = vunpack.c.l.b16 %v109
  %v773 = vunpack.c.l.b16 %v110
  %v774 = vunpack.c.l.b16 %v111
  %v775 = vunpack.c.l.b16 %v112
  %v776 = vunpack.c.l.b16 %v113
  %v777 = vunpack.c.l.b16 %v114
  %v778 = vunpack.c.l.b16 %v115
  %v779 = vunpack.c.l.b16 %v116
  %v780 = vunpack.c.l.b16 %v117
  %v781 = vunpack.c.l.b16 %v118
  %v782 = vunpack.c.l.b16 %v119
  %v783 = vunpack.c.l.b16 %v120
  %v784 = vunpack.c.l.b16 %v121
  %v785 = vunpack.c.l.b16 %v122
  %v786 = vunpack.c.l.b16 %v123
  %v787 = vunpack.c.l.b16 %v124
  %v788 = vunpack.c.l.b16 %v125
  %v789 = vunpack.c.l.b16 %v126
  %v790 = vunpack.c.l.b16 %v127
  %v791 = vunpack.c.l.b16 %v128
  %v792 = vunpack.c.l.b16 %v129
  %v793 = vunpack.c.l.b16 %v130
  %v794 = vunpack.c.l.b16 %v131
  %v795 = vunpack.c.l.b16 %v132
  %v796 = vunpack.c.l.b16 %v133
  %v797 = vunpack.c.l.b16 %v134
  %v798 = vunpack.c.l.b16 %v135
  %v799 = vunpack.c.l.b16 %v136
  %v800 = vunpack.c.l.b16 %v137
  %v801 = vunpack.c.l.b16 %v138
  %v802 = vunpack.c.l.b16 %v139
  %v803 = vunpack.c.l.b16 %v140
  %v804 = vunpack.c.l.b16 %v141
  %v805 = vunpack.c.l.b16 %v142
  %v806 = vunpack.c.l.b16 %v143
  %v807 = vunpack.c.l.b16 %v144
  %v808 = vunpack.c.l.b16 %v145
  %v809 = vunpack.c.l.b16 %v146
  %v810 = vunpack.c.l.b16 %v147
  %v811 = vunpack.c.l.b16 %v148
  %v812 = vunpack.c.l.b16 %v149
  %v813 = vunpack.c.l.b16 %v150
  %v814 = vunpack.c.l.b16 %v151
  %v815 = vunpack.c.l.b16 %v152
  %v816 = vunpack.c.l.b16 %v153
  %v817 = vunpack.c.l.b16 %v154
  %v818 = vunpack.c.l.b16 %v155
  %v819 = vunpack.c.l.b16 %v156
  %v820 = vunpack.c.l.b16 %v157
  %v821 = vunpack.c.l.b16 %v158
  %v822 = vunpack.c.l.b16 %v159
  %v823 = vunpack.c.l.b16 %v160
  %v824 = vunpack.c.l.b16 %v161
  %v825 = vunpack.c.l.b16 %v162
  %v826 = vunpack.c.l.b16 %v163
  %v827 = vunpack.c.l.b16 %v164
  %v828 = vunpack.c.l.b16 %v165
  %v829 = vunpack.c.l.b16 %v166
  %v830 = vunpack.c.l.b16 %v167
  %v831 = vunpack.c.l.b16 %v168
  %v832 = vunpack.c.l.b16 %v169
  %v833 = vunpack.c.l.b16 %v170
  %v834 = vunpack.c.l.b16 %v171
  %v835 = vunpack.c.l.b16 %v172
  %v836 = vunpack.c.l.b16 %v173
  %v837 = vunpack.c.l.b16 %v174
  %v838 = vunpack.c.l.b16 %v175
  %v839 = vunpack.c.l.b16 %v176
  %v840 = vunpack.c.l.b16 %v177
  %v841 = vunpack.c.l.b16 %v178
  %v842 = vunpack.c.l.b16 %v179
  %v843 = vunpack.c.l.b16 %v180
  %v844 = vunpack.c.l.b16 %v181
  %v845 = vunpack.c.l.b16 %v182
  %v846 = vunpack.c.l.b16 %v183
  %v847 = vunpack.c.l.b16 %v184
  %v848 = vunpack.c.l.b16 %v185
  %v849 = vunpack.c.l.b16 %v186
  %v850 = vunpack.c.l.b16 %v187
  %v851 = vunpack.c.l.b16 %v188
  %v852 = vunpack.c.l.b16 %v189
  %v853 = vunpack.c.l.b16 %v190
  %v854 = vunpack.c.l.b16 %v191
  %v855 = vunpack.c.l.b16 %v192
  %v856 = vunpack.c.l.b16 %v193
  %v857 = vunpack.c.l.b16 %v194
  %v858 = vunpack.c.l.b16 %v195
  %v859 = vunpack.c.l.b16 %v196
  %v860 = vunpack.c.l.b16 %v197
  %v861 = vunpack.c.l.b16 %v198
  %v862 = vunpack.c.l.b16 %v199
  %v863 = vunpack.c.l.b16 %v200
  %v864 = vunpack.c.l.b16 %v201
  %v865 = vunpack.c.l.b16 %v202
  %v866 = vunpack.c.l.b16 %v203
  %v867 = vunpack.c.l.b16 %v204
  %v868 = vunpack.c.l.b16 %v205
  %v869 = vunpack.c.l.b16 %v206
  %v870 = vunpack.c.l.b16 %v207
  %v871 = vunpack.c.l.b16 %v208
  %v872 = vunpack.c.l.b16 %v209
  %v873 = vunpack.c.l.b16 %v210
  %v874 = vunpack.c.l.b16 %v211
  %v875 = vunpack.c.l.b16 %v212
  %v876 = vunpack.c.l.b16 %v213
  %v877 = vunpack.c.l.b16 %v214
  %v878 = vunpack.c.l.b16 %v215
  %v879 = vunpack.c.l.b16 %v216
  %v880 = vunpack.c.l.b16 %v217
  %v881 = vunpack.c.l.b16 %v218
  %v882 = vunpack.c.l.b16 %v219
  %v883 = vunpack.c.l.b16 %v220
  %v884 = vunpack.c.l.b16 %v221
  %v885 = vunpack.c.l.b16 %v222
  %v886 = vunpack.c.l.b16 %v223
  %v887 = vunpack.c.l.b16 %v224
  %v888 = vunpack.c.l.b16 %v225
  %v889 = vunpack.c.l.b16 %v226
  %v890 = vunpack.c.l.b16 %v227
  %v891 = vunpack.c.l.b16 %v228
  %v892 = vunpack.c.l.b16 %v229
  %v893 = vunpack.c.l.b16 %v230
  %v894 = vunpack.c.l.b16 %v231
  %v895 = vunpack.c.l.b16 %v232
  %v896 = vunpack.c.l.b16 %v233
  %v897 = vunpack.c.l.b16 %v234
  %v898 = vunpack.c.l.b16 %v235
  %v899 = vunpack.c.l.b16 %v236
  %v900 = vunpack.c.l.b16 %v237
  %v901 = vunpack.c.l.b16 %v238
  %v902 = vpack.c.b16 %v759, %v758
  %v903 = vpack.c.b16 %v761, %v760
  %v904 = vpack.c.b16 %v763, %v762
  %v905 = vpack.c.b16 %v765, %v764
  %v906 = vpack.c.b16 %v767, %v766
  %v907 = vpack.c.b16 %v769, %v768
  %v908 = vpack.c.b16 %v771, %v770
  %v909 = vpack.c.b16 %v773, %v772
  %v910 = vpack.c.b16 %v775, %v774
  %v911 = vpack.c.b16 %v777, %v776
  %v912 = vpack.c.b16 %v779, %v778
  %v913 = vpack.c.b16 %v781, %v780
  %v914 = vpack.c.b16 %v783, %v782
  %v915 = vpack.c.b16 %v785, %v784
  %v916 = vpack.c.b16 %v787, %v786
  %v917 = vpack.c.b16 %v789, %v788
  %v918 = vpack.c.b16 %v791, %v790
  %v919 = vpack.c.b16 %v793, %v792
  %v920 = vpack.c.b16 %v795, %v794
  %v921 = vpack.c.b16 %v797, %v796
  %v922 = vpack.c.b16 %v799, %v798
  %v923 = vpack.c.b16 %v801, %v800
  %v924 = vpack.c.b16 %v803, %v802
  %v925 = vpack.c.b16 %v805, %v804
  %v926 = vpack.c.b16 %v807, %v806
  %v927 = vpack.c.b16 %v809, %v808
  %v928 = vpack.c.b16 %v811, %v810
  %v929 = vpack.c.b16 %v813, %v812
  %v930 = vpack.c.b16 %v815, %v814
  %v931 = vpack.c.b16 %v817, %v816
  %v932 = vpack.c.b16 %v819, %v818
  %v933 = vpack.c.b16 %v821, %v820
  %v934 = vpack.c.b16 %v823, %v822
  %v935 = vpack.c.b16 %v825, %v824
  %v936 = vpack.c.b16 %v827, %v826
  %v937 = vpack.c.b16 %v829, %v828
  %v938 = vpack.c.b16 %v831, %v830
  %v939 = vpack.c.b16 %v833, %v832
  %v940 = vpack.c.b16 %v835, %v834
  %v941 = vpack.c.b16 %v837, %v836
  %v942 = vpack.c.b16 %v839, %v838
  %v943 = vpack.c.b16 %v841, %v840
  %v944 = vpack.c.b16 %v843, %v842
  %v945 = vpack.c.b16 %v845, %v844
  %v946 = vpack.c.b16 %v847, %v846
  %v947 = vpack.c.b16 %v849, %v848
  %v948 = vpack.c.b16 %v851, %v850
  %v949 = vpack.c.b16 %v853, %v852
  %v950 = vpack.c.b16 %v855, %v854
  %v951 = vpack.c.b16 %v857, %v856
  %v952 = vpack.c.b16 %v859, %v858
  %v953 = vpack.c.b16 %v861, %v860
  %v954 = vpack.c.b16 %v863, %v862
  %v955 = vpack.c.b16 %v865, %v864
  %v956 = vpack.c.b16 %v867, %v866
  %v957 = vpack.c.b16 %v869, %v868
  %v958 = vpack.c.b16 %v871, %v870
  %v959 = vpack.c.b16 %v873, %v872
  %v960 = vpack.c.b16 %v875, %v874
  %v961 = vpack.c.b16 %v877, %v876
  %v962 = vpack.c.b16 %v879, %v878
  %v963 = vpack.c.b16 %v881, %v880
  %v964 = vpack.c.b16 %v883, %v882
  %v965 = vpack.c.b16 %v885, %v884
  %v966 = vpack.c.b16 %v887, %v886
  %v967 = vpack.c.b16 %v889, %v888
  %v968 = vpack.c.b16 %v891, %v890
  %v969 = vpack.c.b16 %v893, %v892
  %v970 = vpack.c.b16 %v895, %v894
  %v971 = vpack.c.b16 %v897, %v896
  %v972 = vpack.c.b16 %v899, %v898
  %v973 = vpack.c.b16 %v901, %v900
  %1046 = vmatprep.subr.bf16.mxu0 0
  %1047 = vmatpush1.bf16.msra.mxu0 %v909
  %1048 = vmatprep.subr.bf16.mxu0 0
  %1049 = vmatpush1.bf16.msra.mxu0 %v908
  %1050 = vmatprep.subr.bf16.mxu0 0
  %1051 = vmatpush1.bf16.msra.mxu0 %v907
  %1052 = vmatprep.subr.bf16.mxu0 0
  %1053 = vmatpush1.bf16.msra.mxu0 %v906
  %1054 = vmatprep.subr.bf16.mxu0 0
  %1055 = vmatpush1.bf16.msra.mxu0 %v905
  %1056 = vmatprep.subr.bf16.mxu0 0
  %1057 = vmatpush1.bf16.msra.mxu0 %v904
  %1058 = vmatprep.subr.bf16.mxu0 0
  %1059 = vmatpush1.bf16.msra.mxu0 %v903
  %1060 = vmatprep.subr.bf16.mxu0 0
  %1061 = vmatpush1.bf16.msra.mxu0 %v902
  %1062 = vmatprep.subr.bf16.mxu0 0
  %1063 = vmatpush2.bf16.msra.mxu0 %v917
  %1064 = vmatprep.subr.bf16.mxu0 0
  %1065 = vmatpush2.bf16.msra.mxu0 %v916
  %1066 = vmatprep.subr.bf16.mxu0 0
  %1067 = vmatpush2.bf16.msra.mxu0 %v915
  %1068 = vmatprep.subr.bf16.mxu0 0
  %1069 = vmatpush2.bf16.msra.mxu0 %v914
  %1070 = vmatprep.subr.bf16.mxu0 0
  %1071 = vmatpush2.bf16.msra.mxu0 %v913
  %1072 = vmatprep.subr.bf16.mxu0 0
  %1073 = vmatpush2.bf16.msra.mxu0 %v912
  %1074 = vmatprep.subr.bf16.mxu0 0
  %1075 = vmatpush2.bf16.msra.mxu0 %v911
  %1076 = vmatprep.subr.bf16.mxu0 0
  %1077 = vmatpush2.bf16.msra.mxu0 %v910
  %1078 = vmatprep.mubr.bf16.mxu0 %v471
  %1079 = vmatmul.mubr.bf16.gmra.mxu0 %v470
  %v1080 = vpop.f32.mrf.mxu0
  %v1081 = vadd.f32 %v244, %v1080
  %v1082 = vpop.f32.mrf.mxu0
  %v1083 = vpop.f32.mrf.mxu0
  %v1084 = vadd.f32 %v244, %v1083
  %v1085 = vpop.f32.mrf.mxu0
  %1086 = vmatprep.mubr.bf16.mxu0 %v480
  %1087 = vmatmul.mubr.bf16.gmra.mxu0 %v479
  %v1088 = vpop.f32.mrf.mxu0
  %v1089 = vadd.f32 %v244, %v1088
  %v1090 = vpop.f32.mrf.mxu0
  %v1091 = vpop.f32.mrf.mxu0
  %v1092 = vadd.f32 %v244, %v1091
  %v1093 = vpop.f32.mrf.mxu0
  %1094 = vmatprep.mubr.bf16.mxu0 %v489
  %1095 = vmatmul.mubr.bf16.gmra.mxu0 %v488
  %v1096 = vpop.f32.mrf.mxu0
  %v1097 = vadd.f32 %v244, %v1096
  %v1098 = vpop.f32.mrf.mxu0
  %v1099 = vpop.f32.mrf.mxu0
  %v1100 = vadd.f32 %v244, %v1099
  %v1101 = vpop.f32.mrf.mxu0
  %1102 = vmatprep.mubr.bf16.mxu0 %v498
  %1103 = vmatmul.mubr.bf16.gmra.mxu0 %v497
  %v1104 = vpop.f32.mrf.mxu0
  %v1105 = vadd.f32 %v244, %v1104
  %v1106 = vpop.f32.mrf.mxu0
  %v1107 = vpop.f32.mrf.mxu0
  %v1108 = vadd.f32 %v244, %v1107
  %v1109 = vpop.f32.mrf.mxu0
  %1110 = vmatprep.mubr.bf16.mxu0 %v507
  %1111 = vmatmul.mubr.bf16.gmra.mxu0 %v506
  %v1112 = vpop.f32.mrf.mxu0
  %v1113 = vadd.f32 %v244, %v1112
  %v1114 = vpop.f32.mrf.mxu0
  %v1115 = vpop.f32.mrf.mxu0
  %v1116 = vadd.f32 %v244, %v1115
  %v1117 = vpop.f32.mrf.mxu0
  %1118 = vmatprep.mubr.bf16.mxu0 %v516
  %1119 = vmatmul.mubr.bf16.gmra.mxu0 %v515
  %v1120 = vpop.f32.mrf.mxu0
  %v1121 = vadd.f32 %v244, %v1120
  %v1122 = vpop.f32.mrf.mxu0
  %v1123 = vpop.f32.mrf.mxu0
  %v1124 = vadd.f32 %v244, %v1123
  %v1125 = vpop.f32.mrf.mxu0
  %1126 = vmatprep.mubr.bf16.mxu0 %v525
  %1127 = vmatmul.mubr.bf16.gmra.mxu0 %v524
  %v1128 = vpop.f32.mrf.mxu0
  %v1129 = vadd.f32 %v244, %v1128
  %v1130 = vpop.f32.mrf.mxu0
  %v1131 = vpop.f32.mrf.mxu0
  %v1132 = vadd.f32 %v244, %v1131
  %v1133 = vpop.f32.mrf.mxu0
  %1134 = vmatprep.mubr.bf16.mxu0 %v534
  %1135 = vmatmul.mubr.bf16.gmra.mxu0 %v533
  %v1136 = vpop.f32.mrf.mxu0
  %v1137 = vadd.f32 %v244, %v1136
  %v1138 = vpop.f32.mrf.mxu0
  %v1139 = vpop.f32.mrf.mxu0
  %v1140 = vadd.f32 %v244, %v1139
  %v1141 = vpop.f32.mrf.mxu0
  %1142 = vdwg.mxu0
  %1143 = vmatprep.subr.bf16.mxu0 0
  %1144 = vmatpush1.bf16.msra.mxu0 %v925
  %1145 = vmatprep.subr.bf16.mxu0 0
  %1146 = vmatpush1.bf16.msra.mxu0 %v924
  %1147 = vmatprep.subr.bf16.mxu0 0
  %1148 = vmatpush1.bf16.msra.mxu0 %v923
  %1149 = vmatprep.subr.bf16.mxu0 0
  %1150 = vmatpush1.bf16.msra.mxu0 %v922
  %1151 = vmatprep.subr.bf16.mxu0 0
  %1152 = vmatpush1.bf16.msra.mxu0 %v921
  %1153 = vmatprep.subr.bf16.mxu0 0
  %1154 = vmatpush1.bf16.msra.mxu0 %v920
  %1155 = vmatprep.subr.bf16.mxu0 0
  %1156 = vmatpush1.bf16.msra.mxu0 %v919
  %1157 = vmatprep.subr.bf16.mxu0 0
  %1158 = vmatpush1.bf16.msra.mxu0 %v918
  %1159 = vmatprep.subr.bf16.mxu0 0
  %1160 = vmatpush2.bf16.msra.mxu0 %v933
  %1161 = vmatprep.subr.bf16.mxu0 0
  %1162 = vmatpush2.bf16.msra.mxu0 %v932
  %1163 = vmatprep.subr.bf16.mxu0 0
  %1164 = vmatpush2.bf16.msra.mxu0 %v931
  %1165 = vmatprep.subr.bf16.mxu0 0
  %1166 = vmatpush2.bf16.msra.mxu0 %v930
  %1167 = vmatprep.subr.bf16.mxu0 0
  %1168 = vmatpush2.bf16.msra.mxu0 %v929
  %1169 = vmatprep.subr.bf16.mxu0 0
  %1170 = vmatpush2.bf16.msra.mxu0 %v928
  %1171 = vmatprep.subr.bf16.mxu0 0
  %1172 = vmatpush2.bf16.msra.mxu0 %v927
  %1173 = vmatprep.subr.bf16.mxu0 0
  %1174 = vmatpush2.bf16.msra.mxu0 %v926
  %1175 = vmatprep.mubr.bf16.mxu0 %v473
  %1176 = vmatmul.mubr.bf16.gmra.mxu0 %v472
  %v1177 = vpop.f32.mrf.mxu0
  %v1178 = vadd.f32 %v1081, %v1177
  %v1179 = vpop.f32.mrf.mxu0
  %v1180 = vpop.f32.mrf.mxu0
  %v1181 = vadd.f32 %v1084, %v1180
  %v1182 = vpop.f32.mrf.mxu0
  %1183 = vmatprep.mubr.bf16.mxu0 %v482
  %1184 = vmatmul.mubr.bf16.gmra.mxu0 %v481
  %v1185 = vpop.f32.mrf.mxu0
  %v1186 = vadd.f32 %v1089, %v1185
  %v1187 = vpop.f32.mrf.mxu0
  %v1188 = vpop.f32.mrf.mxu0
  %v1189 = vadd.f32 %v1092, %v1188
  %v1190 = vpop.f32.mrf.mxu0
  %1191 = vmatprep.mubr.bf16.mxu0 %v491
  %1192 = vmatmul.mubr.bf16.gmra.mxu0 %v490
  %v1193 = vpop.f32.mrf.mxu0
  %v1194 = vadd.f32 %v1097, %v1193
  %v1195 = vpop.f32.mrf.mxu0
  %v1196 = vpop.f32.mrf.mxu0
  %v1197 = vadd.f32 %v1100, %v1196
  %v1198 = vpop.f32.mrf.mxu0
  %1199 = vmatprep.mubr.bf16.mxu0 %v500
  %1200 = vmatmul.mubr.bf16.gmra.mxu0 %v499
  %v1201 = vpop.f32.mrf.mxu0
  %v1202 = vadd.f32 %v1105, %v1201
  %v1203 = vpop.f32.mrf.mxu0
  %v1204 = vpop.f32.mrf.mxu0
  %v1205 = vadd.f32 %v1108, %v1204
  %v1206 = vpop.f32.mrf.mxu0
  %1207 = vmatprep.mubr.bf16.mxu0 %v509
  %1208 = vmatmul.mubr.bf16.gmra.mxu0 %v508
  %v1209 = vpop.f32.mrf.mxu0
  %v1210 = vadd.f32 %v1113, %v1209
  %v1211 = vpop.f32.mrf.mxu0
  %v1212 = vpop.f32.mrf.mxu0
  %v1213 = vadd.f32 %v1116, %v1212
  %v1214 = vpop.f32.mrf.mxu0
  %1215 = vmatprep.mubr.bf16.mxu0 %v518
  %1216 = vmatmul.mubr.bf16.gmra.mxu0 %v517
  %v1217 = vpop.f32.mrf.mxu0
  %v1218 = vadd.f32 %v1121, %v1217
  %v1219 = vpop.f32.mrf.mxu0
  %v1220 = vpop.f32.mrf.mxu0
  %v1221 = vadd.f32 %v1124, %v1220
  %v1222 = vpop.f32.mrf.mxu0
  %1223 = vmatprep.mubr.bf16.mxu0 %v527
  %1224 = vmatmul.mubr.bf16.gmra.mxu0 %v526
  %v1225 = vpop.f32.mrf.mxu0
  %v1226 = vadd.f32 %v1129, %v1225
  %v1227 = vpop.f32.mrf.mxu0
  %v1228 = vpop.f32.mrf.mxu0
  %v1229 = vadd.f32 %v1132, %v1228
  %v1230 = vpop.f32.mrf.mxu0
  %1231 = vmatprep.mubr.bf16.mxu0 %v536
  %1232 = vmatmul.mubr.bf16.gmra.mxu0 %v535
  %v1233 = vpop.f32.mrf.mxu0
  %v1234 = vadd.f32 %v1137, %v1233
  %v1235 = vpop.f32.mrf.mxu0
  %v1236 = vpop.f32.mrf.mxu0
  %v1237 = vadd.f32 %v1140, %v1236
  %v1238 = vpop.f32.mrf.mxu0
  %1239 = vdwg.mxu0
  %1240 = vmatprep.subr.bf16.mxu0 0
  %1241 = vmatpush1.bf16.msra.mxu0 %v941
  %1242 = vmatprep.subr.bf16.mxu0 0
  %1243 = vmatpush1.bf16.msra.mxu0 %v940
  %1244 = vmatprep.subr.bf16.mxu0 0
  %1245 = vmatpush1.bf16.msra.mxu0 %v939
  %1246 = vmatprep.subr.bf16.mxu0 0
  %1247 = vmatpush1.bf16.msra.mxu0 %v938
  %1248 = vmatprep.subr.bf16.mxu0 0
  %1249 = vmatpush1.bf16.msra.mxu0 %v937
  %1250 = vmatprep.subr.bf16.mxu0 0
  %1251 = vmatpush1.bf16.msra.mxu0 %v936
  %1252 = vmatprep.subr.bf16.mxu0 0
  %1253 = vmatpush1.bf16.msra.mxu0 %v935
  %1254 = vmatprep.subr.bf16.mxu0 0
  %1255 = vmatpush1.bf16.msra.mxu0 %v934
  %1256 = vmatprep.subr.bf16.mxu0 0
  %1257 = vmatpush2.bf16.msra.mxu0 %v949
  %1258 = vmatprep.subr.bf16.mxu0 0
  %1259 = vmatpush2.bf16.msra.mxu0 %v948
  %1260 = vmatprep.subr.bf16.mxu0 0
  %1261 = vmatpush2.bf16.msra.mxu0 %v947
  %1262 = vmatprep.subr.bf16.mxu0 0
  %1263 = vmatpush2.bf16.msra.mxu0 %v946
  %1264 = vmatprep.subr.bf16.mxu0 0
  %1265 = vmatpush2.bf16.msra.mxu0 %v945
  %1266 = vmatprep.subr.bf16.mxu0 0
  %1267 = vmatpush2.bf16.msra.mxu0 %v944
  %1268 = vmatprep.subr.bf16.mxu0 0
  %1269 = vmatpush2.bf16.msra.mxu0 %v943
  %1270 = vmatprep.subr.bf16.mxu0 0
  %1271 = vmatpush2.bf16.msra.mxu0 %v942
  %1272 = vmatprep.mubr.bf16.mxu0 %v475
  %1273 = vmatmul.mubr.bf16.gmra.mxu0 %v474
  %v1274 = vpop.f32.mrf.mxu0
  %v1275 = vadd.f32 %v1178, %v1274
  %v1276 = vpop.f32.mrf.mxu0
  %v1277 = vpop.f32.mrf.mxu0
  %v1278 = vadd.f32 %v1181, %v1277
  %v1279 = vpop.f32.mrf.mxu0
  %1280 = vmatprep.mubr.bf16.mxu0 %v484
  %1281 = vmatmul.mubr.bf16.gmra.mxu0 %v483
  %v1282 = vpop.f32.mrf.mxu0
  %v1283 = vadd.f32 %v1186, %v1282
  %v1284 = vpop.f32.mrf.mxu0
  %v1285 = vpop.f32.mrf.mxu0
  %v1286 = vadd.f32 %v1189, %v1285
  %v1287 = vpop.f32.mrf.mxu0
  %1288 = vmatprep.mubr.bf16.mxu0 %v493
  %1289 = vmatmul.mubr.bf16.gmra.mxu0 %v492
  %v1290 = vpop.f32.mrf.mxu0
  %v1291 = vadd.f32 %v1194, %v1290
  %v1292 = vpop.f32.mrf.mxu0
  %v1293 = vpop.f32.mrf.mxu0
  %v1294 = vadd.f32 %v1197, %v1293
  %v1295 = vpop.f32.mrf.mxu0
  %1296 = vmatprep.mubr.bf16.mxu0 %v502
  %1297 = vmatmul.mubr.bf16.gmra.mxu0 %v501
  %v1298 = vpop.f32.mrf.mxu0
  %v1299 = vadd.f32 %v1202, %v1298
  %v1300 = vpop.f32.mrf.mxu0
  %v1301 = vpop.f32.mrf.mxu0
  %v1302 = vadd.f32 %v1205, %v1301
  %v1303 = vpop.f32.mrf.mxu0
  %1304 = vmatprep.mubr.bf16.mxu0 %v511
  %1305 = vmatmul.mubr.bf16.gmra.mxu0 %v510
  %v1306 = vpop.f32.mrf.mxu0
  %v1307 = vadd.f32 %v1210, %v1306
  %v1308 = vpop.f32.mrf.mxu0
  %v1309 = vpop.f32.mrf.mxu0
  %v1310 = vadd.f32 %v1213, %v1309
  %v1311 = vpop.f32.mrf.mxu0
  %1312 = vmatprep.mubr.bf16.mxu0 %v520
  %1313 = vmatmul.mubr.bf16.gmra.mxu0 %v519
  %v1314 = vpop.f32.mrf.mxu0
  %v1315 = vadd.f32 %v1218, %v1314
  %v1316 = vpop.f32.mrf.mxu0
  %v1317 = vpop.f32.mrf.mxu0
  %v1318 = vadd.f32 %v1221, %v1317
  %v1319 = vpop.f32.mrf.mxu0
  %1320 = vmatprep.mubr.bf16.mxu0 %v529
  %1321 = vmatmul.mubr.bf16.gmra.mxu0 %v528
  %v1322 = vpop.f32.mrf.mxu0
  %v1323 = vadd.f32 %v1226, %v1322
  %v1324 = vpop.f32.mrf.mxu0
  %v1325 = vpop.f32.mrf.mxu0
  %v1326 = vadd.f32 %v1229, %v1325
  %v1327 = vpop.f32.mrf.mxu0
  %1328 = vmatprep.mubr.bf16.mxu0 %v538
  %1329 = vmatmul.mubr.bf16.gmra.mxu0 %v537
  %v1330 = vpop.f32.mrf.mxu0
  %v1331 = vadd.f32 %v1234, %v1330
  %v1332 = vpop.f32.mrf.mxu0
  %v1333 = vpop.f32.mrf.mxu0
  %v1334 = vadd.f32 %v1237, %v1333
  %v1335 = vpop.f32.mrf.mxu0
  %1336 = vdwg.mxu0
  %1337 = vmatprep.subr.bf16.mxu0 0
  %1338 = vmatpush1.bf16.msra.mxu0 %v957
  %1339 = vmatprep.subr.bf16.mxu0 0
  %1340 = vmatpush1.bf16.msra.mxu0 %v956
  %1341 = vmatprep.subr.bf16.mxu0 0
  %1342 = vmatpush1.bf16.msra.mxu0 %v955
  %1343 = vmatprep.subr.bf16.mxu0 0
  %1344 = vmatpush1.bf16.msra.mxu0 %v954
  %1345 = vmatprep.subr.bf16.mxu0 0
  %1346 = vmatpush1.bf16.msra.mxu0 %v953
  %1347 = vmatprep.subr.bf16.mxu0 0
  %1348 = vmatpush1.bf16.msra.mxu0 %v952
  %1349 = vmatprep.subr.bf16.mxu0 0
  %1350 = vmatpush1.bf16.msra.mxu0 %v951
  %1351 = vmatprep.subr.bf16.mxu0 0
  %1352 = vmatpush1.bf16.msra.mxu0 %v950
  %1353 = vmatprep.subr.bf16.mxu0 0
  %1354 = vmatpush2.bf16.msra.mxu0 %v965
  %1355 = vmatprep.subr.bf16.mxu0 0
  %1356 = vmatpush2.bf16.msra.mxu0 %v964
  %1357 = vmatprep.subr.bf16.mxu0 0
  %1358 = vmatpush2.bf16.msra.mxu0 %v963
  %1359 = vmatprep.subr.bf16.mxu0 0
  %1360 = vmatpush2.bf16.msra.mxu0 %v962
  %1361 = vmatprep.subr.bf16.mxu0 0
  %1362 = vmatpush2.bf16.msra.mxu0 %v961
  %1363 = vmatprep.subr.bf16.mxu0 0
  %1364 = vmatpush2.bf16.msra.mxu0 %v960
  %1365 = vmatprep.subr.bf16.mxu0 0
  %1366 = vmatpush2.bf16.msra.mxu0 %v959
  %1367 = vmatprep.subr.bf16.mxu0 0
  %1368 = vmatpush2.bf16.msra.mxu0 %v958
  %1369 = vmatprep.mubr.bf16.mxu0 %v477
  %1370 = vmatmul.mubr.bf16.gmra.mxu0 %v476
  %v1371 = vpop.f32.mrf.mxu0
  %v1372 = vadd.f32 %v1275, %v1371
  %v1373 = vpop.f32.mrf.mxu0
  %v1374 = vpop.f32.mrf.mxu0
  %v1375 = vadd.f32 %v1278, %v1374
  %v1376 = vpop.f32.mrf.mxu0
  %1377 = vmatprep.mubr.bf16.mxu0 %v486
  %1378 = vmatmul.mubr.bf16.gmra.mxu0 %v485
  %v1379 = vpop.f32.mrf.mxu0
  %v1380 = vadd.f32 %v1283, %v1379
  %v1381 = vpop.f32.mrf.mxu0
  %v1382 = vpop.f32.mrf.mxu0
  %v1383 = vadd.f32 %v1286, %v1382
  %v1384 = vpop.f32.mrf.mxu0
  %1385 = vmatprep.mubr.bf16.mxu0 %v495
  %1386 = vmatmul.mubr.bf16.gmra.mxu0 %v494
  %v1387 = vpop.f32.mrf.mxu0
  %v1388 = vadd.f32 %v1291, %v1387
  %v1389 = vpop.f32.mrf.mxu0
  %v1390 = vpop.f32.mrf.mxu0
  %v1391 = vadd.f32 %v1294, %v1390
  %v1392 = vpop.f32.mrf.mxu0
  %1393 = vmatprep.mubr.bf16.mxu0 %v504
  %1394 = vmatmul.mubr.bf16.gmra.mxu0 %v503
  %v1395 = vpop.f32.mrf.mxu0
  %v1396 = vadd.f32 %v1299, %v1395
  %v1397 = vpop.f32.mrf.mxu0
  %v1398 = vpop.f32.mrf.mxu0
  %v1399 = vadd.f32 %v1302, %v1398
  %v1400 = vpop.f32.mrf.mxu0
  %1401 = vmatprep.mubr.bf16.mxu0 %v513
  %1402 = vmatmul.mubr.bf16.gmra.mxu0 %v512
  %v1403 = vpop.f32.mrf.mxu0
  %v1404 = vadd.f32 %v1307, %v1403
  %v1405 = vpop.f32.mrf.mxu0
  %v1406 = vpop.f32.mrf.mxu0
  %v1407 = vadd.f32 %v1310, %v1406
  %v1408 = vpop.f32.mrf.mxu0
  %1409 = vmatprep.mubr.bf16.mxu0 %v522
  %1410 = vmatmul.mubr.bf16.gmra.mxu0 %v521
  %v1411 = vpop.f32.mrf.mxu0
  %v1412 = vadd.f32 %v1315, %v1411
  %v1413 = vpop.f32.mrf.mxu0
  %v1414 = vpop.f32.mrf.mxu0
  %v1415 = vadd.f32 %v1318, %v1414
  %v1416 = vpop.f32.mrf.mxu0
  %1417 = vmatprep.mubr.bf16.mxu0 %v531
  %1418 = vmatmul.mubr.bf16.gmra.mxu0 %v530
  %v1419 = vpop.f32.mrf.mxu0
  %v1420 = vadd.f32 %v1323, %v1419
  %v1421 = vpop.f32.mrf.mxu0
  %v1422 = vpop.f32.mrf.mxu0
  %v1423 = vadd.f32 %v1326, %v1422
  %v1424 = vpop.f32.mrf.mxu0
  %1425 = vmatprep.mubr.bf16.mxu0 %v540
  %1426 = vmatmul.mubr.bf16.gmra.mxu0 %v539
  %v1427 = vpop.f32.mrf.mxu0
  %v1428 = vadd.f32 %v1331, %v1427
  %v1429 = vpop.f32.mrf.mxu0
  %v1430 = vpop.f32.mrf.mxu0
  %v1431 = vadd.f32 %v1334, %v1430
  %v1432 = vpop.f32.mrf.mxu0
  %1433 = vdwg.mxu0
  %1434 = vmatprep.subr.bf16.mxu0 0
  %1435 = vmatpush1.bf16.msra.mxu0 %v973
  %1436 = vmatprep.subr.bf16.mxu0 0
  %1437 = vmatpush1.bf16.msra.mxu0 %v972
  %1438 = vmatprep.subr.bf16.mxu0 0
  %1439 = vmatpush1.bf16.msra.mxu0 %v971
  %1440 = vmatprep.subr.bf16.mxu0 0
  %1441 = vmatpush1.bf16.msra.mxu0 %v970
  %1442 = vmatprep.subr.bf16.mxu0 0
  %1443 = vmatpush1.bf16.msra.mxu0 %v969
  %1444 = vmatprep.subr.bf16.mxu0 0
  %1445 = vmatpush1.bf16.msra.mxu0 %v968
  %1446 = vmatprep.subr.bf16.mxu0 0
  %1447 = vmatpush1.bf16.msra.mxu0 %v967
  %1448 = vmatprep.subr.bf16.mxu0 0
  %1449 = vmatpush1.bf16.msra.mxu0 %v966
  %1450 = vmatprep.subr.bf16.mxu0 0
  %1451 = vmatpush2.bf16.msra.mxu0 0
  %1452 = vmatprep.subr.bf16.mxu0 0
  %1453 = vmatpush2.bf16.msra.mxu0 0
  %1454 = vmatprep.subr.bf16.mxu0 0
  %1455 = vmatpush2.bf16.msra.mxu0 0
  %1456 = vmatprep.subr.bf16.mxu0 0
  %1457 = vmatpush2.bf16.msra.mxu0 0
  %1458 = vmatprep.subr.bf16.mxu0 0
  %1459 = vmatpush2.bf16.msra.mxu0 0
  %1460 = vmatprep.subr.bf16.mxu0 0
  %1461 = vmatpush2.bf16.msra.mxu0 0
  %1462 = vmatprep.subr.bf16.mxu0 0
  %1463 = vmatpush2.bf16.msra.mxu0 0
  %1464 = vmatprep.subr.bf16.mxu0 0
  %1465 = vmatpush2.bf16.msra.mxu0 0
  %1466 = vmatprep.mubr.bf16.mxu0 0
  %1467 = vmatmul.mubr.bf16.gmra.mxu0 %v478
  %v1468 = vpop.f32.mrf.mxu0
  %v1469 = vadd.f32 %v1372, %v1468
  %v1470 = vpop.f32.mrf.mxu0
  %v1471 = vpop.f32.mrf.mxu0
  %v1472 = vadd.f32 %v1375, %v1471
  %v1473 = vpop.f32.mrf.mxu0
  %1474 = vmatprep.mubr.bf16.mxu0 0
  %1475 = vmatmul.mubr.bf16.gmra.mxu0 %v487
  %v1476 = vpop.f32.mrf.mxu0
  %v1477 = vadd.f32 %v1380, %v1476
  %v1478 = vpop.f32.mrf.mxu0
  %v1479 = vpop.f32.mrf.mxu0
  %v1480 = vadd.f32 %v1383, %v1479
  %v1481 = vpop.f32.mrf.mxu0
  %1482 = vmatprep.mubr.bf16.mxu0 0
  %1483 = vmatmul.mubr.bf16.gmra.mxu0 %v496
  %v1484 = vpop.f32.mrf.mxu0
  %v1485 = vadd.f32 %v1388, %v1484
  %v1486 = vpop.f32.mrf.mxu0
  %v1487 = vpop.f32.mrf.mxu0
  %v1488 = vadd.f32 %v1391, %v1487
  %v1489 = vpop.f32.mrf.mxu0
  %1490 = vmatprep.mubr.bf16.mxu0 0
  %1491 = vmatmul.mubr.bf16.gmra.mxu0 %v505
  %v1492 = vpop.f32.mrf.mxu0
  %v1493 = vadd.f32 %v1396, %v1492
  %v1494 = vpop.f32.mrf.mxu0
  %v1495 = vpop.f32.mrf.mxu0
  %v1496 = vadd.f32 %v1399, %v1495
  %v1497 = vpop.f32.mrf.mxu0
  %1498 = vmatprep.mubr.bf16.mxu0 0
  %1499 = vmatmul.mubr.bf16.gmra.mxu0 %v514
  %v1500 = vpop.f32.mrf.mxu0
  %v1501 = vadd.f32 %v1404, %v1500
  %v1502 = vpop.f32.mrf.mxu0
  %v1503 = vpop.f32.mrf.mxu0
  %v1504 = vadd.f32 %v1407, %v1503
  %v1505 = vpop.f32.mrf.mxu0
  %1506 = vmatprep.mubr.bf16.mxu0 0
  %1507 = vmatmul.mubr.bf16.gmra.mxu0 %v523
  %v1508 = vpop.f32.mrf.mxu0
  %v1509 = vadd.f32 %v1412, %v1508
  %v1510 = vpop.f32.mrf.mxu0
  %v1511 = vpop.f32.mrf.mxu0
  %v1512 = vadd.f32 %v1415, %v1511
  %v1513 = vpop.f32.mrf.mxu0
  %1514 = vmatprep.mubr.bf16.mxu0 0
  %1515 = vmatmul.mubr.bf16.gmra.mxu0 %v532
  %v1516 = vpop.f32.mrf.mxu0
  %v1517 = vadd.f32 %v1420, %v1516
  %v1518 = vpop.f32.mrf.mxu0
  %v1519 = vpop.f32.mrf.mxu0
  %v1520 = vadd.f32 %v1423, %v1519
  %v1521 = vpop.f32.mrf.mxu0
  %1522 = vmatprep.mubr.bf16.mxu0 0
  %1523 = vmatmul.mubr.bf16.gmra.mxu0 %v541
  %v1524 = vpop.f32.mrf.mxu0
  %v1525 = vadd.f32 %v1428, %v1524
  %v1526 = vpop.f32.mrf.mxu0
  %v1527 = vpop.f32.mrf.mxu0
  %v1528 = vadd.f32 %v1431, %v1527
  %v1529 = vpop.f32.mrf.mxu0
  %1530 = vdwg.mxu0
  %vm1531 = vcmp.gt.f32.partialorder %v1469, 0.0
  %vm1532 = vcmp.gt.f32.partialorder %v1472, 0.0
  %vm1533 = vcmp.gt.f32.partialorder %v1477, 0.0
  %vm1534 = vcmp.gt.f32.partialorder %v1480, 0.0
  %vm1535 = vcmp.gt.f32.partialorder %v1485, 0.0
  %vm1536 = vcmp.gt.f32.partialorder %v1488, 0.0
  %vm1537 = vcmp.gt.f32.partialorder %v1493, 0.0
  %vm1538 = vcmp.gt.f32.partialorder %v1496, 0.0
  %vm1539 = vcmp.gt.f32.partialorder %v1501, 0.0
  %vm1540 = vcmp.gt.f32.partialorder %v1504, 0.0
  %vm1541 = vcmp.gt.f32.partialorder %v1509, 0.0
  %vm1542 = vcmp.gt.f32.partialorder %v1512, 0.0
  %vm1543 = vcmp.gt.f32.partialorder %v1517, 0.0
  %vm1544 = vcmp.gt.f32.partialorder %v1520, 0.0
  %vm1545 = vcmp.gt.f32.partialorder %v1525, 0.0
  %vm1546 = vcmp.gt.f32.partialorder %v1528, 0.0
  %v1547 = vmul.f32 %v1469, 0.2
  %v1548 = vmul.f32 %v1472, 0.2
  %v1549 = vmul.f32 %v1477, 0.2
  %v1550 = vmul.f32 %v1480, 0.2
  %v1551 = vmul.f32 %v1485, 0.2
  %v1552 = vmul.f32 %v1488, 0.2
  %v1553 = vmul.f32 %v1493, 0.2
  %v1554 = vmul.f32 %v1496, 0.2
  %v1555 = vmul.f32 %v1501, 0.2
  %v1556 = vmul.f32 %v1504, 0.2
  %v1557 = vmul.f32 %v1509, 0.2
  %v1558 = vmul.f32 %v1512, 0.2
  %v1559 = vmul.f32 %v1517, 0.2
  %v1560 = vmul.f32 %v1520, 0.2
  %v1561 = vmul.f32 %v1525, 0.2
  %v1562 = vmul.f32 %v1528, 0.2
  %v1563 = vsel %vm1531, %v1469, %v1547
  %v1564 = vsel %vm1532, %v1472, %v1548
  %v1565 = vsel %vm1533, %v1477, %v1549
  %v1566 = vsel %vm1534, %v1480, %v1550
  %v1567 = vsel %vm1535, %v1485, %v1551
  %v1568 = vsel %vm1536, %v1488, %v1552
  %v1569 = vsel %vm1537, %v1493, %v1553
  %v1570 = vsel %vm1538, %v1496, %v1554
  %v1571 = vsel %vm1539, %v1501, %v1555
  %v1572 = vsel %vm1540, %v1504, %v1556
  %v1573 = vsel %vm1541, %v1509, %v1557
  %v1574 = vsel %vm1542, %v1512, %v1558
  %v1575 = vsel %vm1543, %v1517, %v1559
  %v1576 = vsel %vm1544, %v1520, %v1560
  %v1577 = vsel %vm1545, %v1525, %v1561
  %v1578 = vsel %vm1546, %v1528, %v1562
  %v1579 = vpack.c.bf16 %v1564, %v1563
  %v1580 = vpack.c.bf16 %v1566, %v1565
  %v1581 = vpack.c.bf16 %v1568, %v1567
  %v1582 = vpack.c.bf16 %v1570, %v1569
  %v1583 = vpack.c.bf16 %v1572, %v1571
  %v1584 = vpack.c.bf16 %v1574, %v1573
  %v1585 = vpack.c.bf16 %v1576, %v1575
  %v1586 = vpack.c.bf16 %v1578, %v1577
  %v1595 = vunpack.c.l.b16 %v1579
  %v1596 = vunpack.c.h.b16 %v1579
  %v1597 = vunpack.c.l.b16 %v1580
  %v1598 = vunpack.c.h.b16 %v1580
  %v1599 = vunpack.c.l.b16 %v1581
  %v1600 = vunpack.c.h.b16 %v1581
  %v1601 = vunpack.c.l.b16 %v1582
  %v1602 = vunpack.c.h.b16 %v1582
  %v1603 = vunpack.c.l.b16 %v1583
  %v1604 = vunpack.c.h.b16 %v1583
  %v1605 = vunpack.c.l.b16 %v1584
  %v1606 = vunpack.c.h.b16 %v1584
  %v1607 = vunpack.c.l.b16 %v1585
  %v1608 = vunpack.c.h.b16 %v1585
  %v1609 = vunpack.c.l.b16 %v1586
  %v1610 = vunpack.c.h.b16 %v1586
  %v1611 = vpack.c.b16 %v1595, %v1595
  %v1612 = vpack.c.b16 %v1596, %v1596
  %v1613 = vpack.c.b16 %v1597, %v1597
  %v1614 = vpack.c.b16 %v1598, %v1598
  %v1615 = vpack.c.b16 %v1599, %v1599
  %v1616 = vpack.c.b16 %v1600, %v1600
  %v1617 = vpack.c.b16 %v1601, %v1601
  %v1618 = vpack.c.b16 %v1602, %v1602
  %v1619 = vpack.c.b16 %v1603, %v1603
  %v1620 = vpack.c.b16 %v1604, %v1604
  %v1621 = vpack.c.b16 %v1605, %v1605
  %v1622 = vpack.c.b16 %v1606, %v1606
  %v1623 = vpack.c.b16 %v1607, %v1607
  %v1624 = vpack.c.b16 %v1608, %v1608
  %v1625 = vpack.c.b16 %v1609, %v1609
  %v1626 = vpack.c.b16 %v1610, %v1610
  %1643 = vst [vmem:[%s3] sm:$0xf] %v1611
  %1644 = vst [vmem:[%s3 + $0x4] sm:$0xf] %v1612
  %1645 = vst [vmem:[%s3 + $0x8] sm:$0xf] %v1613
  %1646 = vst [vmem:[%s3 + $0xc] sm:$0xf] %v1614
  %1647 = vst [vmem:[%s3 + $0x10] sm:$0xf] %v1615
  %1648 = vst [vmem:[%s3 + $0x14] sm:$0xf] %v1616
  %1649 = vst [vmem:[%s3 + $0x18] sm:$0xf] %v1617
  %1650 = vst [vmem:[%s3 + $0x1c] sm:$0xf] %v1618
  %1651 = vst [vmem:[%s3 + $0x20] sm:$0xf] %v1619
  %1652 = vst [vmem:[%s3 + $0x24] sm:$0xf] %v1620
  %1653 = vst [vmem:[%s3 + $0x28] sm:$0xf] %v1621
  %1654 = vst [vmem:[%s3 + $0x2c] sm:$0xf] %v1622
  %1655 = vst [vmem:[%s3 + $0x30] sm:$0xf] %v1623
  %1656 = vst [vmem:[%s3 + $0x34] sm:$0xf] %v1624
  %1657 = vst [vmem:[%s3 + $0x38] sm:$0xf] %v1625
  %1658 = vst [vmem:[%s3 + $0x3c] sm:$0xf] %v1626
  // Predicated region
  $region14: #{discriminator_forward.6} parent=0 // pred_check
    _
  $region15: #{discriminator_forward.6} parent=0 // pred_check_branch
    %1660 = sbr.rel (0) target = $region17
  $region16: #{discriminator_forward.6} parent=0 // pred_region
    _
  $region17: #{discriminator_forward.6} parent=0 // pred_fallthru
    _
  // Predicated region
  $region18: #{discriminator_forward.6} parent=0 // pred_check
    _
  $region19: #{discriminator_forward.6} parent=0 // pred_check_branch
    %1662 = sbr.rel (0) target = $region21
  $region20: #{discriminator_forward.6} parent=0 // pred_region
    _
  $region21: #{discriminator_forward.6} parent=0 // pred_fallthru
    _

// kernel: discriminator_forward.5
$region0: #{discriminator_forward.5}
  #allocation0 [shape = 'u32[]', space=smem, size = 0x4, offset = 0x4, fixed_abs, tag = 'smem constant byte address 0x4 - core index']
  #allocation1 [shape = 'u32[144,128]{1,0:T(1,128)}', space=vmem, size = 0x12000, scoped, tag = 'internal scratch']
  %s0 = inlined_call_operand.vmem [shape: bf16[512,1152], index: 0, kind: input, shape index: {}]
  %s1 = inlined_call_operand.vmem [shape: bf16[1152,128], index: 1, kind: input, shape index: {}]
  %s2 = inlined_call_operand.vmem [shape: f32[1,128], index: 2, kind: input, shape index: {}]
  %s3 = inlined_call_operand.vmem [shape: bf16[512,128], index: 3, kind: output, shape index: {}]
  %s4 = sld [smem:[#allocation0]]
  $region22: #{discriminator_forward.5} parent=0
    _
  %s6 = ssub.s32 1, %s4
  %s7 = scalar_select 0, %s6, %s4
  // Predicated region
  $region2: #{discriminator_forward.5} parent=0 // pred_check
    _
  $region3: #{discriminator_forward.5} parent=0 // pred_check_branch
    %9 = sbr.rel (0) target = $region5
  $region4: #{discriminator_forward.5} parent=0 // pred_region
    _
  $region5: #{discriminator_forward.5} parent=0 // pred_fallthru
    _
  // Predicated region
  $region6: #{discriminator_forward.5} parent=0 // pred_check
    _
  $region7: #{discriminator_forward.5} parent=0 // pred_check_branch
    %11 = sbr.rel (0) target = $region9
  $region8: #{discriminator_forward.5} parent=0 // pred_region
    _
  $region9: #{discriminator_forward.5} parent=0 // pred_fallthru
    _
  // Predicated region
  $region10: #{discriminator_forward.5} parent=0 // pred_check
    _
  $region11: #{discriminator_forward.5} parent=0 // pred_check_branch
    %13 = sbr.rel (0) target = $region13
  $region12: #{discriminator_forward.5} parent=0 // pred_region
    _
  $region13: #{discriminator_forward.5} parent=0 // pred_fallthru
    _
  %v15 = vld [vmem:[%s0] sm:$0xff]
  %v16 = vld [vmem:[%s0 + $0x8] sm:$0xff]
  %v17 = vld [vmem:[%s0 + $0x10] sm:$0xff]
  %v18 = vld [vmem:[%s0 + $0x18] sm:$0xff]
  %v19 = vld [vmem:[%s0 + $0x20] sm:$0xf]
  %v20 = vld [vmem:[%s0 + $0x24] sm:$0xff]
  %v21 = vld [vmem:[%s0 + $0x2c] sm:$0xff]
  %v22 = vld [vmem:[%s0 + $0x34] sm:$0xff]
  %v23 = vld [vmem:[%s0 + $0x3c] sm:$0xff]
  %v24 = vld [vmem:[%s0 + $0x44] sm:$0xf]
  %v25 = vld [vmem:[%s0 + $0x48] sm:$0xff]
  %v26 = vld [vmem:[%s0 + $0x50] sm:$0xff]
  %v27 = vld [vmem:[%s0 + $0x58] sm:$0xff]
  %v28 = vld [vmem:[%s0 + $0x60] sm:$0xff]
  %v29 = vld [vmem:[%s0 + $0x68] sm:$0xf]
  %v30 = vld [vmem:[%s0 + $0x6c] sm:$0xff]
  %v31 = vld [vmem:[%s0 + $0x74] sm:$0xff]
  %v32 = vld [vmem:[%s0 + $0x7c] sm:$0xff]
  %v33 = vld [vmem:[%s0 + $0x84] sm:$0xff]
  %v34 = vld [vmem:[%s0 + $0x8c] sm:$0xf]
  %v35 = vld [vmem:[%s0 + $0x90] sm:$0xff]
  %v36 = vld [vmem:[%s0 + $0x98] sm:$0xff]
  %v37 = vld [vmem:[%s0 + $0xa0] sm:$0xff]
  %v38 = vld [vmem:[%s0 + $0xa8] sm:$0xff]
  %v39 = vld [vmem:[%s0 + $0xb0] sm:$0xf]
  %v40 = vld [vmem:[%s0 + $0xb4] sm:$0xff]
  %v41 = vld [vmem:[%s0 + $0xbc] sm:$0xff]
  %v42 = vld [vmem:[%s0 + $0xc4] sm:$0xff]
  %v43 = vld [vmem:[%s0 + $0xcc] sm:$0xff]
  %v44 = vld [vmem:[%s0 + $0xd4] sm:$0xf]
  %v45 = vld [vmem:[%s0 + $0xd8] sm:$0xff]
  %v46 = vld [vmem:[%s0 + $0xe0] sm:$0xff]
  %v47 = vld [vmem:[%s0 + $0xe8] sm:$0xff]
  %v48 = vld [vmem:[%s0 + $0xf0] sm:$0xff]
  %v49 = vld [vmem:[%s0 + $0xf8] sm:$0xf]
  %v50 = vld [vmem:[%s0 + $0xfc] sm:$0xff]
  %v51 = vld [vmem:[%s0 + $0x104] sm:$0xff]
  %v52 = vld [vmem:[%s0 + $0x10c] sm:$0xff]
  %v53 = vld [vmem:[%s0 + $0x114] sm:$0xff]
  %v54 = vld [vmem:[%s0 + $0x11c] sm:$0xf]
  %v55 = vld [vmem:[%s0 + $0x120] sm:$0xff]
  %v56 = vld [vmem:[%s0 + $0x128] sm:$0xff]
  %v57 = vld [vmem:[%s0 + $0x130] sm:$0xff]
  %v58 = vld [vmem:[%s0 + $0x138] sm:$0xff]
  %v59 = vld [vmem:[%s0 + $0x140] sm:$0xf]
  %v60 = vld [vmem:[%s0 + $0x144] sm:$0xff]
  %v61 = vld [vmem:[%s0 + $0x14c] sm:$0xff]
  %v62 = vld [vmem:[%s0 + $0x154] sm:$0xff]
  %v63 = vld [vmem:[%s0 + $0x15c] sm:$0xff]
  %v64 = vld [vmem:[%s0 + $0x164] sm:$0xf]
  %v65 = vld [vmem:[%s0 + $0x168] sm:$0xff]
  %v66 = vld [vmem:[%s0 + $0x170] sm:$0xff]
  %v67 = vld [vmem:[%s0 + $0x178] sm:$0xff]
  %v68 = vld [vmem:[%s0 + $0x180] sm:$0xff]
  %v69 = vld [vmem:[%s0 + $0x188] sm:$0xf]
  %v70 = vld [vmem:[%s0 + $0x18c] sm:$0xff]
  %v71 = vld [vmem:[%s0 + $0x194] sm:$0xff]
  %v72 = vld [vmem:[%s0 + $0x19c] sm:$0xff]
  %v73 = vld [vmem:[%s0 + $0x1a4] sm:$0xff]
  %v74 = vld [vmem:[%s0 + $0x1ac] sm:$0xf]
  %v75 = vld [vmem:[%s0 + $0x1b0] sm:$0xff]
  %v76 = vld [vmem:[%s0 + $0x1b8] sm:$0xff]
  %v77 = vld [vmem:[%s0 + $0x1c0] sm:$0xff]
  %v78 = vld [vmem:[%s0 + $0x1c8] sm:$0xff]
  %v79 = vld [vmem:[%s0 + $0x1d0] sm:$0xf]
  %v80 = vld [vmem:[%s0 + $0x1d4] sm:$0xff]
  %v81 = vld [vmem:[%s0 + $0x1dc] sm:$0xff]
  %v82 = vld [vmem:[%s0 + $0x1e4] sm:$0xff]
  %v83 = vld [vmem:[%s0 + $0x1ec] sm:$0xff]
  %v84 = vld [vmem:[%s0 + $0x1f4] sm:$0xf]
  %v85 = vld [vmem:[%s0 + $0x1f8] sm:$0xff]
  %v86 = vld [vmem:[%s0 + $0x200] sm:$0xff]
  %v87 = vld [vmem:[%s0 + $0x208] sm:$0xff]
  %v88 = vld [vmem:[%s0 + $0x210] sm:$0xff]
  %v89 = vld [vmem:[%s0 + $0x218] sm:$0xf]
  %v90 = vld [vmem:[%s0 + $0x21c] sm:$0xff]
  %v91 = vld [vmem:[%s0 + $0x224] sm:$0xff]
  %v92 = vld [vmem:[%s0 + $0x22c] sm:$0xff]
  %v93 = vld [vmem:[%s0 + $0x234] sm:$0xff]
  %v94 = vld [vmem:[%s0 + $0x23c] sm:$0xf]
  %v95 = vld [vmem:[%s0 + $0x240] sm:$0xff]
  %v96 = vld [vmem:[%s0 + $0x248] sm:$0xff]
  %v97 = vld [vmem:[%s0 + $0x250] sm:$0xff]
  %v98 = vld [vmem:[%s0 + $0x258] sm:$0xff]
  %v99 = vld [vmem:[%s0 + $0x260] sm:$0xf]
  %v100 = vld [vmem:[%s0 + $0x264] sm:$0xff]
  %v101 = vld [vmem:[%s0 + $0x26c] sm:$0xff]
  %v102 = vld [vmem:[%s0 + $0x274] sm:$0xff]
  %v103 = vld [vmem:[%s0 + $0x27c] sm:$0xff]
  %v104 = vld [vmem:[%s0 + $0x284] sm:$0xf]
  %v105 = vld [vmem:[%s0 + $0x288] sm:$0xff]
  %v106 = vld [vmem:[%s0 + $0x290] sm:$0xff]
  %v107 = vld [vmem:[%s0 + $0x298] sm:$0xff]
  %v108 = vld [vmem:[%s0 + $0x2a0] sm:$0xff]
  %v109 = vld [vmem:[%s0 + $0x2a8] sm:$0xf]
  %v110 = vld [vmem:[%s0 + $0x2ac] sm:$0xff]
  %v111 = vld [vmem:[%s0 + $0x2b4] sm:$0xff]
  %v112 = vld [vmem:[%s0 + $0x2bc] sm:$0xff]
  %v113 = vld [vmem:[%s0 + $0x2c4] sm:$0xff]
  %v114 = vld [vmem:[%s0 + $0x2cc] sm:$0xf]
  %v115 = vld [vmem:[%s0 + $0x2d0] sm:$0xff]
  %v116 = vld [vmem:[%s0 + $0x2d8] sm:$0xff]
  %v117 = vld [vmem:[%s0 + $0x2e0] sm:$0xff]
  %v118 = vld [vmem:[%s0 + $0x2e8] sm:$0xff]
  %v119 = vld [vmem:[%s0 + $0x2f0] sm:$0xf]
  %v120 = vld [vmem:[%s0 + $0x2f4] sm:$0xff]
  %v121 = vld [vmem:[%s0 + $0x2fc] sm:$0xff]
  %v122 = vld [vmem:[%s0 + $0x304] sm:$0xff]
  %v123 = vld [vmem:[%s0 + $0x30c] sm:$0xff]
  %v124 = vld [vmem:[%s0 + $0x314] sm:$0xf]
  %v125 = vld [vmem:[%s0 + $0x318] sm:$0xff]
  %v126 = vld [vmem:[%s0 + $0x320] sm:$0xff]
  %v127 = vld [vmem:[%s0 + $0x328] sm:$0xff]
  %v128 = vld [vmem:[%s0 + $0x330] sm:$0xff]
  %v129 = vld [vmem:[%s0 + $0x338] sm:$0xf]
  %v130 = vld [vmem:[%s0 + $0x33c] sm:$0xff]
  %v131 = vld [vmem:[%s0 + $0x344] sm:$0xff]
  %v132 = vld [vmem:[%s0 + $0x34c] sm:$0xff]
  %v133 = vld [vmem:[%s0 + $0x354] sm:$0xff]
  %v134 = vld [vmem:[%s0 + $0x35c] sm:$0xf]
  %v135 = vld [vmem:[%s0 + $0x360] sm:$0xff]
  %v136 = vld [vmem:[%s0 + $0x368] sm:$0xff]
  %v137 = vld [vmem:[%s0 + $0x370] sm:$0xff]
  %v138 = vld [vmem:[%s0 + $0x378] sm:$0xff]
  %v139 = vld [vmem:[%s0 + $0x380] sm:$0xf]
  %v140 = vld [vmem:[%s0 + $0x384] sm:$0xff]
  %v141 = vld [vmem:[%s0 + $0x38c] sm:$0xff]
  %v142 = vld [vmem:[%s0 + $0x394] sm:$0xff]
  %v143 = vld [vmem:[%s0 + $0x39c] sm:$0xff]
  %v144 = vld [vmem:[%s0 + $0x3a4] sm:$0xf]
  %v145 = vld [vmem:[%s0 + $0x3a8] sm:$0xff]
  %v146 = vld [vmem:[%s0 + $0x3b0] sm:$0xff]
  %v147 = vld [vmem:[%s0 + $0x3b8] sm:$0xff]
  %v148 = vld [vmem:[%s0 + $0x3c0] sm:$0xff]
  %v149 = vld [vmem:[%s0 + $0x3c8] sm:$0xf]
  %v150 = vld [vmem:[%s0 + $0x3cc] sm:$0xff]
  %v151 = vld [vmem:[%s0 + $0x3d4] sm:$0xff]
  %v152 = vld [vmem:[%s0 + $0x3dc] sm:$0xff]
  %v153 = vld [vmem:[%s0 + $0x3e4] sm:$0xff]
  %v154 = vld [vmem:[%s0 + $0x3ec] sm:$0xf]
  %v155 = vld [vmem:[%s0 + $0x3f0] sm:$0xff]
  %v156 = vld [vmem:[%s0 + $0x3f8] sm:$0xff]
  %v157 = vld [vmem:[%s0 + $0x400] sm:$0xff]
  %v158 = vld [vmem:[%s0 + $0x408] sm:$0xff]
  %v159 = vld [vmem:[%s0 + $0x410] sm:$0xf]
  %v160 = vld [vmem:[%s0 + $0x414] sm:$0xff]
  %v161 = vld [vmem:[%s0 + $0x41c] sm:$0xff]
  %v162 = vld [vmem:[%s0 + $0x424] sm:$0xff]
  %v163 = vld [vmem:[%s0 + $0x42c] sm:$0xff]
  %v164 = vld [vmem:[%s0 + $0x434] sm:$0xf]
  %v165 = vld [vmem:[%s0 + $0x438] sm:$0xff]
  %v166 = vld [vmem:[%s0 + $0x440] sm:$0xff]
  %v167 = vld [vmem:[%s0 + $0x448] sm:$0xff]
  %v168 = vld [vmem:[%s0 + $0x450] sm:$0xff]
  %v169 = vld [vmem:[%s0 + $0x458] sm:$0xf]
  %v170 = vld [vmem:[%s0 + $0x45c] sm:$0xff]
  %v171 = vld [vmem:[%s0 + $0x464] sm:$0xff]
  %v172 = vld [vmem:[%s0 + $0x46c] sm:$0xff]
  %v173 = vld [vmem:[%s0 + $0x474] sm:$0xff]
  %v174 = vld [vmem:[%s0 + $0x47c] sm:$0xf]
  %v175 = vld [vmem:[%s0 + $0x480] sm:$0xff]
  %v176 = vld [vmem:[%s0 + $0x488] sm:$0xff]
  %v177 = vld [vmem:[%s0 + $0x490] sm:$0xff]
  %v178 = vld [vmem:[%s0 + $0x498] sm:$0xff]
  %v179 = vld [vmem:[%s0 + $0x4a0] sm:$0xf]
  %v180 = vld [vmem:[%s0 + $0x4a4] sm:$0xff]
  %v181 = vld [vmem:[%s0 + $0x4ac] sm:$0xff]
  %v182 = vld [vmem:[%s0 + $0x4b4] sm:$0xff]
  %v183 = vld [vmem:[%s0 + $0x4bc] sm:$0xff]
  %v184 = vld [vmem:[%s0 + $0x4c4] sm:$0xf]
  %v185 = vld [vmem:[%s0 + $0x4c8] sm:$0xff]
  %v186 = vld [vmem:[%s0 + $0x4d0] sm:$0xff]
  %v187 = vld [vmem:[%s0 + $0x4d8] sm:$0xff]
  %v188 = vld [vmem:[%s0 + $0x4e0] sm:$0xff]
  %v189 = vld [vmem:[%s0 + $0x4e8] sm:$0xf]
  %v190 = vld [vmem:[%s0 + $0x4ec] sm:$0xff]
  %v191 = vld [vmem:[%s0 + $0x4f4] sm:$0xff]
  %v192 = vld [vmem:[%s0 + $0x4fc] sm:$0xff]
  %v193 = vld [vmem:[%s0 + $0x504] sm:$0xff]
  %v194 = vld [vmem:[%s0 + $0x50c] sm:$0xf]
  %v195 = vld [vmem:[%s0 + $0x510] sm:$0xff]
  %v196 = vld [vmem:[%s0 + $0x518] sm:$0xff]
  %v197 = vld [vmem:[%s0 + $0x520] sm:$0xff]
  %v198 = vld [vmem:[%s0 + $0x528] sm:$0xff]
  %v199 = vld [vmem:[%s0 + $0x530] sm:$0xf]
  %v200 = vld [vmem:[%s0 + $0x534] sm:$0xff]
  %v201 = vld [vmem:[%s0 + $0x53c] sm:$0xff]
  %v202 = vld [vmem:[%s0 + $0x544] sm:$0xff]
  %v203 = vld [vmem:[%s0 + $0x54c] sm:$0xff]
  %v204 = vld [vmem:[%s0 + $0x554] sm:$0xf]
  %v205 = vld [vmem:[%s0 + $0x558] sm:$0xff]
  %v206 = vld [vmem:[%s0 + $0x560] sm:$0xff]
  %v207 = vld [vmem:[%s0 + $0x568] sm:$0xff]
  %v208 = vld [vmem:[%s0 + $0x570] sm:$0xff]
  %v209 = vld [vmem:[%s0 + $0x578] sm:$0xf]
  %v210 = vld [vmem:[%s0 + $0x57c] sm:$0xff]
  %v211 = vld [vmem:[%s0 + $0x584] sm:$0xff]
  %v212 = vld [vmem:[%s0 + $0x58c] sm:$0xff]
  %v213 = vld [vmem:[%s0 + $0x594] sm:$0xff]
  %v214 = vld [vmem:[%s0 + $0x59c] sm:$0xf]
  %v215 = vld [vmem:[%s0 + $0x5a0] sm:$0xff]
  %v216 = vld [vmem:[%s0 + $0x5a8] sm:$0xff]
  %v217 = vld [vmem:[%s0 + $0x5b0] sm:$0xff]
  %v218 = vld [vmem:[%s0 + $0x5b8] sm:$0xff]
  %v219 = vld [vmem:[%s0 + $0x5c0] sm:$0xf]
  %v220 = vld [vmem:[%s0 + $0x5c4] sm:$0xff]
  %v221 = vld [vmem:[%s0 + $0x5cc] sm:$0xff]
  %v222 = vld [vmem:[%s0 + $0x5d4] sm:$0xff]
  %v223 = vld [vmem:[%s0 + $0x5dc] sm:$0xff]
  %v224 = vld [vmem:[%s0 + $0x5e4] sm:$0xf]
  %v225 = vld [vmem:[%s0 + $0x5e8] sm:$0xff]
  %v226 = vld [vmem:[%s0 + $0x5f0] sm:$0xff]
  %v227 = vld [vmem:[%s0 + $0x5f8] sm:$0xff]
  %v228 = vld [vmem:[%s0 + $0x600] sm:$0xff]
  %v229 = vld [vmem:[%s0 + $0x608] sm:$0xf]
  %v230 = vld [vmem:[%s0 + $0x60c] sm:$0xff]
  %v231 = vld [vmem:[%s0 + $0x614] sm:$0xff]
  %v232 = vld [vmem:[%s0 + $0x61c] sm:$0xff]
  %v233 = vld [vmem:[%s0 + $0x624] sm:$0xff]
  %v234 = vld [vmem:[%s0 + $0x62c] sm:$0xf]
  %v235 = vld [vmem:[%s0 + $0x630] sm:$0xff]
  %v236 = vld [vmem:[%s0 + $0x638] sm:$0xff]
  %v237 = vld [vmem:[%s0 + $0x640] sm:$0xff]
  %v238 = vld [vmem:[%s0 + $0x648] sm:$0xff]
  %v239 = vld [vmem:[%s0 + $0x650] sm:$0xf]
  %v240 = vld [vmem:[%s0 + $0x654] sm:$0xff]
  %v241 = vld [vmem:[%s0 + $0x65c] sm:$0xff]
  %v242 = vld [vmem:[%s0 + $0x664] sm:$0xff]
  %v243 = vld [vmem:[%s0 + $0x66c] sm:$0xff]
  %v244 = vld [vmem:[%s0 + $0x674] sm:$0xf]
  %v245 = vld [vmem:[%s0 + $0x678] sm:$0xff]
  %v246 = vld [vmem:[%s0 + $0x680] sm:$0xff]
  %v247 = vld [vmem:[%s0 + $0x688] sm:$0xff]
  %v248 = vld [vmem:[%s0 + $0x690] sm:$0xff]
  %v249 = vld [vmem:[%s0 + $0x698] sm:$0xf]
  %v250 = vld [vmem:[%s0 + $0x69c] sm:$0xff]
  %v251 = vld [vmem:[%s0 + $0x6a4] sm:$0xff]
  %v252 = vld [vmem:[%s0 + $0x6ac] sm:$0xff]
  %v253 = vld [vmem:[%s0 + $0x6b4] sm:$0xff]
  %v254 = vld [vmem:[%s0 + $0x6bc] sm:$0xf]
  %v255 = vld [vmem:[%s0 + $0x6c0] sm:$0xff]
  %v256 = vld [vmem:[%s0 + $0x6c8] sm:$0xff]
  %v257 = vld [vmem:[%s0 + $0x6d0] sm:$0xff]
  %v258 = vld [vmem:[%s0 + $0x6d8] sm:$0xff]
  %v259 = vld [vmem:[%s0 + $0x6e0] sm:$0xf]
  %v260 = vld [vmem:[%s0 + $0x6e4] sm:$0xff]
  %v261 = vld [vmem:[%s0 + $0x6ec] sm:$0xff]
  %v262 = vld [vmem:[%s0 + $0x6f4] sm:$0xff]
  %v263 = vld [vmem:[%s0 + $0x6fc] sm:$0xff]
  %v264 = vld [vmem:[%s0 + $0x704] sm:$0xf]
  %v265 = vld [vmem:[%s0 + $0x708] sm:$0xff]
  %v266 = vld [vmem:[%s0 + $0x710] sm:$0xff]
  %v267 = vld [vmem:[%s0 + $0x718] sm:$0xff]
  %v268 = vld [vmem:[%s0 + $0x720] sm:$0xff]
  %v269 = vld [vmem:[%s0 + $0x728] sm:$0xf]
  %v270 = vld [vmem:[%s0 + $0x72c] sm:$0xff]
  %v271 = vld [vmem:[%s0 + $0x734] sm:$0xff]
  %v272 = vld [vmem:[%s0 + $0x73c] sm:$0xff]
  %v273 = vld [vmem:[%s0 + $0x744] sm:$0xff]
  %v274 = vld [vmem:[%s0 + $0x74c] sm:$0xf]
  %v275 = vld [vmem:[%s0 + $0x750] sm:$0xff]
  %v276 = vld [vmem:[%s0 + $0x758] sm:$0xff]
  %v277 = vld [vmem:[%s0 + $0x760] sm:$0xff]
  %v278 = vld [vmem:[%s0 + $0x768] sm:$0xff]
  %v279 = vld [vmem:[%s0 + $0x770] sm:$0xf]
  %v280 = vld [vmem:[%s0 + $0x774] sm:$0xff]
  %v281 = vld [vmem:[%s0 + $0x77c] sm:$0xff]
  %v282 = vld [vmem:[%s0 + $0x784] sm:$0xff]
  %v283 = vld [vmem:[%s0 + $0x78c] sm:$0xff]
  %v284 = vld [vmem:[%s0 + $0x794] sm:$0xf]
  %v285 = vld [vmem:[%s0 + $0x798] sm:$0xff]
  %v286 = vld [vmem:[%s0 + $0x7a0] sm:$0xff]
  %v287 = vld [vmem:[%s0 + $0x7a8] sm:$0xff]
  %v288 = vld [vmem:[%s0 + $0x7b0] sm:$0xff]
  %v289 = vld [vmem:[%s0 + $0x7b8] sm:$0xf]
  %v290 = vld [vmem:[%s0 + $0x7bc] sm:$0xff]
  %v291 = vld [vmem:[%s0 + $0x7c4] sm:$0xff]
  %v292 = vld [vmem:[%s0 + $0x7cc] sm:$0xff]
  %v293 = vld [vmem:[%s0 + $0x7d4] sm:$0xff]
  %v294 = vld [vmem:[%s0 + $0x7dc] sm:$0xf]
  %v295 = vld [vmem:[%s0 + $0x7e0] sm:$0xff]
  %v296 = vld [vmem:[%s0 + $0x7e8] sm:$0xff]
  %v297 = vld [vmem:[%s0 + $0x7f0] sm:$0xff]
  %v298 = vld [vmem:[%s0 + $0x7f8] sm:$0xff]
  %v299 = vld [vmem:[%s0 + $0x800] sm:$0xf]
  %v300 = vld [vmem:[%s0 + $0x804] sm:$0xff]
  %v301 = vld [vmem:[%s0 + $0x80c] sm:$0xff]
  %v302 = vld [vmem:[%s0 + $0x814] sm:$0xff]
  %v303 = vld [vmem:[%s0 + $0x81c] sm:$0xff]
  %v304 = vld [vmem:[%s0 + $0x824] sm:$0xf]
  %v305 = vld [vmem:[%s0 + $0x828] sm:$0xff]
  %v306 = vld [vmem:[%s0 + $0x830] sm:$0xff]
  %v307 = vld [vmem:[%s0 + $0x838] sm:$0xff]
  %v308 = vld [vmem:[%s0 + $0x840] sm:$0xff]
  %v309 = vld [vmem:[%s0 + $0x848] sm:$0xf]
  %v310 = vld [vmem:[%s0 + $0x84c] sm:$0xff]
  %v311 = vld [vmem:[%s0 + $0x854] sm:$0xff]
  %v312 = vld [vmem:[%s0 + $0x85c] sm:$0xff]
  %v313 = vld [vmem:[%s0 + $0x864] sm:$0xff]
  %v314 = vld [vmem:[%s0 + $0x86c] sm:$0xf]
  %v315 = vld [vmem:[%s0 + $0x870] sm:$0xff]
  %v316 = vld [vmem:[%s0 + $0x878] sm:$0xff]
  %v317 = vld [vmem:[%s0 + $0x880] sm:$0xff]
  %v318 = vld [vmem:[%s0 + $0x888] sm:$0xff]
  %v319 = vld [vmem:[%s0 + $0x890] sm:$0xf]
  %v320 = vld [vmem:[%s0 + $0x894] sm:$0xff]
  %v321 = vld [vmem:[%s0 + $0x89c] sm:$0xff]
  %v322 = vld [vmem:[%s0 + $0x8a4] sm:$0xff]
  %v323 = vld [vmem:[%s0 + $0x8ac] sm:$0xff]
  %v324 = vld [vmem:[%s0 + $0x8b4] sm:$0xf]
  %v325 = vld [vmem:[%s0 + $0x8b8] sm:$0xff]
  %v326 = vld [vmem:[%s0 + $0x8c0] sm:$0xff]
  %v327 = vld [vmem:[%s0 + $0x8c8] sm:$0xff]
  %v328 = vld [vmem:[%s0 + $0x8d0] sm:$0xff]
  %v329 = vld [vmem:[%s0 + $0x8d8] sm:$0xf]
  %v330 = vld [vmem:[%s0 + $0x8dc] sm:$0xff]
  %v331 = vld [vmem:[%s0 + $0x8e4] sm:$0xff]
  %v332 = vld [vmem:[%s0 + $0x8ec] sm:$0xff]
  %v333 = vld [vmem:[%s0 + $0x8f4] sm:$0xff]
  %v334 = vld [vmem:[%s0 + $0x8fc] sm:$0xf]
  %v335 = vld [vmem:[%s1] sm:$0xf]
  %v336 = vld [vmem:[%s1 + $0x4] sm:$0xf]
  %v337 = vld [vmem:[%s1 + $0x8] sm:$0xf]
  %v338 = vld [vmem:[%s1 + $0xc] sm:$0xf]
  %v339 = vld [vmem:[%s1 + $0x10] sm:$0xf]
  %v340 = vld [vmem:[%s1 + $0x14] sm:$0xf]
  %v341 = vld [vmem:[%s1 + $0x18] sm:$0xf]
  %v342 = vld [vmem:[%s1 + $0x1c] sm:$0xf]
  %v343 = vld [vmem:[%s1 + $0x20] sm:$0xf]
  %v344 = vld [vmem:[%s1 + $0x24] sm:$0xf]
  %v345 = vld [vmem:[%s1 + $0x28] sm:$0xf]
  %v346 = vld [vmem:[%s1 + $0x2c] sm:$0xf]
  %v347 = vld [vmem:[%s1 + $0x30] sm:$0xf]
  %v348 = vld [vmem:[%s1 + $0x34] sm:$0xf]
  %v349 = vld [vmem:[%s1 + $0x38] sm:$0xf]
  %v350 = vld [vmem:[%s1 + $0x3c] sm:$0xf]
  %v351 = vld [vmem:[%s1 + $0x40] sm:$0xf]
  %v352 = vld [vmem:[%s1 + $0x44] sm:$0xf]
  %v353 = vld [vmem:[%s1 + $0x48] sm:$0xf]
  %v354 = vld [vmem:[%s1 + $0x4c] sm:$0xf]
  %v355 = vld [vmem:[%s1 + $0x50] sm:$0xf]
  %v356 = vld [vmem:[%s1 + $0x54] sm:$0xf]
  %v357 = vld [vmem:[%s1 + $0x58] sm:$0xf]
  %v358 = vld [vmem:[%s1 + $0x5c] sm:$0xf]
  %v359 = vld [vmem:[%s1 + $0x60] sm:$0xf]
  %v360 = vld [vmem:[%s1 + $0x64] sm:$0xf]
  %v361 = vld [vmem:[%s1 + $0x68] sm:$0xf]
  %v362 = vld [vmem:[%s1 + $0x6c] sm:$0xf]
  %v363 = vld [vmem:[%s1 + $0x70] sm:$0xf]
  %v364 = vld [vmem:[%s1 + $0x74] sm:$0xf]
  %v365 = vld [vmem:[%s1 + $0x78] sm:$0xf]
  %v366 = vld [vmem:[%s1 + $0x7c] sm:$0xf]
  %v367 = vld [vmem:[%s1 + $0x80] sm:$0xf]
  %v368 = vld [vmem:[%s1 + $0x84] sm:$0xf]
  %v369 = vld [vmem:[%s1 + $0x88] sm:$0xf]
  %v370 = vld [vmem:[%s1 + $0x8c] sm:$0xf]
  %v371 = vld [vmem:[%s1 + $0x90] sm:$0xf]
  %v372 = vld [vmem:[%s1 + $0x94] sm:$0xf]
  %v373 = vld [vmem:[%s1 + $0x98] sm:$0xf]
  %v374 = vld [vmem:[%s1 + $0x9c] sm:$0xf]
  %v375 = vld [vmem:[%s1 + $0xa0] sm:$0xf]
  %v376 = vld [vmem:[%s1 + $0xa4] sm:$0xf]
  %v377 = vld [vmem:[%s1 + $0xa8] sm:$0xf]
  %v378 = vld [vmem:[%s1 + $0xac] sm:$0xf]
  %v379 = vld [vmem:[%s1 + $0xb0] sm:$0xf]
  %v380 = vld [vmem:[%s1 + $0xb4] sm:$0xf]
  %v381 = vld [vmem:[%s1 + $0xb8] sm:$0xf]
  %v382 = vld [vmem:[%s1 + $0xbc] sm:$0xf]
  %v383 = vld [vmem:[%s1 + $0xc0] sm:$0xf]
  %v384 = vld [vmem:[%s1 + $0xc4] sm:$0xf]
  %v385 = vld [vmem:[%s1 + $0xc8] sm:$0xf]
  %v386 = vld [vmem:[%s1 + $0xcc] sm:$0xf]
  %v387 = vld [vmem:[%s1 + $0xd0] sm:$0xf]
  %v388 = vld [vmem:[%s1 + $0xd4] sm:$0xf]
  %v389 = vld [vmem:[%s1 + $0xd8] sm:$0xf]
  %v390 = vld [vmem:[%s1 + $0xdc] sm:$0xf]
  %v391 = vld [vmem:[%s1 + $0xe0] sm:$0xf]
  %v392 = vld [vmem:[%s1 + $0xe4] sm:$0xf]
  %v393 = vld [vmem:[%s1 + $0xe8] sm:$0xf]
  %v394 = vld [vmem:[%s1 + $0xec] sm:$0xf]
  %v395 = vld [vmem:[%s1 + $0xf0] sm:$0xf]
  %v396 = vld [vmem:[%s1 + $0xf4] sm:$0xf]
  %v397 = vld [vmem:[%s1 + $0xf8] sm:$0xf]
  %v398 = vld [vmem:[%s1 + $0xfc] sm:$0xf]
  %v399 = vld [vmem:[%s1 + $0x100] sm:$0xf]
  %v400 = vld [vmem:[%s1 + $0x104] sm:$0xf]
  %v401 = vld [vmem:[%s1 + $0x108] sm:$0xf]
  %v402 = vld [vmem:[%s1 + $0x10c] sm:$0xf]
  %v403 = vld [vmem:[%s1 + $0x110] sm:$0xf]
  %v404 = vld [vmem:[%s1 + $0x114] sm:$0xf]
  %v405 = vld [vmem:[%s1 + $0x118] sm:$0xf]
  %v406 = vld [vmem:[%s1 + $0x11c] sm:$0xf]
  %v407 = vld [vmem:[%s1 + $0x120] sm:$0xf]
  %v408 = vld [vmem:[%s1 + $0x124] sm:$0xf]
  %v409 = vld [vmem:[%s1 + $0x128] sm:$0xf]
  %v410 = vld [vmem:[%s1 + $0x12c] sm:$0xf]
  %v411 = vld [vmem:[%s1 + $0x130] sm:$0xf]
  %v412 = vld [vmem:[%s1 + $0x134] sm:$0xf]
  %v413 = vld [vmem:[%s1 + $0x138] sm:$0xf]
  %v414 = vld [vmem:[%s1 + $0x13c] sm:$0xf]
  %v415 = vld [vmem:[%s1 + $0x140] sm:$0xf]
  %v416 = vld [vmem:[%s1 + $0x144] sm:$0xf]
  %v417 = vld [vmem:[%s1 + $0x148] sm:$0xf]
  %v418 = vld [vmem:[%s1 + $0x14c] sm:$0xf]
  %v419 = vld [vmem:[%s1 + $0x150] sm:$0xf]
  %v420 = vld [vmem:[%s1 + $0x154] sm:$0xf]
  %v421 = vld [vmem:[%s1 + $0x158] sm:$0xf]
  %v422 = vld [vmem:[%s1 + $0x15c] sm:$0xf]
  %v423 = vld [vmem:[%s1 + $0x160] sm:$0xf]
  %v424 = vld [vmem:[%s1 + $0x164] sm:$0xf]
  %v425 = vld [vmem:[%s1 + $0x168] sm:$0xf]
  %v426 = vld [vmem:[%s1 + $0x16c] sm:$0xf]
  %v427 = vld [vmem:[%s1 + $0x170] sm:$0xf]
  %v428 = vld [vmem:[%s1 + $0x174] sm:$0xf]
  %v429 = vld [vmem:[%s1 + $0x178] sm:$0xf]
  %v430 = vld [vmem:[%s1 + $0x17c] sm:$0xf]
  %v431 = vld [vmem:[%s1 + $0x180] sm:$0xf]
  %v432 = vld [vmem:[%s1 + $0x184] sm:$0xf]
  %v433 = vld [vmem:[%s1 + $0x188] sm:$0xf]
  %v434 = vld [vmem:[%s1 + $0x18c] sm:$0xf]
  %v435 = vld [vmem:[%s1 + $0x190] sm:$0xf]
  %v436 = vld [vmem:[%s1 + $0x194] sm:$0xf]
  %v437 = vld [vmem:[%s1 + $0x198] sm:$0xf]
  %v438 = vld [vmem:[%s1 + $0x19c] sm:$0xf]
  %v439 = vld [vmem:[%s1 + $0x1a0] sm:$0xf]
  %v440 = vld [vmem:[%s1 + $0x1a4] sm:$0xf]
  %v441 = vld [vmem:[%s1 + $0x1a8] sm:$0xf]
  %v442 = vld [vmem:[%s1 + $0x1ac] sm:$0xf]
  %v443 = vld [vmem:[%s1 + $0x1b0] sm:$0xf]
  %v444 = vld [vmem:[%s1 + $0x1b4] sm:$0xf]
  %v445 = vld [vmem:[%s1 + $0x1b8] sm:$0xf]
  %v446 = vld [vmem:[%s1 + $0x1bc] sm:$0xf]
  %v447 = vld [vmem:[%s1 + $0x1c0] sm:$0xf]
  %v448 = vld [vmem:[%s1 + $0x1c4] sm:$0xf]
  %v449 = vld [vmem:[%s1 + $0x1c8] sm:$0xf]
  %v450 = vld [vmem:[%s1 + $0x1cc] sm:$0xf]
  %v451 = vld [vmem:[%s1 + $0x1d0] sm:$0xf]
  %v452 = vld [vmem:[%s1 + $0x1d4] sm:$0xf]
  %v453 = vld [vmem:[%s1 + $0x1d8] sm:$0xf]
  %v454 = vld [vmem:[%s1 + $0x1dc] sm:$0xf]
  %v455 = vld [vmem:[%s1 + $0x1e0] sm:$0xf]
  %v456 = vld [vmem:[%s1 + $0x1e4] sm:$0xf]
  %v457 = vld [vmem:[%s1 + $0x1e8] sm:$0xf]
  %v458 = vld [vmem:[%s1 + $0x1ec] sm:$0xf]
  %v459 = vld [vmem:[%s1 + $0x1f0] sm:$0xf]
  %v460 = vld [vmem:[%s1 + $0x1f4] sm:$0xf]
  %v461 = vld [vmem:[%s1 + $0x1f8] sm:$0xf]
  %v462 = vld [vmem:[%s1 + $0x1fc] sm:$0xf]
  %v463 = vld [vmem:[%s1 + $0x200] sm:$0xf]
  %v464 = vld [vmem:[%s1 + $0x204] sm:$0xf]
  %v465 = vld [vmem:[%s1 + $0x208] sm:$0xf]
  %v466 = vld [vmem:[%s1 + $0x20c] sm:$0xf]
  %v467 = vld [vmem:[%s1 + $0x210] sm:$0xf]
  %v468 = vld [vmem:[%s1 + $0x214] sm:$0xf]
  %v469 = vld [vmem:[%s1 + $0x218] sm:$0xf]
  %v470 = vld [vmem:[%s1 + $0x21c] sm:$0xf]
  %v471 = vld [vmem:[%s1 + $0x220] sm:$0xf]
  %v472 = vld [vmem:[%s1 + $0x224] sm:$0xf]
  %v473 = vld [vmem:[%s1 + $0x228] sm:$0xf]
  %v474 = vld [vmem:[%s1 + $0x22c] sm:$0xf]
  %v475 = vld [vmem:[%s1 + $0x230] sm:$0xf]
  %v476 = vld [vmem:[%s1 + $0x234] sm:$0xf]
  %v477 = vld [vmem:[%s1 + $0x238] sm:$0xf]
  %v478 = vld [vmem:[%s1 + $0x23c] sm:$0xf]
  %v479 = vld [vmem:[%s2] sm:$0x1]
  %v481 = vlaneseq
  %v482 = vshrl.u32 %v481, 7
  %v483 = vsub.s32 0, %v482
  %v484 = vrot.slane %v479, %v483
  %v806 = vunpack.c.l.b16 %v15
  %v807 = vunpack.c.h.b16 %v15
  %v808 = vunpack.c.l.b16 %v16
  %v809 = vunpack.c.h.b16 %v16
  %v810 = vunpack.c.l.b16 %v17
  %v811 = vunpack.c.h.b16 %v17
  %v812 = vunpack.c.l.b16 %v18
  %v813 = vunpack.c.h.b16 %v18
  %v814 = vunpack.c.l.b16 %v19
  %v815 = vunpack.c.l.b16 %v20
  %v816 = vunpack.c.h.b16 %v20
  %v817 = vunpack.c.l.b16 %v21
  %v818 = vunpack.c.h.b16 %v21
  %v819 = vunpack.c.l.b16 %v22
  %v820 = vunpack.c.h.b16 %v22
  %v821 = vunpack.c.l.b16 %v23
  %v822 = vunpack.c.h.b16 %v23
  %v823 = vunpack.c.l.b16 %v24
  %v824 = vunpack.c.l.b16 %v25
  %v825 = vunpack.c.h.b16 %v25
  %v826 = vunpack.c.l.b16 %v26
  %v827 = vunpack.c.h.b16 %v26
  %v828 = vunpack.c.l.b16 %v27
  %v829 = vunpack.c.h.b16 %v27
  %v830 = vunpack.c.l.b16 %v28
  %v831 = vunpack.c.h.b16 %v28
  %v832 = vunpack.c.l.b16 %v29
  %v833 = vunpack.c.l.b16 %v30
  %v834 = vunpack.c.h.b16 %v30
  %v835 = vunpack.c.l.b16 %v31
  %v836 = vunpack.c.h.b16 %v31
  %v837 = vunpack.c.l.b16 %v32
  %v838 = vunpack.c.h.b16 %v32
  %v839 = vunpack.c.l.b16 %v33
  %v840 = vunpack.c.h.b16 %v33
  %v841 = vunpack.c.l.b16 %v34
  %v842 = vunpack.c.l.b16 %v35
  %v843 = vunpack.c.h.b16 %v35
  %v844 = vunpack.c.l.b16 %v36
  %v845 = vunpack.c.h.b16 %v36
  %v846 = vunpack.c.l.b16 %v37
  %v847 = vunpack.c.h.b16 %v37
  %v848 = vunpack.c.l.b16 %v38
  %v849 = vunpack.c.h.b16 %v38
  %v850 = vunpack.c.l.b16 %v39
  %v851 = vunpack.c.l.b16 %v40
  %v852 = vunpack.c.h.b16 %v40
  %v853 = vunpack.c.l.b16 %v41
  %v854 = vunpack.c.h.b16 %v41
  %v855 = vunpack.c.l.b16 %v42
  %v856 = vunpack.c.h.b16 %v42
  %v857 = vunpack.c.l.b16 %v43
  %v858 = vunpack.c.h.b16 %v43
  %v859 = vunpack.c.l.b16 %v44
  %v860 = vunpack.c.l.b16 %v45
  %v861 = vunpack.c.h.b16 %v45
  %v862 = vunpack.c.l.b16 %v46
  %v863 = vunpack.c.h.b16 %v46
  %v864 = vunpack.c.l.b16 %v47
  %v865 = vunpack.c.h.b16 %v47
  %v866 = vunpack.c.l.b16 %v48
  %v867 = vunpack.c.h.b16 %v48
  %v868 = vunpack.c.l.b16 %v49
  %v869 = vunpack.c.l.b16 %v50
  %v870 = vunpack.c.h.b16 %v50
  %v871 = vunpack.c.l.b16 %v51
  %v872 = vunpack.c.h.b16 %v51
  %v873 = vunpack.c.l.b16 %v52
  %v874 = vunpack.c.h.b16 %v52
  %v875 = vunpack.c.l.b16 %v53
  %v876 = vunpack.c.h.b16 %v53
  %v877 = vunpack.c.l.b16 %v54
  %v878 = vunpack.c.l.b16 %v55
  %v879 = vunpack.c.h.b16 %v55
  %v880 = vunpack.c.l.b16 %v56
  %v881 = vunpack.c.h.b16 %v56
  %v882 = vunpack.c.l.b16 %v57
  %v883 = vunpack.c.h.b16 %v57
  %v884 = vunpack.c.l.b16 %v58
  %v885 = vunpack.c.h.b16 %v58
  %v886 = vunpack.c.l.b16 %v59
  %v887 = vunpack.c.l.b16 %v60
  %v888 = vunpack.c.h.b16 %v60
  %v889 = vunpack.c.l.b16 %v61
  %v890 = vunpack.c.h.b16 %v61
  %v891 = vunpack.c.l.b16 %v62
  %v892 = vunpack.c.h.b16 %v62
  %v893 = vunpack.c.l.b16 %v63
  %v894 = vunpack.c.h.b16 %v63
  %v895 = vunpack.c.l.b16 %v64
  %v896 = vunpack.c.l.b16 %v65
  %v897 = vunpack.c.h.b16 %v65
  %v898 = vunpack.c.l.b16 %v66
  %v899 = vunpack.c.h.b16 %v66
  %v900 = vunpack.c.l.b16 %v67
  %v901 = vunpack.c.h.b16 %v67
  %v902 = vunpack.c.l.b16 %v68
  %v903 = vunpack.c.h.b16 %v68
  %v904 = vunpack.c.l.b16 %v69
  %v905 = vunpack.c.l.b16 %v70
  %v906 = vunpack.c.h.b16 %v70
  %v907 = vunpack.c.l.b16 %v71
  %v908 = vunpack.c.h.b16 %v71
  %v909 = vunpack.c.l.b16 %v72
  %v910 = vunpack.c.h.b16 %v72
  %v911 = vunpack.c.l.b16 %v73
  %v912 = vunpack.c.h.b16 %v73
  %v913 = vunpack.c.l.b16 %v74
  %v914 = vunpack.c.l.b16 %v75
  %v915 = vunpack.c.h.b16 %v75
  %v916 = vunpack.c.l.b16 %v76
  %v917 = vunpack.c.h.b16 %v76
  %v918 = vunpack.c.l.b16 %v77
  %v919 = vunpack.c.h.b16 %v77
  %v920 = vunpack.c.l.b16 %v78
  %v921 = vunpack.c.h.b16 %v78
  %v922 = vunpack.c.l.b16 %v79
  %v923 = vunpack.c.l.b16 %v80
  %v924 = vunpack.c.h.b16 %v80
  %v925 = vunpack.c.l.b16 %v81
  %v926 = vunpack.c.h.b16 %v81
  %v927 = vunpack.c.l.b16 %v82
  %v928 = vunpack.c.h.b16 %v82
  %v929 = vunpack.c.l.b16 %v83
  %v930 = vunpack.c.h.b16 %v83
  %v931 = vunpack.c.l.b16 %v84
  %v932 = vunpack.c.l.b16 %v85
  %v933 = vunpack.c.h.b16 %v85
  %v934 = vunpack.c.l.b16 %v86
  %v935 = vunpack.c.h.b16 %v86
  %v936 = vunpack.c.l.b16 %v87
  %v937 = vunpack.c.h.b16 %v87
  %v938 = vunpack.c.l.b16 %v88
  %v939 = vunpack.c.h.b16 %v88
  %v940 = vunpack.c.l.b16 %v89
  %v941 = vunpack.c.l.b16 %v90
  %v942 = vunpack.c.h.b16 %v90
  %v943 = vunpack.c.l.b16 %v91
  %v944 = vunpack.c.h.b16 %v91
  %v945 = vunpack.c.l.b16 %v92
  %v946 = vunpack.c.h.b16 %v92
  %v947 = vunpack.c.l.b16 %v93
  %v948 = vunpack.c.h.b16 %v93
  %v949 = vunpack.c.l.b16 %v94
  %v950 = vunpack.c.l.b16 %v95
  %v951 = vunpack.c.h.b16 %v95
  %v952 = vunpack.c.l.b16 %v96
  %v953 = vunpack.c.h.b16 %v96
  %v954 = vunpack.c.l.b16 %v97
  %v955 = vunpack.c.h.b16 %v97
  %v956 = vunpack.c.l.b16 %v98
  %v957 = vunpack.c.h.b16 %v98
  %v958 = vunpack.c.l.b16 %v99
  %v959 = vunpack.c.l.b16 %v100
  %v960 = vunpack.c.h.b16 %v100
  %v961 = vunpack.c.l.b16 %v101
  %v962 = vunpack.c.h.b16 %v101
  %v963 = vunpack.c.l.b16 %v102
  %v964 = vunpack.c.h.b16 %v102
  %v965 = vunpack.c.l.b16 %v103
  %v966 = vunpack.c.h.b16 %v103
  %v967 = vunpack.c.l.b16 %v104
  %v968 = vunpack.c.l.b16 %v105
  %v969 = vunpack.c.h.b16 %v105
  %v970 = vunpack.c.l.b16 %v106
  %v971 = vunpack.c.h.b16 %v106
  %v972 = vunpack.c.l.b16 %v107
  %v973 = vunpack.c.h.b16 %v107
  %v974 = vunpack.c.l.b16 %v108
  %v975 = vunpack.c.h.b16 %v108
  %v976 = vunpack.c.l.b16 %v109
  %v977 = vunpack.c.l.b16 %v110
  %v978 = vunpack.c.h.b16 %v110
  %v979 = vunpack.c.l.b16 %v111
  %v980 = vunpack.c.h.b16 %v111
  %v981 = vunpack.c.l.b16 %v112
  %v982 = vunpack.c.h.b16 %v112
  %v983 = vunpack.c.l.b16 %v113
  %v984 = vunpack.c.h.b16 %v113
  %v985 = vunpack.c.l.b16 %v114
  %v986 = vunpack.c.l.b16 %v115
  %v987 = vunpack.c.h.b16 %v115
  %v988 = vunpack.c.l.b16 %v116
  %v989 = vunpack.c.h.b16 %v116
  %v990 = vunpack.c.l.b16 %v117
  %v991 = vunpack.c.h.b16 %v117
  %v992 = vunpack.c.l.b16 %v118
  %v993 = vunpack.c.h.b16 %v118
  %v994 = vunpack.c.l.b16 %v119
  %v995 = vunpack.c.l.b16 %v120
  %v996 = vunpack.c.h.b16 %v120
  %v997 = vunpack.c.l.b16 %v121
  %v998 = vunpack.c.h.b16 %v121
  %v999 = vunpack.c.l.b16 %v122
  %v1000 = vunpack.c.h.b16 %v122
  %v1001 = vunpack.c.l.b16 %v123
  %v1002 = vunpack.c.h.b16 %v123
  %v1003 = vunpack.c.l.b16 %v124
  %v1004 = vunpack.c.l.b16 %v125
  %v1005 = vunpack.c.h.b16 %v125
  %v1006 = vunpack.c.l.b16 %v126
  %v1007 = vunpack.c.h.b16 %v126
  %v1008 = vunpack.c.l.b16 %v127
  %v1009 = vunpack.c.h.b16 %v127
  %v1010 = vunpack.c.l.b16 %v128
  %v1011 = vunpack.c.h.b16 %v128
  %v1012 = vunpack.c.l.b16 %v129
  %v1013 = vunpack.c.l.b16 %v130
  %v1014 = vunpack.c.h.b16 %v130
  %v1015 = vunpack.c.l.b16 %v131
  %v1016 = vunpack.c.h.b16 %v131
  %v1017 = vunpack.c.l.b16 %v132
  %v1018 = vunpack.c.h.b16 %v132
  %v1019 = vunpack.c.l.b16 %v133
  %v1020 = vunpack.c.h.b16 %v133
  %v1021 = vunpack.c.l.b16 %v134
  %v1022 = vunpack.c.l.b16 %v135
  %v1023 = vunpack.c.h.b16 %v135
  %v1024 = vunpack.c.l.b16 %v136
  %v1025 = vunpack.c.h.b16 %v136
  %v1026 = vunpack.c.l.b16 %v137
  %v1027 = vunpack.c.h.b16 %v137
  %v1028 = vunpack.c.l.b16 %v138
  %v1029 = vunpack.c.h.b16 %v138
  %v1030 = vunpack.c.l.b16 %v139
  %v1031 = vunpack.c.l.b16 %v140
  %v1032 = vunpack.c.h.b16 %v140
  %v1033 = vunpack.c.l.b16 %v141
  %v1034 = vunpack.c.h.b16 %v141
  %v1035 = vunpack.c.l.b16 %v142
  %v1036 = vunpack.c.h.b16 %v142
  %v1037 = vunpack.c.l.b16 %v143
  %v1038 = vunpack.c.h.b16 %v143
  %v1039 = vunpack.c.l.b16 %v144
  %v1040 = vunpack.c.l.b16 %v145
  %v1041 = vunpack.c.h.b16 %v145
  %v1042 = vunpack.c.l.b16 %v146
  %v1043 = vunpack.c.h.b16 %v146
  %v1044 = vunpack.c.l.b16 %v147
  %v1045 = vunpack.c.h.b16 %v147
  %v1046 = vunpack.c.l.b16 %v148
  %v1047 = vunpack.c.h.b16 %v148
  %v1048 = vunpack.c.l.b16 %v149
  %v1049 = vunpack.c.l.b16 %v150
  %v1050 = vunpack.c.h.b16 %v150
  %v1051 = vunpack.c.l.b16 %v151
  %v1052 = vunpack.c.h.b16 %v151
  %v1053 = vunpack.c.l.b16 %v152
  %v1054 = vunpack.c.h.b16 %v152
  %v1055 = vunpack.c.l.b16 %v153
  %v1056 = vunpack.c.h.b16 %v153
  %v1057 = vunpack.c.l.b16 %v154
  %v1058 = vunpack.c.l.b16 %v155
  %v1059 = vunpack.c.h.b16 %v155
  %v1060 = vunpack.c.l.b16 %v156
  %v1061 = vunpack.c.h.b16 %v156
  %v1062 = vunpack.c.l.b16 %v157
  %v1063 = vunpack.c.h.b16 %v157
  %v1064 = vunpack.c.l.b16 %v158
  %v1065 = vunpack.c.h.b16 %v158
  %v1066 = vunpack.c.l.b16 %v159
  %v1067 = vunpack.c.l.b16 %v160
  %v1068 = vunpack.c.h.b16 %v160
  %v1069 = vunpack.c.l.b16 %v161
  %v1070 = vunpack.c.h.b16 %v161
  %v1071 = vunpack.c.l.b16 %v162
  %v1072 = vunpack.c.h.b16 %v162
  %v1073 = vunpack.c.l.b16 %v163
  %v1074 = vunpack.c.h.b16 %v163
  %v1075 = vunpack.c.l.b16 %v164
  %v1076 = vunpack.c.l.b16 %v165
  %v1077 = vunpack.c.h.b16 %v165
  %v1078 = vunpack.c.l.b16 %v166
  %v1079 = vunpack.c.h.b16 %v166
  %v1080 = vunpack.c.l.b16 %v167
  %v1081 = vunpack.c.h.b16 %v167
  %v1082 = vunpack.c.l.b16 %v168
  %v1083 = vunpack.c.h.b16 %v168
  %v1084 = vunpack.c.l.b16 %v169
  %v1085 = vunpack.c.l.b16 %v170
  %v1086 = vunpack.c.h.b16 %v170
  %v1087 = vunpack.c.l.b16 %v171
  %v1088 = vunpack.c.h.b16 %v171
  %v1089 = vunpack.c.l.b16 %v172
  %v1090 = vunpack.c.h.b16 %v172
  %v1091 = vunpack.c.l.b16 %v173
  %v1092 = vunpack.c.h.b16 %v173
  %v1093 = vunpack.c.l.b16 %v174
  %v1094 = vunpack.c.l.b16 %v175
  %v1095 = vunpack.c.h.b16 %v175
  %v1096 = vunpack.c.l.b16 %v176
  %v1097 = vunpack.c.h.b16 %v176
  %v1098 = vunpack.c.l.b16 %v177
  %v1099 = vunpack.c.h.b16 %v177
  %v1100 = vunpack.c.l.b16 %v178
  %v1101 = vunpack.c.h.b16 %v178
  %v1102 = vunpack.c.l.b16 %v179
  %v1103 = vunpack.c.l.b16 %v180
  %v1104 = vunpack.c.h.b16 %v180
  %v1105 = vunpack.c.l.b16 %v181
  %v1106 = vunpack.c.h.b16 %v181
  %v1107 = vunpack.c.l.b16 %v182
  %v1108 = vunpack.c.h.b16 %v182
  %v1109 = vunpack.c.l.b16 %v183
  %v1110 = vunpack.c.h.b16 %v183
  %v1111 = vunpack.c.l.b16 %v184
  %v1112 = vunpack.c.l.b16 %v185
  %v1113 = vunpack.c.h.b16 %v185
  %v1114 = vunpack.c.l.b16 %v186
  %v1115 = vunpack.c.h.b16 %v186
  %v1116 = vunpack.c.l.b16 %v187
  %v1117 = vunpack.c.h.b16 %v187
  %v1118 = vunpack.c.l.b16 %v188
  %v1119 = vunpack.c.h.b16 %v188
  %v1120 = vunpack.c.l.b16 %v189
  %v1121 = vunpack.c.l.b16 %v190
  %v1122 = vunpack.c.h.b16 %v190
  %v1123 = vunpack.c.l.b16 %v191
  %v1124 = vunpack.c.h.b16 %v191
  %v1125 = vunpack.c.l.b16 %v192
  %v1126 = vunpack.c.h.b16 %v192
  %v1127 = vunpack.c.l.b16 %v193
  %v1128 = vunpack.c.h.b16 %v193
  %v1129 = vunpack.c.l.b16 %v194
  %v1130 = vunpack.c.l.b16 %v195
  %v1131 = vunpack.c.h.b16 %v195
  %v1132 = vunpack.c.l.b16 %v196
  %v1133 = vunpack.c.h.b16 %v196
  %v1134 = vunpack.c.l.b16 %v197
  %v1135 = vunpack.c.h.b16 %v197
  %v1136 = vunpack.c.l.b16 %v198
  %v1137 = vunpack.c.h.b16 %v198
  %v1138 = vunpack.c.l.b16 %v199
  %v1139 = vunpack.c.l.b16 %v200
  %v1140 = vunpack.c.h.b16 %v200
  %v1141 = vunpack.c.l.b16 %v201
  %v1142 = vunpack.c.h.b16 %v201
  %v1143 = vunpack.c.l.b16 %v202
  %v1144 = vunpack.c.h.b16 %v202
  %v1145 = vunpack.c.l.b16 %v203
  %v1146 = vunpack.c.h.b16 %v203
  %v1147 = vunpack.c.l.b16 %v204
  %v1148 = vunpack.c.l.b16 %v205
  %v1149 = vunpack.c.h.b16 %v205
  %v1150 = vunpack.c.l.b16 %v206
  %v1151 = vunpack.c.h.b16 %v206
  %v1152 = vunpack.c.l.b16 %v207
  %v1153 = vunpack.c.h.b16 %v207
  %v1154 = vunpack.c.l.b16 %v208
  %v1155 = vunpack.c.h.b16 %v208
  %v1156 = vunpack.c.l.b16 %v209
  %v1157 = vunpack.c.l.b16 %v210
  %v1158 = vunpack.c.h.b16 %v210
  %v1159 = vunpack.c.l.b16 %v211
  %v1160 = vunpack.c.h.b16 %v211
  %v1161 = vunpack.c.l.b16 %v212
  %v1162 = vunpack.c.h.b16 %v212
  %v1163 = vunpack.c.l.b16 %v213
  %v1164 = vunpack.c.h.b16 %v213
  %v1165 = vunpack.c.l.b16 %v214
  %v1166 = vunpack.c.l.b16 %v215
  %v1167 = vunpack.c.h.b16 %v215
  %v1168 = vunpack.c.l.b16 %v216
  %v1169 = vunpack.c.h.b16 %v216
  %v1170 = vunpack.c.l.b16 %v217
  %v1171 = vunpack.c.h.b16 %v217
  %v1172 = vunpack.c.l.b16 %v218
  %v1173 = vunpack.c.h.b16 %v218
  %v1174 = vunpack.c.l.b16 %v219
  %v1175 = vunpack.c.l.b16 %v220
  %v1176 = vunpack.c.h.b16 %v220
  %v1177 = vunpack.c.l.b16 %v221
  %v1178 = vunpack.c.h.b16 %v221
  %v1179 = vunpack.c.l.b16 %v222
  %v1180 = vunpack.c.h.b16 %v222
  %v1181 = vunpack.c.l.b16 %v223
  %v1182 = vunpack.c.h.b16 %v223
  %v1183 = vunpack.c.l.b16 %v224
  %v1184 = vunpack.c.l.b16 %v225
  %v1185 = vunpack.c.h.b16 %v225
  %v1186 = vunpack.c.l.b16 %v226
  %v1187 = vunpack.c.h.b16 %v226
  %v1188 = vunpack.c.l.b16 %v227
  %v1189 = vunpack.c.h.b16 %v227
  %v1190 = vunpack.c.l.b16 %v228
  %v1191 = vunpack.c.h.b16 %v228
  %v1192 = vunpack.c.l.b16 %v229
  %v1193 = vunpack.c.l.b16 %v230
  %v1194 = vunpack.c.h.b16 %v230
  %v1195 = vunpack.c.l.b16 %v231
  %v1196 = vunpack.c.h.b16 %v231
  %v1197 = vunpack.c.l.b16 %v232
  %v1198 = vunpack.c.h.b16 %v232
  %v1199 = vunpack.c.l.b16 %v233
  %v1200 = vunpack.c.h.b16 %v233
  %v1201 = vunpack.c.l.b16 %v234
  %v1202 = vunpack.c.l.b16 %v235
  %v1203 = vunpack.c.h.b16 %v235
  %v1204 = vunpack.c.l.b16 %v236
  %v1205 = vunpack.c.h.b16 %v236
  %v1206 = vunpack.c.l.b16 %v237
  %v1207 = vunpack.c.h.b16 %v237
  %v1208 = vunpack.c.l.b16 %v238
  %v1209 = vunpack.c.h.b16 %v238
  %v1210 = vunpack.c.l.b16 %v239
  %v1211 = vunpack.c.l.b16 %v240
  %v1212 = vunpack.c.h.b16 %v240
  %v1213 = vunpack.c.l.b16 %v241
  %v1214 = vunpack.c.h.b16 %v241
  %v1215 = vunpack.c.l.b16 %v242
  %v1216 = vunpack.c.h.b16 %v242
  %v1217 = vunpack.c.l.b16 %v243
  %v1218 = vunpack.c.h.b16 %v243
  %v1219 = vunpack.c.l.b16 %v244
  %v1220 = vunpack.c.l.b16 %v245
  %v1221 = vunpack.c.h.b16 %v245
  %v1222 = vunpack.c.l.b16 %v246
  %v1223 = vunpack.c.h.b16 %v246
  %v1224 = vunpack.c.l.b16 %v247
  %v1225 = vunpack.c.h.b16 %v247
  %v1226 = vunpack.c.l.b16 %v248
  %v1227 = vunpack.c.h.b16 %v248
  %v1228 = vunpack.c.l.b16 %v249
  %v1229 = vunpack.c.l.b16 %v250
  %v1230 = vunpack.c.h.b16 %v250
  %v1231 = vunpack.c.l.b16 %v251
  %v1232 = vunpack.c.h.b16 %v251
  %v1233 = vunpack.c.l.b16 %v252
  %v1234 = vunpack.c.h.b16 %v252
  %v1235 = vunpack.c.l.b16 %v253
  %v1236 = vunpack.c.h.b16 %v253
  %v1237 = vunpack.c.l.b16 %v254
  %v1238 = vunpack.c.l.b16 %v255
  %v1239 = vunpack.c.h.b16 %v255
  %v1240 = vunpack.c.l.b16 %v256
  %v1241 = vunpack.c.h.b16 %v256
  %v1242 = vunpack.c.l.b16 %v257
  %v1243 = vunpack.c.h.b16 %v257
  %v1244 = vunpack.c.l.b16 %v258
  %v1245 = vunpack.c.h.b16 %v258
  %v1246 = vunpack.c.l.b16 %v259
  %v1247 = vunpack.c.l.b16 %v260
  %v1248 = vunpack.c.h.b16 %v260
  %v1249 = vunpack.c.l.b16 %v261
  %v1250 = vunpack.c.h.b16 %v261
  %v1251 = vunpack.c.l.b16 %v262
  %v1252 = vunpack.c.h.b16 %v262
  %v1253 = vunpack.c.l.b16 %v263
  %v1254 = vunpack.c.h.b16 %v263
  %v1255 = vunpack.c.l.b16 %v264
  %v1256 = vunpack.c.l.b16 %v265
  %v1257 = vunpack.c.h.b16 %v265
  %v1258 = vunpack.c.l.b16 %v266
  %v1259 = vunpack.c.h.b16 %v266
  %v1260 = vunpack.c.l.b16 %v267
  %v1261 = vunpack.c.h.b16 %v267
  %v1262 = vunpack.c.l.b16 %v268
  %v1263 = vunpack.c.h.b16 %v268
  %v1264 = vunpack.c.l.b16 %v269
  %v1265 = vunpack.c.l.b16 %v270
  %v1266 = vunpack.c.h.b16 %v270
  %v1267 = vunpack.c.l.b16 %v271
  %v1268 = vunpack.c.h.b16 %v271
  %v1269 = vunpack.c.l.b16 %v272
  %v1270 = vunpack.c.h.b16 %v272
  %v1271 = vunpack.c.l.b16 %v273
  %v1272 = vunpack.c.h.b16 %v273
  %v1273 = vunpack.c.l.b16 %v274
  %v1274 = vunpack.c.l.b16 %v275
  %v1275 = vunpack.c.h.b16 %v275
  %v1276 = vunpack.c.l.b16 %v276
  %v1277 = vunpack.c.h.b16 %v276
  %v1278 = vunpack.c.l.b16 %v277
  %v1279 = vunpack.c.h.b16 %v277
  %v1280 = vunpack.c.l.b16 %v278
  %v1281 = vunpack.c.h.b16 %v278
  %v1282 = vunpack.c.l.b16 %v279
  %v1283 = vunpack.c.l.b16 %v280
  %v1284 = vunpack.c.h.b16 %v280
  %v1285 = vunpack.c.l.b16 %v281
  %v1286 = vunpack.c.h.b16 %v281
  %v1287 = vunpack.c.l.b16 %v282
  %v1288 = vunpack.c.h.b16 %v282
  %v1289 = vunpack.c.l.b16 %v283
  %v1290 = vunpack.c.h.b16 %v283
  %v1291 = vunpack.c.l.b16 %v284
  %v1292 = vunpack.c.l.b16 %v285
  %v1293 = vunpack.c.h.b16 %v285
  %v1294 = vunpack.c.l.b16 %v286
  %v1295 = vunpack.c.h.b16 %v286
  %v1296 = vunpack.c.l.b16 %v287
  %v1297 = vunpack.c.h.b16 %v287
  %v1298 = vunpack.c.l.b16 %v288
  %v1299 = vunpack.c.h.b16 %v288
  %v1300 = vunpack.c.l.b16 %v289
  %v1301 = vunpack.c.l.b16 %v290
  %v1302 = vunpack.c.h.b16 %v290
  %v1303 = vunpack.c.l.b16 %v291
  %v1304 = vunpack.c.h.b16 %v291
  %v1305 = vunpack.c.l.b16 %v292
  %v1306 = vunpack.c.h.b16 %v292
  %v1307 = vunpack.c.l.b16 %v293
  %v1308 = vunpack.c.h.b16 %v293
  %v1309 = vunpack.c.l.b16 %v294
  %v1310 = vunpack.c.l.b16 %v295
  %v1311 = vunpack.c.h.b16 %v295
  %v1312 = vunpack.c.l.b16 %v296
  %v1313 = vunpack.c.h.b16 %v296
  %v1314 = vunpack.c.l.b16 %v297
  %v1315 = vunpack.c.h.b16 %v297
  %v1316 = vunpack.c.l.b16 %v298
  %v1317 = vunpack.c.h.b16 %v298
  %v1318 = vunpack.c.l.b16 %v299
  %v1319 = vunpack.c.l.b16 %v300
  %v1320 = vunpack.c.h.b16 %v300
  %v1321 = vunpack.c.l.b16 %v301
  %v1322 = vunpack.c.h.b16 %v301
  %v1323 = vunpack.c.l.b16 %v302
  %v1324 = vunpack.c.h.b16 %v302
  %v1325 = vunpack.c.l.b16 %v303
  %v1326 = vunpack.c.h.b16 %v303
  %v1327 = vunpack.c.l.b16 %v304
  %v1328 = vunpack.c.l.b16 %v305
  %v1329 = vunpack.c.h.b16 %v305
  %v1330 = vunpack.c.l.b16 %v306
  %v1331 = vunpack.c.h.b16 %v306
  %v1332 = vunpack.c.l.b16 %v307
  %v1333 = vunpack.c.h.b16 %v307
  %v1334 = vunpack.c.l.b16 %v308
  %v1335 = vunpack.c.h.b16 %v308
  %v1336 = vunpack.c.l.b16 %v309
  %v1337 = vunpack.c.l.b16 %v310
  %v1338 = vunpack.c.h.b16 %v310
  %v1339 = vunpack.c.l.b16 %v311
  %v1340 = vunpack.c.h.b16 %v311
  %v1341 = vunpack.c.l.b16 %v312
  %v1342 = vunpack.c.h.b16 %v312
  %v1343 = vunpack.c.l.b16 %v313
  %v1344 = vunpack.c.h.b16 %v313
  %v1345 = vunpack.c.l.b16 %v314
  %v1346 = vunpack.c.l.b16 %v315
  %v1347 = vunpack.c.h.b16 %v315
  %v1348 = vunpack.c.l.b16 %v316
  %v1349 = vunpack.c.h.b16 %v316
  %v1350 = vunpack.c.l.b16 %v317
  %v1351 = vunpack.c.h.b16 %v317
  %v1352 = vunpack.c.l.b16 %v318
  %v1353 = vunpack.c.h.b16 %v318
  %v1354 = vunpack.c.l.b16 %v319
  %v1355 = vunpack.c.l.b16 %v320
  %v1356 = vunpack.c.h.b16 %v320
  %v1357 = vunpack.c.l.b16 %v321
  %v1358 = vunpack.c.h.b16 %v321
  %v1359 = vunpack.c.l.b16 %v322
  %v1360 = vunpack.c.h.b16 %v322
  %v1361 = vunpack.c.l.b16 %v323
  %v1362 = vunpack.c.h.b16 %v323
  %v1363 = vunpack.c.l.b16 %v324
  %v1364 = vunpack.c.l.b16 %v325
  %v1365 = vunpack.c.h.b16 %v325
  %v1366 = vunpack.c.l.b16 %v326
  %v1367 = vunpack.c.h.b16 %v326
  %v1368 = vunpack.c.l.b16 %v327
  %v1369 = vunpack.c.h.b16 %v327
  %v1370 = vunpack.c.l.b16 %v328
  %v1371 = vunpack.c.h.b16 %v328
  %v1372 = vunpack.c.l.b16 %v329
  %v1373 = vunpack.c.l.b16 %v330
  %v1374 = vunpack.c.h.b16 %v330
  %v1375 = vunpack.c.l.b16 %v331
  %v1376 = vunpack.c.h.b16 %v331
  %v1377 = vunpack.c.l.b16 %v332
  %v1378 = vunpack.c.h.b16 %v332
  %v1379 = vunpack.c.l.b16 %v333
  %v1380 = vunpack.c.h.b16 %v333
  %v1381 = vunpack.c.l.b16 %v334
  %v1382 = vpack.c.b16 %v815, %v806
  %v1383 = vpack.c.b16 %v816, %v807
  %v1384 = vpack.c.b16 %v817, %v808
  %v1385 = vpack.c.b16 %v818, %v809
  %v1386 = vpack.c.b16 %v819, %v810
  %v1387 = vpack.c.b16 %v820, %v811
  %v1388 = vpack.c.b16 %v821, %v812
  %v1389 = vpack.c.b16 %v822, %v813
  %v1390 = vpack.c.b16 %v823, %v814
  %v1391 = vpack.c.b16 %v833, %v824
  %v1392 = vpack.c.b16 %v834, %v825
  %v1393 = vpack.c.b16 %v835, %v826
  %v1394 = vpack.c.b16 %v836, %v827
  %v1395 = vpack.c.b16 %v837, %v828
  %v1396 = vpack.c.b16 %v838, %v829
  %v1397 = vpack.c.b16 %v839, %v830
  %v1398 = vpack.c.b16 %v840, %v831
  %v1399 = vpack.c.b16 %v841, %v832
  %v1400 = vpack.c.b16 %v851, %v842
  %v1401 = vpack.c.b16 %v852, %v843
  %v1402 = vpack.c.b16 %v853, %v844
  %v1403 = vpack.c.b16 %v854, %v845
  %v1404 = vpack.c.b16 %v855, %v846
  %v1405 = vpack.c.b16 %v856, %v847
  %v1406 = vpack.c.b16 %v857, %v848
  %v1407 = vpack.c.b16 %v858, %v849
  %v1408 = vpack.c.b16 %v859, %v850
  %v1409 = vpack.c.b16 %v869, %v860
  %v1410 = vpack.c.b16 %v870, %v861
  %v1411 = vpack.c.b16 %v871, %v862
  %v1412 = vpack.c.b16 %v872, %v863
  %v1413 = vpack.c.b16 %v873, %v864
  %v1414 = vpack.c.b16 %v874, %v865
  %v1415 = vpack.c.b16 %v875, %v866
  %v1416 = vpack.c.b16 %v876, %v867
  %v1417 = vpack.c.b16 %v877, %v868
  %v1418 = vpack.c.b16 %v887, %v878
  %v1419 = vpack.c.b16 %v888, %v879
  %v1420 = vpack.c.b16 %v889, %v880
  %v1421 = vpack.c.b16 %v890, %v881
  %v1422 = vpack.c.b16 %v891, %v882
  %v1423 = vpack.c.b16 %v892, %v883
  %v1424 = vpack.c.b16 %v893, %v884
  %v1425 = vpack.c.b16 %v894, %v885
  %v1426 = vpack.c.b16 %v895, %v886
  %v1427 = vpack.c.b16 %v905, %v896
  %v1428 = vpack.c.b16 %v906, %v897
  %v1429 = vpack.c.b16 %v907, %v898
  %v1430 = vpack.c.b16 %v908, %v899
  %v1431 = vpack.c.b16 %v909, %v900
  %v1432 = vpack.c.b16 %v910, %v901
  %v1433 = vpack.c.b16 %v911, %v902
  %v1434 = vpack.c.b16 %v912, %v903
  %v1435 = vpack.c.b16 %v913, %v904
  %v1436 = vpack.c.b16 %v923, %v914
  %v1437 = vpack.c.b16 %v924, %v915
  %v1438 = vpack.c.b16 %v925, %v916
  %v1439 = vpack.c.b16 %v926, %v917
  %v1440 = vpack.c.b16 %v927, %v918
  %v1441 = vpack.c.b16 %v928, %v919
  %v1442 = vpack.c.b16 %v929, %v920
  %v1443 = vpack.c.b16 %v930, %v921
  %v1444 = vpack.c.b16 %v931, %v922
  %v1445 = vpack.c.b16 %v941, %v932
  %v1446 = vpack.c.b16 %v942, %v933
  %v1447 = vpack.c.b16 %v943, %v934
  %v1448 = vpack.c.b16 %v944, %v935
  %v1449 = vpack.c.b16 %v945, %v936
  %v1450 = vpack.c.b16 %v946, %v937
  %v1451 = vpack.c.b16 %v947, %v938
  %v1452 = vpack.c.b16 %v948, %v939
  %v1453 = vpack.c.b16 %v949, %v940
  %v1454 = vpack.c.b16 %v959, %v950
  %v1455 = vpack.c.b16 %v960, %v951
  %v1456 = vpack.c.b16 %v961, %v952
  %v1457 = vpack.c.b16 %v962, %v953
  %v1458 = vpack.c.b16 %v963, %v954
  %v1459 = vpack.c.b16 %v964, %v955
  %v1460 = vpack.c.b16 %v965, %v956
  %v1461 = vpack.c.b16 %v966, %v957
  %v1462 = vpack.c.b16 %v967, %v958
  %v1463 = vpack.c.b16 %v977, %v968
  %v1464 = vpack.c.b16 %v978, %v969
  %v1465 = vpack.c.b16 %v979, %v970
  %v1466 = vpack.c.b16 %v980, %v971
  %v1467 = vpack.c.b16 %v981, %v972
  %v1468 = vpack.c.b16 %v982, %v973
  %v1469 = vpack.c.b16 %v983, %v974
  %v1470 = vpack.c.b16 %v984, %v975
  %v1471 = vpack.c.b16 %v985, %v976
  %v1472 = vpack.c.b16 %v995, %v986
  %v1473 = vpack.c.b16 %v996, %v987
  %v1474 = vpack.c.b16 %v997, %v988
  %v1475 = vpack.c.b16 %v998, %v989
  %v1476 = vpack.c.b16 %v999, %v990
  %v1477 = vpack.c.b16 %v1000, %v991
  %v1478 = vpack.c.b16 %v1001, %v992
  %v1479 = vpack.c.b16 %v1002, %v993
  %v1480 = vpack.c.b16 %v1003, %v994
  %v1481 = vpack.c.b16 %v1013, %v1004
  %v1482 = vpack.c.b16 %v1014, %v1005
  %v1483 = vpack.c.b16 %v1015, %v1006
  %v1484 = vpack.c.b16 %v1016, %v1007
  %v1485 = vpack.c.b16 %v1017, %v1008
  %v1486 = vpack.c.b16 %v1018, %v1009
  %v1487 = vpack.c.b16 %v1019, %v1010
  %v1488 = vpack.c.b16 %v1020, %v1011
  %v1489 = vpack.c.b16 %v1021, %v1012
  %v1490 = vpack.c.b16 %v1031, %v1022
  %v1491 = vpack.c.b16 %v1032, %v1023
  %v1492 = vpack.c.b16 %v1033, %v1024
  %v1493 = vpack.c.b16 %v1034, %v1025
  %v1494 = vpack.c.b16 %v1035, %v1026
  %v1495 = vpack.c.b16 %v1036, %v1027
  %v1496 = vpack.c.b16 %v1037, %v1028
  %v1497 = vpack.c.b16 %v1038, %v1029
  %v1498 = vpack.c.b16 %v1039, %v1030
  %v1499 = vpack.c.b16 %v1049, %v1040
  %v1500 = vpack.c.b16 %v1050, %v1041
  %v1501 = vpack.c.b16 %v1051, %v1042
  %v1502 = vpack.c.b16 %v1052, %v1043
  %v1503 = vpack.c.b16 %v1053, %v1044
  %v1504 = vpack.c.b16 %v1054, %v1045
  %v1505 = vpack.c.b16 %v1055, %v1046
  %v1506 = vpack.c.b16 %v1056, %v1047
  %v1507 = vpack.c.b16 %v1057, %v1048
  %v1508 = vpack.c.b16 %v1067, %v1058
  %v1509 = vpack.c.b16 %v1068, %v1059
  %v1510 = vpack.c.b16 %v1069, %v1060
  %v1511 = vpack.c.b16 %v1070, %v1061
  %v1512 = vpack.c.b16 %v1071, %v1062
  %v1513 = vpack.c.b16 %v1072, %v1063
  %v1514 = vpack.c.b16 %v1073, %v1064
  %v1515 = vpack.c.b16 %v1074, %v1065
  %v1516 = vpack.c.b16 %v1075, %v1066
  %v1517 = vpack.c.b16 %v1085, %v1076
  %v1518 = vpack.c.b16 %v1086, %v1077
  %v1519 = vpack.c.b16 %v1087, %v1078
  %v1520 = vpack.c.b16 %v1088, %v1079
  %v1521 = vpack.c.b16 %v1089, %v1080
  %v1522 = vpack.c.b16 %v1090, %v1081
  %v1523 = vpack.c.b16 %v1091, %v1082
  %v1524 = vpack.c.b16 %v1092, %v1083
  %v1525 = vpack.c.b16 %v1093, %v1084
  %v1526 = vpack.c.b16 %v1103, %v1094
  %v1527 = vpack.c.b16 %v1104, %v1095
  %v1528 = vpack.c.b16 %v1105, %v1096
  %v1529 = vpack.c.b16 %v1106, %v1097
  %v1530 = vpack.c.b16 %v1107, %v1098
  %v1531 = vpack.c.b16 %v1108, %v1099
  %v1532 = vpack.c.b16 %v1109, %v1100
  %v1533 = vpack.c.b16 %v1110, %v1101
  %v1534 = vpack.c.b16 %v1111, %v1102
  %v1535 = vpack.c.b16 %v1121, %v1112
  %v1536 = vpack.c.b16 %v1122, %v1113
  %v1537 = vpack.c.b16 %v1123, %v1114
  %v1538 = vpack.c.b16 %v1124, %v1115
  %v1539 = vpack.c.b16 %v1125, %v1116
  %v1540 = vpack.c.b16 %v1126, %v1117
  %v1541 = vpack.c.b16 %v1127, %v1118
  %v1542 = vpack.c.b16 %v1128, %v1119
  %v1543 = vpack.c.b16 %v1129, %v1120
  %v1544 = vpack.c.b16 %v1139, %v1130
  %v1545 = vpack.c.b16 %v1140, %v1131
  %v1546 = vpack.c.b16 %v1141, %v1132
  %v1547 = vpack.c.b16 %v1142, %v1133
  %v1548 = vpack.c.b16 %v1143, %v1134
  %v1549 = vpack.c.b16 %v1144, %v1135
  %v1550 = vpack.c.b16 %v1145, %v1136
  %v1551 = vpack.c.b16 %v1146, %v1137
  %v1552 = vpack.c.b16 %v1147, %v1138
  %v1553 = vpack.c.b16 %v1157, %v1148
  %v1554 = vpack.c.b16 %v1158, %v1149
  %v1555 = vpack.c.b16 %v1159, %v1150
  %v1556 = vpack.c.b16 %v1160, %v1151
  %v1557 = vpack.c.b16 %v1161, %v1152
  %v1558 = vpack.c.b16 %v1162, %v1153
  %v1559 = vpack.c.b16 %v1163, %v1154
  %v1560 = vpack.c.b16 %v1164, %v1155
  %v1561 = vpack.c.b16 %v1165, %v1156
  %v1562 = vpack.c.b16 %v1175, %v1166
  %v1563 = vpack.c.b16 %v1176, %v1167
  %v1564 = vpack.c.b16 %v1177, %v1168
  %v1565 = vpack.c.b16 %v1178, %v1169
  %v1566 = vpack.c.b16 %v1179, %v1170
  %v1567 = vpack.c.b16 %v1180, %v1171
  %v1568 = vpack.c.b16 %v1181, %v1172
  %v1569 = vpack.c.b16 %v1182, %v1173
  %v1570 = vpack.c.b16 %v1183, %v1174
  %v1571 = vpack.c.b16 %v1193, %v1184
  %v1572 = vpack.c.b16 %v1194, %v1185
  %v1573 = vpack.c.b16 %v1195, %v1186
  %v1574 = vpack.c.b16 %v1196, %v1187
  %v1575 = vpack.c.b16 %v1197, %v1188
  %v1576 = vpack.c.b16 %v1198, %v1189
  %v1577 = vpack.c.b16 %v1199, %v1190
  %v1578 = vpack.c.b16 %v1200, %v1191
  %v1579 = vpack.c.b16 %v1201, %v1192
  %v1580 = vpack.c.b16 %v1211, %v1202
  %v1581 = vpack.c.b16 %v1212, %v1203
  %v1582 = vpack.c.b16 %v1213, %v1204
  %v1583 = vpack.c.b16 %v1214, %v1205
  %v1584 = vpack.c.b16 %v1215, %v1206
  %v1585 = vpack.c.b16 %v1216, %v1207
  %v1586 = vpack.c.b16 %v1217, %v1208
  %v1587 = vpack.c.b16 %v1218, %v1209
  %v1588 = vpack.c.b16 %v1219, %v1210
  %v1589 = vpack.c.b16 %v1229, %v1220
  %v1590 = vpack.c.b16 %v1230, %v1221
  %v1591 = vpack.c.b16 %v1231, %v1222
  %v1592 = vpack.c.b16 %v1232, %v1223
  %v1593 = vpack.c.b16 %v1233, %v1224
  %v1594 = vpack.c.b16 %v1234, %v1225
  %v1595 = vpack.c.b16 %v1235, %v1226
  %v1596 = vpack.c.b16 %v1236, %v1227
  %v1597 = vpack.c.b16 %v1237, %v1228
  %v1598 = vpack.c.b16 %v1247, %v1238
  %v1599 = vpack.c.b16 %v1248, %v1239
  %v1600 = vpack.c.b16 %v1249, %v1240
  %v1601 = vpack.c.b16 %v1250, %v1241
  %v1602 = vpack.c.b16 %v1251, %v1242
  %v1603 = vpack.c.b16 %v1252, %v1243
  %v1604 = vpack.c.b16 %v1253, %v1244
  %v1605 = vpack.c.b16 %v1254, %v1245
  %v1606 = vpack.c.b16 %v1255, %v1246
  %v1607 = vpack.c.b16 %v1265, %v1256
  %v1608 = vpack.c.b16 %v1266, %v1257
  %v1609 = vpack.c.b16 %v1267, %v1258
  %v1610 = vpack.c.b16 %v1268, %v1259
  %v1611 = vpack.c.b16 %v1269, %v1260
  %v1612 = vpack.c.b16 %v1270, %v1261
  %v1613 = vpack.c.b16 %v1271, %v1262
  %v1614 = vpack.c.b16 %v1272, %v1263
  %v1615 = vpack.c.b16 %v1273, %v1264
  %v1616 = vpack.c.b16 %v1283, %v1274
  %v1617 = vpack.c.b16 %v1284, %v1275
  %v1618 = vpack.c.b16 %v1285, %v1276
  %v1619 = vpack.c.b16 %v1286, %v1277
  %v1620 = vpack.c.b16 %v1287, %v1278
  %v1621 = vpack.c.b16 %v1288, %v1279
  %v1622 = vpack.c.b16 %v1289, %v1280
  %v1623 = vpack.c.b16 %v1290, %v1281
  %v1624 = vpack.c.b16 %v1291, %v1282
  %v1625 = vpack.c.b16 %v1301, %v1292
  %v1626 = vpack.c.b16 %v1302, %v1293
  %v1627 = vpack.c.b16 %v1303, %v1294
  %v1628 = vpack.c.b16 %v1304, %v1295
  %v1629 = vpack.c.b16 %v1305, %v1296
  %v1630 = vpack.c.b16 %v1306, %v1297
  %v1631 = vpack.c.b16 %v1307, %v1298
  %v1632 = vpack.c.b16 %v1308, %v1299
  %v1633 = vpack.c.b16 %v1309, %v1300
  %v1634 = vpack.c.b16 %v1319, %v1310
  %v1635 = vpack.c.b16 %v1320, %v1311
  %v1636 = vpack.c.b16 %v1321, %v1312
  %v1637 = vpack.c.b16 %v1322, %v1313
  %v1638 = vpack.c.b16 %v1323, %v1314
  %v1639 = vpack.c.b16 %v1324, %v1315
  %v1640 = vpack.c.b16 %v1325, %v1316
  %v1641 = vpack.c.b16 %v1326, %v1317
  %v1642 = vpack.c.b16 %v1327, %v1318
  %v1643 = vpack.c.b16 %v1337, %v1328
  %v1644 = vpack.c.b16 %v1338, %v1329
  %v1645 = vpack.c.b16 %v1339, %v1330
  %v1646 = vpack.c.b16 %v1340, %v1331
  %v1647 = vpack.c.b16 %v1341, %v1332
  %v1648 = vpack.c.b16 %v1342, %v1333
  %v1649 = vpack.c.b16 %v1343, %v1334
  %v1650 = vpack.c.b16 %v1344, %v1335
  %v1651 = vpack.c.b16 %v1345, %v1336
  %v1652 = vpack.c.b16 %v1355, %v1346
  %v1653 = vpack.c.b16 %v1356, %v1347
  %v1654 = vpack.c.b16 %v1357, %v1348
  %v1655 = vpack.c.b16 %v1358, %v1349
  %v1656 = vpack.c.b16 %v1359, %v1350
  %v1657 = vpack.c.b16 %v1360, %v1351
  %v1658 = vpack.c.b16 %v1361, %v1352
  %v1659 = vpack.c.b16 %v1362, %v1353
  %v1660 = vpack.c.b16 %v1363, %v1354
  %v1661 = vpack.c.b16 %v1373, %v1364
  %v1662 = vpack.c.b16 %v1374, %v1365
  %v1663 = vpack.c.b16 %v1375, %v1366
  %v1664 = vpack.c.b16 %v1376, %v1367
  %v1665 = vpack.c.b16 %v1377, %v1368
  %v1666 = vpack.c.b16 %v1378, %v1369
  %v1667 = vpack.c.b16 %v1379, %v1370
  %v1668 = vpack.c.b16 %v1380, %v1371
  %v1669 = vpack.c.b16 %v1381, %v1372
  %v2102 = vunpack.c.l.b16 %v335
  %v2103 = vunpack.c.l.b16 %v336
  %v2104 = vunpack.c.l.b16 %v337
  %v2105 = vunpack.c.l.b16 %v338
  %v2106 = vunpack.c.l.b16 %v339
  %v2107 = vunpack.c.l.b16 %v340
  %v2108 = vunpack.c.l.b16 %v341
  %v2109 = vunpack.c.l.b16 %v342
  %v2110 = vunpack.c.l.b16 %v343
  %v2111 = vunpack.c.l.b16 %v344
  %v2112 = vunpack.c.l.b16 %v345
  %v2113 = vunpack.c.l.b16 %v346
  %v2114 = vunpack.c.l.b16 %v347
  %v2115 = vunpack.c.l.b16 %v348
  %v2116 = vunpack.c.l.b16 %v349
  %v2117 = vunpack.c.l.b16 %v350
  %v2118 = vunpack.c.l.b16 %v351
  %v2119 = vunpack.c.l.b16 %v352
  %v2120 = vunpack.c.l.b16 %v353
  %v2121 = vunpack.c.l.b16 %v354
  %v2122 = vunpack.c.l.b16 %v355
  %v2123 = vunpack.c.l.b16 %v356
  %v2124 = vunpack.c.l.b16 %v357
  %v2125 = vunpack.c.l.b16 %v358
  %v2126 = vunpack.c.l.b16 %v359
  %v2127 = vunpack.c.l.b16 %v360
  %v2128 = vunpack.c.l.b16 %v361
  %v2129 = vunpack.c.l.b16 %v362
  %v2130 = vunpack.c.l.b16 %v363
  %v2131 = vunpack.c.l.b16 %v364
  %v2132 = vunpack.c.l.b16 %v365
  %v2133 = vunpack.c.l.b16 %v366
  %v2134 = vunpack.c.l.b16 %v367
  %v2135 = vunpack.c.l.b16 %v368
  %v2136 = vunpack.c.l.b16 %v369
  %v2137 = vunpack.c.l.b16 %v370
  %v2138 = vunpack.c.l.b16 %v371
  %v2139 = vunpack.c.l.b16 %v372
  %v2140 = vunpack.c.l.b16 %v373
  %v2141 = vunpack.c.l.b16 %v374
  %v2142 = vunpack.c.l.b16 %v375
  %v2143 = vunpack.c.l.b16 %v376
  %v2144 = vunpack.c.l.b16 %v377
  %v2145 = vunpack.c.l.b16 %v378
  %v2146 = vunpack.c.l.b16 %v379
  %v2147 = vunpack.c.l.b16 %v380
  %v2148 = vunpack.c.l.b16 %v381
  %v2149 = vunpack.c.l.b16 %v382
  %v2150 = vunpack.c.l.b16 %v383
  %v2151 = vunpack.c.l.b16 %v384
  %v2152 = vunpack.c.l.b16 %v385
  %v2153 = vunpack.c.l.b16 %v386
  %v2154 = vunpack.c.l.b16 %v387
  %v2155 = vunpack.c.l.b16 %v388
  %v2156 = vunpack.c.l.b16 %v389
  %v2157 = vunpack.c.l.b16 %v390
  %v2158 = vunpack.c.l.b16 %v391
  %v2159 = vunpack.c.l.b16 %v392
  %v2160 = vunpack.c.l.b16 %v393
  %v2161 = vunpack.c.l.b16 %v394
  %v2162 = vunpack.c.l.b16 %v395
  %v2163 = vunpack.c.l.b16 %v396
  %v2164 = vunpack.c.l.b16 %v397
  %v2165 = vunpack.c.l.b16 %v398
  %v2166 = vunpack.c.l.b16 %v399
  %v2167 = vunpack.c.l.b16 %v400
  %v2168 = vunpack.c.l.b16 %v401
  %v2169 = vunpack.c.l.b16 %v402
  %v2170 = vunpack.c.l.b16 %v403
  %v2171 = vunpack.c.l.b16 %v404
  %v2172 = vunpack.c.l.b16 %v405
  %v2173 = vunpack.c.l.b16 %v406
  %v2174 = vunpack.c.l.b16 %v407
  %v2175 = vunpack.c.l.b16 %v408
  %v2176 = vunpack.c.l.b16 %v409
  %v2177 = vunpack.c.l.b16 %v410
  %v2178 = vunpack.c.l.b16 %v411
  %v2179 = vunpack.c.l.b16 %v412
  %v2180 = vunpack.c.l.b16 %v413
  %v2181 = vunpack.c.l.b16 %v414
  %v2182 = vunpack.c.l.b16 %v415
  %v2183 = vunpack.c.l.b16 %v416
  %v2184 = vunpack.c.l.b16 %v417
  %v2185 = vunpack.c.l.b16 %v418
  %v2186 = vunpack.c.l.b16 %v419
  %v2187 = vunpack.c.l.b16 %v420
  %v2188 = vunpack.c.l.b16 %v421
  %v2189 = vunpack.c.l.b16 %v422
  %v2190 = vunpack.c.l.b16 %v423
  %v2191 = vunpack.c.l.b16 %v424
  %v2192 = vunpack.c.l.b16 %v425
  %v2193 = vunpack.c.l.b16 %v426
  %v2194 = vunpack.c.l.b16 %v427
  %v2195 = vunpack.c.l.b16 %v428
  %v2196 = vunpack.c.l.b16 %v429
  %v2197 = vunpack.c.l.b16 %v430
  %v2198 = vunpack.c.l.b16 %v431
  %v2199 = vunpack.c.l.b16 %v432
  %v2200 = vunpack.c.l.b16 %v433
  %v2201 = vunpack.c.l.b16 %v434
  %v2202 = vunpack.c.l.b16 %v435
  %v2203 = vunpack.c.l.b16 %v436
  %v2204 = vunpack.c.l.b16 %v437
  %v2205 = vunpack.c.l.b16 %v438
  %v2206 = vunpack.c.l.b16 %v439
  %v2207 = vunpack.c.l.b16 %v440
  %v2208 = vunpack.c.l.b16 %v441
  %v2209 = vunpack.c.l.b16 %v442
  %v2210 = vunpack.c.l.b16 %v443
  %v2211 = vunpack.c.l.b16 %v444
  %v2212 = vunpack.c.l.b16 %v445
  %v2213 = vunpack.c.l.b16 %v446
  %v2214 = vunpack.c.l.b16 %v447
  %v2215 = vunpack.c.l.b16 %v448
  %v2216 = vunpack.c.l.b16 %v449
  %v2217 = vunpack.c.l.b16 %v450
  %v2218 = vunpack.c.l.b16 %v451
  %v2219 = vunpack.c.l.b16 %v452
  %v2220 = vunpack.c.l.b16 %v453
  %v2221 = vunpack.c.l.b16 %v454
  %v2222 = vunpack.c.l.b16 %v455
  %v2223 = vunpack.c.l.b16 %v456
  %v2224 = vunpack.c.l.b16 %v457
  %v2225 = vunpack.c.l.b16 %v458
  %v2226 = vunpack.c.l.b16 %v459
  %v2227 = vunpack.c.l.b16 %v460
  %v2228 = vunpack.c.l.b16 %v461
  %v2229 = vunpack.c.l.b16 %v462
  %v2230 = vunpack.c.l.b16 %v463
  %v2231 = vunpack.c.l.b16 %v464
  %v2232 = vunpack.c.l.b16 %v465
  %v2233 = vunpack.c.l.b16 %v466
  %v2234 = vunpack.c.l.b16 %v467
  %v2235 = vunpack.c.l.b16 %v468
  %v2236 = vunpack.c.l.b16 %v469
  %v2237 = vunpack.c.l.b16 %v470
  %v2238 = vunpack.c.l.b16 %v471
  %v2239 = vunpack.c.l.b16 %v472
  %v2240 = vunpack.c.l.b16 %v473
  %v2241 = vunpack.c.l.b16 %v474
  %v2242 = vunpack.c.l.b16 %v475
  %v2243 = vunpack.c.l.b16 %v476
  %v2244 = vunpack.c.l.b16 %v477
  %v2245 = vunpack.c.l.b16 %v478
  %v2246 = vpack.c.b16 %v2103, %v2102
  %v2247 = vpack.c.b16 %v2105, %v2104
  %v2248 = vpack.c.b16 %v2107, %v2106
  %v2249 = vpack.c.b16 %v2109, %v2108
  %v2250 = vpack.c.b16 %v2111, %v2110
  %v2251 = vpack.c.b16 %v2113, %v2112
  %v2252 = vpack.c.b16 %v2115, %v2114
  %v2253 = vpack.c.b16 %v2117, %v2116
  %v2254 = vpack.c.b16 %v2119, %v2118
  %v2255 = vpack.c.b16 %v2121, %v2120
  %v2256 = vpack.c.b16 %v2123, %v2122
  %v2257 = vpack.c.b16 %v2125, %v2124
  %v2258 = vpack.c.b16 %v2127, %v2126
  %v2259 = vpack.c.b16 %v2129, %v2128
  %v2260 = vpack.c.b16 %v2131, %v2130
  %v2261 = vpack.c.b16 %v2133, %v2132
  %v2262 = vpack.c.b16 %v2135, %v2134
  %v2263 = vpack.c.b16 %v2137, %v2136
  %v2264 = vpack.c.b16 %v2139, %v2138
  %v2265 = vpack.c.b16 %v2141, %v2140
  %v2266 = vpack.c.b16 %v2143, %v2142
  %v2267 = vpack.c.b16 %v2145, %v2144
  %v2268 = vpack.c.b16 %v2147, %v2146
  %v2269 = vpack.c.b16 %v2149, %v2148
  %v2270 = vpack.c.b16 %v2151, %v2150
  %v2271 = vpack.c.b16 %v2153, %v2152
  %v2272 = vpack.c.b16 %v2155, %v2154
  %v2273 = vpack.c.b16 %v2157, %v2156
  %v2274 = vpack.c.b16 %v2159, %v2158
  %v2275 = vpack.c.b16 %v2161, %v2160
  %v2276 = vpack.c.b16 %v2163, %v2162
  %v2277 = vpack.c.b16 %v2165, %v2164
  %v2278 = vpack.c.b16 %v2167, %v2166
  %v2279 = vpack.c.b16 %v2169, %v2168
  %v2280 = vpack.c.b16 %v2171, %v2170
  %v2281 = vpack.c.b16 %v2173, %v2172
  %v2282 = vpack.c.b16 %v2175, %v2174
  %v2283 = vpack.c.b16 %v2177, %v2176
  %v2284 = vpack.c.b16 %v2179, %v2178
  %v2285 = vpack.c.b16 %v2181, %v2180
  %v2286 = vpack.c.b16 %v2183, %v2182
  %v2287 = vpack.c.b16 %v2185, %v2184
  %v2288 = vpack.c.b16 %v2187, %v2186
  %v2289 = vpack.c.b16 %v2189, %v2188
  %v2290 = vpack.c.b16 %v2191, %v2190
  %v2291 = vpack.c.b16 %v2193, %v2192
  %v2292 = vpack.c.b16 %v2195, %v2194
  %v2293 = vpack.c.b16 %v2197, %v2196
  %v2294 = vpack.c.b16 %v2199, %v2198
  %v2295 = vpack.c.b16 %v2201, %v2200
  %v2296 = vpack.c.b16 %v2203, %v2202
  %v2297 = vpack.c.b16 %v2205, %v2204
  %v2298 = vpack.c.b16 %v2207, %v2206
  %v2299 = vpack.c.b16 %v2209, %v2208
  %v2300 = vpack.c.b16 %v2211, %v2210
  %v2301 = vpack.c.b16 %v2213, %v2212
  %v2302 = vpack.c.b16 %v2215, %v2214
  %v2303 = vpack.c.b16 %v2217, %v2216
  %v2304 = vpack.c.b16 %v2219, %v2218
  %v2305 = vpack.c.b16 %v2221, %v2220
  %v2306 = vpack.c.b16 %v2223, %v2222
  %v2307 = vpack.c.b16 %v2225, %v2224
  %v2308 = vpack.c.b16 %v2227, %v2226
  %v2309 = vpack.c.b16 %v2229, %v2228
  %v2310 = vpack.c.b16 %v2231, %v2230
  %v2311 = vpack.c.b16 %v2233, %v2232
  %v2312 = vpack.c.b16 %v2235, %v2234
  %v2313 = vpack.c.b16 %v2237, %v2236
  %v2314 = vpack.c.b16 %v2239, %v2238
  %v2315 = vpack.c.b16 %v2241, %v2240
  %v2316 = vpack.c.b16 %v2243, %v2242
  %v2317 = vpack.c.b16 %v2245, %v2244
  %2390 = vmatprep.subr.bf16.mxu0 0
  %2391 = vmatpush1.bf16.msra.mxu0 %v2253
  %2392 = vmatprep.subr.bf16.mxu0 0
  %2393 = vmatpush1.bf16.msra.mxu0 %v2252
  %2394 = vmatprep.subr.bf16.mxu0 0
  %2395 = vmatpush1.bf16.msra.mxu0 %v2251
  %2396 = vmatprep.subr.bf16.mxu0 0
  %2397 = vmatpush1.bf16.msra.mxu0 %v2250
  %2398 = vmatprep.subr.bf16.mxu0 0
  %2399 = vmatpush1.bf16.msra.mxu0 %v2249
  %2400 = vmatprep.subr.bf16.mxu0 0
  %2401 = vmatpush1.bf16.msra.mxu0 %v2248
  %2402 = vmatprep.subr.bf16.mxu0 0
  %2403 = vmatpush1.bf16.msra.mxu0 %v2247
  %2404 = vmatprep.subr.bf16.mxu0 0
  %2405 = vmatpush1.bf16.msra.mxu0 %v2246
  %2406 = vmatprep.subr.bf16.mxu0 0
  %2407 = vmatpush2.bf16.msra.mxu0 %v2261
  %2408 = vmatprep.subr.bf16.mxu0 0
  %2409 = vmatpush2.bf16.msra.mxu0 %v2260
  %2410 = vmatprep.subr.bf16.mxu0 0
  %2411 = vmatpush2.bf16.msra.mxu0 %v2259
  %2412 = vmatprep.subr.bf16.mxu0 0
  %2413 = vmatpush2.bf16.msra.mxu0 %v2258
  %2414 = vmatprep.subr.bf16.mxu0 0
  %2415 = vmatpush2.bf16.msra.mxu0 %v2257
  %2416 = vmatprep.subr.bf16.mxu0 0
  %2417 = vmatpush2.bf16.msra.mxu0 %v2256
  %2418 = vmatprep.subr.bf16.mxu0 0
  %2419 = vmatpush2.bf16.msra.mxu0 %v2255
  %2420 = vmatprep.subr.bf16.mxu0 0
  %2421 = vmatpush2.bf16.msra.mxu0 %v2254
  %2422 = vmatprep.mubr.bf16.mxu0 %v1383
  %2423 = vmatmul.mubr.bf16.gmra.mxu0 %v1382
  %v2424 = vpop.f32.mrf.mxu0
  %v2425 = vadd.f32 %v484, %v2424
  %v2426 = vpop.f32.mrf.mxu0
  %v2427 = vpop.f32.mrf.mxu0
  %v2428 = vadd.f32 %v484, %v2427
  %v2429 = vpop.f32.mrf.mxu0
  %2430 = vmatprep.mubr.bf16.mxu0 %v1392
  %2431 = vmatmul.mubr.bf16.gmra.mxu0 %v1391
  %v2432 = vpop.f32.mrf.mxu0
  %v2433 = vadd.f32 %v484, %v2432
  %v2434 = vpop.f32.mrf.mxu0
  %v2435 = vpop.f32.mrf.mxu0
  %v2436 = vadd.f32 %v484, %v2435
  %v2437 = vpop.f32.mrf.mxu0
  %2438 = vmatprep.mubr.bf16.mxu0 %v1401
  %2439 = vmatmul.mubr.bf16.gmra.mxu0 %v1400
  %v2440 = vpop.f32.mrf.mxu0
  %v2441 = vadd.f32 %v484, %v2440
  %v2442 = vpop.f32.mrf.mxu0
  %v2443 = vpop.f32.mrf.mxu0
  %v2444 = vadd.f32 %v484, %v2443
  %v2445 = vpop.f32.mrf.mxu0
  %2446 = vmatprep.mubr.bf16.mxu0 %v1410
  %2447 = vmatmul.mubr.bf16.gmra.mxu0 %v1409
  %v2448 = vpop.f32.mrf.mxu0
  %v2449 = vadd.f32 %v484, %v2448
  %v2450 = vpop.f32.mrf.mxu0
  %v2451 = vpop.f32.mrf.mxu0
  %v2452 = vadd.f32 %v484, %v2451
  %v2453 = vpop.f32.mrf.mxu0
  %2454 = vmatprep.mubr.bf16.mxu0 %v1419
  %2455 = vmatmul.mubr.bf16.gmra.mxu0 %v1418
  %v2456 = vpop.f32.mrf.mxu0
  %v2457 = vadd.f32 %v484, %v2456
  %v2458 = vpop.f32.mrf.mxu0
  %v2459 = vpop.f32.mrf.mxu0
  %v2460 = vadd.f32 %v484, %v2459
  %v2461 = vpop.f32.mrf.mxu0
  %2462 = vmatprep.mubr.bf16.mxu0 %v1428
  %2463 = vmatmul.mubr.bf16.gmra.mxu0 %v1427
  %v2464 = vpop.f32.mrf.mxu0
  %v2465 = vadd.f32 %v484, %v2464
  %v2466 = vpop.f32.mrf.mxu0
  %v2467 = vpop.f32.mrf.mxu0
  %v2468 = vadd.f32 %v484, %v2467
  %v2469 = vpop.f32.mrf.mxu0
  %2470 = vmatprep.mubr.bf16.mxu0 %v1437
  %2471 = vmatmul.mubr.bf16.gmra.mxu0 %v1436
  %v2472 = vpop.f32.mrf.mxu0
  %v2473 = vadd.f32 %v484, %v2472
  %v2474 = vpop.f32.mrf.mxu0
  %v2475 = vpop.f32.mrf.mxu0
  %v2476 = vadd.f32 %v484, %v2475
  %v2477 = vpop.f32.mrf.mxu0
  %2478 = vmatprep.mubr.bf16.mxu0 %v1446
  %2479 = vmatmul.mubr.bf16.gmra.mxu0 %v1445
  %v2480 = vpop.f32.mrf.mxu0
  %v2481 = vadd.f32 %v484, %v2480
  %v2482 = vpop.f32.mrf.mxu0
  %v2483 = vpop.f32.mrf.mxu0
  %v2484 = vadd.f32 %v484, %v2483
  %v2485 = vpop.f32.mrf.mxu0
  %2486 = vmatprep.mubr.bf16.mxu0 %v1455
  %2487 = vmatmul.mubr.bf16.gmra.mxu0 %v1454
  %v2488 = vpop.f32.mrf.mxu0
  %v2489 = vadd.f32 %v484, %v2488
  %v2490 = vpop.f32.mrf.mxu0
  %v2491 = vpop.f32.mrf.mxu0
  %v2492 = vadd.f32 %v484, %v2491
  %v2493 = vpop.f32.mrf.mxu0
  %2494 = vmatprep.mubr.bf16.mxu0 %v1464
  %2495 = vmatmul.mubr.bf16.gmra.mxu0 %v1463
  %v2496 = vpop.f32.mrf.mxu0
  %v2497 = vadd.f32 %v484, %v2496
  %v2498 = vpop.f32.mrf.mxu0
  %v2499 = vpop.f32.mrf.mxu0
  %v2500 = vadd.f32 %v484, %v2499
  %v2501 = vpop.f32.mrf.mxu0
  %2502 = vmatprep.mubr.bf16.mxu0 %v1473
  %2503 = vmatmul.mubr.bf16.gmra.mxu0 %v1472
  %v2504 = vpop.f32.mrf.mxu0
  %v2505 = vadd.f32 %v484, %v2504
  %v2506 = vpop.f32.mrf.mxu0
  %v2507 = vpop.f32.mrf.mxu0
  %v2508 = vadd.f32 %v484, %v2507
  %v2509 = vpop.f32.mrf.mxu0
  %2510 = vmatprep.mubr.bf16.mxu0 %v1482
  %2511 = vmatmul.mubr.bf16.gmra.mxu0 %v1481
  %v2512 = vpop.f32.mrf.mxu0
  %v2513 = vadd.f32 %v484, %v2512
  %v2514 = vpop.f32.mrf.mxu0
  %v2515 = vpop.f32.mrf.mxu0
  %v2516 = vadd.f32 %v484, %v2515
  %v2517 = vpop.f32.mrf.mxu0
  %2518 = vmatprep.mubr.bf16.mxu0 %v1491
  %2519 = vmatmul.mubr.bf16.gmra.mxu0 %v1490
  %v2520 = vpop.f32.mrf.mxu0
  %v2521 = vadd.f32 %v484, %v2520
  %v2522 = vpop.f32.mrf.mxu0
  %v2523 = vpop.f32.mrf.mxu0
  %v2524 = vadd.f32 %v484, %v2523
  %v2525 = vpop.f32.mrf.mxu0
  %2526 = vmatprep.mubr.bf16.mxu0 %v1500
  %2527 = vmatmul.mubr.bf16.gmra.mxu0 %v1499
  %v2528 = vpop.f32.mrf.mxu0
  %v2529 = vadd.f32 %v484, %v2528
  %v2530 = vpop.f32.mrf.mxu0
  %v2531 = vpop.f32.mrf.mxu0
  %v2532 = vadd.f32 %v484, %v2531
  %v2533 = vpop.f32.mrf.mxu0
  %2534 = vmatprep.mubr.bf16.mxu0 %v1509
  %2535 = vmatmul.mubr.bf16.gmra.mxu0 %v1508
  %v2536 = vpop.f32.mrf.mxu0
  %v2537 = vadd.f32 %v484, %v2536
  %v2538 = vpop.f32.mrf.mxu0
  %v2539 = vpop.f32.mrf.mxu0
  %v2540 = vadd.f32 %v484, %v2539
  %v2541 = vpop.f32.mrf.mxu0
  %2542 = vmatprep.mubr.bf16.mxu0 %v1518
  %2543 = vmatmul.mubr.bf16.gmra.mxu0 %v1517
  %v2544 = vpop.f32.mrf.mxu0
  %v2545 = vadd.f32 %v484, %v2544
  %v2546 = vpop.f32.mrf.mxu0
  %v2547 = vpop.f32.mrf.mxu0
  %v2548 = vadd.f32 %v484, %v2547
  %v2549 = vpop.f32.mrf.mxu0
  %2550 = vmatprep.mubr.bf16.mxu0 %v1527
  %2551 = vmatmul.mubr.bf16.gmra.mxu0 %v1526
  %v2552 = vpop.f32.mrf.mxu0
  %v2553 = vadd.f32 %v484, %v2552
  %v2554 = vpop.f32.mrf.mxu0
  %v2555 = vpop.f32.mrf.mxu0
  %v2556 = vadd.f32 %v484, %v2555
  %v2557 = vpop.f32.mrf.mxu0
  %2558 = vmatprep.mubr.bf16.mxu0 %v1536
  %2559 = vmatmul.mubr.bf16.gmra.mxu0 %v1535
  %v2560 = vpop.f32.mrf.mxu0
  %v2561 = vadd.f32 %v484, %v2560
  %v2562 = vpop.f32.mrf.mxu0
  %v2563 = vpop.f32.mrf.mxu0
  %v2564 = vadd.f32 %v484, %v2563
  %v2565 = vpop.f32.mrf.mxu0
  %2566 = vmatprep.mubr.bf16.mxu0 %v1545
  %2567 = vmatmul.mubr.bf16.gmra.mxu0 %v1544
  %v2568 = vpop.f32.mrf.mxu0
  %v2569 = vadd.f32 %v484, %v2568
  %v2570 = vpop.f32.mrf.mxu0
  %v2571 = vpop.f32.mrf.mxu0
  %v2572 = vadd.f32 %v484, %v2571
  %v2573 = vpop.f32.mrf.mxu0
  %2574 = vmatprep.mubr.bf16.mxu0 %v1554
  %2575 = vmatmul.mubr.bf16.gmra.mxu0 %v1553
  %v2576 = vpop.f32.mrf.mxu0
  %v2577 = vadd.f32 %v484, %v2576
  %v2578 = vpop.f32.mrf.mxu0
  %v2579 = vpop.f32.mrf.mxu0
  %v2580 = vadd.f32 %v484, %v2579
  %v2581 = vpop.f32.mrf.mxu0
  %2582 = vmatprep.mubr.bf16.mxu0 %v1563
  %2583 = vmatmul.mubr.bf16.gmra.mxu0 %v1562
  %v2584 = vpop.f32.mrf.mxu0
  %v2585 = vadd.f32 %v484, %v2584
  %v2586 = vpop.f32.mrf.mxu0
  %v2587 = vpop.f32.mrf.mxu0
  %v2588 = vadd.f32 %v484, %v2587
  %v2589 = vpop.f32.mrf.mxu0
  %2590 = vmatprep.mubr.bf16.mxu0 %v1572
  %2591 = vmatmul.mubr.bf16.gmra.mxu0 %v1571
  %v2592 = vpop.f32.mrf.mxu0
  %v2593 = vadd.f32 %v484, %v2592
  %v2594 = vpop.f32.mrf.mxu0
  %v2595 = vpop.f32.mrf.mxu0
  %v2596 = vadd.f32 %v484, %v2595
  %v2597 = vpop.f32.mrf.mxu0
  %2598 = vmatprep.mubr.bf16.mxu0 %v1581
  %2599 = vmatmul.mubr.bf16.gmra.mxu0 %v1580
  %v2600 = vpop.f32.mrf.mxu0
  %v2601 = vadd.f32 %v484, %v2600
  %v2602 = vpop.f32.mrf.mxu0
  %v2603 = vpop.f32.mrf.mxu0
  %v2604 = vadd.f32 %v484, %v2603
  %v2605 = vpop.f32.mrf.mxu0
  %2606 = vmatprep.mubr.bf16.mxu0 %v1590
  %2607 = vmatmul.mubr.bf16.gmra.mxu0 %v1589
  %v2608 = vpop.f32.mrf.mxu0
  %v2609 = vadd.f32 %v484, %v2608
  %v2610 = vpop.f32.mrf.mxu0
  %v2611 = vpop.f32.mrf.mxu0
  %v2612 = vadd.f32 %v484, %v2611
  %v2613 = vpop.f32.mrf.mxu0
  %2614 = vmatprep.mubr.bf16.mxu0 %v1599
  %2615 = vmatmul.mubr.bf16.gmra.mxu0 %v1598
  %v2616 = vpop.f32.mrf.mxu0
  %v2617 = vadd.f32 %v484, %v2616
  %v2618 = vpop.f32.mrf.mxu0
  %v2619 = vpop.f32.mrf.mxu0
  %v2620 = vadd.f32 %v484, %v2619
  %v2621 = vpop.f32.mrf.mxu0
  %2622 = vmatprep.mubr.bf16.mxu0 %v1608
  %2623 = vmatmul.mubr.bf16.gmra.mxu0 %v1607
  %v2624 = vpop.f32.mrf.mxu0
  %v2625 = vadd.f32 %v484, %v2624
  %v2626 = vpop.f32.mrf.mxu0
  %v2627 = vpop.f32.mrf.mxu0
  %v2628 = vadd.f32 %v484, %v2627
  %v2629 = vpop.f32.mrf.mxu0
  %2630 = vmatprep.mubr.bf16.mxu0 %v1617
  %2631 = vmatmul.mubr.bf16.gmra.mxu0 %v1616
  %v2632 = vpop.f32.mrf.mxu0
  %v2633 = vadd.f32 %v484, %v2632
  %v2634 = vpop.f32.mrf.mxu0
  %v2635 = vpop.f32.mrf.mxu0
  %v2636 = vadd.f32 %v484, %v2635
  %v2637 = vpop.f32.mrf.mxu0
  %2638 = vmatprep.mubr.bf16.mxu0 %v1626
  %2639 = vmatmul.mubr.bf16.gmra.mxu0 %v1625
  %v2640 = vpop.f32.mrf.mxu0
  %v2641 = vadd.f32 %v484, %v2640
  %v2642 = vpop.f32.mrf.mxu0
  %v2643 = vpop.f32.mrf.mxu0
  %v2644 = vadd.f32 %v484, %v2643
  %v2645 = vpop.f32.mrf.mxu0
  %2646 = vmatprep.mubr.bf16.mxu0 %v1635
  %2647 = vmatmul.mubr.bf16.gmra.mxu0 %v1634
  %v2648 = vpop.f32.mrf.mxu0
  %v2649 = vadd.f32 %v484, %v2648
  %v2650 = vpop.f32.mrf.mxu0
  %v2651 = vpop.f32.mrf.mxu0
  %v2652 = vadd.f32 %v484, %v2651
  %v2653 = vpop.f32.mrf.mxu0
  %2654 = vmatprep.mubr.bf16.mxu0 %v1644
  %2655 = vmatmul.mubr.bf16.gmra.mxu0 %v1643
  %v2656 = vpop.f32.mrf.mxu0
  %v2657 = vadd.f32 %v484, %v2656
  %v2658 = vpop.f32.mrf.mxu0
  %v2659 = vpop.f32.mrf.mxu0
  %v2660 = vadd.f32 %v484, %v2659
  %v2661 = vpop.f32.mrf.mxu0
  %2662 = vmatprep.mubr.bf16.mxu0 %v1653
  %2663 = vmatmul.mubr.bf16.gmra.mxu0 %v1652
  %v2664 = vpop.f32.mrf.mxu0
  %v2665 = vadd.f32 %v484, %v2664
  %v2666 = vpop.f32.mrf.mxu0
  %v2667 = vpop.f32.mrf.mxu0
  %v2668 = vadd.f32 %v484, %v2667
  %v2669 = vpop.f32.mrf.mxu0
  %2670 = vmatprep.mubr.bf16.mxu0 %v1662
  %2671 = vmatmul.mubr.bf16.gmra.mxu0 %v1661
  %v2672 = vpop.f32.mrf.mxu0
  %v2673 = vadd.f32 %v484, %v2672
  %v2674 = vpop.f32.mrf.mxu0
  %v2675 = vpop.f32.mrf.mxu0
  %v2676 = vadd.f32 %v484, %v2675
  %v2677 = vpop.f32.mrf.mxu0
  %2678 = vdwg.mxu0
  %2679 = vmatprep.subr.bf16.mxu0 0
  %2680 = vmatpush1.bf16.msra.mxu0 %v2269
  %2681 = vmatprep.subr.bf16.mxu0 0
  %2682 = vmatpush1.bf16.msra.mxu0 %v2268
  %2683 = vmatprep.subr.bf16.mxu0 0
  %2684 = vmatpush1.bf16.msra.mxu0 %v2267
  %2685 = vmatprep.subr.bf16.mxu0 0
  %2686 = vmatpush1.bf16.msra.mxu0 %v2266
  %2687 = vmatprep.subr.bf16.mxu0 0
  %2688 = vmatpush1.bf16.msra.mxu0 %v2265
  %2689 = vmatprep.subr.bf16.mxu0 0
  %2690 = vmatpush1.bf16.msra.mxu0 %v2264
  %2691 = vmatprep.subr.bf16.mxu0 0
  %2692 = vmatpush1.bf16.msra.mxu0 %v2263
  %2693 = vmatprep.subr.bf16.mxu0 0
  %2694 = vmatpush1.bf16.msra.mxu0 %v2262
  %2695 = vmatprep.subr.bf16.mxu0 0
  %2696 = vmatpush2.bf16.msra.mxu0 %v2277
  %2697 = vmatprep.subr.bf16.mxu0 0
  %2698 = vmatpush2.bf16.msra.mxu0 %v2276
  %2699 = vmatprep.subr.bf16.mxu0 0
  %2700 = vmatpush2.bf16.msra.mxu0 %v2275
  %2701 = vmatprep.subr.bf16.mxu0 0
  %2702 = vmatpush2.bf16.msra.mxu0 %v2274
  %2703 = vmatprep.subr.bf16.mxu0 0
  %2704 = vmatpush2.bf16.msra.mxu0 %v2273
  %2705 = vmatprep.subr.bf16.mxu0 0
  %2706 = vmatpush2.bf16.msra.mxu0 %v2272
  %2707 = vmatprep.subr.bf16.mxu0 0
  %2708 = vmatpush2.bf16.msra.mxu0 %v2271
  %2709 = vmatprep.subr.bf16.mxu0 0
  %2710 = vmatpush2.bf16.msra.mxu0 %v2270
  %2711 = vmatprep.mubr.bf16.mxu0 %v1385
  %2712 = vmatmul.mubr.bf16.gmra.mxu0 %v1384
  %v2713 = vpop.f32.mrf.mxu0
  %v2714 = vadd.f32 %v2425, %v2713
  %v2715 = vpop.f32.mrf.mxu0
  %v2716 = vpop.f32.mrf.mxu0
  %v2717 = vadd.f32 %v2428, %v2716
  %v2718 = vpop.f32.mrf.mxu0
  %2719 = vmatprep.mubr.bf16.mxu0 %v1394
  %2720 = vmatmul.mubr.bf16.gmra.mxu0 %v1393
  %v2721 = vpop.f32.mrf.mxu0
  %v2722 = vadd.f32 %v2433, %v2721
  %v2723 = vpop.f32.mrf.mxu0
  %v2724 = vpop.f32.mrf.mxu0
  %v2725 = vadd.f32 %v2436, %v2724
  %v2726 = vpop.f32.mrf.mxu0
  %2727 = vmatprep.mubr.bf16.mxu0 %v1403
  %2728 = vmatmul.mubr.bf16.gmra.mxu0 %v1402
  %v2729 = vpop.f32.mrf.mxu0
  %v2730 = vadd.f32 %v2441, %v2729
  %v2731 = vpop.f32.mrf.mxu0
  %v2732 = vpop.f32.mrf.mxu0
  %v2733 = vadd.f32 %v2444, %v2732
  %v2734 = vpop.f32.mrf.mxu0
  %2735 = vmatprep.mubr.bf16.mxu0 %v1412
  %2736 = vmatmul.mubr.bf16.gmra.mxu0 %v1411
  %v2737 = vpop.f32.mrf.mxu0
  %v2738 = vadd.f32 %v2449, %v2737
  %v2739 = vpop.f32.mrf.mxu0
  %v2740 = vpop.f32.mrf.mxu0
  %v2741 = vadd.f32 %v2452, %v2740
  %v2742 = vpop.f32.mrf.mxu0
  %2743 = vmatprep.mubr.bf16.mxu0 %v1421
  %2744 = vmatmul.mubr.bf16.gmra.mxu0 %v1420
  %v2745 = vpop.f32.mrf.mxu0
  %v2746 = vadd.f32 %v2457, %v2745
  %v2747 = vpop.f32.mrf.mxu0
  %v2748 = vpop.f32.mrf.mxu0
  %v2749 = vadd.f32 %v2460, %v2748
  %v2750 = vpop.f32.mrf.mxu0
  %2751 = vmatprep.mubr.bf16.mxu0 %v1430
  %2752 = vmatmul.mubr.bf16.gmra.mxu0 %v1429
  %v2753 = vpop.f32.mrf.mxu0
  %v2754 = vadd.f32 %v2465, %v2753
  %v2755 = vpop.f32.mrf.mxu0
  %v2756 = vpop.f32.mrf.mxu0
  %v2757 = vadd.f32 %v2468, %v2756
  %v2758 = vpop.f32.mrf.mxu0
  %2759 = vmatprep.mubr.bf16.mxu0 %v1439
  %2760 = vmatmul.mubr.bf16.gmra.mxu0 %v1438
  %v2761 = vpop.f32.mrf.mxu0
  %v2762 = vadd.f32 %v2473, %v2761
  %v2763 = vpop.f32.mrf.mxu0
  %v2764 = vpop.f32.mrf.mxu0
  %v2765 = vadd.f32 %v2476, %v2764
  %v2766 = vpop.f32.mrf.mxu0
  %2767 = vmatprep.mubr.bf16.mxu0 %v1448
  %2768 = vmatmul.mubr.bf16.gmra.mxu0 %v1447
  %v2769 = vpop.f32.mrf.mxu0
  %v2770 = vadd.f32 %v2481, %v2769
  %v2771 = vpop.f32.mrf.mxu0
  %v2772 = vpop.f32.mrf.mxu0
  %v2773 = vadd.f32 %v2484, %v2772
  %v2774 = vpop.f32.mrf.mxu0
  %2775 = vmatprep.mubr.bf16.mxu0 %v1457
  %2776 = vmatmul.mubr.bf16.gmra.mxu0 %v1456
  %v2777 = vpop.f32.mrf.mxu0
  %v2778 = vadd.f32 %v2489, %v2777
  %v2779 = vpop.f32.mrf.mxu0
  %v2780 = vpop.f32.mrf.mxu0
  %v2781 = vadd.f32 %v2492, %v2780
  %v2782 = vpop.f32.mrf.mxu0
  %2783 = vmatprep.mubr.bf16.mxu0 %v1466
  %2784 = vmatmul.mubr.bf16.gmra.mxu0 %v1465
  %v2785 = vpop.f32.mrf.mxu0
  %v2786 = vadd.f32 %v2497, %v2785
  %v2787 = vpop.f32.mrf.mxu0
  %v2788 = vpop.f32.mrf.mxu0
  %v2789 = vadd.f32 %v2500, %v2788
  %v2790 = vpop.f32.mrf.mxu0
  %2791 = vmatprep.mubr.bf16.mxu0 %v1475
  %2792 = vmatmul.mubr.bf16.gmra.mxu0 %v1474
  %v2793 = vpop.f32.mrf.mxu0
  %v2794 = vadd.f32 %v2505, %v2793
  %v2795 = vpop.f32.mrf.mxu0
  %v2796 = vpop.f32.mrf.mxu0
  %v2797 = vadd.f32 %v2508, %v2796
  %v2798 = vpop.f32.mrf.mxu0
  %2799 = vmatprep.mubr.bf16.mxu0 %v1484
  %2800 = vmatmul.mubr.bf16.gmra.mxu0 %v1483
  %v2801 = vpop.f32.mrf.mxu0
  %v2802 = vadd.f32 %v2513, %v2801
  %v2803 = vpop.f32.mrf.mxu0
  %v2804 = vpop.f32.mrf.mxu0
  %v2805 = vadd.f32 %v2516, %v2804
  %v2806 = vpop.f32.mrf.mxu0
  %2807 = vmatprep.mubr.bf16.mxu0 %v1493
  %2808 = vmatmul.mubr.bf16.gmra.mxu0 %v1492
  %v2809 = vpop.f32.mrf.mxu0
  %v2810 = vadd.f32 %v2521, %v2809
  %v2811 = vpop.f32.mrf.mxu0
  %v2812 = vpop.f32.mrf.mxu0
  %v2813 = vadd.f32 %v2524, %v2812
  %v2814 = vpop.f32.mrf.mxu0
  %2815 = vmatprep.mubr.bf16.mxu0 %v1502
  %2816 = vmatmul.mubr.bf16.gmra.mxu0 %v1501
  %v2817 = vpop.f32.mrf.mxu0
  %v2818 = vadd.f32 %v2529, %v2817
  %v2819 = vpop.f32.mrf.mxu0
  %v2820 = vpop.f32.mrf.mxu0
  %v2821 = vadd.f32 %v2532, %v2820
  %v2822 = vpop.f32.mrf.mxu0
  %2823 = vmatprep.mubr.bf16.mxu0 %v1511
  %2824 = vmatmul.mubr.bf16.gmra.mxu0 %v1510
  %v2825 = vpop.f32.mrf.mxu0
  %v2826 = vadd.f32 %v2537, %v2825
  %v2827 = vpop.f32.mrf.mxu0
  %v2828 = vpop.f32.mrf.mxu0
  %v2829 = vadd.f32 %v2540, %v2828
  %v2830 = vpop.f32.mrf.mxu0
  %2831 = vmatprep.mubr.bf16.mxu0 %v1520
  %2832 = vmatmul.mubr.bf16.gmra.mxu0 %v1519
  %v2833 = vpop.f32.mrf.mxu0
  %v2834 = vadd.f32 %v2545, %v2833
  %v2835 = vpop.f32.mrf.mxu0
  %v2836 = vpop.f32.mrf.mxu0
  %v2837 = vadd.f32 %v2548, %v2836
  %v2838 = vpop.f32.mrf.mxu0
  %2839 = vmatprep.mubr.bf16.mxu0 %v1529
  %2840 = vmatmul.mubr.bf16.gmra.mxu0 %v1528
  %v2841 = vpop.f32.mrf.mxu0
  %v2842 = vadd.f32 %v2553, %v2841
  %v2843 = vpop.f32.mrf.mxu0
  %v2844 = vpop.f32.mrf.mxu0
  %v2845 = vadd.f32 %v2556, %v2844
  %v2846 = vpop.f32.mrf.mxu0
  %2847 = vmatprep.mubr.bf16.mxu0 %v1538
  %2848 = vmatmul.mubr.bf16.gmra.mxu0 %v1537
  %v2849 = vpop.f32.mrf.mxu0
  %v2850 = vadd.f32 %v2561, %v2849
  %v2851 = vpop.f32.mrf.mxu0
  %v2852 = vpop.f32.mrf.mxu0
  %v2853 = vadd.f32 %v2564, %v2852
  %v2854 = vpop.f32.mrf.mxu0
  %2855 = vmatprep.mubr.bf16.mxu0 %v1547
  %2856 = vmatmul.mubr.bf16.gmra.mxu0 %v1546
  %v2857 = vpop.f32.mrf.mxu0
  %v2858 = vadd.f32 %v2569, %v2857
  %v2859 = vpop.f32.mrf.mxu0
  %v2860 = vpop.f32.mrf.mxu0
  %v2861 = vadd.f32 %v2572, %v2860
  %v2862 = vpop.f32.mrf.mxu0
  %2863 = vmatprep.mubr.bf16.mxu0 %v1556
  %2864 = vmatmul.mubr.bf16.gmra.mxu0 %v1555
  %v2865 = vpop.f32.mrf.mxu0
  %v2866 = vadd.f32 %v2577, %v2865
  %v2867 = vpop.f32.mrf.mxu0
  %v2868 = vpop.f32.mrf.mxu0
  %v2869 = vadd.f32 %v2580, %v2868
  %v2870 = vpop.f32.mrf.mxu0
  %2871 = vmatprep.mubr.bf16.mxu0 %v1565
  %2872 = vmatmul.mubr.bf16.gmra.mxu0 %v1564
  %v2873 = vpop.f32.mrf.mxu0
  %v2874 = vadd.f32 %v2585, %v2873
  %v2875 = vpop.f32.mrf.mxu0
  %v2876 = vpop.f32.mrf.mxu0
  %v2877 = vadd.f32 %v2588, %v2876
  %v2878 = vpop.f32.mrf.mxu0
  %2879 = vmatprep.mubr.bf16.mxu0 %v1574
  %2880 = vmatmul.mubr.bf16.gmra.mxu0 %v1573
  %v2881 = vpop.f32.mrf.mxu0
  %v2882 = vadd.f32 %v2593, %v2881
  %v2883 = vpop.f32.mrf.mxu0
  %v2884 = vpop.f32.mrf.mxu0
  %v2885 = vadd.f32 %v2596, %v2884
  %v2886 = vpop.f32.mrf.mxu0
  %2887 = vmatprep.mubr.bf16.mxu0 %v1583
  %2888 = vmatmul.mubr.bf16.gmra.mxu0 %v1582
  %v2889 = vpop.f32.mrf.mxu0
  %v2890 = vadd.f32 %v2601, %v2889
  %v2891 = vpop.f32.mrf.mxu0
  %v2892 = vpop.f32.mrf.mxu0
  %v2893 = vadd.f32 %v2604, %v2892
  %v2894 = vpop.f32.mrf.mxu0
  %2895 = vmatprep.mubr.bf16.mxu0 %v1592
  %2896 = vmatmul.mubr.bf16.gmra.mxu0 %v1591
  %v2897 = vpop.f32.mrf.mxu0
  %v2898 = vadd.f32 %v2609, %v2897
  %v2899 = vpop.f32.mrf.mxu0
  %v2900 = vpop.f32.mrf.mxu0
  %v2901 = vadd.f32 %v2612, %v2900
  %v2902 = vpop.f32.mrf.mxu0
  %2903 = vmatprep.mubr.bf16.mxu0 %v1601
  %2904 = vmatmul.mubr.bf16.gmra.mxu0 %v1600
  %v2905 = vpop.f32.mrf.mxu0
  %v2906 = vadd.f32 %v2617, %v2905
  %v2907 = vpop.f32.mrf.mxu0
  %v2908 = vpop.f32.mrf.mxu0
  %v2909 = vadd.f32 %v2620, %v2908
  %v2910 = vpop.f32.mrf.mxu0
  %2911 = vmatprep.mubr.bf16.mxu0 %v1610
  %2912 = vmatmul.mubr.bf16.gmra.mxu0 %v1609
  %v2913 = vpop.f32.mrf.mxu0
  %v2914 = vadd.f32 %v2625, %v2913
  %v2915 = vpop.f32.mrf.mxu0
  %v2916 = vpop.f32.mrf.mxu0
  %v2917 = vadd.f32 %v2628, %v2916
  %v2918 = vpop.f32.mrf.mxu0
  %2919 = vmatprep.mubr.bf16.mxu0 %v1619
  %2920 = vmatmul.mubr.bf16.gmra.mxu0 %v1618
  %v2921 = vpop.f32.mrf.mxu0
  %v2922 = vadd.f32 %v2633, %v2921
  %v2923 = vpop.f32.mrf.mxu0
  %v2924 = vpop.f32.mrf.mxu0
  %v2925 = vadd.f32 %v2636, %v2924
  %v2926 = vpop.f32.mrf.mxu0
  %2927 = vmatprep.mubr.bf16.mxu0 %v1628
  %2928 = vmatmul.mubr.bf16.gmra.mxu0 %v1627
  %v2929 = vpop.f32.mrf.mxu0
  %v2930 = vadd.f32 %v2641, %v2929
  %v2931 = vpop.f32.mrf.mxu0
  %v2932 = vpop.f32.mrf.mxu0
  %v2933 = vadd.f32 %v2644, %v2932
  %v2934 = vpop.f32.mrf.mxu0
  %2935 = vmatprep.mubr.bf16.mxu0 %v1637
  %2936 = vmatmul.mubr.bf16.gmra.mxu0 %v1636
  %v2937 = vpop.f32.mrf.mxu0
  %v2938 = vadd.f32 %v2649, %v2937
  %v2939 = vpop.f32.mrf.mxu0
  %v2940 = vpop.f32.mrf.mxu0
  %v2941 = vadd.f32 %v2652, %v2940
  %v2942 = vpop.f32.mrf.mxu0
  %2943 = vmatprep.mubr.bf16.mxu0 %v1646
  %2944 = vmatmul.mubr.bf16.gmra.mxu0 %v1645
  %v2945 = vpop.f32.mrf.mxu0
  %v2946 = vadd.f32 %v2657, %v2945
  %v2947 = vpop.f32.mrf.mxu0
  %v2948 = vpop.f32.mrf.mxu0
  %v2949 = vadd.f32 %v2660, %v2948
  %v2950 = vpop.f32.mrf.mxu0
  %2951 = vmatprep.mubr.bf16.mxu0 %v1655
  %2952 = vmatmul.mubr.bf16.gmra.mxu0 %v1654
  %v2953 = vpop.f32.mrf.mxu0
  %v2954 = vadd.f32 %v2665, %v2953
  %v2955 = vpop.f32.mrf.mxu0
  %v2956 = vpop.f32.mrf.mxu0
  %v2957 = vadd.f32 %v2668, %v2956
  %v2958 = vpop.f32.mrf.mxu0
  %2959 = vmatprep.mubr.bf16.mxu0 %v1664
  %2960 = vmatmul.mubr.bf16.gmra.mxu0 %v1663
  %v2961 = vpop.f32.mrf.mxu0
  %v2962 = vadd.f32 %v2673, %v2961
  %v2963 = vpop.f32.mrf.mxu0
  %v2964 = vpop.f32.mrf.mxu0
  %v2965 = vadd.f32 %v2676, %v2964
  %v2966 = vpop.f32.mrf.mxu0
  %2967 = vdwg.mxu0
  %2968 = vmatprep.subr.bf16.mxu0 0
  %2969 = vmatpush1.bf16.msra.mxu0 %v2285
  %2970 = vmatprep.subr.bf16.mxu0 0
  %2971 = vmatpush1.bf16.msra.mxu0 %v2284
  %2972 = vmatprep.subr.bf16.mxu0 0
  %2973 = vmatpush1.bf16.msra.mxu0 %v2283
  %2974 = vmatprep.subr.bf16.mxu0 0
  %2975 = vmatpush1.bf16.msra.mxu0 %v2282
  %2976 = vmatprep.subr.bf16.mxu0 0
  %2977 = vmatpush1.bf16.msra.mxu0 %v2281
  %2978 = vmatprep.subr.bf16.mxu0 0
  %2979 = vmatpush1.bf16.msra.mxu0 %v2280
  %2980 = vmatprep.subr.bf16.mxu0 0
  %2981 = vmatpush1.bf16.msra.mxu0 %v2279
  %2982 = vmatprep.subr.bf16.mxu0 0
  %2983 = vmatpush1.bf16.msra.mxu0 %v2278
  %2984 = vmatprep.subr.bf16.mxu0 0
  %2985 = vmatpush2.bf16.msra.mxu0 %v2293
  %2986 = vmatprep.subr.bf16.mxu0 0
  %2987 = vmatpush2.bf16.msra.mxu0 %v2292
  %2988 = vmatprep.subr.bf16.mxu0 0
  %2989 = vmatpush2.bf16.msra.mxu0 %v2291
  %2990 = vmatprep.subr.bf16.mxu0 0
  %2991 = vmatpush2.bf16.msra.mxu0 %v2290
  %2992 = vmatprep.subr.bf16.mxu0 0
  %2993 = vmatpush2.bf16.msra.mxu0 %v2289
  %2994 = vmatprep.subr.bf16.mxu0 0
  %2995 = vmatpush2.bf16.msra.mxu0 %v2288
  %2996 = vmatprep.subr.bf16.mxu0 0
  %2997 = vmatpush2.bf16.msra.mxu0 %v2287
  %2998 = vmatprep.subr.bf16.mxu0 0
  %2999 = vmatpush2.bf16.msra.mxu0 %v2286
  %3000 = vmatprep.mubr.bf16.mxu0 %v1387
  %3001 = vmatmul.mubr.bf16.gmra.mxu0 %v1386
  %v3002 = vpop.f32.mrf.mxu0
  %v3003 = vadd.f32 %v2714, %v3002
  %v3004 = vpop.f32.mrf.mxu0
  %v3005 = vpop.f32.mrf.mxu0
  %v3006 = vadd.f32 %v2717, %v3005
  %v3007 = vpop.f32.mrf.mxu0
  %3008 = vmatprep.mubr.bf16.mxu0 %v1396
  %3009 = vmatmul.mubr.bf16.gmra.mxu0 %v1395
  %v3010 = vpop.f32.mrf.mxu0
  %v3011 = vadd.f32 %v2722, %v3010
  %v3012 = vpop.f32.mrf.mxu0
  %v3013 = vpop.f32.mrf.mxu0
  %v3014 = vadd.f32 %v2725, %v3013
  %v3015 = vpop.f32.mrf.mxu0
  %3016 = vmatprep.mubr.bf16.mxu0 %v1405
  %3017 = vmatmul.mubr.bf16.gmra.mxu0 %v1404
  %v3018 = vpop.f32.mrf.mxu0
  %v3019 = vadd.f32 %v2730, %v3018
  %v3020 = vpop.f32.mrf.mxu0
  %v3021 = vpop.f32.mrf.mxu0
  %v3022 = vadd.f32 %v2733, %v3021
  %v3023 = vpop.f32.mrf.mxu0
  %3024 = vmatprep.mubr.bf16.mxu0 %v1414
  %3025 = vmatmul.mubr.bf16.gmra.mxu0 %v1413
  %v3026 = vpop.f32.mrf.mxu0
  %v3027 = vadd.f32 %v2738, %v3026
  %v3028 = vpop.f32.mrf.mxu0
  %v3029 = vpop.f32.mrf.mxu0
  %v3030 = vadd.f32 %v2741, %v3029
  %v3031 = vpop.f32.mrf.mxu0
  %3032 = vmatprep.mubr.bf16.mxu0 %v1423
  %3033 = vmatmul.mubr.bf16.gmra.mxu0 %v1422
  %v3034 = vpop.f32.mrf.mxu0
  %v3035 = vadd.f32 %v2746, %v3034
  %v3036 = vpop.f32.mrf.mxu0
  %v3037 = vpop.f32.mrf.mxu0
  %v3038 = vadd.f32 %v2749, %v3037
  %v3039 = vpop.f32.mrf.mxu0
  %3040 = vmatprep.mubr.bf16.mxu0 %v1432
  %3041 = vmatmul.mubr.bf16.gmra.mxu0 %v1431
  %v3042 = vpop.f32.mrf.mxu0
  %v3043 = vadd.f32 %v2754, %v3042
  %v3044 = vpop.f32.mrf.mxu0
  %v3045 = vpop.f32.mrf.mxu0
  %v3046 = vadd.f32 %v2757, %v3045
  %v3047 = vpop.f32.mrf.mxu0
  %3048 = vmatprep.mubr.bf16.mxu0 %v1441
  %3049 = vmatmul.mubr.bf16.gmra.mxu0 %v1440
  %v3050 = vpop.f32.mrf.mxu0
  %v3051 = vadd.f32 %v2762, %v3050
  %v3052 = vpop.f32.mrf.mxu0
  %v3053 = vpop.f32.mrf.mxu0
  %v3054 = vadd.f32 %v2765, %v3053
  %v3055 = vpop.f32.mrf.mxu0
  %3056 = vmatprep.mubr.bf16.mxu0 %v1450
  %3057 = vmatmul.mubr.bf16.gmra.mxu0 %v1449
  %v3058 = vpop.f32.mrf.mxu0
  %v3059 = vadd.f32 %v2770, %v3058
  %v3060 = vpop.f32.mrf.mxu0
  %v3061 = vpop.f32.mrf.mxu0
  %v3062 = vadd.f32 %v2773, %v3061
  %v3063 = vpop.f32.mrf.mxu0
  %3064 = vmatprep.mubr.bf16.mxu0 %v1459
  %3065 = vmatmul.mubr.bf16.gmra.mxu0 %v1458
  %v3066 = vpop.f32.mrf.mxu0
  %v3067 = vadd.f32 %v2778, %v3066
  %v3068 = vpop.f32.mrf.mxu0
  %v3069 = vpop.f32.mrf.mxu0
  %v3070 = vadd.f32 %v2781, %v3069
  %v3071 = vpop.f32.mrf.mxu0
  %3072 = vmatprep.mubr.bf16.mxu0 %v1468
  %3073 = vmatmul.mubr.bf16.gmra.mxu0 %v1467
  %v3074 = vpop.f32.mrf.mxu0
  %v3075 = vadd.f32 %v2786, %v3074
  %v3076 = vpop.f32.mrf.mxu0
  %v3077 = vpop.f32.mrf.mxu0
  %v3078 = vadd.f32 %v2789, %v3077
  %v3079 = vpop.f32.mrf.mxu0
  %3080 = vmatprep.mubr.bf16.mxu0 %v1477
  %3081 = vmatmul.mubr.bf16.gmra.mxu0 %v1476
  %v3082 = vpop.f32.mrf.mxu0
  %v3083 = vadd.f32 %v2794, %v3082
  %v3084 = vpop.f32.mrf.mxu0
  %v3085 = vpop.f32.mrf.mxu0
  %v3086 = vadd.f32 %v2797, %v3085
  %v3087 = vpop.f32.mrf.mxu0
  %3088 = vmatprep.mubr.bf16.mxu0 %v1486
  %3089 = vmatmul.mubr.bf16.gmra.mxu0 %v1485
  %v3090 = vpop.f32.mrf.mxu0
  %v3091 = vadd.f32 %v2802, %v3090
  %v3092 = vpop.f32.mrf.mxu0
  %v3093 = vpop.f32.mrf.mxu0
  %v3094 = vadd.f32 %v2805, %v3093
  %v3095 = vpop.f32.mrf.mxu0
  %3096 = vmatprep.mubr.bf16.mxu0 %v1495
  %3097 = vmatmul.mubr.bf16.gmra.mxu0 %v1494
  %v3098 = vpop.f32.mrf.mxu0
  %v3099 = vadd.f32 %v2810, %v3098
  %v3100 = vpop.f32.mrf.mxu0
  %v3101 = vpop.f32.mrf.mxu0
  %v3102 = vadd.f32 %v2813, %v3101
  %v3103 = vpop.f32.mrf.mxu0
  %3104 = vmatprep.mubr.bf16.mxu0 %v1504
  %3105 = vmatmul.mubr.bf16.gmra.mxu0 %v1503
  %v3106 = vpop.f32.mrf.mxu0
  %v3107 = vadd.f32 %v2818, %v3106
  %v3108 = vpop.f32.mrf.mxu0
  %v3109 = vpop.f32.mrf.mxu0
  %v3110 = vadd.f32 %v2821, %v3109
  %v3111 = vpop.f32.mrf.mxu0
  %3112 = vmatprep.mubr.bf16.mxu0 %v1513
  %3113 = vmatmul.mubr.bf16.gmra.mxu0 %v1512
  %v3114 = vpop.f32.mrf.mxu0
  %v3115 = vadd.f32 %v2826, %v3114
  %v3116 = vpop.f32.mrf.mxu0
  %v3117 = vpop.f32.mrf.mxu0
  %v3118 = vadd.f32 %v2829, %v3117
  %v3119 = vpop.f32.mrf.mxu0
  %3120 = vmatprep.mubr.bf16.mxu0 %v1522
  %3121 = vmatmul.mubr.bf16.gmra.mxu0 %v1521
  %v3122 = vpop.f32.mrf.mxu0
  %v3123 = vadd.f32 %v2834, %v3122
  %v3124 = vpop.f32.mrf.mxu0
  %v3125 = vpop.f32.mrf.mxu0
  %v3126 = vadd.f32 %v2837, %v3125
  %v3127 = vpop.f32.mrf.mxu0
  %3128 = vmatprep.mubr.bf16.mxu0 %v1531
  %3129 = vmatmul.mubr.bf16.gmra.mxu0 %v1530
  %v3130 = vpop.f32.mrf.mxu0
  %v3131 = vadd.f32 %v2842, %v3130
  %v3132 = vpop.f32.mrf.mxu0
  %v3133 = vpop.f32.mrf.mxu0
  %v3134 = vadd.f32 %v2845, %v3133
  %v3135 = vpop.f32.mrf.mxu0
  %3136 = vmatprep.mubr.bf16.mxu0 %v1540
  %3137 = vmatmul.mubr.bf16.gmra.mxu0 %v1539
  %v3138 = vpop.f32.mrf.mxu0
  %v3139 = vadd.f32 %v2850, %v3138
  %v3140 = vpop.f32.mrf.mxu0
  %v3141 = vpop.f32.mrf.mxu0
  %v3142 = vadd.f32 %v2853, %v3141
  %v3143 = vpop.f32.mrf.mxu0
  %3144 = vmatprep.mubr.bf16.mxu0 %v1549
  %3145 = vmatmul.mubr.bf16.gmra.mxu0 %v1548
  %v3146 = vpop.f32.mrf.mxu0
  %v3147 = vadd.f32 %v2858, %v3146
  %v3148 = vpop.f32.mrf.mxu0
  %v3149 = vpop.f32.mrf.mxu0
  %v3150 = vadd.f32 %v2861, %v3149
  %v3151 = vpop.f32.mrf.mxu0
  %3152 = vmatprep.mubr.bf16.mxu0 %v1558
  %3153 = vmatmul.mubr.bf16.gmra.mxu0 %v1557
  %v3154 = vpop.f32.mrf.mxu0
  %v3155 = vadd.f32 %v2866, %v3154
  %v3156 = vpop.f32.mrf.mxu0
  %v3157 = vpop.f32.mrf.mxu0
  %v3158 = vadd.f32 %v2869, %v3157
  %v3159 = vpop.f32.mrf.mxu0
  %3160 = vmatprep.mubr.bf16.mxu0 %v1567
  %3161 = vmatmul.mubr.bf16.gmra.mxu0 %v1566
  %v3162 = vpop.f32.mrf.mxu0
  %v3163 = vadd.f32 %v2874, %v3162
  %v3164 = vpop.f32.mrf.mxu0
  %v3165 = vpop.f32.mrf.mxu0
  %v3166 = vadd.f32 %v2877, %v3165
  %v3167 = vpop.f32.mrf.mxu0
  %3168 = vmatprep.mubr.bf16.mxu0 %v1576
  %3169 = vmatmul.mubr.bf16.gmra.mxu0 %v1575
  %v3170 = vpop.f32.mrf.mxu0
  %v3171 = vadd.f32 %v2882, %v3170
  %v3172 = vpop.f32.mrf.mxu0
  %v3173 = vpop.f32.mrf.mxu0
  %v3174 = vadd.f32 %v2885, %v3173
  %v3175 = vpop.f32.mrf.mxu0
  %3176 = vmatprep.mubr.bf16.mxu0 %v1585
  %3177 = vmatmul.mubr.bf16.gmra.mxu0 %v1584
  %v3178 = vpop.f32.mrf.mxu0
  %v3179 = vadd.f32 %v2890, %v3178
  %v3180 = vpop.f32.mrf.mxu0
  %v3181 = vpop.f32.mrf.mxu0
  %v3182 = vadd.f32 %v2893, %v3181
  %v3183 = vpop.f32.mrf.mxu0
  %3184 = vmatprep.mubr.bf16.mxu0 %v1594
  %3185 = vmatmul.mubr.bf16.gmra.mxu0 %v1593
  %v3186 = vpop.f32.mrf.mxu0
  %v3187 = vadd.f32 %v2898, %v3186
  %v3188 = vpop.f32.mrf.mxu0
  %v3189 = vpop.f32.mrf.mxu0
  %v3190 = vadd.f32 %v2901, %v3189
  %v3191 = vpop.f32.mrf.mxu0
  %3192 = vmatprep.mubr.bf16.mxu0 %v1603
  %3193 = vmatmul.mubr.bf16.gmra.mxu0 %v1602
  %v3194 = vpop.f32.mrf.mxu0
  %v3195 = vadd.f32 %v2906, %v3194
  %v3196 = vpop.f32.mrf.mxu0
  %v3197 = vpop.f32.mrf.mxu0
  %v3198 = vadd.f32 %v2909, %v3197
  %v3199 = vpop.f32.mrf.mxu0
  %3200 = vmatprep.mubr.bf16.mxu0 %v1612
  %3201 = vmatmul.mubr.bf16.gmra.mxu0 %v1611
  %v3202 = vpop.f32.mrf.mxu0
  %v3203 = vadd.f32 %v2914, %v3202
  %v3204 = vpop.f32.mrf.mxu0
  %v3205 = vpop.f32.mrf.mxu0
  %v3206 = vadd.f32 %v2917, %v3205
  %v3207 = vpop.f32.mrf.mxu0
  %3208 = vmatprep.mubr.bf16.mxu0 %v1621
  %3209 = vmatmul.mubr.bf16.gmra.mxu0 %v1620
  %v3210 = vpop.f32.mrf.mxu0
  %v3211 = vadd.f32 %v2922, %v3210
  %v3212 = vpop.f32.mrf.mxu0
  %v3213 = vpop.f32.mrf.mxu0
  %v3214 = vadd.f32 %v2925, %v3213
  %v3215 = vpop.f32.mrf.mxu0
  %3216 = vmatprep.mubr.bf16.mxu0 %v1630
  %3217 = vmatmul.mubr.bf16.gmra.mxu0 %v1629
  %v3218 = vpop.f32.mrf.mxu0
  %v3219 = vadd.f32 %v2930, %v3218
  %v3220 = vpop.f32.mrf.mxu0
  %v3221 = vpop.f32.mrf.mxu0
  %v3222 = vadd.f32 %v2933, %v3221
  %v3223 = vpop.f32.mrf.mxu0
  %3224 = vmatprep.mubr.bf16.mxu0 %v1639
  %3225 = vmatmul.mubr.bf16.gmra.mxu0 %v1638
  %v3226 = vpop.f32.mrf.mxu0
  %v3227 = vadd.f32 %v2938, %v3226
  %v3228 = vpop.f32.mrf.mxu0
  %v3229 = vpop.f32.mrf.mxu0
  %v3230 = vadd.f32 %v2941, %v3229
  %v3231 = vpop.f32.mrf.mxu0
  %3232 = vmatprep.mubr.bf16.mxu0 %v1648
  %3233 = vmatmul.mubr.bf16.gmra.mxu0 %v1647
  %v3234 = vpop.f32.mrf.mxu0
  %v3235 = vadd.f32 %v2946, %v3234
  %v3236 = vpop.f32.mrf.mxu0
  %v3237 = vpop.f32.mrf.mxu0
  %v3238 = vadd.f32 %v2949, %v3237
  %v3239 = vpop.f32.mrf.mxu0
  %3240 = vmatprep.mubr.bf16.mxu0 %v1657
  %3241 = vmatmul.mubr.bf16.gmra.mxu0 %v1656
  %v3242 = vpop.f32.mrf.mxu0
  %v3243 = vadd.f32 %v2954, %v3242
  %v3244 = vpop.f32.mrf.mxu0
  %v3245 = vpop.f32.mrf.mxu0
  %v3246 = vadd.f32 %v2957, %v3245
  %v3247 = vpop.f32.mrf.mxu0
  %3248 = vmatprep.mubr.bf16.mxu0 %v1666
  %3249 = vmatmul.mubr.bf16.gmra.mxu0 %v1665
  %v3250 = vpop.f32.mrf.mxu0
  %v3251 = vadd.f32 %v2962, %v3250
  %v3252 = vpop.f32.mrf.mxu0
  %v3253 = vpop.f32.mrf.mxu0
  %v3254 = vadd.f32 %v2965, %v3253
  %v3255 = vpop.f32.mrf.mxu0
  %3256 = vdwg.mxu0
  %3257 = vmatprep.subr.bf16.mxu0 0
  %3258 = vmatpush1.bf16.msra.mxu0 %v2301
  %3259 = vmatprep.subr.bf16.mxu0 0
  %3260 = vmatpush1.bf16.msra.mxu0 %v2300
  %3261 = vmatprep.subr.bf16.mxu0 0
  %3262 = vmatpush1.bf16.msra.mxu0 %v2299
  %3263 = vmatprep.subr.bf16.mxu0 0
  %3264 = vmatpush1.bf16.msra.mxu0 %v2298
  %3265 = vmatprep.subr.bf16.mxu0 0
  %3266 = vmatpush1.bf16.msra.mxu0 %v2297
  %3267 = vmatprep.subr.bf16.mxu0 0
  %3268 = vmatpush1.bf16.msra.mxu0 %v2296
  %3269 = vmatprep.subr.bf16.mxu0 0
  %3270 = vmatpush1.bf16.msra.mxu0 %v2295
  %3271 = vmatprep.subr.bf16.mxu0 0
  %3272 = vmatpush1.bf16.msra.mxu0 %v2294
  %3273 = vmatprep.subr.bf16.mxu0 0
  %3274 = vmatpush2.bf16.msra.mxu0 %v2309
  %3275 = vmatprep.subr.bf16.mxu0 0
  %3276 = vmatpush2.bf16.msra.mxu0 %v2308
  %3277 = vmatprep.subr.bf16.mxu0 0
  %3278 = vmatpush2.bf16.msra.mxu0 %v2307
  %3279 = vmatprep.subr.bf16.mxu0 0
  %3280 = vmatpush2.bf16.msra.mxu0 %v2306
  %3281 = vmatprep.subr.bf16.mxu0 0
  %3282 = vmatpush2.bf16.msra.mxu0 %v2305
  %3283 = vmatprep.subr.bf16.mxu0 0
  %3284 = vmatpush2.bf16.msra.mxu0 %v2304
  %3285 = vmatprep.subr.bf16.mxu0 0
  %3286 = vmatpush2.bf16.msra.mxu0 %v2303
  %3287 = vmatprep.subr.bf16.mxu0 0
  %3288 = vmatpush2.bf16.msra.mxu0 %v2302
  %3289 = vmatprep.mubr.bf16.mxu0 %v1389
  %3290 = vmatmul.mubr.bf16.gmra.mxu0 %v1388
  %v3291 = vpop.f32.mrf.mxu0
  %v3292 = vadd.f32 %v3003, %v3291
  %v3293 = vpop.f32.mrf.mxu0
  %v3294 = vpop.f32.mrf.mxu0
  %v3295 = vadd.f32 %v3006, %v3294
  %v3296 = vpop.f32.mrf.mxu0
  %3297 = vmatprep.mubr.bf16.mxu0 %v1398
  %3298 = vmatmul.mubr.bf16.gmra.mxu0 %v1397
  %v3299 = vpop.f32.mrf.mxu0
  %v3300 = vadd.f32 %v3011, %v3299
  %v3301 = vpop.f32.mrf.mxu0
  %v3302 = vpop.f32.mrf.mxu0
  %v3303 = vadd.f32 %v3014, %v3302
  %v3304 = vpop.f32.mrf.mxu0
  %3305 = vmatprep.mubr.bf16.mxu0 %v1407
  %3306 = vmatmul.mubr.bf16.gmra.mxu0 %v1406
  %v3307 = vpop.f32.mrf.mxu0
  %v3308 = vadd.f32 %v3019, %v3307
  %v3309 = vpop.f32.mrf.mxu0
  %v3310 = vpop.f32.mrf.mxu0
  %v3311 = vadd.f32 %v3022, %v3310
  %v3312 = vpop.f32.mrf.mxu0
  %3313 = vmatprep.mubr.bf16.mxu0 %v1416
  %3314 = vmatmul.mubr.bf16.gmra.mxu0 %v1415
  %v3315 = vpop.f32.mrf.mxu0
  %v3316 = vadd.f32 %v3027, %v3315
  %v3317 = vpop.f32.mrf.mxu0
  %v3318 = vpop.f32.mrf.mxu0
  %v3319 = vadd.f32 %v3030, %v3318
  %v3320 = vpop.f32.mrf.mxu0
  %3321 = vmatprep.mubr.bf16.mxu0 %v1425
  %3322 = vmatmul.mubr.bf16.gmra.mxu0 %v1424
  %v3323 = vpop.f32.mrf.mxu0
  %v3324 = vadd.f32 %v3035, %v3323
  %v3325 = vpop.f32.mrf.mxu0
  %v3326 = vpop.f32.mrf.mxu0
  %v3327 = vadd.f32 %v3038, %v3326
  %v3328 = vpop.f32.mrf.mxu0
  %3329 = vmatprep.mubr.bf16.mxu0 %v1434
  %3330 = vmatmul.mubr.bf16.gmra.mxu0 %v1433
  %v3331 = vpop.f32.mrf.mxu0
  %v3332 = vadd.f32 %v3043, %v3331
  %v3333 = vpop.f32.mrf.mxu0
  %v3334 = vpop.f32.mrf.mxu0
  %v3335 = vadd.f32 %v3046, %v3334
  %v3336 = vpop.f32.mrf.mxu0
  %3337 = vmatprep.mubr.bf16.mxu0 %v1443
  %3338 = vmatmul.mubr.bf16.gmra.mxu0 %v1442
  %v3339 = vpop.f32.mrf.mxu0
  %v3340 = vadd.f32 %v3051, %v3339
  %v3341 = vpop.f32.mrf.mxu0
  %v3342 = vpop.f32.mrf.mxu0
  %v3343 = vadd.f32 %v3054, %v3342
  %v3344 = vpop.f32.mrf.mxu0
  %3345 = vmatprep.mubr.bf16.mxu0 %v1452
  %3346 = vmatmul.mubr.bf16.gmra.mxu0 %v1451
  %v3347 = vpop.f32.mrf.mxu0
  %v3348 = vadd.f32 %v3059, %v3347
  %v3349 = vpop.f32.mrf.mxu0
  %v3350 = vpop.f32.mrf.mxu0
  %v3351 = vadd.f32 %v3062, %v3350
  %v3352 = vpop.f32.mrf.mxu0
  %3353 = vmatprep.mubr.bf16.mxu0 %v1461
  %3354 = vmatmul.mubr.bf16.gmra.mxu0 %v1460
  %v3355 = vpop.f32.mrf.mxu0
  %v3356 = vadd.f32 %v3067, %v3355
  %v3357 = vpop.f32.mrf.mxu0
  %v3358 = vpop.f32.mrf.mxu0
  %v3359 = vadd.f32 %v3070, %v3358
  %v3360 = vpop.f32.mrf.mxu0
  %3361 = vmatprep.mubr.bf16.mxu0 %v1470
  %3362 = vmatmul.mubr.bf16.gmra.mxu0 %v1469
  %v3363 = vpop.f32.mrf.mxu0
  %v3364 = vadd.f32 %v3075, %v3363
  %v3365 = vpop.f32.mrf.mxu0
  %v3366 = vpop.f32.mrf.mxu0
  %v3367 = vadd.f32 %v3078, %v3366
  %v3368 = vpop.f32.mrf.mxu0
  %3369 = vmatprep.mubr.bf16.mxu0 %v1479
  %3370 = vmatmul.mubr.bf16.gmra.mxu0 %v1478
  %v3371 = vpop.f32.mrf.mxu0
  %v3372 = vadd.f32 %v3083, %v3371
  %v3373 = vpop.f32.mrf.mxu0
  %v3374 = vpop.f32.mrf.mxu0
  %v3375 = vadd.f32 %v3086, %v3374
  %v3376 = vpop.f32.mrf.mxu0
  %3377 = vmatprep.mubr.bf16.mxu0 %v1488
  %3378 = vmatmul.mubr.bf16.gmra.mxu0 %v1487
  %v3379 = vpop.f32.mrf.mxu0
  %v3380 = vadd.f32 %v3091, %v3379
  %v3381 = vpop.f32.mrf.mxu0
  %v3382 = vpop.f32.mrf.mxu0
  %v3383 = vadd.f32 %v3094, %v3382
  %v3384 = vpop.f32.mrf.mxu0
  %3385 = vmatprep.mubr.bf16.mxu0 %v1497
  %3386 = vmatmul.mubr.bf16.gmra.mxu0 %v1496
  %v3387 = vpop.f32.mrf.mxu0
  %v3388 = vadd.f32 %v3099, %v3387
  %v3389 = vpop.f32.mrf.mxu0
  %v3390 = vpop.f32.mrf.mxu0
  %v3391 = vadd.f32 %v3102, %v3390
  %v3392 = vpop.f32.mrf.mxu0
  %3393 = vmatprep.mubr.bf16.mxu0 %v1506
  %3394 = vmatmul.mubr.bf16.gmra.mxu0 %v1505
  %v3395 = vpop.f32.mrf.mxu0
  %v3396 = vadd.f32 %v3107, %v3395
  %v3397 = vpop.f32.mrf.mxu0
  %v3398 = vpop.f32.mrf.mxu0
  %v3399 = vadd.f32 %v3110, %v3398
  %v3400 = vpop.f32.mrf.mxu0
  %3401 = vmatprep.mubr.bf16.mxu0 %v1515
  %3402 = vmatmul.mubr.bf16.gmra.mxu0 %v1514
  %v3403 = vpop.f32.mrf.mxu0
  %v3404 = vadd.f32 %v3115, %v3403
  %v3405 = vpop.f32.mrf.mxu0
  %v3406 = vpop.f32.mrf.mxu0
  %v3407 = vadd.f32 %v3118, %v3406
  %v3408 = vpop.f32.mrf.mxu0
  %3409 = vmatprep.mubr.bf16.mxu0 %v1524
  %3410 = vmatmul.mubr.bf16.gmra.mxu0 %v1523
  %v3411 = vpop.f32.mrf.mxu0
  %v3412 = vadd.f32 %v3123, %v3411
  %v3413 = vpop.f32.mrf.mxu0
  %v3414 = vpop.f32.mrf.mxu0
  %v3415 = vadd.f32 %v3126, %v3414
  %v3416 = vpop.f32.mrf.mxu0
  %3417 = vmatprep.mubr.bf16.mxu0 %v1533
  %3418 = vmatmul.mubr.bf16.gmra.mxu0 %v1532
  %v3419 = vpop.f32.mrf.mxu0
  %v3420 = vadd.f32 %v3131, %v3419
  %v3421 = vpop.f32.mrf.mxu0
  %v3422 = vpop.f32.mrf.mxu0
  %v3423 = vadd.f32 %v3134, %v3422
  %v3424 = vpop.f32.mrf.mxu0
  %3425 = vmatprep.mubr.bf16.mxu0 %v1542
  %3426 = vmatmul.mubr.bf16.gmra.mxu0 %v1541
  %v3427 = vpop.f32.mrf.mxu0
  %v3428 = vadd.f32 %v3139, %v3427
  %v3429 = vpop.f32.mrf.mxu0
  %v3430 = vpop.f32.mrf.mxu0
  %v3431 = vadd.f32 %v3142, %v3430
  %v3432 = vpop.f32.mrf.mxu0
  %3433 = vmatprep.mubr.bf16.mxu0 %v1551
  %3434 = vmatmul.mubr.bf16.gmra.mxu0 %v1550
  %v3435 = vpop.f32.mrf.mxu0
  %v3436 = vadd.f32 %v3147, %v3435
  %v3437 = vpop.f32.mrf.mxu0
  %v3438 = vpop.f32.mrf.mxu0
  %v3439 = vadd.f32 %v3150, %v3438
  %v3440 = vpop.f32.mrf.mxu0
  %3441 = vmatprep.mubr.bf16.mxu0 %v1560
  %3442 = vmatmul.mubr.bf16.gmra.mxu0 %v1559
  %v3443 = vpop.f32.mrf.mxu0
  %v3444 = vadd.f32 %v3155, %v3443
  %v3445 = vpop.f32.mrf.mxu0
  %v3446 = vpop.f32.mrf.mxu0
  %v3447 = vadd.f32 %v3158, %v3446
  %v3448 = vpop.f32.mrf.mxu0
  %3449 = vmatprep.mubr.bf16.mxu0 %v1569
  %3450 = vmatmul.mubr.bf16.gmra.mxu0 %v1568
  %v3451 = vpop.f32.mrf.mxu0
  %v3452 = vadd.f32 %v3163, %v3451
  %v3453 = vpop.f32.mrf.mxu0
  %v3454 = vpop.f32.mrf.mxu0
  %v3455 = vadd.f32 %v3166, %v3454
  %v3456 = vpop.f32.mrf.mxu0
  %3457 = vmatprep.mubr.bf16.mxu0 %v1578
  %3458 = vmatmul.mubr.bf16.gmra.mxu0 %v1577
  %v3459 = vpop.f32.mrf.mxu0
  %v3460 = vadd.f32 %v3171, %v3459
  %v3461 = vpop.f32.mrf.mxu0
  %v3462 = vpop.f32.mrf.mxu0
  %v3463 = vadd.f32 %v3174, %v3462
  %v3464 = vpop.f32.mrf.mxu0
  %3465 = vmatprep.mubr.bf16.mxu0 %v1587
  %3466 = vmatmul.mubr.bf16.gmra.mxu0 %v1586
  %v3467 = vpop.f32.mrf.mxu0
  %v3468 = vadd.f32 %v3179, %v3467
  %v3469 = vpop.f32.mrf.mxu0
  %v3470 = vpop.f32.mrf.mxu0
  %v3471 = vadd.f32 %v3182, %v3470
  %v3472 = vpop.f32.mrf.mxu0
  %3473 = vmatprep.mubr.bf16.mxu0 %v1596
  %3474 = vmatmul.mubr.bf16.gmra.mxu0 %v1595
  %v3475 = vpop.f32.mrf.mxu0
  %v3476 = vadd.f32 %v3187, %v3475
  %v3477 = vpop.f32.mrf.mxu0
  %v3478 = vpop.f32.mrf.mxu0
  %v3479 = vadd.f32 %v3190, %v3478
  %v3480 = vpop.f32.mrf.mxu0
  %3481 = vmatprep.mubr.bf16.mxu0 %v1605
  %3482 = vmatmul.mubr.bf16.gmra.mxu0 %v1604
  %v3483 = vpop.f32.mrf.mxu0
  %v3484 = vadd.f32 %v3195, %v3483
  %v3485 = vpop.f32.mrf.mxu0
  %v3486 = vpop.f32.mrf.mxu0
  %v3487 = vadd.f32 %v3198, %v3486
  %v3488 = vpop.f32.mrf.mxu0
  %3489 = vmatprep.mubr.bf16.mxu0 %v1614
  %3490 = vmatmul.mubr.bf16.gmra.mxu0 %v1613
  %v3491 = vpop.f32.mrf.mxu0
  %v3492 = vadd.f32 %v3203, %v3491
  %v3493 = vpop.f32.mrf.mxu0
  %v3494 = vpop.f32.mrf.mxu0
  %v3495 = vadd.f32 %v3206, %v3494
  %v3496 = vpop.f32.mrf.mxu0
  %3497 = vmatprep.mubr.bf16.mxu0 %v1623
  %3498 = vmatmul.mubr.bf16.gmra.mxu0 %v1622
  %v3499 = vpop.f32.mrf.mxu0
  %v3500 = vadd.f32 %v3211, %v3499
  %v3501 = vpop.f32.mrf.mxu0
  %v3502 = vpop.f32.mrf.mxu0
  %v3503 = vadd.f32 %v3214, %v3502
  %v3504 = vpop.f32.mrf.mxu0
  %3505 = vmatprep.mubr.bf16.mxu0 %v1632
  %3506 = vmatmul.mubr.bf16.gmra.mxu0 %v1631
  %v3507 = vpop.f32.mrf.mxu0
  %v3508 = vadd.f32 %v3219, %v3507
  %v3509 = vpop.f32.mrf.mxu0
  %v3510 = vpop.f32.mrf.mxu0
  %v3511 = vadd.f32 %v3222, %v3510
  %v3512 = vpop.f32.mrf.mxu0
  %3513 = vmatprep.mubr.bf16.mxu0 %v1641
  %3514 = vmatmul.mubr.bf16.gmra.mxu0 %v1640
  %v3515 = vpop.f32.mrf.mxu0
  %v3516 = vadd.f32 %v3227, %v3515
  %v3517 = vpop.f32.mrf.mxu0
  %v3518 = vpop.f32.mrf.mxu0
  %v3519 = vadd.f32 %v3230, %v3518
  %v3520 = vpop.f32.mrf.mxu0
  %3521 = vmatprep.mubr.bf16.mxu0 %v1650
  %3522 = vmatmul.mubr.bf16.gmra.mxu0 %v1649
  %v3523 = vpop.f32.mrf.mxu0
  %v3524 = vadd.f32 %v3235, %v3523
  %v3525 = vpop.f32.mrf.mxu0
  %v3526 = vpop.f32.mrf.mxu0
  %v3527 = vadd.f32 %v3238, %v3526
  %v3528 = vpop.f32.mrf.mxu0
  %3529 = vmatprep.mubr.bf16.mxu0 %v1659
  %3530 = vmatmul.mubr.bf16.gmra.mxu0 %v1658
  %v3531 = vpop.f32.mrf.mxu0
  %v3532 = vadd.f32 %v3243, %v3531
  %v3533 = vpop.f32.mrf.mxu0
  %v3534 = vpop.f32.mrf.mxu0
  %v3535 = vadd.f32 %v3246, %v3534
  %v3536 = vpop.f32.mrf.mxu0
  %3537 = vmatprep.mubr.bf16.mxu0 %v1668
  %3538 = vmatmul.mubr.bf16.gmra.mxu0 %v1667
  %v3539 = vpop.f32.mrf.mxu0
  %v3540 = vadd.f32 %v3251, %v3539
  %v3541 = vpop.f32.mrf.mxu0
  %v3542 = vpop.f32.mrf.mxu0
  %v3543 = vadd.f32 %v3254, %v3542
  %v3544 = vpop.f32.mrf.mxu0
  %3545 = vdwg.mxu0
  %3546 = vmatprep.subr.bf16.mxu0 0
  %3547 = vmatpush1.bf16.msra.mxu0 %v2317
  %3548 = vmatprep.subr.bf16.mxu0 0
  %3549 = vmatpush1.bf16.msra.mxu0 %v2316
  %3550 = vmatprep.subr.bf16.mxu0 0
  %3551 = vmatpush1.bf16.msra.mxu0 %v2315
  %3552 = vmatprep.subr.bf16.mxu0 0
  %3553 = vmatpush1.bf16.msra.mxu0 %v2314
  %3554 = vmatprep.subr.bf16.mxu0 0
  %3555 = vmatpush1.bf16.msra.mxu0 %v2313
  %3556 = vmatprep.subr.bf16.mxu0 0
  %3557 = vmatpush1.bf16.msra.mxu0 %v2312
  %3558 = vmatprep.subr.bf16.mxu0 0
  %3559 = vmatpush1.bf16.msra.mxu0 %v2311
  %3560 = vmatprep.subr.bf16.mxu0 0
  %3561 = vmatpush1.bf16.msra.mxu0 %v2310
  %3562 = vmatprep.subr.bf16.mxu0 0
  %3563 = vmatpush2.bf16.msra.mxu0 0
  %3564 = vmatprep.subr.bf16.mxu0 0
  %3565 = vmatpush2.bf16.msra.mxu0 0
  %3566 = vmatprep.subr.bf16.mxu0 0
  %3567 = vmatpush2.bf16.msra.mxu0 0
  %3568 = vmatprep.subr.bf16.mxu0 0
  %3569 = vmatpush2.bf16.msra.mxu0 0
  %3570 = vmatprep.subr.bf16.mxu0 0
  %3571 = vmatpush2.bf16.msra.mxu0 0
  %3572 = vmatprep.subr.bf16.mxu0 0
  %3573 = vmatpush2.bf16.msra.mxu0 0
  %3574 = vmatprep.subr.bf16.mxu0 0
  %3575 = vmatpush2.bf16.msra.mxu0 0
  %3576 = vmatprep.subr.bf16.mxu0 0
  %3577 = vmatpush2.bf16.msra.mxu0 0
  %3578 = vmatprep.mubr.bf16.mxu0 0
  %3579 = vmatmul.mubr.bf16.gmra.mxu0 %v1390
  %v3580 = vpop.f32.mrf.mxu0
  %v3581 = vadd.f32 %v3292, %v3580
  %v3582 = vpop.f32.mrf.mxu0
  %v3583 = vpop.f32.mrf.mxu0
  %v3584 = vadd.f32 %v3295, %v3583
  %v3585 = vpop.f32.mrf.mxu0
  %3586 = vmatprep.mubr.bf16.mxu0 0
  %3587 = vmatmul.mubr.bf16.gmra.mxu0 %v1399
  %v3588 = vpop.f32.mrf.mxu0
  %v3589 = vadd.f32 %v3300, %v3588
  %v3590 = vpop.f32.mrf.mxu0
  %v3591 = vpop.f32.mrf.mxu0
  %v3592 = vadd.f32 %v3303, %v3591
  %v3593 = vpop.f32.mrf.mxu0
  %3594 = vmatprep.mubr.bf16.mxu0 0
  %3595 = vmatmul.mubr.bf16.gmra.mxu0 %v1408
  %v3596 = vpop.f32.mrf.mxu0
  %v3597 = vadd.f32 %v3308, %v3596
  %v3598 = vpop.f32.mrf.mxu0
  %v3599 = vpop.f32.mrf.mxu0
  %v3600 = vadd.f32 %v3311, %v3599
  %v3601 = vpop.f32.mrf.mxu0
  %3602 = vmatprep.mubr.bf16.mxu0 0
  %3603 = vmatmul.mubr.bf16.gmra.mxu0 %v1417
  %v3604 = vpop.f32.mrf.mxu0
  %v3605 = vadd.f32 %v3316, %v3604
  %v3606 = vpop.f32.mrf.mxu0
  %v3607 = vpop.f32.mrf.mxu0
  %v3608 = vadd.f32 %v3319, %v3607
  %v3609 = vpop.f32.mrf.mxu0
  %3610 = vmatprep.mubr.bf16.mxu0 0
  %3611 = vmatmul.mubr.bf16.gmra.mxu0 %v1426
  %v3612 = vpop.f32.mrf.mxu0
  %v3613 = vadd.f32 %v3324, %v3612
  %v3614 = vpop.f32.mrf.mxu0
  %v3615 = vpop.f32.mrf.mxu0
  %v3616 = vadd.f32 %v3327, %v3615
  %v3617 = vpop.f32.mrf.mxu0
  %3618 = vmatprep.mubr.bf16.mxu0 0
  %3619 = vmatmul.mubr.bf16.gmra.mxu0 %v1435
  %v3620 = vpop.f32.mrf.mxu0
  %v3621 = vadd.f32 %v3332, %v3620
  %v3622 = vpop.f32.mrf.mxu0
  %v3623 = vpop.f32.mrf.mxu0
  %v3624 = vadd.f32 %v3335, %v3623
  %v3625 = vpop.f32.mrf.mxu0
  %3626 = vmatprep.mubr.bf16.mxu0 0
  %3627 = vmatmul.mubr.bf16.gmra.mxu0 %v1444
  %v3628 = vpop.f32.mrf.mxu0
  %v3629 = vadd.f32 %v3340, %v3628
  %v3630 = vpop.f32.mrf.mxu0
  %v3631 = vpop.f32.mrf.mxu0
  %v3632 = vadd.f32 %v3343, %v3631
  %v3633 = vpop.f32.mrf.mxu0
  %3634 = vmatprep.mubr.bf16.mxu0 0
  %3635 = vmatmul.mubr.bf16.gmra.mxu0 %v1453
  %v3636 = vpop.f32.mrf.mxu0
  %v3637 = vadd.f32 %v3348, %v3636
  %v3638 = vpop.f32.mrf.mxu0
  %v3639 = vpop.f32.mrf.mxu0
  %v3640 = vadd.f32 %v3351, %v3639
  %v3641 = vpop.f32.mrf.mxu0
  %3642 = vmatprep.mubr.bf16.mxu0 0
  %3643 = vmatmul.mubr.bf16.gmra.mxu0 %v1462
  %v3644 = vpop.f32.mrf.mxu0
  %v3645 = vadd.f32 %v3356, %v3644
  %v3646 = vpop.f32.mrf.mxu0
  %v3647 = vpop.f32.mrf.mxu0
  %v3648 = vadd.f32 %v3359, %v3647
  %v3649 = vpop.f32.mrf.mxu0
  %3650 = vmatprep.mubr.bf16.mxu0 0
  %3651 = vmatmul.mubr.bf16.gmra.mxu0 %v1471
  %v3652 = vpop.f32.mrf.mxu0
  %v3653 = vadd.f32 %v3364, %v3652
  %v3654 = vpop.f32.mrf.mxu0
  %v3655 = vpop.f32.mrf.mxu0
  %v3656 = vadd.f32 %v3367, %v3655
  %v3657 = vpop.f32.mrf.mxu0
  %3658 = vmatprep.mubr.bf16.mxu0 0
  %3659 = vmatmul.mubr.bf16.gmra.mxu0 %v1480
  %v3660 = vpop.f32.mrf.mxu0
  %v3661 = vadd.f32 %v3372, %v3660
  %v3662 = vpop.f32.mrf.mxu0
  %v3663 = vpop.f32.mrf.mxu0
  %v3664 = vadd.f32 %v3375, %v3663
  %v3665 = vpop.f32.mrf.mxu0
  %3666 = vmatprep.mubr.bf16.mxu0 0
  %3667 = vmatmul.mubr.bf16.gmra.mxu0 %v1489
  %v3668 = vpop.f32.mrf.mxu0
  %v3669 = vadd.f32 %v3380, %v3668
  %v3670 = vpop.f32.mrf.mxu0
  %v3671 = vpop.f32.mrf.mxu0
  %v3672 = vadd.f32 %v3383, %v3671
  %v3673 = vpop.f32.mrf.mxu0
  %3674 = vmatprep.mubr.bf16.mxu0 0
  %3675 = vmatmul.mubr.bf16.gmra.mxu0 %v1498
  %v3676 = vpop.f32.mrf.mxu0
  %v3677 = vadd.f32 %v3388, %v3676
  %v3678 = vpop.f32.mrf.mxu0
  %v3679 = vpop.f32.mrf.mxu0
  %v3680 = vadd.f32 %v3391, %v3679
  %v3681 = vpop.f32.mrf.mxu0
  %3682 = vmatprep.mubr.bf16.mxu0 0
  %3683 = vmatmul.mubr.bf16.gmra.mxu0 %v1507
  %v3684 = vpop.f32.mrf.mxu0
  %v3685 = vadd.f32 %v3396, %v3684
  %v3686 = vpop.f32.mrf.mxu0
  %v3687 = vpop.f32.mrf.mxu0
  %v3688 = vadd.f32 %v3399, %v3687
  %v3689 = vpop.f32.mrf.mxu0
  %3690 = vmatprep.mubr.bf16.mxu0 0
  %3691 = vmatmul.mubr.bf16.gmra.mxu0 %v1516
  %v3692 = vpop.f32.mrf.mxu0
  %v3693 = vadd.f32 %v3404, %v3692
  %v3694 = vpop.f32.mrf.mxu0
  %v3695 = vpop.f32.mrf.mxu0
  %v3696 = vadd.f32 %v3407, %v3695
  %v3697 = vpop.f32.mrf.mxu0
  %3698 = vmatprep.mubr.bf16.mxu0 0
  %3699 = vmatmul.mubr.bf16.gmra.mxu0 %v1525
  %v3700 = vpop.f32.mrf.mxu0
  %v3701 = vadd.f32 %v3412, %v3700
  %v3702 = vpop.f32.mrf.mxu0
  %v3703 = vpop.f32.mrf.mxu0
  %v3704 = vadd.f32 %v3415, %v3703
  %v3705 = vpop.f32.mrf.mxu0
  %3706 = vmatprep.mubr.bf16.mxu0 0
  %3707 = vmatmul.mubr.bf16.gmra.mxu0 %v1534
  %v3708 = vpop.f32.mrf.mxu0
  %v3709 = vadd.f32 %v3420, %v3708
  %v3710 = vpop.f32.mrf.mxu0
  %v3711 = vpop.f32.mrf.mxu0
  %v3712 = vadd.f32 %v3423, %v3711
  %v3713 = vpop.f32.mrf.mxu0
  %3714 = vmatprep.mubr.bf16.mxu0 0
  %3715 = vmatmul.mubr.bf16.gmra.mxu0 %v1543
  %v3716 = vpop.f32.mrf.mxu0
  %v3717 = vadd.f32 %v3428, %v3716
  %v3718 = vpop.f32.mrf.mxu0
  %v3719 = vpop.f32.mrf.mxu0
  %v3720 = vadd.f32 %v3431, %v3719
  %v3721 = vpop.f32.mrf.mxu0
  %3722 = vmatprep.mubr.bf16.mxu0 0
  %3723 = vmatmul.mubr.bf16.gmra.mxu0 %v1552
  %v3724 = vpop.f32.mrf.mxu0
  %v3725 = vadd.f32 %v3436, %v3724
  %v3726 = vpop.f32.mrf.mxu0
  %v3727 = vpop.f32.mrf.mxu0
  %v3728 = vadd.f32 %v3439, %v3727
  %v3729 = vpop.f32.mrf.mxu0
  %3730 = vmatprep.mubr.bf16.mxu0 0
  %3731 = vmatmul.mubr.bf16.gmra.mxu0 %v1561
  %v3732 = vpop.f32.mrf.mxu0
  %v3733 = vadd.f32 %v3444, %v3732
  %v3734 = vpop.f32.mrf.mxu0
  %v3735 = vpop.f32.mrf.mxu0
  %v3736 = vadd.f32 %v3447, %v3735
  %v3737 = vpop.f32.mrf.mxu0
  %3738 = vmatprep.mubr.bf16.mxu0 0
  %3739 = vmatmul.mubr.bf16.gmra.mxu0 %v1570
  %v3740 = vpop.f32.mrf.mxu0
  %v3741 = vadd.f32 %v3452, %v3740
  %v3742 = vpop.f32.mrf.mxu0
  %v3743 = vpop.f32.mrf.mxu0
  %v3744 = vadd.f32 %v3455, %v3743
  %v3745 = vpop.f32.mrf.mxu0
  %3746 = vmatprep.mubr.bf16.mxu0 0
  %3747 = vmatmul.mubr.bf16.gmra.mxu0 %v1579
  %v3748 = vpop.f32.mrf.mxu0
  %v3749 = vadd.f32 %v3460, %v3748
  %v3750 = vpop.f32.mrf.mxu0
  %v3751 = vpop.f32.mrf.mxu0
  %v3752 = vadd.f32 %v3463, %v3751
  %v3753 = vpop.f32.mrf.mxu0
  %3754 = vmatprep.mubr.bf16.mxu0 0
  %3755 = vmatmul.mubr.bf16.gmra.mxu0 %v1588
  %v3756 = vpop.f32.mrf.mxu0
  %v3757 = vadd.f32 %v3468, %v3756
  %v3758 = vpop.f32.mrf.mxu0
  %v3759 = vpop.f32.mrf.mxu0
  %v3760 = vadd.f32 %v3471, %v3759
  %v3761 = vpop.f32.mrf.mxu0
  %3762 = vmatprep.mubr.bf16.mxu0 0
  %3763 = vmatmul.mubr.bf16.gmra.mxu0 %v1597
  %v3764 = vpop.f32.mrf.mxu0
  %v3765 = vadd.f32 %v3476, %v3764
  %v3766 = vpop.f32.mrf.mxu0
  %v3767 = vpop.f32.mrf.mxu0
  %v3768 = vadd.f32 %v3479, %v3767
  %v3769 = vpop.f32.mrf.mxu0
  %3770 = vmatprep.mubr.bf16.mxu0 0
  %3771 = vmatmul.mubr.bf16.gmra.mxu0 %v1606
  %v3772 = vpop.f32.mrf.mxu0
  %v3773 = vadd.f32 %v3484, %v3772
  %v3774 = vpop.f32.mrf.mxu0
  %v3775 = vpop.f32.mrf.mxu0
  %v3776 = vadd.f32 %v3487, %v3775
  %v3777 = vpop.f32.mrf.mxu0
  %3778 = vmatprep.mubr.bf16.mxu0 0
  %3779 = vmatmul.mubr.bf16.gmra.mxu0 %v1615
  %v3780 = vpop.f32.mrf.mxu0
  %v3781 = vadd.f32 %v3492, %v3780
  %v3782 = vpop.f32.mrf.mxu0
  %v3783 = vpop.f32.mrf.mxu0
  %v3784 = vadd.f32 %v3495, %v3783
  %v3785 = vpop.f32.mrf.mxu0
  %3786 = vmatprep.mubr.bf16.mxu0 0
  %3787 = vmatmul.mubr.bf16.gmra.mxu0 %v1624
  %v3788 = vpop.f32.mrf.mxu0
  %v3789 = vadd.f32 %v3500, %v3788
  %v3790 = vpop.f32.mrf.mxu0
  %v3791 = vpop.f32.mrf.mxu0
  %v3792 = vadd.f32 %v3503, %v3791
  %v3793 = vpop.f32.mrf.mxu0
  %3794 = vmatprep.mubr.bf16.mxu0 0
  %3795 = vmatmul.mubr.bf16.gmra.mxu0 %v1633
  %v3796 = vpop.f32.mrf.mxu0
  %v3797 = vadd.f32 %v3508, %v3796
  %v3798 = vpop.f32.mrf.mxu0
  %v3799 = vpop.f32.mrf.mxu0
  %v3800 = vadd.f32 %v3511, %v3799
  %v3801 = vpop.f32.mrf.mxu0
  %3802 = vmatprep.mubr.bf16.mxu0 0
  %3803 = vmatmul.mubr.bf16.gmra.mxu0 %v1642
  %v3804 = vpop.f32.mrf.mxu0
  %v3805 = vadd.f32 %v3516, %v3804
  %v3806 = vpop.f32.mrf.mxu0
  %v3807 = vpop.f32.mrf.mxu0
  %v3808 = vadd.f32 %v3519, %v3807
  %v3809 = vpop.f32.mrf.mxu0
  %3810 = vmatprep.mubr.bf16.mxu0 0
  %3811 = vmatmul.mubr.bf16.gmra.mxu0 %v1651
  %v3812 = vpop.f32.mrf.mxu0
  %v3813 = vadd.f32 %v3524, %v3812
  %v3814 = vpop.f32.mrf.mxu0
  %v3815 = vpop.f32.mrf.mxu0
  %v3816 = vadd.f32 %v3527, %v3815
  %v3817 = vpop.f32.mrf.mxu0
  %3818 = vmatprep.mubr.bf16.mxu0 0
  %3819 = vmatmul.mubr.bf16.gmra.mxu0 %v1660
  %v3820 = vpop.f32.mrf.mxu0
  %v3821 = vadd.f32 %v3532, %v3820
  %v3822 = vpop.f32.mrf.mxu0
  %v3823 = vpop.f32.mrf.mxu0
  %v3824 = vadd.f32 %v3535, %v3823
  %v3825 = vpop.f32.mrf.mxu0
  %3826 = vmatprep.mubr.bf16.mxu0 0
  %3827 = vmatmul.mubr.bf16.gmra.mxu0 %v1669
  %v3828 = vpop.f32.mrf.mxu0
  %v3829 = vadd.f32 %v3540, %v3828
  %v3830 = vpop.f32.mrf.mxu0
  %v3831 = vpop.f32.mrf.mxu0
  %v3832 = vadd.f32 %v3543, %v3831
  %v3833 = vpop.f32.mrf.mxu0
  %3834 = vdwg.mxu0
  %vm3835 = vcmp.gt.f32.partialorder %v3581, 0.0
  %vm3836 = vcmp.gt.f32.partialorder %v3584, 0.0
  %vm3837 = vcmp.gt.f32.partialorder %v3589, 0.0
  %vm3838 = vcmp.gt.f32.partialorder %v3592, 0.0
  %vm3839 = vcmp.gt.f32.partialorder %v3597, 0.0
  %vm3840 = vcmp.gt.f32.partialorder %v3600, 0.0
  %vm3841 = vcmp.gt.f32.partialorder %v3605, 0.0
  %vm3842 = vcmp.gt.f32.partialorder %v3608, 0.0
  %vm3843 = vcmp.gt.f32.partialorder %v3613, 0.0
  %vm3844 = vcmp.gt.f32.partialorder %v3616, 0.0
  %vm3845 = vcmp.gt.f32.partialorder %v3621, 0.0
  %vm3846 = vcmp.gt.f32.partialorder %v3624, 0.0
  %vm3847 = vcmp.gt.f32.partialorder %v3629, 0.0
  %vm3848 = vcmp.gt.f32.partialorder %v3632, 0.0
  %vm3849 = vcmp.gt.f32.partialorder %v3637, 0.0
  %vm3850 = vcmp.gt.f32.partialorder %v3640, 0.0
  %vm3851 = vcmp.gt.f32.partialorder %v3645, 0.0
  %vm3852 = vcmp.gt.f32.partialorder %v3648, 0.0
  %vm3853 = vcmp.gt.f32.partialorder %v3653, 0.0
  %vm3854 = vcmp.gt.f32.partialorder %v3656, 0.0
  %vm3855 = vcmp.gt.f32.partialorder %v3661, 0.0
  %vm3856 = vcmp.gt.f32.partialorder %v3664, 0.0
  %vm3857 = vcmp.gt.f32.partialorder %v3669, 0.0
  %vm3858 = vcmp.gt.f32.partialorder %v3672, 0.0
  %vm3859 = vcmp.gt.f32.partialorder %v3677, 0.0
  %vm3860 = vcmp.gt.f32.partialorder %v3680, 0.0
  %vm3861 = vcmp.gt.f32.partialorder %v3685, 0.0
  %vm3862 = vcmp.gt.f32.partialorder %v3688, 0.0
  %vm3863 = vcmp.gt.f32.partialorder %v3693, 0.0
  %vm3864 = vcmp.gt.f32.partialorder %v3696, 0.0
  %vm3865 = vcmp.gt.f32.partialorder %v3701, 0.0
  %vm3866 = vcmp.gt.f32.partialorder %v3704, 0.0
  %vm3867 = vcmp.gt.f32.partialorder %v3709, 0.0
  %vm3868 = vcmp.gt.f32.partialorder %v3712, 0.0
  %vm3869 = vcmp.gt.f32.partialorder %v3717, 0.0
  %vm3870 = vcmp.gt.f32.partialorder %v3720, 0.0
  %vm3871 = vcmp.gt.f32.partialorder %v3725, 0.0
  %vm3872 = vcmp.gt.f32.partialorder %v3728, 0.0
  %vm3873 = vcmp.gt.f32.partialorder %v3733, 0.0
  %vm3874 = vcmp.gt.f32.partialorder %v3736, 0.0
  %vm3875 = vcmp.gt.f32.partialorder %v3741, 0.0
  %vm3876 = vcmp.gt.f32.partialorder %v3744, 0.0
  %vm3877 = vcmp.gt.f32.partialorder %v3749, 0.0
  %vm3878 = vcmp.gt.f32.partialorder %v3752, 0.0
  %vm3879 = vcmp.gt.f32.partialorder %v3757, 0.0
  %vm3880 = vcmp.gt.f32.partialorder %v3760, 0.0
  %vm3881 = vcmp.gt.f32.partialorder %v3765, 0.0
  %vm3882 = vcmp.gt.f32.partialorder %v3768, 0.0
  %vm3883 = vcmp.gt.f32.partialorder %v3773, 0.0
  %vm3884 = vcmp.gt.f32.partialorder %v3776, 0.0
  %vm3885 = vcmp.gt.f32.partialorder %v3781, 0.0
  %vm3886 = vcmp.gt.f32.partialorder %v3784, 0.0
  %vm3887 = vcmp.gt.f32.partialorder %v3789, 0.0
  %vm3888 = vcmp.gt.f32.partialorder %v3792, 0.0
  %vm3889 = vcmp.gt.f32.partialorder %v3797, 0.0
  %vm3890 = vcmp.gt.f32.partialorder %v3800, 0.0
  %vm3891 = vcmp.gt.f32.partialorder %v3805, 0.0
  %vm3892 = vcmp.gt.f32.partialorder %v3808, 0.0
  %vm3893 = vcmp.gt.f32.partialorder %v3813, 0.0
  %vm3894 = vcmp.gt.f32.partialorder %v3816, 0.0
  %vm3895 = vcmp.gt.f32.partialorder %v3821, 0.0
  %vm3896 = vcmp.gt.f32.partialorder %v3824, 0.0
  %vm3897 = vcmp.gt.f32.partialorder %v3829, 0.0
  %vm3898 = vcmp.gt.f32.partialorder %v3832, 0.0
  %v3899 = vmul.f32 %v3581, 0.2
  %v3900 = vmul.f32 %v3584, 0.2
  %v3901 = vmul.f32 %v3589, 0.2
  %v3902 = vmul.f32 %v3592, 0.2
  %v3903 = vmul.f32 %v3597, 0.2
  %v3904 = vmul.f32 %v3600, 0.2
  %v3905 = vmul.f32 %v3605, 0.2
  %v3906 = vmul.f32 %v3608, 0.2
  %v3907 = vmul.f32 %v3613, 0.2
  %v3908 = vmul.f32 %v3616, 0.2
  %v3909 = vmul.f32 %v3621, 0.2
  %v3910 = vmul.f32 %v3624, 0.2
  %v3911 = vmul.f32 %v3629, 0.2
  %v3912 = vmul.f32 %v3632, 0.2
  %v3913 = vmul.f32 %v3637, 0.2
  %v3914 = vmul.f32 %v3640, 0.2
  %v3915 = vmul.f32 %v3645, 0.2
  %v3916 = vmul.f32 %v3648, 0.2
  %v3917 = vmul.f32 %v3653, 0.2
  %v3918 = vmul.f32 %v3656, 0.2
  %v3919 = vmul.f32 %v3661, 0.2
  %v3920 = vmul.f32 %v3664, 0.2
  %v3921 = vmul.f32 %v3669, 0.2
  %v3922 = vmul.f32 %v3672, 0.2
  %v3923 = vmul.f32 %v3677, 0.2
  %v3924 = vmul.f32 %v3680, 0.2
  %v3925 = vmul.f32 %v3685, 0.2
  %v3926 = vmul.f32 %v3688, 0.2
  %v3927 = vmul.f32 %v3693, 0.2
  %v3928 = vmul.f32 %v3696, 0.2
  %v3929 = vmul.f32 %v3701, 0.2
  %v3930 = vmul.f32 %v3704, 0.2
  %v3931 = vmul.f32 %v3709, 0.2
  %v3932 = vmul.f32 %v3712, 0.2
  %v3933 = vmul.f32 %v3717, 0.2
  %v3934 = vmul.f32 %v3720, 0.2
  %v3935 = vmul.f32 %v3725, 0.2
  %v3936 = vmul.f32 %v3728, 0.2
  %v3937 = vmul.f32 %v3733, 0.2
  %v3938 = vmul.f32 %v3736, 0.2
  %v3939 = vmul.f32 %v3741, 0.2
  %v3940 = vmul.f32 %v3744, 0.2
  %v3941 = vmul.f32 %v3749, 0.2
  %v3942 = vmul.f32 %v3752, 0.2
  %v3943 = vmul.f32 %v3757, 0.2
  %v3944 = vmul.f32 %v3760, 0.2
  %v3945 = vmul.f32 %v3765, 0.2
  %v3946 = vmul.f32 %v3768, 0.2
  %v3947 = vmul.f32 %v3773, 0.2
  %v3948 = vmul.f32 %v3776, 0.2
  %v3949 = vmul.f32 %v3781, 0.2
  %v3950 = vmul.f32 %v3784, 0.2
  %v3951 = vmul.f32 %v3789, 0.2
  %v3952 = vmul.f32 %v3792, 0.2
  %v3953 = vmul.f32 %v3797, 0.2
  %v3954 = vmul.f32 %v3800, 0.2
  %v3955 = vmul.f32 %v3805, 0.2
  %v3956 = vmul.f32 %v3808, 0.2
  %v3957 = vmul.f32 %v3813, 0.2
  %v3958 = vmul.f32 %v3816, 0.2
  %v3959 = vmul.f32 %v3821, 0.2
  %v3960 = vmul.f32 %v3824, 0.2
  %v3961 = vmul.f32 %v3829, 0.2
  %v3962 = vmul.f32 %v3832, 0.2
  %v3963 = vsel %vm3835, %v3581, %v3899
  %v3964 = vsel %vm3836, %v3584, %v3900
  %v3965 = vsel %vm3837, %v3589, %v3901
  %v3966 = vsel %vm3838, %v3592, %v3902
  %v3967 = vsel %vm3839, %v3597, %v3903
  %v3968 = vsel %vm3840, %v3600, %v3904
  %v3969 = vsel %vm3841, %v3605, %v3905
  %v3970 = vsel %vm3842, %v3608, %v3906
  %v3971 = vsel %vm3843, %v3613, %v3907
  %v3972 = vsel %vm3844, %v3616, %v3908
  %v3973 = vsel %vm3845, %v3621, %v3909
  %v3974 = vsel %vm3846, %v3624, %v3910
  %v3975 = vsel %vm3847, %v3629, %v3911
  %v3976 = vsel %vm3848, %v3632, %v3912
  %v3977 = vsel %vm3849, %v3637, %v3913
  %v3978 = vsel %vm3850, %v3640, %v3914
  %v3979 = vsel %vm3851, %v3645, %v3915
  %v3980 = vsel %vm3852, %v3648, %v3916
  %v3981 = vsel %vm3853, %v3653, %v3917
  %v3982 = vsel %vm3854, %v3656, %v3918
  %v3983 = vsel %vm3855, %v3661, %v3919
  %v3984 = vsel %vm3856, %v3664, %v3920
  %v3985 = vsel %vm3857, %v3669, %v3921
  %v3986 = vsel %vm3858, %v3672, %v3922
  %v3987 = vsel %vm3859, %v3677, %v3923
  %v3988 = vsel %vm3860, %v3680, %v3924
  %v3989 = vsel %vm3861, %v3685, %v3925
  %v3990 = vsel %vm3862, %v3688, %v3926
  %v3991 = vsel %vm3863, %v3693, %v3927
  %v3992 = vsel %vm3864, %v3696, %v3928
  %v3993 = vsel %vm3865, %v3701, %v3929
  %v3994 = vsel %vm3866, %v3704, %v3930
  %v3995 = vsel %vm3867, %v3709, %v3931
  %v3996 = vsel %vm3868, %v3712, %v3932
  %v3997 = vsel %vm3869, %v3717, %v3933
  %v3998 = vsel %vm3870, %v3720, %v3934
  %v3999 = vsel %vm3871, %v3725, %v3935
  %v4000 = vsel %vm3872, %v3728, %v3936
  %v4001 = vsel %vm3873, %v3733, %v3937
  %v4002 = vsel %vm3874, %v3736, %v3938
  %v4003 = vsel %vm3875, %v3741, %v3939
  %v4004 = vsel %vm3876, %v3744, %v3940
  %v4005 = vsel %vm3877, %v3749, %v3941
  %v4006 = vsel %vm3878, %v3752, %v3942
  %v4007 = vsel %vm3879, %v3757, %v3943
  %v4008 = vsel %vm3880, %v3760, %v3944
  %v4009 = vsel %vm3881, %v3765, %v3945
  %v4010 = vsel %vm3882, %v3768, %v3946
  %v4011 = vsel %vm3883, %v3773, %v3947
  %v4012 = vsel %vm3884, %v3776, %v3948
  %v4013 = vsel %vm3885, %v3781, %v3949
  %v4014 = vsel %vm3886, %v3784, %v3950
  %v4015 = vsel %vm3887, %v3789, %v3951
  %v4016 = vsel %vm3888, %v3792, %v3952
  %v4017 = vsel %vm3889, %v3797, %v3953
  %v4018 = vsel %vm3890, %v3800, %v3954
  %v4019 = vsel %vm3891, %v3805, %v3955
  %v4020 = vsel %vm3892, %v3808, %v3956
  %v4021 = vsel %vm3893, %v3813, %v3957
  %v4022 = vsel %vm3894, %v3816, %v3958
  %v4023 = vsel %vm3895, %v3821, %v3959
  %v4024 = vsel %vm3896, %v3824, %v3960
  %v4025 = vsel %vm3897, %v3829, %v3961
  %v4026 = vsel %vm3898, %v3832, %v3962
  %v4027 = vpack.c.bf16 %v3964, %v3963
  %v4028 = vpack.c.bf16 %v3966, %v3965
  %v4029 = vpack.c.bf16 %v3968, %v3967
  %v4030 = vpack.c.bf16 %v3970, %v3969
  %v4031 = vpack.c.bf16 %v3972, %v3971
  %v4032 = vpack.c.bf16 %v3974, %v3973
  %v4033 = vpack.c.bf16 %v3976, %v3975
  %v4034 = vpack.c.bf16 %v3978, %v3977
  %v4035 = vpack.c.bf16 %v3980, %v3979
  %v4036 = vpack.c.bf16 %v3982, %v3981
  %v4037 = vpack.c.bf16 %v3984, %v3983
  %v4038 = vpack.c.bf16 %v3986, %v3985
  %v4039 = vpack.c.bf16 %v3988, %v3987
  %v4040 = vpack.c.bf16 %v3990, %v3989
  %v4041 = vpack.c.bf16 %v3992, %v3991
  %v4042 = vpack.c.bf16 %v3994, %v3993
  %v4043 = vpack.c.bf16 %v3996, %v3995
  %v4044 = vpack.c.bf16 %v3998, %v3997
  %v4045 = vpack.c.bf16 %v4000, %v3999
  %v4046 = vpack.c.bf16 %v4002, %v4001
  %v4047 = vpack.c.bf16 %v4004, %v4003
  %v4048 = vpack.c.bf16 %v4006, %v4005
  %v4049 = vpack.c.bf16 %v4008, %v4007
  %v4050 = vpack.c.bf16 %v4010, %v4009
  %v4051 = vpack.c.bf16 %v4012, %v4011
  %v4052 = vpack.c.bf16 %v4014, %v4013
  %v4053 = vpack.c.bf16 %v4016, %v4015
  %v4054 = vpack.c.bf16 %v4018, %v4017
  %v4055 = vpack.c.bf16 %v4020, %v4019
  %v4056 = vpack.c.bf16 %v4022, %v4021
  %v4057 = vpack.c.bf16 %v4024, %v4023
  %v4058 = vpack.c.bf16 %v4026, %v4025
  %v4091 = vunpack.c.l.b16 %v4027
  %v4092 = vunpack.c.h.b16 %v4027
  %v4093 = vunpack.c.l.b16 %v4028
  %v4094 = vunpack.c.h.b16 %v4028
  %v4095 = vunpack.c.l.b16 %v4029
  %v4096 = vunpack.c.h.b16 %v4029
  %v4097 = vunpack.c.l.b16 %v4030
  %v4098 = vunpack.c.h.b16 %v4030
  %v4099 = vunpack.c.l.b16 %v4031
  %v4100 = vunpack.c.h.b16 %v4031
  %v4101 = vunpack.c.l.b16 %v4032
  %v4102 = vunpack.c.h.b16 %v4032
  %v4103 = vunpack.c.l.b16 %v4033
  %v4104 = vunpack.c.h.b16 %v4033
  %v4105 = vunpack.c.l.b16 %v4034
  %v4106 = vunpack.c.h.b16 %v4034
  %v4107 = vunpack.c.l.b16 %v4035
  %v4108 = vunpack.c.h.b16 %v4035
  %v4109 = vunpack.c.l.b16 %v4036
  %v4110 = vunpack.c.h.b16 %v4036
  %v4111 = vunpack.c.l.b16 %v4037
  %v4112 = vunpack.c.h.b16 %v4037
  %v4113 = vunpack.c.l.b16 %v4038
  %v4114 = vunpack.c.h.b16 %v4038
  %v4115 = vunpack.c.l.b16 %v4039
  %v4116 = vunpack.c.h.b16 %v4039
  %v4117 = vunpack.c.l.b16 %v4040
  %v4118 = vunpack.c.h.b16 %v4040
  %v4119 = vunpack.c.l.b16 %v4041
  %v4120 = vunpack.c.h.b16 %v4041
  %v4121 = vunpack.c.l.b16 %v4042
  %v4122 = vunpack.c.h.b16 %v4042
  %v4123 = vunpack.c.l.b16 %v4043
  %v4124 = vunpack.c.h.b16 %v4043
  %v4125 = vunpack.c.l.b16 %v4044
  %v4126 = vunpack.c.h.b16 %v4044
  %v4127 = vunpack.c.l.b16 %v4045
  %v4128 = vunpack.c.h.b16 %v4045
  %v4129 = vunpack.c.l.b16 %v4046
  %v4130 = vunpack.c.h.b16 %v4046
  %v4131 = vunpack.c.l.b16 %v4047
  %v4132 = vunpack.c.h.b16 %v4047
  %v4133 = vunpack.c.l.b16 %v4048
  %v4134 = vunpack.c.h.b16 %v4048
  %v4135 = vunpack.c.l.b16 %v4049
  %v4136 = vunpack.c.h.b16 %v4049
  %v4137 = vunpack.c.l.b16 %v4050
  %v4138 = vunpack.c.h.b16 %v4050
  %v4139 = vunpack.c.l.b16 %v4051
  %v4140 = vunpack.c.h.b16 %v4051
  %v4141 = vunpack.c.l.b16 %v4052
  %v4142 = vunpack.c.h.b16 %v4052
  %v4143 = vunpack.c.l.b16 %v4053
  %v4144 = vunpack.c.h.b16 %v4053
  %v4145 = vunpack.c.l.b16 %v4054
  %v4146 = vunpack.c.h.b16 %v4054
  %v4147 = vunpack.c.l.b16 %v4055
  %v4148 = vunpack.c.h.b16 %v4055
  %v4149 = vunpack.c.l.b16 %v4056
  %v4150 = vunpack.c.h.b16 %v4056
  %v4151 = vunpack.c.l.b16 %v4057
  %v4152 = vunpack.c.h.b16 %v4057
  %v4153 = vunpack.c.l.b16 %v4058
  %v4154 = vunpack.c.h.b16 %v4058
  %v4155 = vpack.c.b16 %v4091, %v4091
  %v4156 = vpack.c.b16 %v4092, %v4092
  %v4157 = vpack.c.b16 %v4093, %v4093
  %v4158 = vpack.c.b16 %v4094, %v4094
  %v4159 = vpack.c.b16 %v4095, %v4095
  %v4160 = vpack.c.b16 %v4096, %v4096
  %v4161 = vpack.c.b16 %v4097, %v4097
  %v4162 = vpack.c.b16 %v4098, %v4098
  %v4163 = vpack.c.b16 %v4099, %v4099
  %v4164 = vpack.c.b16 %v4100, %v4100
  %v4165 = vpack.c.b16 %v4101, %v4101
  %v4166 = vpack.c.b16 %v4102, %v4102
  %v4167 = vpack.c.b16 %v4103, %v4103
  %v4168 = vpack.c.b16 %v4104, %v4104
  %v4169 = vpack.c.b16 %v4105, %v4105
  %v4170 = vpack.c.b16 %v4106, %v4106
  %v4171 = vpack.c.b16 %v4107, %v4107
  %v4172 = vpack.c.b16 %v4108, %v4108
  %v4173 = vpack.c.b16 %v4109, %v4109
  %v4174 = vpack.c.b16 %v4110, %v4110
  %v4175 = vpack.c.b16 %v4111, %v4111
  %v4176 = vpack.c.b16 %v4112, %v4112
  %v4177 = vpack.c.b16 %v4113, %v4113
  %v4178 = vpack.c.b16 %v4114, %v4114
  %v4179 = vpack.c.b16 %v4115, %v4115
  %v4180 = vpack.c.b16 %v4116, %v4116
  %v4181 = vpack.c.b16 %v4117, %v4117
  %v4182 = vpack.c.b16 %v4118, %v4118
  %v4183 = vpack.c.b16 %v4119, %v4119
  %v4184 = vpack.c.b16 %v4120, %v4120
  %v4185 = vpack.c.b16 %v4121, %v4121
  %v4186 = vpack.c.b16 %v4122, %v4122
  %v4187 = vpack.c.b16 %v4123, %v4123
  %v4188 = vpack.c.b16 %v4124, %v4124
  %v4189 = vpack.c.b16 %v4125, %v4125
  %v4190 = vpack.c.b16 %v4126, %v4126
  %v4191 = vpack.c.b16 %v4127, %v4127
  %v4192 = vpack.c.b16 %v4128, %v4128
  %v4193 = vpack.c.b16 %v4129, %v4129
  %v4194 = vpack.c.b16 %v4130, %v4130
  %v4195 = vpack.c.b16 %v4131, %v4131
  %v4196 = vpack.c.b16 %v4132, %v4132
  %v4197 = vpack.c.b16 %v4133, %v4133
  %v4198 = vpack.c.b16 %v4134, %v4134
  %v4199 = vpack.c.b16 %v4135, %v4135
  %v4200 = vpack.c.b16 %v4136, %v4136
  %v4201 = vpack.c.b16 %v4137, %v4137
  %v4202 = vpack.c.b16 %v4138, %v4138
  %v4203 = vpack.c.b16 %v4139, %v4139
  %v4204 = vpack.c.b16 %v4140, %v4140
  %v4205 = vpack.c.b16 %v4141, %v4141
  %v4206 = vpack.c.b16 %v4142, %v4142
  %v4207 = vpack.c.b16 %v4143, %v4143
  %v4208 = vpack.c.b16 %v4144, %v4144
  %v4209 = vpack.c.b16 %v4145, %v4145
  %v4210 = vpack.c.b16 %v4146, %v4146
  %v4211 = vpack.c.b16 %v4147, %v4147
  %v4212 = vpack.c.b16 %v4148, %v4148
  %v4213 = vpack.c.b16 %v4149, %v4149
  %v4214 = vpack.c.b16 %v4150, %v4150
  %v4215 = vpack.c.b16 %v4151, %v4151
  %v4216 = vpack.c.b16 %v4152, %v4152
  %v4217 = vpack.c.b16 %v4153, %v4153
  %v4218 = vpack.c.b16 %v4154, %v4154
  %4283 = vst [vmem:[%s3] sm:$0xf] %v4155
  %4284 = vst [vmem:[%s3 + $0x4] sm:$0xf] %v4156
  %4285 = vst [vmem:[%s3 + $0x8] sm:$0xf] %v4157
  %4286 = vst [vmem:[%s3 + $0xc] sm:$0xf] %v4158
  %4287 = vst [vmem:[%s3 + $0x10] sm:$0xf] %v4159
  %4288 = vst [vmem:[%s3 + $0x14] sm:$0xf] %v4160
  %4289 = vst [vmem:[%s3 + $0x18] sm:$0xf] %v4161
  %4290 = vst [vmem:[%s3 + $0x1c] sm:$0xf] %v4162
  %4291 = vst [vmem:[%s3 + $0x20] sm:$0xf] %v4163
  %4292 = vst [vmem:[%s3 + $0x24] sm:$0xf] %v4164
  %4293 = vst [vmem:[%s3 + $0x28] sm:$0xf] %v4165
  %4294 = vst [vmem:[%s3 + $0x2c] sm:$0xf] %v4166
  %4295 = vst [vmem:[%s3 + $0x30] sm:$0xf] %v4167
  %4296 = vst [vmem:[%s3 + $0x34] sm:$0xf] %v4168
  %4297 = vst [vmem:[%s3 + $0x38] sm:$0xf] %v4169
  %4298 = vst [vmem:[%s3 + $0x3c] sm:$0xf] %v4170
  %4299 = vst [vmem:[%s3 + $0x40] sm:$0xf] %v4171
  %4300 = vst [vmem:[%s3 + $0x44] sm:$0xf] %v4172
  %4301 = vst [vmem:[%s3 + $0x48] sm:$0xf] %v4173
  %4302 = vst [vmem:[%s3 + $0x4c] sm:$0xf] %v4174
  %4303 = vst [vmem:[%s3 + $0x50] sm:$0xf] %v4175
  %4304 = vst [vmem:[%s3 + $0x54] sm:$0xf] %v4176
  %4305 = vst [vmem:[%s3 + $0x58] sm:$0xf] %v4177
  %4306 = vst [vmem:[%s3 + $0x5c] sm:$0xf] %v4178
  %4307 = vst [vmem:[%s3 + $0x60] sm:$0xf] %v4179
  %4308 = vst [vmem:[%s3 + $0x64] sm:$0xf] %v4180
  %4309 = vst [vmem:[%s3 + $0x68] sm:$0xf] %v4181
  %4310 = vst [vmem:[%s3 + $0x6c] sm:$0xf] %v4182
  %4311 = vst [vmem:[%s3 + $0x70] sm:$0xf] %v4183
  %4312 = vst [vmem:[%s3 + $0x74] sm:$0xf] %v4184
  %4313 = vst [vmem:[%s3 + $0x78] sm:$0xf] %v4185
  %4314 = vst [vmem:[%s3 + $0x7c] sm:$0xf] %v4186
  %4315 = vst [vmem:[%s3 + $0x80] sm:$0xf] %v4187
  %4316 = vst [vmem:[%s3 + $0x84] sm:$0xf] %v4188
  %4317 = vst [vmem:[%s3 + $0x88] sm:$0xf] %v4189
  %4318 = vst [vmem:[%s3 + $0x8c] sm:$0xf] %v4190
  %4319 = vst [vmem:[%s3 + $0x90] sm:$0xf] %v4191
  %4320 = vst [vmem:[%s3 + $0x94] sm:$0xf] %v4192
  %4321 = vst [vmem:[%s3 + $0x98] sm:$0xf] %v4193
  %4322 = vst [vmem:[%s3 + $0x9c] sm:$0xf] %v4194
  %4323 = vst [vmem:[%s3 + $0xa0] sm:$0xf] %v4195
  %4324 = vst [vmem:[%s3 + $0xa4] sm:$0xf] %v4196
  %4325 = vst [vmem:[%s3 + $0xa8] sm:$0xf] %v4197
  %4326 = vst [vmem:[%s3 + $0xac] sm:$0xf] %v4198
  %4327 = vst [vmem:[%s3 + $0xb0] sm:$0xf] %v4199
  %4328 = vst [vmem:[%s3 + $0xb4] sm:$0xf] %v4200
  %4329 = vst [vmem:[%s3 + $0xb8] sm:$0xf] %v4201
  %4330 = vst [vmem:[%s3 + $0xbc] sm:$0xf] %v4202
  %4331 = vst [vmem:[%s3 + $0xc0] sm:$0xf] %v4203
  %4332 = vst [vmem:[%s3 + $0xc4] sm:$0xf] %v4204
  %4333 = vst [vmem:[%s3 + $0xc8] sm:$0xf] %v4205
  %4334 = vst [vmem:[%s3 + $0xcc] sm:$0xf] %v4206
  %4335 = vst [vmem:[%s3 + $0xd0] sm:$0xf] %v4207
  %4336 = vst [vmem:[%s3 + $0xd4] sm:$0xf] %v4208
  %4337 = vst [vmem:[%s3 + $0xd8] sm:$0xf] %v4209
  %4338 = vst [vmem:[%s3 + $0xdc] sm:$0xf] %v4210
  %4339 = vst [vmem:[%s3 + $0xe0] sm:$0xf] %v4211
  %4340 = vst [vmem:[%s3 + $0xe4] sm:$0xf] %v4212
  %4341 = vst [vmem:[%s3 + $0xe8] sm:$0xf] %v4213
  %4342 = vst [vmem:[%s3 + $0xec] sm:$0xf] %v4214
  %4343 = vst [vmem:[%s3 + $0xf0] sm:$0xf] %v4215
  %4344 = vst [vmem:[%s3 + $0xf4] sm:$0xf] %v4216
  %4345 = vst [vmem:[%s3 + $0xf8] sm:$0xf] %v4217
  %4346 = vst [vmem:[%s3 + $0xfc] sm:$0xf] %v4218
  // Predicated region
  $region14: #{discriminator_forward.5} parent=0 // pred_check
    _
  $region15: #{discriminator_forward.5} parent=0 // pred_check_branch
    %4348 = sbr.rel (0) target = $region17
  $region16: #{discriminator_forward.5} parent=0 // pred_region
    _
  $region17: #{discriminator_forward.5} parent=0 // pred_fallthru
    _
  // Predicated region
  $region18: #{discriminator_forward.5} parent=0 // pred_check
    _
  $region19: #{discriminator_forward.5} parent=0 // pred_check_branch
    %4350 = sbr.rel (0) target = $region21
  $region20: #{discriminator_forward.5} parent=0 // pred_region
    _
  $region21: #{discriminator_forward.5} parent=0 // pred_fallthru
    _

// kernel: discriminator_forward.7
$region0: #{discriminator_forward.7}
  #allocation0 [shape = 'u32[]', space=smem, size = 0x4, offset = 0x4, fixed_abs, tag = 'smem constant byte address 0x4 - core index']
  #allocation1 [shape = 'u32[144,128]{1,0:T(1,128)}', space=vmem, size = 0x12000, scoped, tag = 'internal scratch']
  #allocation2 [shape = 'f32[16,256]{1,0:T(8,128)}', space=vmem, size = 0x4000, scoped, tag = 'scratch operand']
  %s0 = inlined_call_operand.vmem [shape: bf16[16,8192], index: 0, kind: input, shape index: {}]
  %s1 = inlined_call_operand.vmem [shape: bf16[8192,256], index: 1, kind: input, shape index: {}]
  %s2 = inlined_call_operand.vmem [shape: f32[1,256], index: 2, kind: input, shape index: {}]
  %s3 = inlined_call_operand.vmem [shape: bf16[256,128], index: 3, kind: input, shape index: {}]
  %s4 = inlined_call_operand.vmem [shape: f32[1,128], index: 4, kind: input, shape index: {}]
  %s5 = inlined_call_operand.vmem [shape: f32[16,128], index: 5, kind: output, shape index: {}]
  %s6 = sld [smem:[#allocation0]]
  $region84: #{discriminator_forward.7} parent=0
    _
  %s8 = ssub.s32 1, %s6
  %s9 = scalar_select 0, %s8, %s6
  $region1: #{discriminator_forward.7} parent=0
    #allocation3 [shape = 'u8[262144]{0}', space=vmem, size = 0x40000, scoped, tag = 'input window, operand 0']
    loop: start=0, step=1, limit=4
    $region2: #{discriminator_forward.7} parent=1 // loop_pre_header
      _
    $region3: #{discriminator_forward.7} parent=1 // loop_header
      %s11 = sphi 0, %s15
      %p12 = scmp.ge.s32.totalorder %s11, 4
      %s21 = sphi 0, %s23
      %s24 = sphi 0, %s21
      %s25 = sphi 0, %s24
      %s41 = sphi 0, %s25
      %s47 = sphi 0, %s49
      %s50 = sphi 0, %s47
      %s51 = sphi 0, %s50
      %s67 = sphi 0, %s51
      %s71 = sphi 0, %s71
      %s73 = sphi 0, %s71
      %s74 = sphi 0, %s73
      %s88 = sphi 0, %s74
      %s92 = sphi 0, %s92
      %s94 = sphi 0, %s92
      %s95 = sphi 0, %s94
      %s109 = sphi 0, %s95
      %s113 = sphi 0, %s113
      %s115 = sphi 0, %s113
      %s116 = sphi 0, %s115
      %s130 = sphi 0, %s116
      %s134 = sphi 0, %s134
      %s136 = sphi 0, %s134
      %s137 = sphi 0, %s136
      %s151 = sphi 0, %s137
    $region4: #{discriminator_forward.7} parent=1 // loop_header_branch
      %14 = sbr.rel (%p12) target = $region8
    $region5: #{discriminator_forward.7} parent=1 // loop_body
      %s16 = ssub.s32 %s11, 1
      %s17 = ssub.s32 %s11, 2
      %s18 = sadd.s32 %s11, 1
      %s19 = ssub.s32 %s11, %s18
      %p20 = scmp.eq.s32.totalorder %s19, 0
      %s22 = sadd.s32 %s21, 1
      %s23 = scalar_select %p20, %s21, %s22
      %p26 = pneg %p20
      %p27 = scmp.eq.s32.totalorder %s11, 1
      %p28 = por %p26, %p27
      %p29 = scmp.ne.s32.totalorder %s21, %s24
      %p30 = scmp.eq.s32.totalorder %s11, 0
      %p31 = por %p29, %p30
      %p32 = scmp.ne.s32.totalorder %s21, %s24
      %p33 = scmp.eq.s32.totalorder %s16, 1
      %p34 = por %p32, %p33
      %p35 = scmp.ne.s32.totalorder %s24, %s25
      %p36 = scmp.eq.s32.totalorder %s16, 0
      %p37 = por %p35, %p36
      %p38 = scmp.ne.s32.totalorder %s24, %s25
      %p39 = scmp.eq.s32.totalorder %s17, 1
      %p40 = por %p38, %p39
      %p42 = scmp.ne.s32.totalorder %s25, %s41
      %p43 = scmp.eq.s32.totalorder %s17, 0
      %p44 = por %p42, %p43
      %s45 = ssub.s32 %s11, %s18
      %p46 = scmp.eq.s32.totalorder %s45, 0
      %s48 = sadd.s32 %s47, 1
      %s49 = scalar_select %p46, %s47, %s48
      %p52 = pneg %p46
      %p53 = scmp.eq.s32.totalorder %s11, 1
      %p54 = por %p52, %p53
      %p55 = scmp.ne.s32.totalorder %s47, %s50
      %p56 = scmp.eq.s32.totalorder %s11, 0
      %p57 = por %p55, %p56
      %p58 = scmp.ne.s32.totalorder %s47, %s50
      %p59 = scmp.eq.s32.totalorder %s16, 1
      %p60 = por %p58, %p59
      %p61 = scmp.ne.s32.totalorder %s50, %s51
      %p62 = scmp.eq.s32.totalorder %s16, 0
      %p63 = por %p61, %p62
      %p64 = scmp.ne.s32.totalorder %s50, %s51
      %p65 = scmp.eq.s32.totalorder %s17, 1
      %p66 = por %p64, %p65
      %p68 = scmp.ne.s32.totalorder %s51, %s67
      %p69 = scmp.eq.s32.totalorder %s17, 0
      %p70 = por %p68, %p69
      %s72 = sadd.s32 %s71, 1
      %p75 = scmp.eq.s32.totalorder %s11, 1
      %p76 = scmp.ne.s32.totalorder %s71, %s73
      %p77 = scmp.eq.s32.totalorder %s11, 0
      %p78 = por %p76, %p77
      %p79 = scmp.ne.s32.totalorder %s71, %s73
      %p80 = scmp.eq.s32.totalorder %s16, 1
      %p81 = por %p79, %p80
      %p82 = scmp.ne.s32.totalorder %s73, %s74
      %p83 = scmp.eq.s32.totalorder %s16, 0
      %p84 = por %p82, %p83
      %p85 = scmp.ne.s32.totalorder %s73, %s74
      %p86 = scmp.eq.s32.totalorder %s17, 1
      %p87 = por %p85, %p86
      %p89 = scmp.ne.s32.totalorder %s74, %s88
      %p90 = scmp.eq.s32.totalorder %s17, 0
      %p91 = por %p89, %p90
      %s93 = sadd.s32 %s92, 1
      %p96 = scmp.eq.s32.totalorder %s11, 1
      %p97 = scmp.ne.s32.totalorder %s92, %s94
      %p98 = scmp.eq.s32.totalorder %s11, 0
      %p99 = por %p97, %p98
      %p100 = scmp.ne.s32.totalorder %s92, %s94
      %p101 = scmp.eq.s32.totalorder %s16, 1
      %p102 = por %p100, %p101
      %p103 = scmp.ne.s32.totalorder %s94, %s95
      %p104 = scmp.eq.s32.totalorder %s16, 0
      %p105 = por %p103, %p104
      %p106 = scmp.ne.s32.totalorder %s94, %s95
      %p107 = scmp.eq.s32.totalorder %s17, 1
      %p108 = por %p106, %p107
      %p110 = scmp.ne.s32.totalorder %s95, %s109
      %p111 = scmp.eq.s32.totalorder %s17, 0
      %p112 = por %p110, %p111
      %s114 = sadd.s32 %s113, 1
      %p117 = scmp.eq.s32.totalorder %s11, 1
      %p118 = scmp.ne.s32.totalorder %s113, %s115
      %p119 = scmp.eq.s32.totalorder %s11, 0
      %p120 = por %p118, %p119
      %p121 = scmp.ne.s32.totalorder %s113, %s115
      %p122 = scmp.eq.s32.totalorder %s16, 1
      %p123 = por %p121, %p122
      %p124 = scmp.ne.s32.totalorder %s115, %s116
      %p125 = scmp.eq.s32.totalorder %s16, 0
      %p126 = por %p124, %p125
      %p127 = scmp.ne.s32.totalorder %s115, %s116
      %p128 = scmp.eq.s32.totalorder %s17, 1
      %p129 = por %p127, %p128
      %p131 = scmp.ne.s32.totalorder %s116, %s130
      %p132 = scmp.eq.s32.totalorder %s17, 0
      %p133 = por %p131, %p132
      %s135 = sadd.s32 %s134, 1
      %p138 = scmp.eq.s32.totalorder %s11, 1
      %p139 = scmp.ne.s32.totalorder %s134, %s136
      %p140 = scmp.eq.s32.totalorder %s11, 0
      %p141 = por %p139, %p140
      %p142 = scmp.ne.s32.totalorder %s134, %s136
      %p143 = scmp.eq.s32.totalorder %s16, 1
      %p144 = por %p142, %p143
      %p145 = scmp.ne.s32.totalorder %s136, %s137
      %p146 = scmp.eq.s32.totalorder %s16, 0
      %p147 = por %p145, %p146
      %p148 = scmp.ne.s32.totalorder %s136, %s137
      %p149 = scmp.eq.s32.totalorder %s17, 1
      %p150 = por %p148, %p149
      %p152 = scmp.ne.s32.totalorder %s137, %s151
      %p153 = scmp.eq.s32.totalorder %s17, 0
      %p154 = por %p152, %p153
      %p155 = scmp.le.s32.totalorder 1, %s11
      %p156 = scmp.lt.s32.totalorder %s11, 3
      %p157 = pnand %p155, %p156
      %p158 = pneg %p157
      // Predicated region
      $region9: #{discriminator_forward.7} parent=5 // pred_check
        _
      $region10: #{discriminator_forward.7} parent=5 // pred_check_branch
        %160 = sbr.rel (%p157) target = $region12
      $region11: #{discriminator_forward.7} parent=5 // pred_region
        %s161 = ssub.s32 %s11, 1
        // Predicated region
        $region13: #{discriminator_forward.7} parent=11 // pred_check
          %p162 = pneg %p84
        $region14: #{discriminator_forward.7} parent=11 // pred_check_branch
          %164 = sbr.rel (%p162) target = $region16
        $region15: #{discriminator_forward.7} parent=11 // pred_region
          _
        $region16: #{discriminator_forward.7} parent=11 // pred_fallthru
          _
        // Predicated region
        $region17: #{discriminator_forward.7} parent=11 // pred_check
          %p165 = pneg %p105
        $region18: #{discriminator_forward.7} parent=11 // pred_check_branch
          %167 = sbr.rel (%p165) target = $region20
        $region19: #{discriminator_forward.7} parent=11 // pred_region
          _
        $region20: #{discriminator_forward.7} parent=11 // pred_fallthru
          _
        // Predicated region
        $region21: #{discriminator_forward.7} parent=11 // pred_check
          %p168 = pneg %p126
        $region22: #{discriminator_forward.7} parent=11 // pred_check_branch
          %170 = sbr.rel (%p168) target = $region24
        $region23: #{discriminator_forward.7} parent=11 // pred_region
          _
        $region24: #{discriminator_forward.7} parent=11 // pred_fallthru
          _
      $region12: #{discriminator_forward.7} parent=5 // pred_fallthru
        _
      %p171 = scmp.lt.s32.totalorder %s11, 2
      // Predicated region
      $region25: #{discriminator_forward.7} parent=5 // pred_check
        %p172 = pneg %p171
      $region26: #{discriminator_forward.7} parent=5 // pred_check_branch
        %174 = sbr.rel (%p172) target = $region28
      $region27: #{discriminator_forward.7} parent=5 // pred_region
        // Predicated region
        $region29: #{discriminator_forward.7} parent=27 // pred_check
          %p175 = pneg %p31
        $region30: #{discriminator_forward.7} parent=27 // pred_check_branch
          %177 = sbr.rel (%p175) target = $region32
        $region31: #{discriminator_forward.7} parent=27 // pred_region
          %s178 = sand.u32 %s21, 1
          %s179 = sand.u32 %s21, 1
          %s180 = smul.addr %s179, 256
          %s181 = scalar_lea.vmem [#allocation3], %s180
          %s182 = smul.u32 32, %s11
          %s183 = smul.addr %s182, 4
          %s184 = scalar_lea.vmem %s0, %s183
          // Predicated region
          $region33: #{discriminator_forward.7} parent=31 // pred_check
            _
          $region34: #{discriminator_forward.7} parent=31 // pred_check_branch
            %186 = sbr.rel (0) target = $region36
          $region35: #{discriminator_forward.7} parent=31 // pred_region
            // Predicated region
            $region37: #{discriminator_forward.7} parent=35 // pred_check
              _
            $region38: #{discriminator_forward.7} parent=35 // pred_check_branch
              %188 = sbr.rel (0) target = $region40
            $region39: #{discriminator_forward.7} parent=35 // pred_region
              loop: start=0, step=1, limit=1
              $region41: #{discriminator_forward.7} parent=39 // loop_pre_header
                _
              $region42: #{discriminator_forward.7} parent=39 // loop_header
                %s190 = sphi 0, %s194
                %p191 = scmp.ge.s32.totalorder %s190, 1
                %s195 = sphi %s184, %s184
                %s196 = sphi %s181, %s181
              $region43: #{discriminator_forward.7} parent=39 // loop_header_branch
                %193 = sbr.rel (%p191) target = $region47
              $region44: #{discriminator_forward.7} parent=39 // loop_body
                %v197 = vld [vmem:[%s195] sm:$0xff]
                %198 = vst [vmem:[%s196] sm:$0xff] %v197
                %v199 = vld [vmem:[%s195 + $0x8] sm:$0xff]
                %200 = vst [vmem:[%s196 + $0x8] sm:$0xff] %v199
                %v201 = vld [vmem:[%s195 + $0x10] sm:$0xff]
                %202 = vst [vmem:[%s196 + $0x10] sm:$0xff] %v201
                %v203 = vld [vmem:[%s195 + $0x18] sm:$0xff]
                %204 = vst [vmem:[%s196 + $0x18] sm:$0xff] %v203
                %v205 = vld [vmem:[%s195 + $0x20] sm:$0xff]
                %206 = vst [vmem:[%s196 + $0x20] sm:$0xff] %v205
                %v207 = vld [vmem:[%s195 + $0x28] sm:$0xff]
                %208 = vst [vmem:[%s196 + $0x28] sm:$0xff] %v207
                %v209 = vld [vmem:[%s195 + $0x30] sm:$0xff]
                %210 = vst [vmem:[%s196 + $0x30] sm:$0xff] %v209
                %v211 = vld [vmem:[%s195 + $0x38] sm:$0xff]
                %212 = vst [vmem:[%s196 + $0x38] sm:$0xff] %v211
                %v213 = vld [vmem:[%s195 + $0x40] sm:$0xff]
                %214 = vst [vmem:[%s196 + $0x40] sm:$0xff] %v213
                %v215 = vld [vmem:[%s195 + $0x48] sm:$0xff]
                %216 = vst [vmem:[%s196 + $0x48] sm:$0xff] %v215
                %v217 = vld [vmem:[%s195 + $0x50] sm:$0xff]
                %218 = vst [vmem:[%s196 + $0x50] sm:$0xff] %v217
                %v219 = vld [vmem:[%s195 + $0x58] sm:$0xff]
                %220 = vst [vmem:[%s196 + $0x58] sm:$0xff] %v219
                %v221 = vld [vmem:[%s195 + $0x60] sm:$0xff]
                %222 = vst [vmem:[%s196 + $0x60] sm:$0xff] %v221
                %v223 = vld [vmem:[%s195 + $0x68] sm:$0xff]
                %224 = vst [vmem:[%s196 + $0x68] sm:$0xff] %v223
                %v225 = vld [vmem:[%s195 + $0x70] sm:$0xff]
                %226 = vst [vmem:[%s196 + $0x70] sm:$0xff] %v225
                %v227 = vld [vmem:[%s195 + $0x78] sm:$0xff]
                %228 = vst [vmem:[%s196 + $0x78] sm:$0xff] %v227
                %v229 = vld [vmem:[%s195 + $0x100] sm:$0xff]
                %230 = vst [vmem:[%s196 + $0x80] sm:$0xff] %v229
                %v231 = vld [vmem:[%s195 + $0x108] sm:$0xff]
                %232 = vst [vmem:[%s196 + $0x88] sm:$0xff] %v231
                %v233 = vld [vmem:[%s195 + $0x110] sm:$0xff]
                %234 = vst [vmem:[%s196 + $0x90] sm:$0xff] %v233
                %v235 = vld [vmem:[%s195 + $0x118] sm:$0xff]
                %236 = vst [vmem:[%s196 + $0x98] sm:$0xff] %v235
                %v237 = vld [vmem:[%s195 + $0x120] sm:$0xff]
                %238 = vst [vmem:[%s196 + $0xa0] sm:$0xff] %v237
                %v239 = vld [vmem:[%s195 + $0x128] sm:$0xff]
                %240 = vst [vmem:[%s196 + $0xa8] sm:$0xff] %v239
                %v241 = vld [vmem:[%s195 + $0x130] sm:$0xff]
                %242 = vst [vmem:[%s196 + $0xb0] sm:$0xff] %v241
                %v243 = vld [vmem:[%s195 + $0x138] sm:$0xff]
                %244 = vst [vmem:[%s196 + $0xb8] sm:$0xff] %v243
                %v245 = vld [vmem:[%s195 + $0x140] sm:$0xff]
                %246 = vst [vmem:[%s196 + $0xc0] sm:$0xff] %v245
                %v247 = vld [vmem:[%s195 + $0x148] sm:$0xff]
                %248 = vst [vmem:[%s196 + $0xc8] sm:$0xff] %v247
                %v249 = vld [vmem:[%s195 + $0x150] sm:$0xff]
                %250 = vst [vmem:[%s196 + $0xd0] sm:$0xff] %v249
                %v251 = vld [vmem:[%s195 + $0x158] sm:$0xff]
                %252 = vst [vmem:[%s196 + $0xd8] sm:$0xff] %v251
                %v253 = vld [vmem:[%s195 + $0x160] sm:$0xff]
                %254 = vst [vmem:[%s196 + $0xe0] sm:$0xff] %v253
                %v255 = vld [vmem:[%s195 + $0x168] sm:$0xff]
                %256 = vst [vmem:[%s196 + $0xe8] sm:$0xff] %v255
                %v257 = vld [vmem:[%s195 + $0x170] sm:$0xff]
                %258 = vst [vmem:[%s196 + $0xf0] sm:$0xff] %v257
                %v259 = vld [vmem:[%s195 + $0x178] sm:$0xff]
                %260 = vst [vmem:[%s196 + $0xf8] sm:$0xff] %v259
              $region45: #{discriminator_forward.7} parent=39 // loop_footer
                %s194 = sadd.s32 1, %s190
              $region46: #{discriminator_forward.7} parent=39 // loop_footer_branch
                %189 = sbr.rel target = $region42
              $region47: #{discriminator_forward.7} parent=39 // loop_exit
                _
            $region40: #{discriminator_forward.7} parent=35 // pred_fallthru
              _
            // Predicated region
            $region48: #{discriminator_forward.7} parent=35 // pred_check
              _
            $region49: #{discriminator_forward.7} parent=35 // pred_check_branch
              %262 = sbr.rel target = $region51
            $region50: #{discriminator_forward.7} parent=35 // pred_region
              _
            $region51: #{discriminator_forward.7} parent=35 // pred_fallthru
              _
          $region36: #{discriminator_forward.7} parent=31 // pred_fallthru
            _
          %263 = vnop
        $region32: #{discriminator_forward.7} parent=27 // pred_fallthru
          _
        // Predicated region
        $region52: #{discriminator_forward.7} parent=27 // pred_check
          %p264 = pneg %p57
        $region53: #{discriminator_forward.7} parent=27 // pred_check_branch
          %266 = sbr.rel (%p264) target = $region55
        $region54: #{discriminator_forward.7} parent=27 // pred_region
          %s267 = smul.u32 512, %s11
          %p268 = scmp.lt.s32.totalorder %s267, 1023
          %s269 = scalar_select %p268, %s267, 1023
          %s270 = smul.addr %s269, 2
          %s271 = smul.addr %s270, 4
          %s272 = scalar_lea.vmem %s1, %s271
          %s273 = smul.u32 512, %s11
        $region55: #{discriminator_forward.7} parent=27 // pred_fallthru
          _
      $region28: #{discriminator_forward.7} parent=5 // pred_fallthru
        _
      %p274 = scmp.le.s32.totalorder 1, %s11
      %p275 = scmp.lt.s32.totalorder %s11, 3
      %p276 = pnand %p274, %p275
      %p277 = pneg %p276
      // Predicated region
      $region56: #{discriminator_forward.7} parent=5 // pred_check
        _
      $region57: #{discriminator_forward.7} parent=5 // pred_check_branch
        %279 = sbr.rel (%p276) target = $region59
      $region58: #{discriminator_forward.7} parent=5 // pred_region
        %s280 = ssub.s32 %s11, 1
        %s281 = sand.u32 %s24, 1
        %s282 = sand.u32 %s24, 1
        %s283 = smul.addr %s282, 256
        %s284 = scalar_lea.vmem [#allocation3], %s283
        // Predicated region
        $region60: #{discriminator_forward.7} parent=58 // pred_check
          %p285 = pneg %p37
        $region61: #{discriminator_forward.7} parent=58 // pred_check_branch
          %287 = sbr.rel (%p285) target = $region63
        $region62: #{discriminator_forward.7} parent=58 // pred_region
          _
        $region63: #{discriminator_forward.7} parent=58 // pred_fallthru
          _
        %s288 = sand.u32 %s24, 1
        %s289 = sand.u32 %s24, 1
        %s290 = smul.addr %s289, 256
        %s291 = scalar_lea.vmem [#allocation3], %s290
        %p292 = pneg %p37
        %p293 = pneg %p34
        %s294 = smul.u32 512, %s16
        %p295 = scmp.lt.s32.totalorder %s294, 1023
        %s296 = scalar_select %p295, %s294, 1023
        %s297 = smul.addr %s296, 2
        %s298 = smul.addr %s297, 4
        %s299 = scalar_lea.vmem %s1, %s298
        %p300 = pneg %p63
        %p301 = pneg %p60
        %p302 = pneg %p84
        %p303 = pneg %p81
        %p304 = pneg %p105
        %p305 = pneg %p102
        %p306 = pneg %p126
        %p307 = pneg %p123
        %p308 = pneg %p147
        %p309 = pneg %p144
        %s310 = smul.u32 32, %s16
        %s311 = smul.u32 512, %s16
        %p312 = scmp.lt.s32.totalorder %s311, 1023
        %s313 = scalar_select %p312, %s311, 1023
        %s314 = smul.addr %s313, 2
        %s315 = smul.addr %s314, 4
        %s316 = scalar_lea.vmem %s1, %s315
        %s317 = smul.u32 512, %s16
        %p319 = scmp.eq.s32.totalorder %s16, 0
        // Predicated region
        $region64: #{discriminator_forward.7} parent=58 // pred_check
          %p320 = pneg %p319
        $region65: #{discriminator_forward.7} parent=58 // pred_check_branch
          %322 = sbr.rel (%p320) target = $region67
        $region66: #{discriminator_forward.7} parent=58 // pred_region
          %323 = vst [vmem:[#allocation2] sm:$0xff] 0.0
          %324 = vst [vmem:[#allocation2 + $0x8] sm:$0xff] 0.0
          %325 = vst [vmem:[#allocation2 + $0x10] sm:$0xff] 0.0
          %326 = vst [vmem:[#allocation2 + $0x18] sm:$0xff] 0.0
        $region67: #{discriminator_forward.7} parent=58 // pred_fallthru
          _
        %v327 = vld [vmem:[#allocation2] sm:$0xff]
        %v328 = vld [vmem:[#allocation2 + $0x8] sm:$0xff]
        %v329 = vld [vmem:[#allocation2 + $0x10] sm:$0xff]
        %v330 = vld [vmem:[#allocation2 + $0x18] sm:$0xff]
        %v331 = vld [vmem:[%s284] sm:$0xff]
        %v332 = vld [vmem:[%s284 + $0x8] sm:$0xff]
        %v333 = vld [vmem:[%s284 + $0x10] sm:$0xff]
        %v334 = vld [vmem:[%s284 + $0x18] sm:$0xff]
        %v335 = vld [vmem:[%s284 + $0x20] sm:$0xff]
        %v336 = vld [vmem:[%s284 + $0x28] sm:$0xff]
        %v337 = vld [vmem:[%s284 + $0x30] sm:$0xff]
        %v338 = vld [vmem:[%s284 + $0x38] sm:$0xff]
        %v339 = vld [vmem:[%s284 + $0x40] sm:$0xff]
        %v340 = vld [vmem:[%s284 + $0x48] sm:$0xff]
        %v341 = vld [vmem:[%s284 + $0x50] sm:$0xff]
        %v342 = vld [vmem:[%s284 + $0x58] sm:$0xff]
        %v343 = vld [vmem:[%s284 + $0x60] sm:$0xff]
        %v344 = vld [vmem:[%s284 + $0x68] sm:$0xff]
        %v345 = vld [vmem:[%s284 + $0x70] sm:$0xff]
        %v346 = vld [vmem:[%s284 + $0x78] sm:$0xff]
        %v347 = vld [vmem:[%s284 + $0x80] sm:$0xff]
        %v348 = vld [vmem:[%s284 + $0x88] sm:$0xff]
        %v349 = vld [vmem:[%s284 + $0x90] sm:$0xff]
        %v350 = vld [vmem:[%s284 + $0x98] sm:$0xff]
        %v351 = vld [vmem:[%s284 + $0xa0] sm:$0xff]
        %v352 = vld [vmem:[%s284 + $0xa8] sm:$0xff]
        %v353 = vld [vmem:[%s284 + $0xb0] sm:$0xff]
        %v354 = vld [vmem:[%s284 + $0xb8] sm:$0xff]
        %v355 = vld [vmem:[%s284 + $0xc0] sm:$0xff]
        %v356 = vld [vmem:[%s284 + $0xc8] sm:$0xff]
        %v357 = vld [vmem:[%s284 + $0xd0] sm:$0xff]
        %v358 = vld [vmem:[%s284 + $0xd8] sm:$0xff]
        %v359 = vld [vmem:[%s284 + $0xe0] sm:$0xff]
        %v360 = vld [vmem:[%s284 + $0xe8] sm:$0xff]
        %v361 = vld [vmem:[%s284 + $0xf0] sm:$0xff]
        %v362 = vld [vmem:[%s284 + $0xf8] sm:$0xff]
        %v363 = vld [vmem:[%s316] sm:$0xff]
        %v364 = vld [vmem:[%s316 + $0x8] sm:$0xff]
        %v365 = vld [vmem:[%s316 + $0x10] sm:$0xff]
        %v366 = vld [vmem:[%s316 + $0x18] sm:$0xff]
        %v367 = vld [vmem:[%s316 + $0x20] sm:$0xff]
        %v368 = vld [vmem:[%s316 + $0x28] sm:$0xff]
        %v369 = vld [vmem:[%s316 + $0x30] sm:$0xff]
        %v370 = vld [vmem:[%s316 + $0x38] sm:$0xff]
        %v371 = vld [vmem:[%s316 + $0x40] sm:$0xff]
        %v372 = vld [vmem:[%s316 + $0x48] sm:$0xff]
        %v373 = vld [vmem:[%s316 + $0x50] sm:$0xff]
        %v374 = vld [vmem:[%s316 + $0x58] sm:$0xff]
        %v375 = vld [vmem:[%s316 + $0x60] sm:$0xff]
        %v376 = vld [vmem:[%s316 + $0x68] sm:$0xff]
        %v377 = vld [vmem:[%s316 + $0x70] sm:$0xff]
        %v378 = vld [vmem:[%s316 + $0x78] sm:$0xff]
        %v379 = vld [vmem:[%s316 + $0x80] sm:$0xff]
        %v380 = vld [vmem:[%s316 + $0x88] sm:$0xff]
        %v381 = vld [vmem:[%s316 + $0x90] sm:$0xff]
        %v382 = vld [vmem:[%s316 + $0x98] sm:$0xff]
        %v383 = vld [vmem:[%s316 + $0xa0] sm:$0xff]
        %v384 = vld [vmem:[%s316 + $0xa8] sm:$0xff]
        %v385 = vld [vmem:[%s316 + $0xb0] sm:$0xff]
        %v386 = vld [vmem:[%s316 + $0xb8] sm:$0xff]
        %v387 = vld [vmem:[%s316 + $0xc0] sm:$0xff]
        %v388 = vld [vmem:[%s316 + $0xc8] sm:$0xff]
        %v389 = vld [vmem:[%s316 + $0xd0] sm:$0xff]
        %v390 = vld [vmem:[%s316 + $0xd8] sm:$0xff]
        %v391 = vld [vmem:[%s316 + $0xe0] sm:$0xff]
        %v392 = vld [vmem:[%s316 + $0xe8] sm:$0xff]
        %v393 = vld [vmem:[%s316 + $0xf0] sm:$0xff]
        %v394 = vld [vmem:[%s316 + $0xf8] sm:$0xff]
        %v395 = vld [vmem:[%s316 + $0x100] sm:$0xff]
        %v396 = vld [vmem:[%s316 + $0x108] sm:$0xff]
        %v397 = vld [vmem:[%s316 + $0x110] sm:$0xff]
        %v398 = vld [vmem:[%s316 + $0x118] sm:$0xff]
        %v399 = vld [vmem:[%s316 + $0x120] sm:$0xff]
        %v400 = vld [vmem:[%s316 + $0x128] sm:$0xff]
        %v401 = vld [vmem:[%s316 + $0x130] sm:$0xff]
        %v402 = vld [vmem:[%s316 + $0x138] sm:$0xff]
        %v403 = vld [vmem:[%s316 + $0x140] sm:$0xff]
        %v404 = vld [vmem:[%s316 + $0x148] sm:$0xff]
        %v405 = vld [vmem:[%s316 + $0x150] sm:$0xff]
        %v406 = vld [vmem:[%s316 + $0x158] sm:$0xff]
        %v407 = vld [vmem:[%s316 + $0x160] sm:$0xff]
        %v408 = vld [vmem:[%s316 + $0x168] sm:$0xff]
        %v409 = vld [vmem:[%s316 + $0x170] sm:$0xff]
        %v410 = vld [vmem:[%s316 + $0x178] sm:$0xff]
        %v411 = vld [vmem:[%s316 + $0x180] sm:$0xff]
        %v412 = vld [vmem:[%s316 + $0x188] sm:$0xff]
        %v413 = vld [vmem:[%s316 + $0x190] sm:$0xff]
        %v414 = vld [vmem:[%s316 + $0x198] sm:$0xff]
        %v415 = vld [vmem:[%s316 + $0x1a0] sm:$0xff]
        %v416 = vld [vmem:[%s316 + $0x1a8] sm:$0xff]
        %v417 = vld [vmem:[%s316 + $0x1b0] sm:$0xff]
        %v418 = vld [vmem:[%s316 + $0x1b8] sm:$0xff]
        %v419 = vld [vmem:[%s316 + $0x1c0] sm:$0xff]
        %v420 = vld [vmem:[%s316 + $0x1c8] sm:$0xff]
        %v421 = vld [vmem:[%s316 + $0x1d0] sm:$0xff]
        %v422 = vld [vmem:[%s316 + $0x1d8] sm:$0xff]
        %v423 = vld [vmem:[%s316 + $0x1e0] sm:$0xff]
        %v424 = vld [vmem:[%s316 + $0x1e8] sm:$0xff]
        %v425 = vld [vmem:[%s316 + $0x1f0] sm:$0xff]
        %v426 = vld [vmem:[%s316 + $0x1f8] sm:$0xff]
        %v427 = vld [vmem:[%s316 + $0x200] sm:$0xff]
        %v428 = vld [vmem:[%s316 + $0x208] sm:$0xff]
        %v429 = vld [vmem:[%s316 + $0x210] sm:$0xff]
        %v430 = vld [vmem:[%s316 + $0x218] sm:$0xff]
        %v431 = vld [vmem:[%s316 + $0x220] sm:$0xff]
        %v432 = vld [vmem:[%s316 + $0x228] sm:$0xff]
        %v433 = vld [vmem:[%s316 + $0x230] sm:$0xff]
        %v434 = vld [vmem:[%s316 + $0x238] sm:$0xff]
        %v435 = vld [vmem:[%s316 + $0x240] sm:$0xff]
        %v436 = vld [vmem:[%s316 + $0x248] sm:$0xff]
        %v437 = vld [vmem:[%s316 + $0x250] sm:$0xff]
        %v438 = vld [vmem:[%s316 + $0x258] sm:$0xff]
        %v439 = vld [vmem:[%s316 + $0x260] sm:$0xff]
        %v440 = vld [vmem:[%s316 + $0x268] sm:$0xff]
        %v441 = vld [vmem:[%s316 + $0x270] sm:$0xff]
        %v442 = vld [vmem:[%s316 + $0x278] sm:$0xff]
        %v443 = vld [vmem:[%s316 + $0x280] sm:$0xff]
        %v444 = vld [vmem:[%s316 + $0x288] sm:$0xff]
        %v445 = vld [vmem:[%s316 + $0x290] sm:$0xff]
        %v446 = vld [vmem:[%s316 + $0x298] sm:$0xff]
        %v447 = vld [vmem:[%s316 + $0x2a0] sm:$0xff]
        %v448 = vld [vmem:[%s316 + $0x2a8] sm:$0xff]
        %v449 = vld [vmem:[%s316 + $0x2b0] sm:$0xff]
        %v450 = vld [vmem:[%s316 + $0x2b8] sm:$0xff]
        %v451 = vld [vmem:[%s316 + $0x2c0] sm:$0xff]
        %v452 = vld [vmem:[%s316 + $0x2c8] sm:$0xff]
        %v453 = vld [vmem:[%s316 + $0x2d0] sm:$0xff]
        %v454 = vld [vmem:[%s316 + $0x2d8] sm:$0xff]
        %v455 = vld [vmem:[%s316 + $0x2e0] sm:$0xff]
        %v456 = vld [vmem:[%s316 + $0x2e8] sm:$0xff]
        %v457 = vld [vmem:[%s316 + $0x2f0] sm:$0xff]
        %v458 = vld [vmem:[%s316 + $0x2f8] sm:$0xff]
        %v459 = vld [vmem:[%s316 + $0x300] sm:$0xff]
        %v460 = vld [vmem:[%s316 + $0x308] sm:$0xff]
        %v461 = vld [vmem:[%s316 + $0x310] sm:$0xff]
        %v462 = vld [vmem:[%s316 + $0x318] sm:$0xff]
        %v463 = vld [vmem:[%s316 + $0x320] sm:$0xff]
        %v464 = vld [vmem:[%s316 + $0x328] sm:$0xff]
        %v465 = vld [vmem:[%s316 + $0x330] sm:$0xff]
        %v466 = vld [vmem:[%s316 + $0x338] sm:$0xff]
        %v467 = vld [vmem:[%s316 + $0x340] sm:$0xff]
        %v468 = vld [vmem:[%s316 + $0x348] sm:$0xff]
        %v469 = vld [vmem:[%s316 + $0x350] sm:$0xff]
        %v470 = vld [vmem:[%s316 + $0x358] sm:$0xff]
        %v471 = vld [vmem:[%s316 + $0x360] sm:$0xff]
        %v472 = vld [vmem:[%s316 + $0x368] sm:$0xff]
        %v473 = vld [vmem:[%s316 + $0x370] sm:$0xff]
        %v474 = vld [vmem:[%s316 + $0x378] sm:$0xff]
        %v475 = vld [vmem:[%s316 + $0x380] sm:$0xff]
        %v476 = vld [vmem:[%s316 + $0x388] sm:$0xff]
        %v477 = vld [vmem:[%s316 + $0x390] sm:$0xff]
        %v478 = vld [vmem:[%s316 + $0x398] sm:$0xff]
        %v479 = vld [vmem:[%s316 + $0x3a0] sm:$0xff]
        %v480 = vld [vmem:[%s316 + $0x3a8] sm:$0xff]
        %v481 = vld [vmem:[%s316 + $0x3b0] sm:$0xff]
        %v482 = vld [vmem:[%s316 + $0x3b8] sm:$0xff]
        %v483 = vld [vmem:[%s316 + $0x3c0] sm:$0xff]
        %v484 = vld [vmem:[%s316 + $0x3c8] sm:$0xff]
        %v485 = vld [vmem:[%s316 + $0x3d0] sm:$0xff]
        %v486 = vld [vmem:[%s316 + $0x3d8] sm:$0xff]
        %v487 = vld [vmem:[%s316 + $0x3e0] sm:$0xff]
        %v488 = vld [vmem:[%s316 + $0x3e8] sm:$0xff]
        %v489 = vld [vmem:[%s316 + $0x3f0] sm:$0xff]
        %v490 = vld [vmem:[%s316 + $0x3f8] sm:$0xff]
        %v491 = vld [vmem:[%s316 + $0x400] sm:$0xff]
        %v492 = vld [vmem:[%s316 + $0x408] sm:$0xff]
        %v493 = vld [vmem:[%s316 + $0x410] sm:$0xff]
        %v494 = vld [vmem:[%s316 + $0x418] sm:$0xff]
        %v495 = vld [vmem:[%s316 + $0x420] sm:$0xff]
        %v496 = vld [vmem:[%s316 + $0x428] sm:$0xff]
        %v497 = vld [vmem:[%s316 + $0x430] sm:$0xff]
        %v498 = vld [vmem:[%s316 + $0x438] sm:$0xff]
        %v499 = vld [vmem:[%s316 + $0x440] sm:$0xff]
        %v500 = vld [vmem:[%s316 + $0x448] sm:$0xff]
        %v501 = vld [vmem:[%s316 + $0x450] sm:$0xff]
        %v502 = vld [vmem:[%s316 + $0x458] sm:$0xff]
        %v503 = vld [vmem:[%s316 + $0x460] sm:$0xff]
        %v504 = vld [vmem:[%s316 + $0x468] sm:$0xff]
        %v505 = vld [vmem:[%s316 + $0x470] sm:$0xff]
        %v506 = vld [vmem:[%s316 + $0x478] sm:$0xff]
        %v507 = vld [vmem:[%s316 + $0x480] sm:$0xff]
        %v508 = vld [vmem:[%s316 + $0x488] sm:$0xff]
        %v509 = vld [vmem:[%s316 + $0x490] sm:$0xff]
        %v510 = vld [vmem:[%s316 + $0x498] sm:$0xff]
        %v511 = vld [vmem:[%s316 + $0x4a0] sm:$0xff]
        %v512 = vld [vmem:[%s316 + $0x4a8] sm:$0xff]
        %v513 = vld [vmem:[%s316 + $0x4b0] sm:$0xff]
        %v514 = vld [vmem:[%s316 + $0x4b8] sm:$0xff]
        %v515 = vld [vmem:[%s316 + $0x4c0] sm:$0xff]
        %v516 = vld [vmem:[%s316 + $0x4c8] sm:$0xff]
        %v517 = vld [vmem:[%s316 + $0x4d0] sm:$0xff]
        %v518 = vld [vmem:[%s316 + $0x4d8] sm:$0xff]
        %v519 = vld [vmem:[%s316 + $0x4e0] sm:$0xff]
        %v520 = vld [vmem:[%s316 + $0x4e8] sm:$0xff]
        %v521 = vld [vmem:[%s316 + $0x4f0] sm:$0xff]
        %v522 = vld [vmem:[%s316 + $0x4f8] sm:$0xff]
        %v523 = vld [vmem:[%s316 + $0x500] sm:$0xff]
        %v524 = vld [vmem:[%s316 + $0x508] sm:$0xff]
        %v525 = vld [vmem:[%s316 + $0x510] sm:$0xff]
        %v526 = vld [vmem:[%s316 + $0x518] sm:$0xff]
        %v527 = vld [vmem:[%s316 + $0x520] sm:$0xff]
        %v528 = vld [vmem:[%s316 + $0x528] sm:$0xff]
        %v529 = vld [vmem:[%s316 + $0x530] sm:$0xff]
        %v530 = vld [vmem:[%s316 + $0x538] sm:$0xff]
        %v531 = vld [vmem:[%s316 + $0x540] sm:$0xff]
        %v532 = vld [vmem:[%s316 + $0x548] sm:$0xff]
        %v533 = vld [vmem:[%s316 + $0x550] sm:$0xff]
        %v534 = vld [vmem:[%s316 + $0x558] sm:$0xff]
        %v535 = vld [vmem:[%s316 + $0x560] sm:$0xff]
        %v536 = vld [vmem:[%s316 + $0x568] sm:$0xff]
        %v537 = vld [vmem:[%s316 + $0x570] sm:$0xff]
        %v538 = vld [vmem:[%s316 + $0x578] sm:$0xff]
        %v539 = vld [vmem:[%s316 + $0x580] sm:$0xff]
        %v540 = vld [vmem:[%s316 + $0x588] sm:$0xff]
        %v541 = vld [vmem:[%s316 + $0x590] sm:$0xff]
        %v542 = vld [vmem:[%s316 + $0x598] sm:$0xff]
        %v543 = vld [vmem:[%s316 + $0x5a0] sm:$0xff]
        %v544 = vld [vmem:[%s316 + $0x5a8] sm:$0xff]
        %v545 = vld [vmem:[%s316 + $0x5b0] sm:$0xff]
        %v546 = vld [vmem:[%s316 + $0x5b8] sm:$0xff]
        %v547 = vld [vmem:[%s316 + $0x5c0] sm:$0xff]
        %v548 = vld [vmem:[%s316 + $0x5c8] sm:$0xff]
        %v549 = vld [vmem:[%s316 + $0x5d0] sm:$0xff]
        %v550 = vld [vmem:[%s316 + $0x5d8] sm:$0xff]
        %v551 = vld [vmem:[%s316 + $0x5e0] sm:$0xff]
        %v552 = vld [vmem:[%s316 + $0x5e8] sm:$0xff]
        %v553 = vld [vmem:[%s316 + $0x5f0] sm:$0xff]
        %v554 = vld [vmem:[%s316 + $0x5f8] sm:$0xff]
        %v555 = vld [vmem:[%s316 + $0x600] sm:$0xff]
        %v556 = vld [vmem:[%s316 + $0x608] sm:$0xff]
        %v557 = vld [vmem:[%s316 + $0x610] sm:$0xff]
        %v558 = vld [vmem:[%s316 + $0x618] sm:$0xff]
        %v559 = vld [vmem:[%s316 + $0x620] sm:$0xff]
        %v560 = vld [vmem:[%s316 + $0x628] sm:$0xff]
        %v561 = vld [vmem:[%s316 + $0x630] sm:$0xff]
        %v562 = vld [vmem:[%s316 + $0x638] sm:$0xff]
        %v563 = vld [vmem:[%s316 + $0x640] sm:$0xff]
        %v564 = vld [vmem:[%s316 + $0x648] sm:$0xff]
        %v565 = vld [vmem:[%s316 + $0x650] sm:$0xff]
        %v566 = vld [vmem:[%s316 + $0x658] sm:$0xff]
        %v567 = vld [vmem:[%s316 + $0x660] sm:$0xff]
        %v568 = vld [vmem:[%s316 + $0x668] sm:$0xff]
        %v569 = vld [vmem:[%s316 + $0x670] sm:$0xff]
        %v570 = vld [vmem:[%s316 + $0x678] sm:$0xff]
        %v571 = vld [vmem:[%s316 + $0x680] sm:$0xff]
        %v572 = vld [vmem:[%s316 + $0x688] sm:$0xff]
        %v573 = vld [vmem:[%s316 + $0x690] sm:$0xff]
        %v574 = vld [vmem:[%s316 + $0x698] sm:$0xff]
        %v575 = vld [vmem:[%s316 + $0x6a0] sm:$0xff]
        %v576 = vld [vmem:[%s316 + $0x6a8] sm:$0xff]
        %v577 = vld [vmem:[%s316 + $0x6b0] sm:$0xff]
        %v578 = vld [vmem:[%s316 + $0x6b8] sm:$0xff]
        %v579 = vld [vmem:[%s316 + $0x6c0] sm:$0xff]
        %v580 = vld [vmem:[%s316 + $0x6c8] sm:$0xff]
        %v581 = vld [vmem:[%s316 + $0x6d0] sm:$0xff]
        %v582 = vld [vmem:[%s316 + $0x6d8] sm:$0xff]
        %v583 = vld [vmem:[%s316 + $0x6e0] sm:$0xff]
        %v584 = vld [vmem:[%s316 + $0x6e8] sm:$0xff]
        %v585 = vld [vmem:[%s316 + $0x6f0] sm:$0xff]
        %v586 = vld [vmem:[%s316 + $0x6f8] sm:$0xff]
        %v587 = vld [vmem:[%s316 + $0x700] sm:$0xff]
        %v588 = vld [vmem:[%s316 + $0x708] sm:$0xff]
        %v589 = vld [vmem:[%s316 + $0x710] sm:$0xff]
        %v590 = vld [vmem:[%s316 + $0x718] sm:$0xff]
        %v591 = vld [vmem:[%s316 + $0x720] sm:$0xff]
        %v592 = vld [vmem:[%s316 + $0x728] sm:$0xff]
        %v593 = vld [vmem:[%s316 + $0x730] sm:$0xff]
        %v594 = vld [vmem:[%s316 + $0x738] sm:$0xff]
        %v595 = vld [vmem:[%s316 + $0x740] sm:$0xff]
        %v596 = vld [vmem:[%s316 + $0x748] sm:$0xff]
        %v597 = vld [vmem:[%s316 + $0x750] sm:$0xff]
        %v598 = vld [vmem:[%s316 + $0x758] sm:$0xff]
        %v599 = vld [vmem:[%s316 + $0x760] sm:$0xff]
        %v600 = vld [vmem:[%s316 + $0x768] sm:$0xff]
        %v601 = vld [vmem:[%s316 + $0x770] sm:$0xff]
        %v602 = vld [vmem:[%s316 + $0x778] sm:$0xff]
        %v603 = vld [vmem:[%s316 + $0x780] sm:$0xff]
        %v604 = vld [vmem:[%s316 + $0x788] sm:$0xff]
        %v605 = vld [vmem:[%s316 + $0x790] sm:$0xff]
        %v606 = vld [vmem:[%s316 + $0x798] sm:$0xff]
        %v607 = vld [vmem:[%s316 + $0x7a0] sm:$0xff]
        %v608 = vld [vmem:[%s316 + $0x7a8] sm:$0xff]
        %v609 = vld [vmem:[%s316 + $0x7b0] sm:$0xff]
        %v610 = vld [vmem:[%s316 + $0x7b8] sm:$0xff]
        %v611 = vld [vmem:[%s316 + $0x7c0] sm:$0xff]
        %v612 = vld [vmem:[%s316 + $0x7c8] sm:$0xff]
        %v613 = vld [vmem:[%s316 + $0x7d0] sm:$0xff]
        %v614 = vld [vmem:[%s316 + $0x7d8] sm:$0xff]
        %v615 = vld [vmem:[%s316 + $0x7e0] sm:$0xff]
        %v616 = vld [vmem:[%s316 + $0x7e8] sm:$0xff]
        %v617 = vld [vmem:[%s316 + $0x7f0] sm:$0xff]
        %v618 = vld [vmem:[%s316 + $0x7f8] sm:$0xff]
        %v619 = vld [vmem:[%s316 + $0x800] sm:$0xff]
        %v620 = vld [vmem:[%s316 + $0x808] sm:$0xff]
        %v621 = vld [vmem:[%s316 + $0x810] sm:$0xff]
        %v622 = vld [vmem:[%s316 + $0x818] sm:$0xff]
        %v623 = vld [vmem:[%s316 + $0x820] sm:$0xff]
        %v624 = vld [vmem:[%s316 + $0x828] sm:$0xff]
        %v625 = vld [vmem:[%s316 + $0x830] sm:$0xff]
        %v626 = vld [vmem:[%s316 + $0x838] sm:$0xff]
        %v627 = vld [vmem:[%s316 + $0x840] sm:$0xff]
        %v628 = vld [vmem:[%s316 + $0x848] sm:$0xff]
        %v629 = vld [vmem:[%s316 + $0x850] sm:$0xff]
        %v630 = vld [vmem:[%s316 + $0x858] sm:$0xff]
        %v631 = vld [vmem:[%s316 + $0x860] sm:$0xff]
        %v632 = vld [vmem:[%s316 + $0x868] sm:$0xff]
        %v633 = vld [vmem:[%s316 + $0x870] sm:$0xff]
        %v634 = vld [vmem:[%s316 + $0x878] sm:$0xff]
        %v635 = vld [vmem:[%s316 + $0x880] sm:$0xff]
        %v636 = vld [vmem:[%s316 + $0x888] sm:$0xff]
        %v637 = vld [vmem:[%s316 + $0x890] sm:$0xff]
        %v638 = vld [vmem:[%s316 + $0x898] sm:$0xff]
        %v639 = vld [vmem:[%s316 + $0x8a0] sm:$0xff]
        %v640 = vld [vmem:[%s316 + $0x8a8] sm:$0xff]
        %v641 = vld [vmem:[%s316 + $0x8b0] sm:$0xff]
        %v642 = vld [vmem:[%s316 + $0x8b8] sm:$0xff]
        %v643 = vld [vmem:[%s316 + $0x8c0] sm:$0xff]
        %v644 = vld [vmem:[%s316 + $0x8c8] sm:$0xff]
        %v645 = vld [vmem:[%s316 + $0x8d0] sm:$0xff]
        %v646 = vld [vmem:[%s316 + $0x8d8] sm:$0xff]
        %v647 = vld [vmem:[%s316 + $0x8e0] sm:$0xff]
        %v648 = vld [vmem:[%s316 + $0x8e8] sm:$0xff]
        %v649 = vld [vmem:[%s316 + $0x8f0] sm:$0xff]
        %v650 = vld [vmem:[%s316 + $0x8f8] sm:$0xff]
        %v651 = vld [vmem:[%s316 + $0x900] sm:$0xff]
        %v652 = vld [vmem:[%s316 + $0x908] sm:$0xff]
        %v653 = vld [vmem:[%s316 + $0x910] sm:$0xff]
        %v654 = vld [vmem:[%s316 + $0x918] sm:$0xff]
        %v655 = vld [vmem:[%s316 + $0x920] sm:$0xff]
        %v656 = vld [vmem:[%s316 + $0x928] sm:$0xff]
        %v657 = vld [vmem:[%s316 + $0x930] sm:$0xff]
        %v658 = vld [vmem:[%s316 + $0x938] sm:$0xff]
        %v659 = vld [vmem:[%s316 + $0x940] sm:$0xff]
        %v660 = vld [vmem:[%s316 + $0x948] sm:$0xff]
        %v661 = vld [vmem:[%s316 + $0x950] sm:$0xff]
        %v662 = vld [vmem:[%s316 + $0x958] sm:$0xff]
        %v663 = vld [vmem:[%s316 + $0x960] sm:$0xff]
        %v664 = vld [vmem:[%s316 + $0x968] sm:$0xff]
        %v665 = vld [vmem:[%s316 + $0x970] sm:$0xff]
        %v666 = vld [vmem:[%s316 + $0x978] sm:$0xff]
        %v667 = vld [vmem:[%s316 + $0x980] sm:$0xff]
        %v668 = vld [vmem:[%s316 + $0x988] sm:$0xff]
        %v669 = vld [vmem:[%s316 + $0x990] sm:$0xff]
        %v670 = vld [vmem:[%s316 + $0x998] sm:$0xff]
        %v671 = vld [vmem:[%s316 + $0x9a0] sm:$0xff]
        %v672 = vld [vmem:[%s316 + $0x9a8] sm:$0xff]
        %v673 = vld [vmem:[%s316 + $0x9b0] sm:$0xff]
        %v674 = vld [vmem:[%s316 + $0x9b8] sm:$0xff]
        %v675 = vld [vmem:[%s316 + $0x9c0] sm:$0xff]
        %v676 = vld [vmem:[%s316 + $0x9c8] sm:$0xff]
        %v677 = vld [vmem:[%s316 + $0x9d0] sm:$0xff]
        %v678 = vld [vmem:[%s316 + $0x9d8] sm:$0xff]
        %v679 = vld [vmem:[%s316 + $0x9e0] sm:$0xff]
        %v680 = vld [vmem:[%s316 + $0x9e8] sm:$0xff]
        %v681 = vld [vmem:[%s316 + $0x9f0] sm:$0xff]
        %v682 = vld [vmem:[%s316 + $0x9f8] sm:$0xff]
        %v683 = vld [vmem:[%s316 + $0xa00] sm:$0xff]
        %v684 = vld [vmem:[%s316 + $0xa08] sm:$0xff]
        %v685 = vld [vmem:[%s316 + $0xa10] sm:$0xff]
        %v686 = vld [vmem:[%s316 + $0xa18] sm:$0xff]
        %v687 = vld [vmem:[%s316 + $0xa20] sm:$0xff]
        %v688 = vld [vmem:[%s316 + $0xa28] sm:$0xff]
        %v689 = vld [vmem:[%s316 + $0xa30] sm:$0xff]
        %v690 = vld [vmem:[%s316 + $0xa38] sm:$0xff]
        %v691 = vld [vmem:[%s316 + $0xa40] sm:$0xff]
        %v692 = vld [vmem:[%s316 + $0xa48] sm:$0xff]
        %v693 = vld [vmem:[%s316 + $0xa50] sm:$0xff]
        %v694 = vld [vmem:[%s316 + $0xa58] sm:$0xff]
        %v695 = vld [vmem:[%s316 + $0xa60] sm:$0xff]
        %v696 = vld [vmem:[%s316 + $0xa68] sm:$0xff]
        %v697 = vld [vmem:[%s316 + $0xa70] sm:$0xff]
        %v698 = vld [vmem:[%s316 + $0xa78] sm:$0xff]
        %v699 = vld [vmem:[%s316 + $0xa80] sm:$0xff]
        %v700 = vld [vmem:[%s316 + $0xa88] sm:$0xff]
        %v701 = vld [vmem:[%s316 + $0xa90] sm:$0xff]
        %v702 = vld [vmem:[%s316 + $0xa98] sm:$0xff]
        %v703 = vld [vmem:[%s316 + $0xaa0] sm:$0xff]
        %v704 = vld [vmem:[%s316 + $0xaa8] sm:$0xff]
        %v705 = vld [vmem:[%s316 + $0xab0] sm:$0xff]
        %v706 = vld [vmem:[%s316 + $0xab8] sm:$0xff]
        %v707 = vld [vmem:[%s316 + $0xac0] sm:$0xff]
        %v708 = vld [vmem:[%s316 + $0xac8] sm:$0xff]
        %v709 = vld [vmem:[%s316 + $0xad0] sm:$0xff]
        %v710 = vld [vmem:[%s316 + $0xad8] sm:$0xff]
        %v711 = vld [vmem:[%s316 + $0xae0] sm:$0xff]
        %v712 = vld [vmem:[%s316 + $0xae8] sm:$0xff]
        %v713 = vld [vmem:[%s316 + $0xaf0] sm:$0xff]
        %v714 = vld [vmem:[%s316 + $0xaf8] sm:$0xff]
        %v715 = vld [vmem:[%s316 + $0xb00] sm:$0xff]
        %v716 = vld [vmem:[%s316 + $0xb08] sm:$0xff]
        %v717 = vld [vmem:[%s316 + $0xb10] sm:$0xff]
        %v718 = vld [vmem:[%s316 + $0xb18] sm:$0xff]
        %v719 = vld [vmem:[%s316 + $0xb20] sm:$0xff]
        %v720 = vld [vmem:[%s316 + $0xb28] sm:$0xff]
        %v721 = vld [vmem:[%s316 + $0xb30] sm:$0xff]
        %v722 = vld [vmem:[%s316 + $0xb38] sm:$0xff]
        %v723 = vld [vmem:[%s316 + $0xb40] sm:$0xff]
        %v724 = vld [vmem:[%s316 + $0xb48] sm:$0xff]
        %v725 = vld [vmem:[%s316 + $0xb50] sm:$0xff]
        %v726 = vld [vmem:[%s316 + $0xb58] sm:$0xff]
        %v727 = vld [vmem:[%s316 + $0xb60] sm:$0xff]
        %v728 = vld [vmem:[%s316 + $0xb68] sm:$0xff]
        %v729 = vld [vmem:[%s316 + $0xb70] sm:$0xff]
        %v730 = vld [vmem:[%s316 + $0xb78] sm:$0xff]
        %v731 = vld [vmem:[%s316 + $0xb80] sm:$0xff]
        %v732 = vld [vmem:[%s316 + $0xb88] sm:$0xff]
        %v733 = vld [vmem:[%s316 + $0xb90] sm:$0xff]
        %v734 = vld [vmem:[%s316 + $0xb98] sm:$0xff]
        %v735 = vld [vmem:[%s316 + $0xba0] sm:$0xff]
        %v736 = vld [vmem:[%s316 + $0xba8] sm:$0xff]
        %v737 = vld [vmem:[%s316 + $0xbb0] sm:$0xff]
        %v738 = vld [vmem:[%s316 + $0xbb8] sm:$0xff]
        %v739 = vld [vmem:[%s316 + $0xbc0] sm:$0xff]
        %v740 = vld [vmem:[%s316 + $0xbc8] sm:$0xff]
        %v741 = vld [vmem:[%s316 + $0xbd0] sm:$0xff]
        %v742 = vld [vmem:[%s316 + $0xbd8] sm:$0xff]
        %v743 = vld [vmem:[%s316 + $0xbe0] sm:$0xff]
        %v744 = vld [vmem:[%s316 + $0xbe8] sm:$0xff]
        %v745 = vld [vmem:[%s316 + $0xbf0] sm:$0xff]
        %v746 = vld [vmem:[%s316 + $0xbf8] sm:$0xff]
        %v747 = vld [vmem:[%s316 + $0xc00] sm:$0xff]
        %v748 = vld [vmem:[%s316 + $0xc08] sm:$0xff]
        %v749 = vld [vmem:[%s316 + $0xc10] sm:$0xff]
        %v750 = vld [vmem:[%s316 + $0xc18] sm:$0xff]
        %v751 = vld [vmem:[%s316 + $0xc20] sm:$0xff]
        %v752 = vld [vmem:[%s316 + $0xc28] sm:$0xff]
        %v753 = vld [vmem:[%s316 + $0xc30] sm:$0xff]
        %v754 = vld [vmem:[%s316 + $0xc38] sm:$0xff]
        %v755 = vld [vmem:[%s316 + $0xc40] sm:$0xff]
        %v756 = vld [vmem:[%s316 + $0xc48] sm:$0xff]
        %v757 = vld [vmem:[%s316 + $0xc50] sm:$0xff]
        %v758 = vld [vmem:[%s316 + $0xc58] sm:$0xff]
        %v759 = vld [vmem:[%s316 + $0xc60] sm:$0xff]
        %v760 = vld [vmem:[%s316 + $0xc68] sm:$0xff]
        %v761 = vld [vmem:[%s316 + $0xc70] sm:$0xff]
        %v762 = vld [vmem:[%s316 + $0xc78] sm:$0xff]
        %v763 = vld [vmem:[%s316 + $0xc80] sm:$0xff]
        %v764 = vld [vmem:[%s316 + $0xc88] sm:$0xff]
        %v765 = vld [vmem:[%s316 + $0xc90] sm:$0xff]
        %v766 = vld [vmem:[%s316 + $0xc98] sm:$0xff]
        %v767 = vld [vmem:[%s316 + $0xca0] sm:$0xff]
        %v768 = vld [vmem:[%s316 + $0xca8] sm:$0xff]
        %v769 = vld [vmem:[%s316 + $0xcb0] sm:$0xff]
        %v770 = vld [vmem:[%s316 + $0xcb8] sm:$0xff]
        %v771 = vld [vmem:[%s316 + $0xcc0] sm:$0xff]
        %v772 = vld [vmem:[%s316 + $0xcc8] sm:$0xff]
        %v773 = vld [vmem:[%s316 + $0xcd0] sm:$0xff]
        %v774 = vld [vmem:[%s316 + $0xcd8] sm:$0xff]
        %v775 = vld [vmem:[%s316 + $0xce0] sm:$0xff]
        %v776 = vld [vmem:[%s316 + $0xce8] sm:$0xff]
        %v777 = vld [vmem:[%s316 + $0xcf0] sm:$0xff]
        %v778 = vld [vmem:[%s316 + $0xcf8] sm:$0xff]
        %v779 = vld [vmem:[%s316 + $0xd00] sm:$0xff]
        %v780 = vld [vmem:[%s316 + $0xd08] sm:$0xff]
        %v781 = vld [vmem:[%s316 + $0xd10] sm:$0xff]
        %v782 = vld [vmem:[%s316 + $0xd18] sm:$0xff]
        %v783 = vld [vmem:[%s316 + $0xd20] sm:$0xff]
        %v784 = vld [vmem:[%s316 + $0xd28] sm:$0xff]
        %v785 = vld [vmem:[%s316 + $0xd30] sm:$0xff]
        %v786 = vld [vmem:[%s316 + $0xd38] sm:$0xff]
        %v787 = vld [vmem:[%s316 + $0xd40] sm:$0xff]
        %v788 = vld [vmem:[%s316 + $0xd48] sm:$0xff]
        %v789 = vld [vmem:[%s316 + $0xd50] sm:$0xff]
        %v790 = vld [vmem:[%s316 + $0xd58] sm:$0xff]
        %v791 = vld [vmem:[%s316 + $0xd60] sm:$0xff]
        %v792 = vld [vmem:[%s316 + $0xd68] sm:$0xff]
        %v793 = vld [vmem:[%s316 + $0xd70] sm:$0xff]
        %v794 = vld [vmem:[%s316 + $0xd78] sm:$0xff]
        %v795 = vld [vmem:[%s316 + $0xd80] sm:$0xff]
        %v796 = vld [vmem:[%s316 + $0xd88] sm:$0xff]
        %v797 = vld [vmem:[%s316 + $0xd90] sm:$0xff]
        %v798 = vld [vmem:[%s316 + $0xd98] sm:$0xff]
        %v799 = vld [vmem:[%s316 + $0xda0] sm:$0xff]
        %v800 = vld [vmem:[%s316 + $0xda8] sm:$0xff]
        %v801 = vld [vmem:[%s316 + $0xdb0] sm:$0xff]
        %v802 = vld [vmem:[%s316 + $0xdb8] sm:$0xff]
        %v803 = vld [vmem:[%s316 + $0xdc0] sm:$0xff]
        %v804 = vld [vmem:[%s316 + $0xdc8] sm:$0xff]
        %v805 = vld [vmem:[%s316 + $0xdd0] sm:$0xff]
        %v806 = vld [vmem:[%s316 + $0xdd8] sm:$0xff]
        %v807 = vld [vmem:[%s316 + $0xde0] sm:$0xff]
        %v808 = vld [vmem:[%s316 + $0xde8] sm:$0xff]
        %v809 = vld [vmem:[%s316 + $0xdf0] sm:$0xff]
        %v810 = vld [vmem:[%s316 + $0xdf8] sm:$0xff]
        %v811 = vld [vmem:[%s316 + $0xe00] sm:$0xff]
        %v812 = vld [vmem:[%s316 + $0xe08] sm:$0xff]
        %v813 = vld [vmem:[%s316 + $0xe10] sm:$0xff]
        %v814 = vld [vmem:[%s316 + $0xe18] sm:$0xff]
        %v815 = vld [vmem:[%s316 + $0xe20] sm:$0xff]
        %v816 = vld [vmem:[%s316 + $0xe28] sm:$0xff]
        %v817 = vld [vmem:[%s316 + $0xe30] sm:$0xff]
        %v818 = vld [vmem:[%s316 + $0xe38] sm:$0xff]
        %v819 = vld [vmem:[%s316 + $0xe40] sm:$0xff]
        %v820 = vld [vmem:[%s316 + $0xe48] sm:$0xff]
        %v821 = vld [vmem:[%s316 + $0xe50] sm:$0xff]
        %v822 = vld [vmem:[%s316 + $0xe58] sm:$0xff]
        %v823 = vld [vmem:[%s316 + $0xe60] sm:$0xff]
        %v824 = vld [vmem:[%s316 + $0xe68] sm:$0xff]
        %v825 = vld [vmem:[%s316 + $0xe70] sm:$0xff]
        %v826 = vld [vmem:[%s316 + $0xe78] sm:$0xff]
        %v827 = vld [vmem:[%s316 + $0xe80] sm:$0xff]
        %v828 = vld [vmem:[%s316 + $0xe88] sm:$0xff]
        %v829 = vld [vmem:[%s316 + $0xe90] sm:$0xff]
        %v830 = vld [vmem:[%s316 + $0xe98] sm:$0xff]
        %v831 = vld [vmem:[%s316 + $0xea0] sm:$0xff]
        %v832 = vld [vmem:[%s316 + $0xea8] sm:$0xff]
        %v833 = vld [vmem:[%s316 + $0xeb0] sm:$0xff]
        %v834 = vld [vmem:[%s316 + $0xeb8] sm:$0xff]
        %v835 = vld [vmem:[%s316 + $0xec0] sm:$0xff]
        %v836 = vld [vmem:[%s316 + $0xec8] sm:$0xff]
        %v837 = vld [vmem:[%s316 + $0xed0] sm:$0xff]
        %v838 = vld [vmem:[%s316 + $0xed8] sm:$0xff]
        %v839 = vld [vmem:[%s316 + $0xee0] sm:$0xff]
        %v840 = vld [vmem:[%s316 + $0xee8] sm:$0xff]
        %v841 = vld [vmem:[%s316 + $0xef0] sm:$0xff]
        %v842 = vld [vmem:[%s316 + $0xef8] sm:$0xff]
        %v843 = vld [vmem:[%s316 + $0xf00] sm:$0xff]
        %v844 = vld [vmem:[%s316 + $0xf08] sm:$0xff]
        %v845 = vld [vmem:[%s316 + $0xf10] sm:$0xff]
        %v846 = vld [vmem:[%s316 + $0xf18] sm:$0xff]
        %v847 = vld [vmem:[%s316 + $0xf20] sm:$0xff]
        %v848 = vld [vmem:[%s316 + $0xf28] sm:$0xff]
        %v849 = vld [vmem:[%s316 + $0xf30] sm:$0xff]
        %v850 = vld [vmem:[%s316 + $0xf38] sm:$0xff]
        %v851 = vld [vmem:[%s316 + $0xf40] sm:$0xff]
        %v852 = vld [vmem:[%s316 + $0xf48] sm:$0xff]
        %v853 = vld [vmem:[%s316 + $0xf50] sm:$0xff]
        %v854 = vld [vmem:[%s316 + $0xf58] sm:$0xff]
        %v855 = vld [vmem:[%s316 + $0xf60] sm:$0xff]
        %v856 = vld [vmem:[%s316 + $0xf68] sm:$0xff]
        %v857 = vld [vmem:[%s316 + $0xf70] sm:$0xff]
        %v858 = vld [vmem:[%s316 + $0xf78] sm:$0xff]
        %v859 = vld [vmem:[%s316 + $0xf80] sm:$0xff]
        %v860 = vld [vmem:[%s316 + $0xf88] sm:$0xff]
        %v861 = vld [vmem:[%s316 + $0xf90] sm:$0xff]
        %v862 = vld [vmem:[%s316 + $0xf98] sm:$0xff]
        %v863 = vld [vmem:[%s316 + $0xfa0] sm:$0xff]
        %v864 = vld [vmem:[%s316 + $0xfa8] sm:$0xff]
        %v865 = vld [vmem:[%s316 + $0xfb0] sm:$0xff]
        %v866 = vld [vmem:[%s316 + $0xfb8] sm:$0xff]
        %v867 = vld [vmem:[%s316 + $0xfc0] sm:$0xff]
        %v868 = vld [vmem:[%s316 + $0xfc8] sm:$0xff]
        %v869 = vld [vmem:[%s316 + $0xfd0] sm:$0xff]
        %v870 = vld [vmem:[%s316 + $0xfd8] sm:$0xff]
        %v871 = vld [vmem:[%s316 + $0xfe0] sm:$0xff]
        %v872 = vld [vmem:[%s316 + $0xfe8] sm:$0xff]
        %v873 = vld [vmem:[%s316 + $0xff0] sm:$0xff]
        %v874 = vld [vmem:[%s316 + $0xff8] sm:$0xff]
        %v907 = vunpack.c.l.b16 %v331
        %v908 = vunpack.c.h.b16 %v331
        %v909 = vunpack.c.l.b16 %v332
        %v910 = vunpack.c.h.b16 %v332
        %v911 = vunpack.c.l.b16 %v333
        %v912 = vunpack.c.h.b16 %v333
        %v913 = vunpack.c.l.b16 %v334
        %v914 = vunpack.c.h.b16 %v334
        %v915 = vunpack.c.l.b16 %v335
        %v916 = vunpack.c.h.b16 %v335
        %v917 = vunpack.c.l.b16 %v336
        %v918 = vunpack.c.h.b16 %v336
        %v919 = vunpack.c.l.b16 %v337
        %v920 = vunpack.c.h.b16 %v337
        %v921 = vunpack.c.l.b16 %v338
        %v922 = vunpack.c.h.b16 %v338
        %v923 = vunpack.c.l.b16 %v339
        %v924 = vunpack.c.h.b16 %v339
        %v925 = vunpack.c.l.b16 %v340
        %v926 = vunpack.c.h.b16 %v340
        %v927 = vunpack.c.l.b16 %v341
        %v928 = vunpack.c.h.b16 %v341
        %v929 = vunpack.c.l.b16 %v342
        %v930 = vunpack.c.h.b16 %v342
        %v931 = vunpack.c.l.b16 %v343
        %v932 = vunpack.c.h.b16 %v343
        %v933 = vunpack.c.l.b16 %v344
        %v934 = vunpack.c.h.b16 %v344
        %v935 = vunpack.c.l.b16 %v345
        %v936 = vunpack.c.h.b16 %v345
        %v937 = vunpack.c.l.b16 %v346
        %v938 = vunpack.c.h.b16 %v346
        %v939 = vunpack.c.l.b16 %v347
        %v940 = vunpack.c.h.b16 %v347
        %v941 = vunpack.c.l.b16 %v348
        %v942 = vunpack.c.h.b16 %v348
        %v943 = vunpack.c.l.b16 %v349
        %v944 = vunpack.c.h.b16 %v349
        %v945 = vunpack.c.l.b16 %v350
        %v946 = vunpack.c.h.b16 %v350
        %v947 = vunpack.c.l.b16 %v351
        %v948 = vunpack.c.h.b16 %v351
        %v949 = vunpack.c.l.b16 %v352
        %v950 = vunpack.c.h.b16 %v352
        %v951 = vunpack.c.l.b16 %v353
        %v952 = vunpack.c.h.b16 %v353
        %v953 = vunpack.c.l.b16 %v354
        %v954 = vunpack.c.h.b16 %v354
        %v955 = vunpack.c.l.b16 %v355
        %v956 = vunpack.c.h.b16 %v355
        %v957 = vunpack.c.l.b16 %v356
        %v958 = vunpack.c.h.b16 %v356
        %v959 = vunpack.c.l.b16 %v357
        %v960 = vunpack.c.h.b16 %v357
        %v961 = vunpack.c.l.b16 %v358
        %v962 = vunpack.c.h.b16 %v358
        %v963 = vunpack.c.l.b16 %v359
        %v964 = vunpack.c.h.b16 %v359
        %v965 = vunpack.c.l.b16 %v360
        %v966 = vunpack.c.h.b16 %v360
        %v967 = vunpack.c.l.b16 %v361
        %v968 = vunpack.c.h.b16 %v361
        %v969 = vunpack.c.l.b16 %v362
        %v970 = vunpack.c.h.b16 %v362
        %v971 = vpack.c.b16 %v939, %v907
        %v972 = vpack.c.b16 %v940, %v908
        %v973 = vpack.c.b16 %v941, %v909
        %v974 = vpack.c.b16 %v942, %v910
        %v975 = vpack.c.b16 %v943, %v911
        %v976 = vpack.c.b16 %v944, %v912
        %v977 = vpack.c.b16 %v945, %v913
        %v978 = vpack.c.b16 %v946, %v914
        %v979 = vpack.c.b16 %v947, %v915
        %v980 = vpack.c.b16 %v948, %v916
        %v981 = vpack.c.b16 %v949, %v917
        %v982 = vpack.c.b16 %v950, %v918
        %v983 = vpack.c.b16 %v951, %v919
        %v984 = vpack.c.b16 %v952, %v920
        %v985 = vpack.c.b16 %v953, %v921
        %v986 = vpack.c.b16 %v954, %v922
        %v987 = vpack.c.b16 %v955, %v923
        %v988 = vpack.c.b16 %v956, %v924
        %v989 = vpack.c.b16 %v957, %v925
        %v990 = vpack.c.b16 %v958, %v926
        %v991 = vpack.c.b16 %v959, %v927
        %v992 = vpack.c.b16 %v960, %v928
        %v993 = vpack.c.b16 %v961, %v929
        %v994 = vpack.c.b16 %v962, %v930
        %v995 = vpack.c.b16 %v963, %v931
        %v996 = vpack.c.b16 %v964, %v932
        %v997 = vpack.c.b16 %v965, %v933
        %v998 = vpack.c.b16 %v966, %v934
        %v999 = vpack.c.b16 %v967, %v935
        %v1000 = vpack.c.b16 %v968, %v936
        %v1001 = vpack.c.b16 %v969, %v937
        %v1002 = vpack.c.b16 %v970, %v938
        %v1547 = vunpack.c.l.b16 %v363
        %v1548 = vunpack.c.h.b16 %v363
        %v1549 = vunpack.c.l.b16 %v364
        %v1550 = vunpack.c.h.b16 %v364
        %v1551 = vunpack.c.l.b16 %v365
        %v1552 = vunpack.c.h.b16 %v365
        %v1553 = vunpack.c.l.b16 %v366
        %v1554 = vunpack.c.h.b16 %v366
        %v1555 = vunpack.c.l.b16 %v367
        %v1556 = vunpack.c.h.b16 %v367
        %v1557 = vunpack.c.l.b16 %v368
        %v1558 = vunpack.c.h.b16 %v368
        %v1559 = vunpack.c.l.b16 %v369
        %v1560 = vunpack.c.h.b16 %v369
        %v1561 = vunpack.c.l.b16 %v370
        %v1562 = vunpack.c.h.b16 %v370
        %v1563 = vunpack.c.l.b16 %v371
        %v1564 = vunpack.c.h.b16 %v371
        %v1565 = vunpack.c.l.b16 %v372
        %v1566 = vunpack.c.h.b16 %v372
        %v1567 = vunpack.c.l.b16 %v373
        %v1568 = vunpack.c.h.b16 %v373
        %v1569 = vunpack.c.l.b16 %v374
        %v1570 = vunpack.c.h.b16 %v374
        %v1571 = vunpack.c.l.b16 %v375
        %v1572 = vunpack.c.h.b16 %v375
        %v1573 = vunpack.c.l.b16 %v376
        %v1574 = vunpack.c.h.b16 %v376
        %v1575 = vunpack.c.l.b16 %v377
        %v1576 = vunpack.c.h.b16 %v377
        %v1577 = vunpack.c.l.b16 %v378
        %v1578 = vunpack.c.h.b16 %v378
        %v1579 = vunpack.c.l.b16 %v379
        %v1580 = vunpack.c.h.b16 %v379
        %v1581 = vunpack.c.l.b16 %v380
        %v1582 = vunpack.c.h.b16 %v380
        %v1583 = vunpack.c.l.b16 %v381
        %v1584 = vunpack.c.h.b16 %v381
        %v1585 = vunpack.c.l.b16 %v382
        %v1586 = vunpack.c.h.b16 %v382
        %v1587 = vunpack.c.l.b16 %v383
        %v1588 = vunpack.c.h.b16 %v383
        %v1589 = vunpack.c.l.b16 %v384
        %v1590 = vunpack.c.h.b16 %v384
        %v1591 = vunpack.c.l.b16 %v385
        %v1592 = vunpack.c.h.b16 %v385
        %v1593 = vunpack.c.l.b16 %v386
        %v1594 = vunpack.c.h.b16 %v386
        %v1595 = vunpack.c.l.b16 %v387
        %v1596 = vunpack.c.h.b16 %v387
        %v1597 = vunpack.c.l.b16 %v388
        %v1598 = vunpack.c.h.b16 %v388
        %v1599 = vunpack.c.l.b16 %v389
        %v1600 = vunpack.c.h.b16 %v389
        %v1601 = vunpack.c.l.b16 %v390
        %v1602 = vunpack.c.h.b16 %v390
        %v1603 = vunpack.c.l.b16 %v391
        %v1604 = vunpack.c.h.b16 %v391
        %v1605 = vunpack.c.l.b16 %v392
        %v1606 = vunpack.c.h.b16 %v392
        %v1607 = vunpack.c.l.b16 %v393
        %v1608 = vunpack.c.h.b16 %v393
        %v1609 = vunpack.c.l.b16 %v394
        %v1610 = vunpack.c.h.b16 %v394
        %v1611 = vunpack.c.l.b16 %v395
        %v1612 = vunpack.c.h.b16 %v395
        %v1613 = vunpack.c.l.b16 %v396
        %v1614 = vunpack.c.h.b16 %v396
        %v1615 = vunpack.c.l.b16 %v397
        %v1616 = vunpack.c.h.b16 %v397
        %v1617 = vunpack.c.l.b16 %v398
        %v1618 = vunpack.c.h.b16 %v398
        %v1619 = vunpack.c.l.b16 %v399
        %v1620 = vunpack.c.h.b16 %v399
        %v1621 = vunpack.c.l.b16 %v400
        %v1622 = vunpack.c.h.b16 %v400
        %v1623 = vunpack.c.l.b16 %v401
        %v1624 = vunpack.c.h.b16 %v401
        %v1625 = vunpack.c.l.b16 %v402
        %v1626 = vunpack.c.h.b16 %v402
        %v1627 = vunpack.c.l.b16 %v403
        %v1628 = vunpack.c.h.b16 %v403
        %v1629 = vunpack.c.l.b16 %v404
        %v1630 = vunpack.c.h.b16 %v404
        %v1631 = vunpack.c.l.b16 %v405
        %v1632 = vunpack.c.h.b16 %v405
        %v1633 = vunpack.c.l.b16 %v406
        %v1634 = vunpack.c.h.b16 %v406
        %v1635 = vunpack.c.l.b16 %v407
        %v1636 = vunpack.c.h.b16 %v407
        %v1637 = vunpack.c.l.b16 %v408
        %v1638 = vunpack.c.h.b16 %v408
        %v1639 = vunpack.c.l.b16 %v409
        %v1640 = vunpack.c.h.b16 %v409
        %v1641 = vunpack.c.l.b16 %v410
        %v1642 = vunpack.c.h.b16 %v410
        %v1643 = vunpack.c.l.b16 %v411
        %v1644 = vunpack.c.h.b16 %v411
        %v1645 = vunpack.c.l.b16 %v412
        %v1646 = vunpack.c.h.b16 %v412
        %v1647 = vunpack.c.l.b16 %v413
        %v1648 = vunpack.c.h.b16 %v413
        %v1649 = vunpack.c.l.b16 %v414
        %v1650 = vunpack.c.h.b16 %v414
        %v1651 = vunpack.c.l.b16 %v415
        %v1652 = vunpack.c.h.b16 %v415
        %v1653 = vunpack.c.l.b16 %v416
        %v1654 = vunpack.c.h.b16 %v416
        %v1655 = vunpack.c.l.b16 %v417
        %v1656 = vunpack.c.h.b16 %v417
        %v1657 = vunpack.c.l.b16 %v418
        %v1658 = vunpack.c.h.b16 %v418
        %v1659 = vunpack.c.l.b16 %v419
        %v1660 = vunpack.c.h.b16 %v419
        %v1661 = vunpack.c.l.b16 %v420
        %v1662 = vunpack.c.h.b16 %v420
        %v1663 = vunpack.c.l.b16 %v421
        %v1664 = vunpack.c.h.b16 %v421
        %v1665 = vunpack.c.l.b16 %v422
        %v1666 = vunpack.c.h.b16 %v422
        %v1667 = vunpack.c.l.b16 %v423
        %v1668 = vunpack.c.h.b16 %v423
        %v1669 = vunpack.c.l.b16 %v424
        %v1670 = vunpack.c.h.b16 %v424
        %v1671 = vunpack.c.l.b16 %v425
        %v1672 = vunpack.c.h.b16 %v425
        %v1673 = vunpack.c.l.b16 %v426
        %v1674 = vunpack.c.h.b16 %v426
        %v1675 = vunpack.c.l.b16 %v427
        %v1676 = vunpack.c.h.b16 %v427
        %v1677 = vunpack.c.l.b16 %v428
        %v1678 = vunpack.c.h.b16 %v428
        %v1679 = vunpack.c.l.b16 %v429
        %v1680 = vunpack.c.h.b16 %v429
        %v1681 = vunpack.c.l.b16 %v430
        %v1682 = vunpack.c.h.b16 %v430
        %v1683 = vunpack.c.l.b16 %v431
        %v1684 = vunpack.c.h.b16 %v431
        %v1685 = vunpack.c.l.b16 %v432
        %v1686 = vunpack.c.h.b16 %v432
        %v1687 = vunpack.c.l.b16 %v433
        %v1688 = vunpack.c.h.b16 %v433
        %v1689 = vunpack.c.l.b16 %v434
        %v1690 = vunpack.c.h.b16 %v434
        %v1691 = vunpack.c.l.b16 %v435
        %v1692 = vunpack.c.h.b16 %v435
        %v1693 = vunpack.c.l.b16 %v436
        %v1694 = vunpack.c.h.b16 %v436
        %v1695 = vunpack.c.l.b16 %v437
        %v1696 = vunpack.c.h.b16 %v437
        %v1697 = vunpack.c.l.b16 %v438
        %v1698 = vunpack.c.h.b16 %v438
        %v1699 = vunpack.c.l.b16 %v439
        %v1700 = vunpack.c.h.b16 %v439
        %v1701 = vunpack.c.l.b16 %v440
        %v1702 = vunpack.c.h.b16 %v440
        %v1703 = vunpack.c.l.b16 %v441
        %v1704 = vunpack.c.h.b16 %v441
        %v1705 = vunpack.c.l.b16 %v442
        %v1706 = vunpack.c.h.b16 %v442
        %v1707 = vunpack.c.l.b16 %v443
        %v1708 = vunpack.c.h.b16 %v443
        %v1709 = vunpack.c.l.b16 %v444
        %v1710 = vunpack.c.h.b16 %v444
        %v1711 = vunpack.c.l.b16 %v445
        %v1712 = vunpack.c.h.b16 %v445
        %v1713 = vunpack.c.l.b16 %v446
        %v1714 = vunpack.c.h.b16 %v446
        %v1715 = vunpack.c.l.b16 %v447
        %v1716 = vunpack.c.h.b16 %v447
        %v1717 = vunpack.c.l.b16 %v448
        %v1718 = vunpack.c.h.b16 %v448
        %v1719 = vunpack.c.l.b16 %v449
        %v1720 = vunpack.c.h.b16 %v449
        %v1721 = vunpack.c.l.b16 %v450
        %v1722 = vunpack.c.h.b16 %v450
        %v1723 = vunpack.c.l.b16 %v451
        %v1724 = vunpack.c.h.b16 %v451
        %v1725 = vunpack.c.l.b16 %v452
        %v1726 = vunpack.c.h.b16 %v452
        %v1727 = vunpack.c.l.b16 %v453
        %v1728 = vunpack.c.h.b16 %v453
        %v1729 = vunpack.c.l.b16 %v454
        %v1730 = vunpack.c.h.b16 %v454
        %v1731 = vunpack.c.l.b16 %v455
        %v1732 = vunpack.c.h.b16 %v455
        %v1733 = vunpack.c.l.b16 %v456
        %v1734 = vunpack.c.h.b16 %v456
        %v1735 = vunpack.c.l.b16 %v457
        %v1736 = vunpack.c.h.b16 %v457
        %v1737 = vunpack.c.l.b16 %v458
        %v1738 = vunpack.c.h.b16 %v458
        %v1739 = vunpack.c.l.b16 %v459
        %v1740 = vunpack.c.h.b16 %v459
        %v1741 = vunpack.c.l.b16 %v460
        %v1742 = vunpack.c.h.b16 %v460
        %v1743 = vunpack.c.l.b16 %v461
        %v1744 = vunpack.c.h.b16 %v461
        %v1745 = vunpack.c.l.b16 %v462
        %v1746 = vunpack.c.h.b16 %v462
        %v1747 = vunpack.c.l.b16 %v463
        %v1748 = vunpack.c.h.b16 %v463
        %v1749 = vunpack.c.l.b16 %v464
        %v1750 = vunpack.c.h.b16 %v464
        %v1751 = vunpack.c.l.b16 %v465
        %v1752 = vunpack.c.h.b16 %v465
        %v1753 = vunpack.c.l.b16 %v466
        %v1754 = vunpack.c.h.b16 %v466
        %v1755 = vunpack.c.l.b16 %v467
        %v1756 = vunpack.c.h.b16 %v467
        %v1757 = vunpack.c.l.b16 %v468
        %v1758 = vunpack.c.h.b16 %v468
        %v1759 = vunpack.c.l.b16 %v469
        %v1760 = vunpack.c.h.b16 %v469
        %v1761 = vunpack.c.l.b16 %v470
        %v1762 = vunpack.c.h.b16 %v470
        %v1763 = vunpack.c.l.b16 %v471
        %v1764 = vunpack.c.h.b16 %v471
        %v1765 = vunpack.c.l.b16 %v472
        %v1766 = vunpack.c.h.b16 %v472
        %v1767 = vunpack.c.l.b16 %v473
        %v1768 = vunpack.c.h.b16 %v473
        %v1769 = vunpack.c.l.b16 %v474
        %v1770 = vunpack.c.h.b16 %v474
        %v1771 = vunpack.c.l.b16 %v475
        %v1772 = vunpack.c.h.b16 %v475
        %v1773 = vunpack.c.l.b16 %v476
        %v1774 = vunpack.c.h.b16 %v476
        %v1775 = vunpack.c.l.b16 %v477
        %v1776 = vunpack.c.h.b16 %v477
        %v1777 = vunpack.c.l.b16 %v478
        %v1778 = vunpack.c.h.b16 %v478
        %v1779 = vunpack.c.l.b16 %v479
        %v1780 = vunpack.c.h.b16 %v479
        %v1781 = vunpack.c.l.b16 %v480
        %v1782 = vunpack.c.h.b16 %v480
        %v1783 = vunpack.c.l.b16 %v481
        %v1784 = vunpack.c.h.b16 %v481
        %v1785 = vunpack.c.l.b16 %v482
        %v1786 = vunpack.c.h.b16 %v482
        %v1787 = vunpack.c.l.b16 %v483
        %v1788 = vunpack.c.h.b16 %v483
        %v1789 = vunpack.c.l.b16 %v484
        %v1790 = vunpack.c.h.b16 %v484
        %v1791 = vunpack.c.l.b16 %v485
        %v1792 = vunpack.c.h.b16 %v485
        %v1793 = vunpack.c.l.b16 %v486
        %v1794 = vunpack.c.h.b16 %v486
        %v1795 = vunpack.c.l.b16 %v487
        %v1796 = vunpack.c.h.b16 %v487
        %v1797 = vunpack.c.l.b16 %v488
        %v1798 = vunpack.c.h.b16 %v488
        %v1799 = vunpack.c.l.b16 %v489
        %v1800 = vunpack.c.h.b16 %v489
        %v1801 = vunpack.c.l.b16 %v490
        %v1802 = vunpack.c.h.b16 %v490
        %v1803 = vunpack.c.l.b16 %v491
        %v1804 = vunpack.c.h.b16 %v491
        %v1805 = vunpack.c.l.b16 %v492
        %v1806 = vunpack.c.h.b16 %v492
        %v1807 = vunpack.c.l.b16 %v493
        %v1808 = vunpack.c.h.b16 %v493
        %v1809 = vunpack.c.l.b16 %v494
        %v1810 = vunpack.c.h.b16 %v494
        %v1811 = vunpack.c.l.b16 %v495
        %v1812 = vunpack.c.h.b16 %v495
        %v1813 = vunpack.c.l.b16 %v496
        %v1814 = vunpack.c.h.b16 %v496
        %v1815 = vunpack.c.l.b16 %v497
        %v1816 = vunpack.c.h.b16 %v497
        %v1817 = vunpack.c.l.b16 %v498
        %v1818 = vunpack.c.h.b16 %v498
        %v1819 = vunpack.c.l.b16 %v499
        %v1820 = vunpack.c.h.b16 %v499
        %v1821 = vunpack.c.l.b16 %v500
        %v1822 = vunpack.c.h.b16 %v500
        %v1823 = vunpack.c.l.b16 %v501
        %v1824 = vunpack.c.h.b16 %v501
        %v1825 = vunpack.c.l.b16 %v502
        %v1826 = vunpack.c.h.b16 %v502
        %v1827 = vunpack.c.l.b16 %v503
        %v1828 = vunpack.c.h.b16 %v503
        %v1829 = vunpack.c.l.b16 %v504
        %v1830 = vunpack.c.h.b16 %v504
        %v1831 = vunpack.c.l.b16 %v505
        %v1832 = vunpack.c.h.b16 %v505
        %v1833 = vunpack.c.l.b16 %v506
        %v1834 = vunpack.c.h.b16 %v506
        %v1835 = vunpack.c.l.b16 %v507
        %v1836 = vunpack.c.h.b16 %v507
        %v1837 = vunpack.c.l.b16 %v508
        %v1838 = vunpack.c.h.b16 %v508
        %v1839 = vunpack.c.l.b16 %v509
        %v1840 = vunpack.c.h.b16 %v509
        %v1841 = vunpack.c.l.b16 %v510
        %v1842 = vunpack.c.h.b16 %v510
        %v1843 = vunpack.c.l.b16 %v511
        %v1844 = vunpack.c.h.b16 %v511
        %v1845 = vunpack.c.l.b16 %v512
        %v1846 = vunpack.c.h.b16 %v512
        %v1847 = vunpack.c.l.b16 %v513
        %v1848 = vunpack.c.h.b16 %v513
        %v1849 = vunpack.c.l.b16 %v514
        %v1850 = vunpack.c.h.b16 %v514
        %v1851 = vunpack.c.l.b16 %v515
        %v1852 = vunpack.c.h.b16 %v515
        %v1853 = vunpack.c.l.b16 %v516
        %v1854 = vunpack.c.h.b16 %v516
        %v1855 = vunpack.c.l.b16 %v517
        %v1856 = vunpack.c.h.b16 %v517
        %v1857 = vunpack.c.l.b16 %v518
        %v1858 = vunpack.c.h.b16 %v518
        %v1859 = vunpack.c.l.b16 %v519
        %v1860 = vunpack.c.h.b16 %v519
        %v1861 = vunpack.c.l.b16 %v520
        %v1862 = vunpack.c.h.b16 %v520
        %v1863 = vunpack.c.l.b16 %v521
        %v1864 = vunpack.c.h.b16 %v521
        %v1865 = vunpack.c.l.b16 %v522
        %v1866 = vunpack.c.h.b16 %v522
        %v1867 = vunpack.c.l.b16 %v523
        %v1868 = vunpack.c.h.b16 %v523
        %v1869 = vunpack.c.l.b16 %v524
        %v1870 = vunpack.c.h.b16 %v524
        %v1871 = vunpack.c.l.b16 %v525
        %v1872 = vunpack.c.h.b16 %v525
        %v1873 = vunpack.c.l.b16 %v526
        %v1874 = vunpack.c.h.b16 %v526
        %v1875 = vunpack.c.l.b16 %v527
        %v1876 = vunpack.c.h.b16 %v527
        %v1877 = vunpack.c.l.b16 %v528
        %v1878 = vunpack.c.h.b16 %v528
        %v1879 = vunpack.c.l.b16 %v529
        %v1880 = vunpack.c.h.b16 %v529
        %v1881 = vunpack.c.l.b16 %v530
        %v1882 = vunpack.c.h.b16 %v530
        %v1883 = vunpack.c.l.b16 %v531
        %v1884 = vunpack.c.h.b16 %v531
        %v1885 = vunpack.c.l.b16 %v532
        %v1886 = vunpack.c.h.b16 %v532
        %v1887 = vunpack.c.l.b16 %v533
        %v1888 = vunpack.c.h.b16 %v533
        %v1889 = vunpack.c.l.b16 %v534
        %v1890 = vunpack.c.h.b16 %v534
        %v1891 = vunpack.c.l.b16 %v535
        %v1892 = vunpack.c.h.b16 %v535
        %v1893 = vunpack.c.l.b16 %v536
        %v1894 = vunpack.c.h.b16 %v536
        %v1895 = vunpack.c.l.b16 %v537
        %v1896 = vunpack.c.h.b16 %v537
        %v1897 = vunpack.c.l.b16 %v538
        %v1898 = vunpack.c.h.b16 %v538
        %v1899 = vunpack.c.l.b16 %v539
        %v1900 = vunpack.c.h.b16 %v539
        %v1901 = vunpack.c.l.b16 %v540
        %v1902 = vunpack.c.h.b16 %v540
        %v1903 = vunpack.c.l.b16 %v541
        %v1904 = vunpack.c.h.b16 %v541
        %v1905 = vunpack.c.l.b16 %v542
        %v1906 = vunpack.c.h.b16 %v542
        %v1907 = vunpack.c.l.b16 %v543
        %v1908 = vunpack.c.h.b16 %v543
        %v1909 = vunpack.c.l.b16 %v544
        %v1910 = vunpack.c.h.b16 %v544
        %v1911 = vunpack.c.l.b16 %v545
        %v1912 = vunpack.c.h.b16 %v545
        %v1913 = vunpack.c.l.b16 %v546
        %v1914 = vunpack.c.h.b16 %v546
        %v1915 = vunpack.c.l.b16 %v547
        %v1916 = vunpack.c.h.b16 %v547
        %v1917 = vunpack.c.l.b16 %v548
        %v1918 = vunpack.c.h.b16 %v548
        %v1919 = vunpack.c.l.b16 %v549
        %v1920 = vunpack.c.h.b16 %v549
        %v1921 = vunpack.c.l.b16 %v550
        %v1922 = vunpack.c.h.b16 %v550
        %v1923 = vunpack.c.l.b16 %v551
        %v1924 = vunpack.c.h.b16 %v551
        %v1925 = vunpack.c.l.b16 %v552
        %v1926 = vunpack.c.h.b16 %v552
        %v1927 = vunpack.c.l.b16 %v553
        %v1928 = vunpack.c.h.b16 %v553
        %v1929 = vunpack.c.l.b16 %v554
        %v1930 = vunpack.c.h.b16 %v554
        %v1931 = vunpack.c.l.b16 %v555
        %v1932 = vunpack.c.h.b16 %v555
        %v1933 = vunpack.c.l.b16 %v556
        %v1934 = vunpack.c.h.b16 %v556
        %v1935 = vunpack.c.l.b16 %v557
        %v1936 = vunpack.c.h.b16 %v557
        %v1937 = vunpack.c.l.b16 %v558
        %v1938 = vunpack.c.h.b16 %v558
        %v1939 = vunpack.c.l.b16 %v559
        %v1940 = vunpack.c.h.b16 %v559
        %v1941 = vunpack.c.l.b16 %v560
        %v1942 = vunpack.c.h.b16 %v560
        %v1943 = vunpack.c.l.b16 %v561
        %v1944 = vunpack.c.h.b16 %v561
        %v1945 = vunpack.c.l.b16 %v562
        %v1946 = vunpack.c.h.b16 %v562
        %v1947 = vunpack.c.l.b16 %v563
        %v1948 = vunpack.c.h.b16 %v563
        %v1949 = vunpack.c.l.b16 %v564
        %v1950 = vunpack.c.h.b16 %v564
        %v1951 = vunpack.c.l.b16 %v565
        %v1952 = vunpack.c.h.b16 %v565
        %v1953 = vunpack.c.l.b16 %v566
        %v1954 = vunpack.c.h.b16 %v566
        %v1955 = vunpack.c.l.b16 %v567
        %v1956 = vunpack.c.h.b16 %v567
        %v1957 = vunpack.c.l.b16 %v568
        %v1958 = vunpack.c.h.b16 %v568
        %v1959 = vunpack.c.l.b16 %v569
        %v1960 = vunpack.c.h.b16 %v569
        %v1961 = vunpack.c.l.b16 %v570
        %v1962 = vunpack.c.h.b16 %v570
        %v1963 = vunpack.c.l.b16 %v571
        %v1964 = vunpack.c.h.b16 %v571
        %v1965 = vunpack.c.l.b16 %v572
        %v1966 = vunpack.c.h.b16 %v572
        %v1967 = vunpack.c.l.b16 %v573
        %v1968 = vunpack.c.h.b16 %v573
        %v1969 = vunpack.c.l.b16 %v574
        %v1970 = vunpack.c.h.b16 %v574
        %v1971 = vunpack.c.l.b16 %v575
        %v1972 = vunpack.c.h.b16 %v575
        %v1973 = vunpack.c.l.b16 %v576
        %v1974 = vunpack.c.h.b16 %v576
        %v1975 = vunpack.c.l.b16 %v577
        %v1976 = vunpack.c.h.b16 %v577
        %v1977 = vunpack.c.l.b16 %v578
        %v1978 = vunpack.c.h.b16 %v578
        %v1979 = vunpack.c.l.b16 %v579
        %v1980 = vunpack.c.h.b16 %v579
        %v1981 = vunpack.c.l.b16 %v580
        %v1982 = vunpack.c.h.b16 %v580
        %v1983 = vunpack.c.l.b16 %v581
        %v1984 = vunpack.c.h.b16 %v581
        %v1985 = vunpack.c.l.b16 %v582
        %v1986 = vunpack.c.h.b16 %v582
        %v1987 = vunpack.c.l.b16 %v583
        %v1988 = vunpack.c.h.b16 %v583
        %v1989 = vunpack.c.l.b16 %v584
        %v1990 = vunpack.c.h.b16 %v584
        %v1991 = vunpack.c.l.b16 %v585
        %v1992 = vunpack.c.h.b16 %v585
        %v1993 = vunpack.c.l.b16 %v586
        %v1994 = vunpack.c.h.b16 %v586
        %v1995 = vunpack.c.l.b16 %v587
        %v1996 = vunpack.c.h.b16 %v587
        %v1997 = vunpack.c.l.b16 %v588
        %v1998 = vunpack.c.h.b16 %v588
        %v1999 = vunpack.c.l.b16 %v589
        %v2000 = vunpack.c.h.b16 %v589
        %v2001 = vunpack.c.l.b16 %v590
        %v2002 = vunpack.c.h.b16 %v590
        %v2003 = vunpack.c.l.b16 %v591
        %v2004 = vunpack.c.h.b16 %v591
        %v2005 = vunpack.c.l.b16 %v592
        %v2006 = vunpack.c.h.b16 %v592
        %v2007 = vunpack.c.l.b16 %v593
        %v2008 = vunpack.c.h.b16 %v593
        %v2009 = vunpack.c.l.b16 %v594
        %v2010 = vunpack.c.h.b16 %v594
        %v2011 = vunpack.c.l.b16 %v595
        %v2012 = vunpack.c.h.b16 %v595
        %v2013 = vunpack.c.l.b16 %v596
        %v2014 = vunpack.c.h.b16 %v596
        %v2015 = vunpack.c.l.b16 %v597
        %v2016 = vunpack.c.h.b16 %v597
        %v2017 = vunpack.c.l.b16 %v598
        %v2018 = vunpack.c.h.b16 %v598
        %v2019 = vunpack.c.l.b16 %v599
        %v2020 = vunpack.c.h.b16 %v599
        %v2021 = vunpack.c.l.b16 %v600
        %v2022 = vunpack.c.h.b16 %v600
        %v2023 = vunpack.c.l.b16 %v601
        %v2024 = vunpack.c.h.b16 %v601
        %v2025 = vunpack.c.l.b16 %v602
        %v2026 = vunpack.c.h.b16 %v602
        %v2027 = vunpack.c.l.b16 %v603
        %v2028 = vunpack.c.h.b16 %v603
        %v2029 = vunpack.c.l.b16 %v604
        %v2030 = vunpack.c.h.b16 %v604
        %v2031 = vunpack.c.l.b16 %v605
        %v2032 = vunpack.c.h.b16 %v605
        %v2033 = vunpack.c.l.b16 %v606
        %v2034 = vunpack.c.h.b16 %v606
        %v2035 = vunpack.c.l.b16 %v607
        %v2036 = vunpack.c.h.b16 %v607
        %v2037 = vunpack.c.l.b16 %v608
        %v2038 = vunpack.c.h.b16 %v608
        %v2039 = vunpack.c.l.b16 %v609
        %v2040 = vunpack.c.h.b16 %v609
        %v2041 = vunpack.c.l.b16 %v610
        %v2042 = vunpack.c.h.b16 %v610
        %v2043 = vunpack.c.l.b16 %v611
        %v2044 = vunpack.c.h.b16 %v611
        %v2045 = vunpack.c.l.b16 %v612
        %v2046 = vunpack.c.h.b16 %v612
        %v2047 = vunpack.c.l.b16 %v613
        %v2048 = vunpack.c.h.b16 %v613
        %v2049 = vunpack.c.l.b16 %v614
        %v2050 = vunpack.c.h.b16 %v614
        %v2051 = vunpack.c.l.b16 %v615
        %v2052 = vunpack.c.h.b16 %v615
        %v2053 = vunpack.c.l.b16 %v616
        %v2054 = vunpack.c.h.b16 %v616
        %v2055 = vunpack.c.l.b16 %v617
        %v2056 = vunpack.c.h.b16 %v617
        %v2057 = vunpack.c.l.b16 %v618
        %v2058 = vunpack.c.h.b16 %v618
        %v2059 = vunpack.c.l.b16 %v619
        %v2060 = vunpack.c.h.b16 %v619
        %v2061 = vunpack.c.l.b16 %v620
        %v2062 = vunpack.c.h.b16 %v620
        %v2063 = vunpack.c.l.b16 %v621
        %v2064 = vunpack.c.h.b16 %v621
        %v2065 = vunpack.c.l.b16 %v622
        %v2066 = vunpack.c.h.b16 %v622
        %v2067 = vunpack.c.l.b16 %v623
        %v2068 = vunpack.c.h.b16 %v623
        %v2069 = vunpack.c.l.b16 %v624
        %v2070 = vunpack.c.h.b16 %v624
        %v2071 = vunpack.c.l.b16 %v625
        %v2072 = vunpack.c.h.b16 %v625
        %v2073 = vunpack.c.l.b16 %v626
        %v2074 = vunpack.c.h.b16 %v626
        %v2075 = vunpack.c.l.b16 %v627
        %v2076 = vunpack.c.h.b16 %v627
        %v2077 = vunpack.c.l.b16 %v628
        %v2078 = vunpack.c.h.b16 %v628
        %v2079 = vunpack.c.l.b16 %v629
        %v2080 = vunpack.c.h.b16 %v629
        %v2081 = vunpack.c.l.b16 %v630
        %v2082 = vunpack.c.h.b16 %v630
        %v2083 = vunpack.c.l.b16 %v631
        %v2084 = vunpack.c.h.b16 %v631
        %v2085 = vunpack.c.l.b16 %v632
        %v2086 = vunpack.c.h.b16 %v632
        %v2087 = vunpack.c.l.b16 %v633
        %v2088 = vunpack.c.h.b16 %v633
        %v2089 = vunpack.c.l.b16 %v634
        %v2090 = vunpack.c.h.b16 %v634
        %v2091 = vunpack.c.l.b16 %v635
        %v2092 = vunpack.c.h.b16 %v635
        %v2093 = vunpack.c.l.b16 %v636
        %v2094 = vunpack.c.h.b16 %v636
        %v2095 = vunpack.c.l.b16 %v637
        %v2096 = vunpack.c.h.b16 %v637
        %v2097 = vunpack.c.l.b16 %v638
        %v2098 = vunpack.c.h.b16 %v638
        %v2099 = vunpack.c.l.b16 %v639
        %v2100 = vunpack.c.h.b16 %v639
        %v2101 = vunpack.c.l.b16 %v640
        %v2102 = vunpack.c.h.b16 %v640
        %v2103 = vunpack.c.l.b16 %v641
        %v2104 = vunpack.c.h.b16 %v641
        %v2105 = vunpack.c.l.b16 %v642
        %v2106 = vunpack.c.h.b16 %v642
        %v2107 = vunpack.c.l.b16 %v643
        %v2108 = vunpack.c.h.b16 %v643
        %v2109 = vunpack.c.l.b16 %v644
        %v2110 = vunpack.c.h.b16 %v644
        %v2111 = vunpack.c.l.b16 %v645
        %v2112 = vunpack.c.h.b16 %v645
        %v2113 = vunpack.c.l.b16 %v646
        %v2114 = vunpack.c.h.b16 %v646
        %v2115 = vunpack.c.l.b16 %v647
        %v2116 = vunpack.c.h.b16 %v647
        %v2117 = vunpack.c.l.b16 %v648
        %v2118 = vunpack.c.h.b16 %v648
        %v2119 = vunpack.c.l.b16 %v649
        %v2120 = vunpack.c.h.b16 %v649
        %v2121 = vunpack.c.l.b16 %v650
        %v2122 = vunpack.c.h.b16 %v650
        %v2123 = vunpack.c.l.b16 %v651
        %v2124 = vunpack.c.h.b16 %v651
        %v2125 = vunpack.c.l.b16 %v652
        %v2126 = vunpack.c.h.b16 %v652
        %v2127 = vunpack.c.l.b16 %v653
        %v2128 = vunpack.c.h.b16 %v653
        %v2129 = vunpack.c.l.b16 %v654
        %v2130 = vunpack.c.h.b16 %v654
        %v2131 = vunpack.c.l.b16 %v655
        %v2132 = vunpack.c.h.b16 %v655
        %v2133 = vunpack.c.l.b16 %v656
        %v2134 = vunpack.c.h.b16 %v656
        %v2135 = vunpack.c.l.b16 %v657
        %v2136 = vunpack.c.h.b16 %v657
        %v2137 = vunpack.c.l.b16 %v658
        %v2138 = vunpack.c.h.b16 %v658
        %v2139 = vunpack.c.l.b16 %v659
        %v2140 = vunpack.c.h.b16 %v659
        %v2141 = vunpack.c.l.b16 %v660
        %v2142 = vunpack.c.h.b16 %v660
        %v2143 = vunpack.c.l.b16 %v661
        %v2144 = vunpack.c.h.b16 %v661
        %v2145 = vunpack.c.l.b16 %v662
        %v2146 = vunpack.c.h.b16 %v662
        %v2147 = vunpack.c.l.b16 %v663
        %v2148 = vunpack.c.h.b16 %v663
        %v2149 = vunpack.c.l.b16 %v664
        %v2150 = vunpack.c.h.b16 %v664
        %v2151 = vunpack.c.l.b16 %v665
        %v2152 = vunpack.c.h.b16 %v665
        %v2153 = vunpack.c.l.b16 %v666
        %v2154 = vunpack.c.h.b16 %v666
        %v2155 = vunpack.c.l.b16 %v667
        %v2156 = vunpack.c.h.b16 %v667
        %v2157 = vunpack.c.l.b16 %v668
        %v2158 = vunpack.c.h.b16 %v668
        %v2159 = vunpack.c.l.b16 %v669
        %v2160 = vunpack.c.h.b16 %v669
        %v2161 = vunpack.c.l.b16 %v670
        %v2162 = vunpack.c.h.b16 %v670
        %v2163 = vunpack.c.l.b16 %v671
        %v2164 = vunpack.c.h.b16 %v671
        %v2165 = vunpack.c.l.b16 %v672
        %v2166 = vunpack.c.h.b16 %v672
        %v2167 = vunpack.c.l.b16 %v673
        %v2168 = vunpack.c.h.b16 %v673
        %v2169 = vunpack.c.l.b16 %v674
        %v2170 = vunpack.c.h.b16 %v674
        %v2171 = vunpack.c.l.b16 %v675
        %v2172 = vunpack.c.h.b16 %v675
        %v2173 = vunpack.c.l.b16 %v676
        %v2174 = vunpack.c.h.b16 %v676
        %v2175 = vunpack.c.l.b16 %v677
        %v2176 = vunpack.c.h.b16 %v677
        %v2177 = vunpack.c.l.b16 %v678
        %v2178 = vunpack.c.h.b16 %v678
        %v2179 = vunpack.c.l.b16 %v679
        %v2180 = vunpack.c.h.b16 %v679
        %v2181 = vunpack.c.l.b16 %v680
        %v2182 = vunpack.c.h.b16 %v680
        %v2183 = vunpack.c.l.b16 %v681
        %v2184 = vunpack.c.h.b16 %v681
        %v2185 = vunpack.c.l.b16 %v682
        %v2186 = vunpack.c.h.b16 %v682
        %v2187 = vunpack.c.l.b16 %v683
        %v2188 = vunpack.c.h.b16 %v683
        %v2189 = vunpack.c.l.b16 %v684
        %v2190 = vunpack.c.h.b16 %v684
        %v2191 = vunpack.c.l.b16 %v685
        %v2192 = vunpack.c.h.b16 %v685
        %v2193 = vunpack.c.l.b16 %v686
        %v2194 = vunpack.c.h.b16 %v686
        %v2195 = vunpack.c.l.b16 %v687
        %v2196 = vunpack.c.h.b16 %v687
        %v2197 = vunpack.c.l.b16 %v688
        %v2198 = vunpack.c.h.b16 %v688
        %v2199 = vunpack.c.l.b16 %v689
        %v2200 = vunpack.c.h.b16 %v689
        %v2201 = vunpack.c.l.b16 %v690
        %v2202 = vunpack.c.h.b16 %v690
        %v2203 = vunpack.c.l.b16 %v691
        %v2204 = vunpack.c.h.b16 %v691
        %v2205 = vunpack.c.l.b16 %v692
        %v2206 = vunpack.c.h.b16 %v692
        %v2207 = vunpack.c.l.b16 %v693
        %v2208 = vunpack.c.h.b16 %v693
        %v2209 = vunpack.c.l.b16 %v694
        %v2210 = vunpack.c.h.b16 %v694
        %v2211 = vunpack.c.l.b16 %v695
        %v2212 = vunpack.c.h.b16 %v695
        %v2213 = vunpack.c.l.b16 %v696
        %v2214 = vunpack.c.h.b16 %v696
        %v2215 = vunpack.c.l.b16 %v697
        %v2216 = vunpack.c.h.b16 %v697
        %v2217 = vunpack.c.l.b16 %v698
        %v2218 = vunpack.c.h.b16 %v698
        %v2219 = vunpack.c.l.b16 %v699
        %v2220 = vunpack.c.h.b16 %v699
        %v2221 = vunpack.c.l.b16 %v700
        %v2222 = vunpack.c.h.b16 %v700
        %v2223 = vunpack.c.l.b16 %v701
        %v2224 = vunpack.c.h.b16 %v701
        %v2225 = vunpack.c.l.b16 %v702
        %v2226 = vunpack.c.h.b16 %v702
        %v2227 = vunpack.c.l.b16 %v703
        %v2228 = vunpack.c.h.b16 %v703
        %v2229 = vunpack.c.l.b16 %v704
        %v2230 = vunpack.c.h.b16 %v704
        %v2231 = vunpack.c.l.b16 %v705
        %v2232 = vunpack.c.h.b16 %v705
        %v2233 = vunpack.c.l.b16 %v706
        %v2234 = vunpack.c.h.b16 %v706
        %v2235 = vunpack.c.l.b16 %v707
        %v2236 = vunpack.c.h.b16 %v707
        %v2237 = vunpack.c.l.b16 %v708
        %v2238 = vunpack.c.h.b16 %v708
        %v2239 = vunpack.c.l.b16 %v709
        %v2240 = vunpack.c.h.b16 %v709
        %v2241 = vunpack.c.l.b16 %v710
        %v2242 = vunpack.c.h.b16 %v710
        %v2243 = vunpack.c.l.b16 %v711
        %v2244 = vunpack.c.h.b16 %v711
        %v2245 = vunpack.c.l.b16 %v712
        %v2246 = vunpack.c.h.b16 %v712
        %v2247 = vunpack.c.l.b16 %v713
        %v2248 = vunpack.c.h.b16 %v713
        %v2249 = vunpack.c.l.b16 %v714
        %v2250 = vunpack.c.h.b16 %v714
        %v2251 = vunpack.c.l.b16 %v715
        %v2252 = vunpack.c.h.b16 %v715
        %v2253 = vunpack.c.l.b16 %v716
        %v2254 = vunpack.c.h.b16 %v716
        %v2255 = vunpack.c.l.b16 %v717
        %v2256 = vunpack.c.h.b16 %v717
        %v2257 = vunpack.c.l.b16 %v718
        %v2258 = vunpack.c.h.b16 %v718
        %v2259 = vunpack.c.l.b16 %v719
        %v2260 = vunpack.c.h.b16 %v719
        %v2261 = vunpack.c.l.b16 %v720
        %v2262 = vunpack.c.h.b16 %v720
        %v2263 = vunpack.c.l.b16 %v721
        %v2264 = vunpack.c.h.b16 %v721
        %v2265 = vunpack.c.l.b16 %v722
        %v2266 = vunpack.c.h.b16 %v722
        %v2267 = vunpack.c.l.b16 %v723
        %v2268 = vunpack.c.h.b16 %v723
        %v2269 = vunpack.c.l.b16 %v724
        %v2270 = vunpack.c.h.b16 %v724
        %v2271 = vunpack.c.l.b16 %v725
        %v2272 = vunpack.c.h.b16 %v725
        %v2273 = vunpack.c.l.b16 %v726
        %v2274 = vunpack.c.h.b16 %v726
        %v2275 = vunpack.c.l.b16 %v727
        %v2276 = vunpack.c.h.b16 %v727
        %v2277 = vunpack.c.l.b16 %v728
        %v2278 = vunpack.c.h.b16 %v728
        %v2279 = vunpack.c.l.b16 %v729
        %v2280 = vunpack.c.h.b16 %v729
        %v2281 = vunpack.c.l.b16 %v730
        %v2282 = vunpack.c.h.b16 %v730
        %v2283 = vunpack.c.l.b16 %v731
        %v2284 = vunpack.c.h.b16 %v731
        %v2285 = vunpack.c.l.b16 %v732
        %v2286 = vunpack.c.h.b16 %v732
        %v2287 = vunpack.c.l.b16 %v733
        %v2288 = vunpack.c.h.b16 %v733
        %v2289 = vunpack.c.l.b16 %v734
        %v2290 = vunpack.c.h.b16 %v734
        %v2291 = vunpack.c.l.b16 %v735
        %v2292 = vunpack.c.h.b16 %v735
        %v2293 = vunpack.c.l.b16 %v736
        %v2294 = vunpack.c.h.b16 %v736
        %v2295 = vunpack.c.l.b16 %v737
        %v2296 = vunpack.c.h.b16 %v737
        %v2297 = vunpack.c.l.b16 %v738
        %v2298 = vunpack.c.h.b16 %v738
        %v2299 = vunpack.c.l.b16 %v739
        %v2300 = vunpack.c.h.b16 %v739
        %v2301 = vunpack.c.l.b16 %v740
        %v2302 = vunpack.c.h.b16 %v740
        %v2303 = vunpack.c.l.b16 %v741
        %v2304 = vunpack.c.h.b16 %v741
        %v2305 = vunpack.c.l.b16 %v742
        %v2306 = vunpack.c.h.b16 %v742
        %v2307 = vunpack.c.l.b16 %v743
        %v2308 = vunpack.c.h.b16 %v743
        %v2309 = vunpack.c.l.b16 %v744
        %v2310 = vunpack.c.h.b16 %v744
        %v2311 = vunpack.c.l.b16 %v745
        %v2312 = vunpack.c.h.b16 %v745
        %v2313 = vunpack.c.l.b16 %v746
        %v2314 = vunpack.c.h.b16 %v746
        %v2315 = vunpack.c.l.b16 %v747
        %v2316 = vunpack.c.h.b16 %v747
        %v2317 = vunpack.c.l.b16 %v748
        %v2318 = vunpack.c.h.b16 %v748
        %v2319 = vunpack.c.l.b16 %v749
        %v2320 = vunpack.c.h.b16 %v749
        %v2321 = vunpack.c.l.b16 %v750
        %v2322 = vunpack.c.h.b16 %v750
        %v2323 = vunpack.c.l.b16 %v751
        %v2324 = vunpack.c.h.b16 %v751
        %v2325 = vunpack.c.l.b16 %v752
        %v2326 = vunpack.c.h.b16 %v752
        %v2327 = vunpack.c.l.b16 %v753
        %v2328 = vunpack.c.h.b16 %v753
        %v2329 = vunpack.c.l.b16 %v754
        %v2330 = vunpack.c.h.b16 %v754
        %v2331 = vunpack.c.l.b16 %v755
        %v2332 = vunpack.c.h.b16 %v755
        %v2333 = vunpack.c.l.b16 %v756
        %v2334 = vunpack.c.h.b16 %v756
        %v2335 = vunpack.c.l.b16 %v757
        %v2336 = vunpack.c.h.b16 %v757
        %v2337 = vunpack.c.l.b16 %v758
        %v2338 = vunpack.c.h.b16 %v758
        %v2339 = vunpack.c.l.b16 %v759
        %v2340 = vunpack.c.h.b16 %v759
        %v2341 = vunpack.c.l.b16 %v760
        %v2342 = vunpack.c.h.b16 %v760
        %v2343 = vunpack.c.l.b16 %v761
        %v2344 = vunpack.c.h.b16 %v761
        %v2345 = vunpack.c.l.b16 %v762
        %v2346 = vunpack.c.h.b16 %v762
        %v2347 = vunpack.c.l.b16 %v763
        %v2348 = vunpack.c.h.b16 %v763
        %v2349 = vunpack.c.l.b16 %v764
        %v2350 = vunpack.c.h.b16 %v764
        %v2351 = vunpack.c.l.b16 %v765
        %v2352 = vunpack.c.h.b16 %v765
        %v2353 = vunpack.c.l.b16 %v766
        %v2354 = vunpack.c.h.b16 %v766
        %v2355 = vunpack.c.l.b16 %v767
        %v2356 = vunpack.c.h.b16 %v767
        %v2357 = vunpack.c.l.b16 %v768
        %v2358 = vunpack.c.h.b16 %v768
        %v2359 = vunpack.c.l.b16 %v769
        %v2360 = vunpack.c.h.b16 %v769
        %v2361 = vunpack.c.l.b16 %v770
        %v2362 = vunpack.c.h.b16 %v770
        %v2363 = vunpack.c.l.b16 %v771
        %v2364 = vunpack.c.h.b16 %v771
        %v2365 = vunpack.c.l.b16 %v772
        %v2366 = vunpack.c.h.b16 %v772
        %v2367 = vunpack.c.l.b16 %v773
        %v2368 = vunpack.c.h.b16 %v773
        %v2369 = vunpack.c.l.b16 %v774
        %v2370 = vunpack.c.h.b16 %v774
        %v2371 = vunpack.c.l.b16 %v775
        %v2372 = vunpack.c.h.b16 %v775
        %v2373 = vunpack.c.l.b16 %v776
        %v2374 = vunpack.c.h.b16 %v776
        %v2375 = vunpack.c.l.b16 %v777
        %v2376 = vunpack.c.h.b16 %v777
        %v2377 = vunpack.c.l.b16 %v778
        %v2378 = vunpack.c.h.b16 %v778
        %v2379 = vunpack.c.l.b16 %v779
        %v2380 = vunpack.c.h.b16 %v779
        %v2381 = vunpack.c.l.b16 %v780
        %v2382 = vunpack.c.h.b16 %v780
        %v2383 = vunpack.c.l.b16 %v781
        %v2384 = vunpack.c.h.b16 %v781
        %v2385 = vunpack.c.l.b16 %v782
        %v2386 = vunpack.c.h.b16 %v782
        %v2387 = vunpack.c.l.b16 %v783
        %v2388 = vunpack.c.h.b16 %v783
        %v2389 = vunpack.c.l.b16 %v784
        %v2390 = vunpack.c.h.b16 %v784
        %v2391 = vunpack.c.l.b16 %v785
        %v2392 = vunpack.c.h.b16 %v785
        %v2393 = vunpack.c.l.b16 %v786
        %v2394 = vunpack.c.h.b16 %v786
        %v2395 = vunpack.c.l.b16 %v787
        %v2396 = vunpack.c.h.b16 %v787
        %v2397 = vunpack.c.l.b16 %v788
        %v2398 = vunpack.c.h.b16 %v788
        %v2399 = vunpack.c.l.b16 %v789
        %v2400 = vunpack.c.h.b16 %v789
        %v2401 = vunpack.c.l.b16 %v790
        %v2402 = vunpack.c.h.b16 %v790
        %v2403 = vunpack.c.l.b16 %v791
        %v2404 = vunpack.c.h.b16 %v791
        %v2405 = vunpack.c.l.b16 %v792
        %v2406 = vunpack.c.h.b16 %v792
        %v2407 = vunpack.c.l.b16 %v793
        %v2408 = vunpack.c.h.b16 %v793
        %v2409 = vunpack.c.l.b16 %v794
        %v2410 = vunpack.c.h.b16 %v794
        %v2411 = vunpack.c.l.b16 %v795
        %v2412 = vunpack.c.h.b16 %v795
        %v2413 = vunpack.c.l.b16 %v796
        %v2414 = vunpack.c.h.b16 %v796
        %v2415 = vunpack.c.l.b16 %v797
        %v2416 = vunpack.c.h.b16 %v797
        %v2417 = vunpack.c.l.b16 %v798
        %v2418 = vunpack.c.h.b16 %v798
        %v2419 = vunpack.c.l.b16 %v799
        %v2420 = vunpack.c.h.b16 %v799
        %v2421 = vunpack.c.l.b16 %v800
        %v2422 = vunpack.c.h.b16 %v800
        %v2423 = vunpack.c.l.b16 %v801
        %v2424 = vunpack.c.h.b16 %v801
        %v2425 = vunpack.c.l.b16 %v802
        %v2426 = vunpack.c.h.b16 %v802
        %v2427 = vunpack.c.l.b16 %v803
        %v2428 = vunpack.c.h.b16 %v803
        %v2429 = vunpack.c.l.b16 %v804
        %v2430 = vunpack.c.h.b16 %v804
        %v2431 = vunpack.c.l.b16 %v805
        %v2432 = vunpack.c.h.b16 %v805
        %v2433 = vunpack.c.l.b16 %v806
        %v2434 = vunpack.c.h.b16 %v806
        %v2435 = vunpack.c.l.b16 %v807
        %v2436 = vunpack.c.h.b16 %v807
        %v2437 = vunpack.c.l.b16 %v808
        %v2438 = vunpack.c.h.b16 %v808
        %v2439 = vunpack.c.l.b16 %v809
        %v2440 = vunpack.c.h.b16 %v809
        %v2441 = vunpack.c.l.b16 %v810
        %v2442 = vunpack.c.h.b16 %v810
        %v2443 = vunpack.c.l.b16 %v811
        %v2444 = vunpack.c.h.b16 %v811
        %v2445 = vunpack.c.l.b16 %v812
        %v2446 = vunpack.c.h.b16 %v812
        %v2447 = vunpack.c.l.b16 %v813
        %v2448 = vunpack.c.h.b16 %v813
        %v2449 = vunpack.c.l.b16 %v814
        %v2450 = vunpack.c.h.b16 %v814
        %v2451 = vunpack.c.l.b16 %v815
        %v2452 = vunpack.c.h.b16 %v815
        %v2453 = vunpack.c.l.b16 %v816
        %v2454 = vunpack.c.h.b16 %v816
        %v2455 = vunpack.c.l.b16 %v817
        %v2456 = vunpack.c.h.b16 %v817
        %v2457 = vunpack.c.l.b16 %v818
        %v2458 = vunpack.c.h.b16 %v818
        %v2459 = vunpack.c.l.b16 %v819
        %v2460 = vunpack.c.h.b16 %v819
        %v2461 = vunpack.c.l.b16 %v820
        %v2462 = vunpack.c.h.b16 %v820
        %v2463 = vunpack.c.l.b16 %v821
        %v2464 = vunpack.c.h.b16 %v821
        %v2465 = vunpack.c.l.b16 %v822
        %v2466 = vunpack.c.h.b16 %v822
        %v2467 = vunpack.c.l.b16 %v823
        %v2468 = vunpack.c.h.b16 %v823
        %v2469 = vunpack.c.l.b16 %v824
        %v2470 = vunpack.c.h.b16 %v824
        %v2471 = vunpack.c.l.b16 %v825
        %v2472 = vunpack.c.h.b16 %v825
        %v2473 = vunpack.c.l.b16 %v826
        %v2474 = vunpack.c.h.b16 %v826
        %v2475 = vunpack.c.l.b16 %v827
        %v2476 = vunpack.c.h.b16 %v827
        %v2477 = vunpack.c.l.b16 %v828
        %v2478 = vunpack.c.h.b16 %v828
        %v2479 = vunpack.c.l.b16 %v829
        %v2480 = vunpack.c.h.b16 %v829
        %v2481 = vunpack.c.l.b16 %v830
        %v2482 = vunpack.c.h.b16 %v830
        %v2483 = vunpack.c.l.b16 %v831
        %v2484 = vunpack.c.h.b16 %v831
        %v2485 = vunpack.c.l.b16 %v832
        %v2486 = vunpack.c.h.b16 %v832
        %v2487 = vunpack.c.l.b16 %v833
        %v2488 = vunpack.c.h.b16 %v833
        %v2489 = vunpack.c.l.b16 %v834
        %v2490 = vunpack.c.h.b16 %v834
        %v2491 = vunpack.c.l.b16 %v835
        %v2492 = vunpack.c.h.b16 %v835
        %v2493 = vunpack.c.l.b16 %v836
        %v2494 = vunpack.c.h.b16 %v836
        %v2495 = vunpack.c.l.b16 %v837
        %v2496 = vunpack.c.h.b16 %v837
        %v2497 = vunpack.c.l.b16 %v838
        %v2498 = vunpack.c.h.b16 %v838
        %v2499 = vunpack.c.l.b16 %v839
        %v2500 = vunpack.c.h.b16 %v839
        %v2501 = vunpack.c.l.b16 %v840
        %v2502 = vunpack.c.h.b16 %v840
        %v2503 = vunpack.c.l.b16 %v841
        %v2504 = vunpack.c.h.b16 %v841
        %v2505 = vunpack.c.l.b16 %v842
        %v2506 = vunpack.c.h.b16 %v842
        %v2507 = vunpack.c.l.b16 %v843
        %v2508 = vunpack.c.h.b16 %v843
        %v2509 = vunpack.c.l.b16 %v844
        %v2510 = vunpack.c.h.b16 %v844
        %v2511 = vunpack.c.l.b16 %v845
        %v2512 = vunpack.c.h.b16 %v845
        %v2513 = vunpack.c.l.b16 %v846
        %v2514 = vunpack.c.h.b16 %v846
        %v2515 = vunpack.c.l.b16 %v847
        %v2516 = vunpack.c.h.b16 %v847
        %v2517 = vunpack.c.l.b16 %v848
        %v2518 = vunpack.c.h.b16 %v848
        %v2519 = vunpack.c.l.b16 %v849
        %v2520 = vunpack.c.h.b16 %v849
        %v2521 = vunpack.c.l.b16 %v850
        %v2522 = vunpack.c.h.b16 %v850
        %v2523 = vunpack.c.l.b16 %v851
        %v2524 = vunpack.c.h.b16 %v851
        %v2525 = vunpack.c.l.b16 %v852
        %v2526 = vunpack.c.h.b16 %v852
        %v2527 = vunpack.c.l.b16 %v853
        %v2528 = vunpack.c.h.b16 %v853
        %v2529 = vunpack.c.l.b16 %v854
        %v2530 = vunpack.c.h.b16 %v854
        %v2531 = vunpack.c.l.b16 %v855
        %v2532 = vunpack.c.h.b16 %v855
        %v2533 = vunpack.c.l.b16 %v856
        %v2534 = vunpack.c.h.b16 %v856
        %v2535 = vunpack.c.l.b16 %v857
        %v2536 = vunpack.c.h.b16 %v857
        %v2537 = vunpack.c.l.b16 %v858
        %v2538 = vunpack.c.h.b16 %v858
        %v2539 = vunpack.c.l.b16 %v859
        %v2540 = vunpack.c.h.b16 %v859
        %v2541 = vunpack.c.l.b16 %v860
        %v2542 = vunpack.c.h.b16 %v860
        %v2543 = vunpack.c.l.b16 %v861
        %v2544 = vunpack.c.h.b16 %v861
        %v2545 = vunpack.c.l.b16 %v862
        %v2546 = vunpack.c.h.b16 %v862
        %v2547 = vunpack.c.l.b16 %v863
        %v2548 = vunpack.c.h.b16 %v863
        %v2549 = vunpack.c.l.b16 %v864
        %v2550 = vunpack.c.h.b16 %v864
        %v2551 = vunpack.c.l.b16 %v865
        %v2552 = vunpack.c.h.b16 %v865
        %v2553 = vunpack.c.l.b16 %v866
        %v2554 = vunpack.c.h.b16 %v866
        %v2555 = vunpack.c.l.b16 %v867
        %v2556 = vunpack.c.h.b16 %v867
        %v2557 = vunpack.c.l.b16 %v868
        %v2558 = vunpack.c.h.b16 %v868
        %v2559 = vunpack.c.l.b16 %v869
        %v2560 = vunpack.c.h.b16 %v869
        %v2561 = vunpack.c.l.b16 %v870
        %v2562 = vunpack.c.h.b16 %v870
        %v2563 = vunpack.c.l.b16 %v871
        %v2564 = vunpack.c.h.b16 %v871
        %v2565 = vunpack.c.l.b16 %v872
        %v2566 = vunpack.c.h.b16 %v872
        %v2567 = vunpack.c.l.b16 %v873
        %v2568 = vunpack.c.h.b16 %v873
        %v2569 = vunpack.c.l.b16 %v874
        %v2570 = vunpack.c.h.b16 %v874
        %v2571 = vpack.c.b16 %v1549, %v1547
        %v2572 = vpack.c.b16 %v1550, %v1548
        %v2573 = vpack.c.b16 %v1553, %v1551
        %v2574 = vpack.c.b16 %v1554, %v1552
        %v2575 = vpack.c.b16 %v1557, %v1555
        %v2576 = vpack.c.b16 %v1558, %v1556
        %v2577 = vpack.c.b16 %v1561, %v1559
        %v2578 = vpack.c.b16 %v1562, %v1560
        %v2579 = vpack.c.b16 %v1565, %v1563
        %v2580 = vpack.c.b16 %v1566, %v1564
        %v2581 = vpack.c.b16 %v1569, %v1567
        %v2582 = vpack.c.b16 %v1570, %v1568
        %v2583 = vpack.c.b16 %v1573, %v1571
        %v2584 = vpack.c.b16 %v1574, %v1572
        %v2585 = vpack.c.b16 %v1577, %v1575
        %v2586 = vpack.c.b16 %v1578, %v1576
        %v2587 = vpack.c.b16 %v1581, %v1579
        %v2588 = vpack.c.b16 %v1582, %v1580
        %v2589 = vpack.c.b16 %v1585, %v1583
        %v2590 = vpack.c.b16 %v1586, %v1584
        %v2591 = vpack.c.b16 %v1589, %v1587
        %v2592 = vpack.c.b16 %v1590, %v1588
        %v2593 = vpack.c.b16 %v1593, %v1591
        %v2594 = vpack.c.b16 %v1594, %v1592
        %v2595 = vpack.c.b16 %v1597, %v1595
        %v2596 = vpack.c.b16 %v1598, %v1596
        %v2597 = vpack.c.b16 %v1601, %v1599
        %v2598 = vpack.c.b16 %v1602, %v1600
        %v2599 = vpack.c.b16 %v1605, %v1603
        %v2600 = vpack.c.b16 %v1606, %v1604
        %v2601 = vpack.c.b16 %v1609, %v1607
        %v2602 = vpack.c.b16 %v1610, %v1608
        %v2603 = vpack.c.b16 %v1613, %v1611
        %v2604 = vpack.c.b16 %v1614, %v1612
        %v2605 = vpack.c.b16 %v1617, %v1615
        %v2606 = vpack.c.b16 %v1618, %v1616
        %v2607 = vpack.c.b16 %v1621, %v1619
        %v2608 = vpack.c.b16 %v1622, %v1620
        %v2609 = vpack.c.b16 %v1625, %v1623
        %v2610 = vpack.c.b16 %v1626, %v1624
        %v2611 = vpack.c.b16 %v1629, %v1627
        %v2612 = vpack.c.b16 %v1630, %v1628
        %v2613 = vpack.c.b16 %v1633, %v1631
        %v2614 = vpack.c.b16 %v1634, %v1632
        %v2615 = vpack.c.b16 %v1637, %v1635
        %v2616 = vpack.c.b16 %v1638, %v1636
        %v2617 = vpack.c.b16 %v1641, %v1639
        %v2618 = vpack.c.b16 %v1642, %v1640
        %v2619 = vpack.c.b16 %v1645, %v1643
        %v2620 = vpack.c.b16 %v1646, %v1644
        %v2621 = vpack.c.b16 %v1649, %v1647
        %v2622 = vpack.c.b16 %v1650, %v1648
        %v2623 = vpack.c.b16 %v1653, %v1651
        %v2624 = vpack.c.b16 %v1654, %v1652
        %v2625 = vpack.c.b16 %v1657, %v1655
        %v2626 = vpack.c.b16 %v1658, %v1656
        %v2627 = vpack.c.b16 %v1661, %v1659
        %v2628 = vpack.c.b16 %v1662, %v1660
        %v2629 = vpack.c.b16 %v1665, %v1663
        %v2630 = vpack.c.b16 %v1666, %v1664
        %v2631 = vpack.c.b16 %v1669, %v1667
        %v2632 = vpack.c.b16 %v1670, %v1668
        %v2633 = vpack.c.b16 %v1673, %v1671
        %v2634 = vpack.c.b16 %v1674, %v1672
        %v2635 = vpack.c.b16 %v1677, %v1675
        %v2636 = vpack.c.b16 %v1678, %v1676
        %v2637 = vpack.c.b16 %v1681, %v1679
        %v2638 = vpack.c.b16 %v1682, %v1680
        %v2639 = vpack.c.b16 %v1685, %v1683
        %v2640 = vpack.c.b16 %v1686, %v1684
        %v2641 = vpack.c.b16 %v1689, %v1687
        %v2642 = vpack.c.b16 %v1690, %v1688
        %v2643 = vpack.c.b16 %v1693, %v1691
        %v2644 = vpack.c.b16 %v1694, %v1692
        %v2645 = vpack.c.b16 %v1697, %v1695
        %v2646 = vpack.c.b16 %v1698, %v1696
        %v2647 = vpack.c.b16 %v1701, %v1699
        %v2648 = vpack.c.b16 %v1702, %v1700
        %v2649 = vpack.c.b16 %v1705, %v1703
        %v2650 = vpack.c.b16 %v1706, %v1704
        %v2651 = vpack.c.b16 %v1709, %v1707
        %v2652 = vpack.c.b16 %v1710, %v1708
        %v2653 = vpack.c.b16 %v1713, %v1711
        %v2654 = vpack.c.b16 %v1714, %v1712
        %v2655 = vpack.c.b16 %v1717, %v1715
        %v2656 = vpack.c.b16 %v1718, %v1716
        %v2657 = vpack.c.b16 %v1721, %v1719
        %v2658 = vpack.c.b16 %v1722, %v1720
        %v2659 = vpack.c.b16 %v1725, %v1723
        %v2660 = vpack.c.b16 %v1726, %v1724
        %v2661 = vpack.c.b16 %v1729, %v1727
        %v2662 = vpack.c.b16 %v1730, %v1728
        %v2663 = vpack.c.b16 %v1733, %v1731
        %v2664 = vpack.c.b16 %v1734, %v1732
        %v2665 = vpack.c.b16 %v1737, %v1735
        %v2666 = vpack.c.b16 %v1738, %v1736
        %v2667 = vpack.c.b16 %v1741, %v1739
        %v2668 = vpack.c.b16 %v1742, %v1740
        %v2669 = vpack.c.b16 %v1745, %v1743
        %v2670 = vpack.c.b16 %v1746, %v1744
        %v2671 = vpack.c.b16 %v1749, %v1747
        %v2672 = vpack.c.b16 %v1750, %v1748
        %v2673 = vpack.c.b16 %v1753, %v1751
        %v2674 = vpack.c.b16 %v1754, %v1752
        %v2675 = vpack.c.b16 %v1757, %v1755
        %v2676 = vpack.c.b16 %v1758, %v1756
        %v2677 = vpack.c.b16 %v1761, %v1759
        %v2678 = vpack.c.b16 %v1762, %v1760
        %v2679 = vpack.c.b16 %v1765, %v1763
        %v2680 = vpack.c.b16 %v1766, %v1764
        %v2681 = vpack.c.b16 %v1769, %v1767
        %v2682 = vpack.c.b16 %v1770, %v1768
        %v2683 = vpack.c.b16 %v1773, %v1771
        %v2684 = vpack.c.b16 %v1774, %v1772
        %v2685 = vpack.c.b16 %v1777, %v1775
        %v2686 = vpack.c.b16 %v1778, %v1776
        %v2687 = vpack.c.b16 %v1781, %v1779
        %v2688 = vpack.c.b16 %v1782, %v1780
        %v2689 = vpack.c.b16 %v1785, %v1783
        %v2690 = vpack.c.b16 %v1786, %v1784
        %v2691 = vpack.c.b16 %v1789, %v1787
        %v2692 = vpack.c.b16 %v1790, %v1788
        %v2693 = vpack.c.b16 %v1793, %v1791
        %v2694 = vpack.c.b16 %v1794, %v1792
        %v2695 = vpack.c.b16 %v1797, %v1795
        %v2696 = vpack.c.b16 %v1798, %v1796
        %v2697 = vpack.c.b16 %v1801, %v1799
        %v2698 = vpack.c.b16 %v1802, %v1800
        %v2699 = vpack.c.b16 %v1805, %v1803
        %v2700 = vpack.c.b16 %v1806, %v1804
        %v2701 = vpack.c.b16 %v1809, %v1807
        %v2702 = vpack.c.b16 %v1810, %v1808
        %v2703 = vpack.c.b16 %v1813, %v1811
        %v2704 = vpack.c.b16 %v1814, %v1812
        %v2705 = vpack.c.b16 %v1817, %v1815
        %v2706 = vpack.c.b16 %v1818, %v1816
        %v2707 = vpack.c.b16 %v1821, %v1819
        %v2708 = vpack.c.b16 %v1822, %v1820
        %v2709 = vpack.c.b16 %v1825, %v1823
        %v2710 = vpack.c.b16 %v1826, %v1824
        %v2711 = vpack.c.b16 %v1829, %v1827
        %v2712 = vpack.c.b16 %v1830, %v1828
        %v2713 = vpack.c.b16 %v1833, %v1831
        %v2714 = vpack.c.b16 %v1834, %v1832
        %v2715 = vpack.c.b16 %v1837, %v1835
        %v2716 = vpack.c.b16 %v1838, %v1836
        %v2717 = vpack.c.b16 %v1841, %v1839
        %v2718 = vpack.c.b16 %v1842, %v1840
        %v2719 = vpack.c.b16 %v1845, %v1843
        %v2720 = vpack.c.b16 %v1846, %v1844
        %v2721 = vpack.c.b16 %v1849, %v1847
        %v2722 = vpack.c.b16 %v1850, %v1848
        %v2723 = vpack.c.b16 %v1853, %v1851
        %v2724 = vpack.c.b16 %v1854, %v1852
        %v2725 = vpack.c.b16 %v1857, %v1855
        %v2726 = vpack.c.b16 %v1858, %v1856
        %v2727 = vpack.c.b16 %v1861, %v1859
        %v2728 = vpack.c.b16 %v1862, %v1860
        %v2729 = vpack.c.b16 %v1865, %v1863
        %v2730 = vpack.c.b16 %v1866, %v1864
        %v2731 = vpack.c.b16 %v1869, %v1867
        %v2732 = vpack.c.b16 %v1870, %v1868
        %v2733 = vpack.c.b16 %v1873, %v1871
        %v2734 = vpack.c.b16 %v1874, %v1872
        %v2735 = vpack.c.b16 %v1877, %v1875
        %v2736 = vpack.c.b16 %v1878, %v1876
        %v2737 = vpack.c.b16 %v1881, %v1879
        %v2738 = vpack.c.b16 %v1882, %v1880
        %v2739 = vpack.c.b16 %v1885, %v1883
        %v2740 = vpack.c.b16 %v1886, %v1884
        %v2741 = vpack.c.b16 %v1889, %v1887
        %v2742 = vpack.c.b16 %v1890, %v1888
        %v2743 = vpack.c.b16 %v1893, %v1891
        %v2744 = vpack.c.b16 %v1894, %v1892
        %v2745 = vpack.c.b16 %v1897, %v1895
        %v2746 = vpack.c.b16 %v1898, %v1896
        %v2747 = vpack.c.b16 %v1901, %v1899
        %v2748 = vpack.c.b16 %v1902, %v1900
        %v2749 = vpack.c.b16 %v1905, %v1903
        %v2750 = vpack.c.b16 %v1906, %v1904
        %v2751 = vpack.c.b16 %v1909, %v1907
        %v2752 = vpack.c.b16 %v1910, %v1908
        %v2753 = vpack.c.b16 %v1913, %v1911
        %v2754 = vpack.c.b16 %v1914, %v1912
        %v2755 = vpack.c.b16 %v1917, %v1915
        %v2756 = vpack.c.b16 %v1918, %v1916
        %v2757 = vpack.c.b16 %v1921, %v1919
        %v2758 = vpack.c.b16 %v1922, %v1920
        %v2759 = vpack.c.b16 %v1925, %v1923
        %v2760 = vpack.c.b16 %v1926, %v1924
        %v2761 = vpack.c.b16 %v1929, %v1927
        %v2762 = vpack.c.b16 %v1930, %v1928
        %v2763 = vpack.c.b16 %v1933, %v1931
        %v2764 = vpack.c.b16 %v1934, %v1932
        %v2765 = vpack.c.b16 %v1937, %v1935
        %v2766 = vpack.c.b16 %v1938, %v1936
        %v2767 = vpack.c.b16 %v1941, %v1939
        %v2768 = vpack.c.b16 %v1942, %v1940
        %v2769 = vpack.c.b16 %v1945, %v1943
        %v2770 = vpack.c.b16 %v1946, %v1944
        %v2771 = vpack.c.b16 %v1949, %v1947
        %v2772 = vpack.c.b16 %v1950, %v1948
        %v2773 = vpack.c.b16 %v1953, %v1951
        %v2774 = vpack.c.b16 %v1954, %v1952
        %v2775 = vpack.c.b16 %v1957, %v1955
        %v2776 = vpack.c.b16 %v1958, %v1956
        %v2777 = vpack.c.b16 %v1961, %v1959
        %v2778 = vpack.c.b16 %v1962, %v1960
        %v2779 = vpack.c.b16 %v1965, %v1963
        %v2780 = vpack.c.b16 %v1966, %v1964
        %v2781 = vpack.c.b16 %v1969, %v1967
        %v2782 = vpack.c.b16 %v1970, %v1968
        %v2783 = vpack.c.b16 %v1973, %v1971
        %v2784 = vpack.c.b16 %v1974, %v1972
        %v2785 = vpack.c.b16 %v1977, %v1975
        %v2786 = vpack.c.b16 %v1978, %v1976
        %v2787 = vpack.c.b16 %v1981, %v1979
        %v2788 = vpack.c.b16 %v1982, %v1980
        %v2789 = vpack.c.b16 %v1985, %v1983
        %v2790 = vpack.c.b16 %v1986, %v1984
        %v2791 = vpack.c.b16 %v1989, %v1987
        %v2792 = vpack.c.b16 %v1990, %v1988
        %v2793 = vpack.c.b16 %v1993, %v1991
        %v2794 = vpack.c.b16 %v1994, %v1992
        %v2795 = vpack.c.b16 %v1997, %v1995
        %v2796 = vpack.c.b16 %v1998, %v1996
        %v2797 = vpack.c.b16 %v2001, %v1999
        %v2798 = vpack.c.b16 %v2002, %v2000
        %v2799 = vpack.c.b16 %v2005, %v2003
        %v2800 = vpack.c.b16 %v2006, %v2004
        %v2801 = vpack.c.b16 %v2009, %v2007
        %v2802 = vpack.c.b16 %v2010, %v2008
        %v2803 = vpack.c.b16 %v2013, %v2011
        %v2804 = vpack.c.b16 %v2014, %v2012
        %v2805 = vpack.c.b16 %v2017, %v2015
        %v2806 = vpack.c.b16 %v2018, %v2016
        %v2807 = vpack.c.b16 %v2021, %v2019
        %v2808 = vpack.c.b16 %v2022, %v2020
        %v2809 = vpack.c.b16 %v2025, %v2023
        %v2810 = vpack.c.b16 %v2026, %v2024
        %v2811 = vpack.c.b16 %v2029, %v2027
        %v2812 = vpack.c.b16 %v2030, %v2028
        %v2813 = vpack.c.b16 %v2033, %v2031
        %v2814 = vpack.c.b16 %v2034, %v2032
        %v2815 = vpack.c.b16 %v2037, %v2035
        %v2816 = vpack.c.b16 %v2038, %v2036
        %v2817 = vpack.c.b16 %v2041, %v2039
        %v2818 = vpack.c.b16 %v2042, %v2040
        %v2819 = vpack.c.b16 %v2045, %v2043
        %v2820 = vpack.c.b16 %v2046, %v2044
        %v2821 = vpack.c.b16 %v2049, %v2047
        %v2822 = vpack.c.b16 %v2050, %v2048
        %v2823 = vpack.c.b16 %v2053, %v2051
        %v2824 = vpack.c.b16 %v2054, %v2052
        %v2825 = vpack.c.b16 %v2057, %v2055
        %v2826 = vpack.c.b16 %v2058, %v2056
        %v2827 = vpack.c.b16 %v2061, %v2059
        %v2828 = vpack.c.b16 %v2062, %v2060
        %v2829 = vpack.c.b16 %v2065, %v2063
        %v2830 = vpack.c.b16 %v2066, %v2064
        %v2831 = vpack.c.b16 %v2069, %v2067
        %v2832 = vpack.c.b16 %v2070, %v2068
        %v2833 = vpack.c.b16 %v2073, %v2071
        %v2834 = vpack.c.b16 %v2074, %v2072
        %v2835 = vpack.c.b16 %v2077, %v2075
        %v2836 = vpack.c.b16 %v2078, %v2076
        %v2837 = vpack.c.b16 %v2081, %v2079
        %v2838 = vpack.c.b16 %v2082, %v2080
        %v2839 = vpack.c.b16 %v2085, %v2083
        %v2840 = vpack.c.b16 %v2086, %v2084
        %v2841 = vpack.c.b16 %v2089, %v2087
        %v2842 = vpack.c.b16 %v2090, %v2088
        %v2843 = vpack.c.b16 %v2093, %v2091
        %v2844 = vpack.c.b16 %v2094, %v2092
        %v2845 = vpack.c.b16 %v2097, %v2095
        %v2846 = vpack.c.b16 %v2098, %v2096
        %v2847 = vpack.c.b16 %v2101, %v2099
        %v2848 = vpack.c.b16 %v2102, %v2100
        %v2849 = vpack.c.b16 %v2105, %v2103
        %v2850 = vpack.c.b16 %v2106, %v2104
        %v2851 = vpack.c.b16 %v2109, %v2107
        %v2852 = vpack.c.b16 %v2110, %v2108
        %v2853 = vpack.c.b16 %v2113, %v2111
        %v2854 = vpack.c.b16 %v2114, %v2112
        %v2855 = vpack.c.b16 %v2117, %v2115
        %v2856 = vpack.c.b16 %v2118, %v2116
        %v2857 = vpack.c.b16 %v2121, %v2119
        %v2858 = vpack.c.b16 %v2122, %v2120
        %v2859 = vpack.c.b16 %v2125, %v2123
        %v2860 = vpack.c.b16 %v2126, %v2124
        %v2861 = vpack.c.b16 %v2129, %v2127
        %v2862 = vpack.c.b16 %v2130, %v2128
        %v2863 = vpack.c.b16 %v2133, %v2131
        %v2864 = vpack.c.b16 %v2134, %v2132
        %v2865 = vpack.c.b16 %v2137, %v2135
        %v2866 = vpack.c.b16 %v2138, %v2136
        %v2867 = vpack.c.b16 %v2141, %v2139
        %v2868 = vpack.c.b16 %v2142, %v2140
        %v2869 = vpack.c.b16 %v2145, %v2143
        %v2870 = vpack.c.b16 %v2146, %v2144
        %v2871 = vpack.c.b16 %v2149, %v2147
        %v2872 = vpack.c.b16 %v2150, %v2148
        %v2873 = vpack.c.b16 %v2153, %v2151
        %v2874 = vpack.c.b16 %v2154, %v2152
        %v2875 = vpack.c.b16 %v2157, %v2155
        %v2876 = vpack.c.b16 %v2158, %v2156
        %v2877 = vpack.c.b16 %v2161, %v2159
        %v2878 = vpack.c.b16 %v2162, %v2160
        %v2879 = vpack.c.b16 %v2165, %v2163
        %v2880 = vpack.c.b16 %v2166, %v2164
        %v2881 = vpack.c.b16 %v2169, %v2167
        %v2882 = vpack.c.b16 %v2170, %v2168
        %v2883 = vpack.c.b16 %v2173, %v2171
        %v2884 = vpack.c.b16 %v2174, %v2172
        %v2885 = vpack.c.b16 %v2177, %v2175
        %v2886 = vpack.c.b16 %v2178, %v2176
        %v2887 = vpack.c.b16 %v2181, %v2179
        %v2888 = vpack.c.b16 %v2182, %v2180
        %v2889 = vpack.c.b16 %v2185, %v2183
        %v2890 = vpack.c.b16 %v2186, %v2184
        %v2891 = vpack.c.b16 %v2189, %v2187
        %v2892 = vpack.c.b16 %v2190, %v2188
        %v2893 = vpack.c.b16 %v2193, %v2191
        %v2894 = vpack.c.b16 %v2194, %v2192
        %v2895 = vpack.c.b16 %v2197, %v2195
        %v2896 = vpack.c.b16 %v2198, %v2196
        %v2897 = vpack.c.b16 %v2201, %v2199
        %v2898 = vpack.c.b16 %v2202, %v2200
        %v2899 = vpack.c.b16 %v2205, %v2203
        %v2900 = vpack.c.b16 %v2206, %v2204
        %v2901 = vpack.c.b16 %v2209, %v2207
        %v2902 = vpack.c.b16 %v2210, %v2208
        %v2903 = vpack.c.b16 %v2213, %v2211
        %v2904 = vpack.c.b16 %v2214, %v2212
        %v2905 = vpack.c.b16 %v2217, %v2215
        %v2906 = vpack.c.b16 %v2218, %v2216
        %v2907 = vpack.c.b16 %v2221, %v2219
        %v2908 = vpack.c.b16 %v2222, %v2220
        %v2909 = vpack.c.b16 %v2225, %v2223
        %v2910 = vpack.c.b16 %v2226, %v2224
        %v2911 = vpack.c.b16 %v2229, %v2227
        %v2912 = vpack.c.b16 %v2230, %v2228
        %v2913 = vpack.c.b16 %v2233, %v2231
        %v2914 = vpack.c.b16 %v2234, %v2232
        %v2915 = vpack.c.b16 %v2237, %v2235
        %v2916 = vpack.c.b16 %v2238, %v2236
        %v2917 = vpack.c.b16 %v2241, %v2239
        %v2918 = vpack.c.b16 %v2242, %v2240
        %v2919 = vpack.c.b16 %v2245, %v2243
        %v2920 = vpack.c.b16 %v2246, %v2244
        %v2921 = vpack.c.b16 %v2249, %v2247
        %v2922 = vpack.c.b16 %v2250, %v2248
        %v2923 = vpack.c.b16 %v2253, %v2251
        %v2924 = vpack.c.b16 %v2254, %v2252
        %v2925 = vpack.c.b16 %v2257, %v2255
        %v2926 = vpack.c.b16 %v2258, %v2256
        %v2927 = vpack.c.b16 %v2261, %v2259
        %v2928 = vpack.c.b16 %v2262, %v2260
        %v2929 = vpack.c.b16 %v2265, %v2263
        %v2930 = vpack.c.b16 %v2266, %v2264
        %v2931 = vpack.c.b16 %v2269, %v2267
        %v2932 = vpack.c.b16 %v2270, %v2268
        %v2933 = vpack.c.b16 %v2273, %v2271
        %v2934 = vpack.c.b16 %v2274, %v2272
        %v2935 = vpack.c.b16 %v2277, %v2275
        %v2936 = vpack.c.b16 %v2278, %v2276
        %v2937 = vpack.c.b16 %v2281, %v2279
        %v2938 = vpack.c.b16 %v2282, %v2280
        %v2939 = vpack.c.b16 %v2285, %v2283
        %v2940 = vpack.c.b16 %v2286, %v2284
        %v2941 = vpack.c.b16 %v2289, %v2287
        %v2942 = vpack.c.b16 %v2290, %v2288
        %v2943 = vpack.c.b16 %v2293, %v2291
        %v2944 = vpack.c.b16 %v2294, %v2292
        %v2945 = vpack.c.b16 %v2297, %v2295
        %v2946 = vpack.c.b16 %v2298, %v2296
        %v2947 = vpack.c.b16 %v2301, %v2299
        %v2948 = vpack.c.b16 %v2302, %v2300
        %v2949 = vpack.c.b16 %v2305, %v2303
        %v2950 = vpack.c.b16 %v2306, %v2304
        %v2951 = vpack.c.b16 %v2309, %v2307
        %v2952 = vpack.c.b16 %v2310, %v2308
        %v2953 = vpack.c.b16 %v2313, %v2311
        %v2954 = vpack.c.b16 %v2314, %v2312
        %v2955 = vpack.c.b16 %v2317, %v2315
        %v2956 = vpack.c.b16 %v2318, %v2316
        %v2957 = vpack.c.b16 %v2321, %v2319
        %v2958 = vpack.c.b16 %v2322, %v2320
        %v2959 = vpack.c.b16 %v2325, %v2323
        %v2960 = vpack.c.b16 %v2326, %v2324
        %v2961 = vpack.c.b16 %v2329, %v2327
        %v2962 = vpack.c.b16 %v2330, %v2328
        %v2963 = vpack.c.b16 %v2333, %v2331
        %v2964 = vpack.c.b16 %v2334, %v2332
        %v2965 = vpack.c.b16 %v2337, %v2335
        %v2966 = vpack.c.b16 %v2338, %v2336
        %v2967 = vpack.c.b16 %v2341, %v2339
        %v2968 = vpack.c.b16 %v2342, %v2340
        %v2969 = vpack.c.b16 %v2345, %v2343
        %v2970 = vpack.c.b16 %v2346, %v2344
        %v2971 = vpack.c.b16 %v2349, %v2347
        %v2972 = vpack.c.b16 %v2350, %v2348
        %v2973 = vpack.c.b16 %v2353, %v2351
        %v2974 = vpack.c.b16 %v2354, %v2352
        %v2975 = vpack.c.b16 %v2357, %v2355
        %v2976 = vpack.c.b16 %v2358, %v2356
        %v2977 = vpack.c.b16 %v2361, %v2359
        %v2978 = vpack.c.b16 %v2362, %v2360
        %v2979 = vpack.c.b16 %v2365, %v2363
        %v2980 = vpack.c.b16 %v2366, %v2364
        %v2981 = vpack.c.b16 %v2369, %v2367
        %v2982 = vpack.c.b16 %v2370, %v2368
        %v2983 = vpack.c.b16 %v2373, %v2371
        %v2984 = vpack.c.b16 %v2374, %v2372
        %v2985 = vpack.c.b16 %v2377, %v2375
        %v2986 = vpack.c.b16 %v2378, %v2376
        %v2987 = vpack.c.b16 %v2381, %v2379
        %v2988 = vpack.c.b16 %v2382, %v2380
        %v2989 = vpack.c.b16 %v2385, %v2383
        %v2990 = vpack.c.b16 %v2386, %v2384
        %v2991 = vpack.c.b16 %v2389, %v2387
        %v2992 = vpack.c.b16 %v2390, %v2388
        %v2993 = vpack.c.b16 %v2393, %v2391
        %v2994 = vpack.c.b16 %v2394, %v2392
        %v2995 = vpack.c.b16 %v2397, %v2395
        %v2996 = vpack.c.b16 %v2398, %v2396
        %v2997 = vpack.c.b16 %v2401, %v2399
        %v2998 = vpack.c.b16 %v2402, %v2400
        %v2999 = vpack.c.b16 %v2405, %v2403
        %v3000 = vpack.c.b16 %v2406, %v2404
        %v3001 = vpack.c.b16 %v2409, %v2407
        %v3002 = vpack.c.b16 %v2410, %v2408
        %v3003 = vpack.c.b16 %v2413, %v2411
        %v3004 = vpack.c.b16 %v2414, %v2412
        %v3005 = vpack.c.b16 %v2417, %v2415
        %v3006 = vpack.c.b16 %v2418, %v2416
        %v3007 = vpack.c.b16 %v2421, %v2419
        %v3008 = vpack.c.b16 %v2422, %v2420
        %v3009 = vpack.c.b16 %v2425, %v2423
        %v3010 = vpack.c.b16 %v2426, %v2424
        %v3011 = vpack.c.b16 %v2429, %v2427
        %v3012 = vpack.c.b16 %v2430, %v2428
        %v3013 = vpack.c.b16 %v2433, %v2431
        %v3014 = vpack.c.b16 %v2434, %v2432
        %v3015 = vpack.c.b16 %v2437, %v2435
        %v3016 = vpack.c.b16 %v2438, %v2436
        %v3017 = vpack.c.b16 %v2441, %v2439
        %v3018 = vpack.c.b16 %v2442, %v2440
        %v3019 = vpack.c.b16 %v2445, %v2443
        %v3020 = vpack.c.b16 %v2446, %v2444
        %v3021 = vpack.c.b16 %v2449, %v2447
        %v3022 = vpack.c.b16 %v2450, %v2448
        %v3023 = vpack.c.b16 %v2453, %v2451
        %v3024 = vpack.c.b16 %v2454, %v2452
        %v3025 = vpack.c.b16 %v2457, %v2455
        %v3026 = vpack.c.b16 %v2458, %v2456
        %v3027 = vpack.c.b16 %v2461, %v2459
        %v3028 = vpack.c.b16 %v2462, %v2460
        %v3029 = vpack.c.b16 %v2465, %v2463
        %v3030 = vpack.c.b16 %v2466, %v2464
        %v3031 = vpack.c.b16 %v2469, %v2467
        %v3032 = vpack.c.b16 %v2470, %v2468
        %v3033 = vpack.c.b16 %v2473, %v2471
        %v3034 = vpack.c.b16 %v2474, %v2472
        %v3035 = vpack.c.b16 %v2477, %v2475
        %v3036 = vpack.c.b16 %v2478, %v2476
        %v3037 = vpack.c.b16 %v2481, %v2479
        %v3038 = vpack.c.b16 %v2482, %v2480
        %v3039 = vpack.c.b16 %v2485, %v2483
        %v3040 = vpack.c.b16 %v2486, %v2484
        %v3041 = vpack.c.b16 %v2489, %v2487
        %v3042 = vpack.c.b16 %v2490, %v2488
        %v3043 = vpack.c.b16 %v2493, %v2491
        %v3044 = vpack.c.b16 %v2494, %v2492
        %v3045 = vpack.c.b16 %v2497, %v2495
        %v3046 = vpack.c.b16 %v2498, %v2496
        %v3047 = vpack.c.b16 %v2501, %v2499
        %v3048 = vpack.c.b16 %v2502, %v2500
        %v3049 = vpack.c.b16 %v2505, %v2503
        %v3050 = vpack.c.b16 %v2506, %v2504
        %v3051 = vpack.c.b16 %v2509, %v2507
        %v3052 = vpack.c.b16 %v2510, %v2508
        %v3053 = vpack.c.b16 %v2513, %v2511
        %v3054 = vpack.c.b16 %v2514, %v2512
        %v3055 = vpack.c.b16 %v2517, %v2515
        %v3056 = vpack.c.b16 %v2518, %v2516
        %v3057 = vpack.c.b16 %v2521, %v2519
        %v3058 = vpack.c.b16 %v2522, %v2520
        %v3059 = vpack.c.b16 %v2525, %v2523
        %v3060 = vpack.c.b16 %v2526, %v2524
        %v3061 = vpack.c.b16 %v2529, %v2527
        %v3062 = vpack.c.b16 %v2530, %v2528
        %v3063 = vpack.c.b16 %v2533, %v2531
        %v3064 = vpack.c.b16 %v2534, %v2532
        %v3065 = vpack.c.b16 %v2537, %v2535
        %v3066 = vpack.c.b16 %v2538, %v2536
        %v3067 = vpack.c.b16 %v2541, %v2539
        %v3068 = vpack.c.b16 %v2542, %v2540
        %v3069 = vpack.c.b16 %v2545, %v2543
        %v3070 = vpack.c.b16 %v2546, %v2544
        %v3071 = vpack.c.b16 %v2549, %v2547
        %v3072 = vpack.c.b16 %v2550, %v2548
        %v3073 = vpack.c.b16 %v2553, %v2551
        %v3074 = vpack.c.b16 %v2554, %v2552
        %v3075 = vpack.c.b16 %v2557, %v2555
        %v3076 = vpack.c.b16 %v2558, %v2556
        %v3077 = vpack.c.b16 %v2561, %v2559
        %v3078 = vpack.c.b16 %v2562, %v2560
        %v3079 = vpack.c.b16 %v2565, %v2563
        %v3080 = vpack.c.b16 %v2566, %v2564
        %v3081 = vpack.c.b16 %v2569, %v2567
        %v3082 = vpack.c.b16 %v2570, %v2568
        %3595 = vmatprep.subr.bf16.mxu0 %v2586
        %3596 = vmatpush1.bf16.msra.mxu0 %v2585
        %3597 = vmatprep.subr.bf16.mxu0 %v2584
        %3598 = vmatpush1.bf16.msra.mxu0 %v2583
        %3599 = vmatprep.subr.bf16.mxu0 %v2582
        %3600 = vmatpush1.bf16.msra.mxu0 %v2581
        %3601 = vmatprep.subr.bf16.mxu0 %v2580
        %3602 = vmatpush1.bf16.msra.mxu0 %v2579
        %3603 = vmatprep.subr.bf16.mxu0 %v2578
        %3604 = vmatpush1.bf16.msra.mxu0 %v2577
        %3605 = vmatprep.subr.bf16.mxu0 %v2576
        %3606 = vmatpush1.bf16.msra.mxu0 %v2575
        %3607 = vmatprep.subr.bf16.mxu0 %v2574
        %3608 = vmatpush1.bf16.msra.mxu0 %v2573
        %3609 = vmatprep.subr.bf16.mxu0 %v2572
        %3610 = vmatpush1.bf16.msra.mxu0 %v2571
        %3611 = vmatprep.subr.bf16.mxu0 %v2602
        %3612 = vmatpush2.bf16.msra.mxu0 %v2601
        %3613 = vmatprep.subr.bf16.mxu0 %v2600
        %3614 = vmatpush2.bf16.msra.mxu0 %v2599
        %3615 = vmatprep.subr.bf16.mxu0 %v2598
        %3616 = vmatpush2.bf16.msra.mxu0 %v2597
        %3617 = vmatprep.subr.bf16.mxu0 %v2596
        %3618 = vmatpush2.bf16.msra.mxu0 %v2595
        %3619 = vmatprep.subr.bf16.mxu0 %v2594
        %3620 = vmatpush2.bf16.msra.mxu0 %v2593
        %3621 = vmatprep.subr.bf16.mxu0 %v2592
        %3622 = vmatpush2.bf16.msra.mxu0 %v2591
        %3623 = vmatprep.subr.bf16.mxu0 %v2590
        %3624 = vmatpush2.bf16.msra.mxu0 %v2589
        %3625 = vmatprep.subr.bf16.mxu0 %v2588
        %3626 = vmatpush2.bf16.msra.mxu0 %v2587
        %3627 = vmatprep.mubr.bf16.mxu0 %v972
        %3628 = vmatmul.mubr.bf16.gmra.mxu0 %v971
        %v3629 = vpop.f32.mrf.mxu0
        %v3630 = vadd.f32 0.0, %v3629
        %v3631 = vpop.f32.mrf.mxu0
        %v3632 = vadd.f32 0.0, %v3631
        %v3633 = vpop.f32.mrf.mxu0
        %v3634 = vadd.f32 0.0, %v3633
        %v3635 = vpop.f32.mrf.mxu0
        %v3636 = vadd.f32 0.0, %v3635
        %3637 = vdwg.mxu0
        %3638 = vmatprep.subr.bf16.mxu0 %v2618
        %3639 = vmatpush1.bf16.msra.mxu0 %v2617
        %3640 = vmatprep.subr.bf16.mxu0 %v2616
        %3641 = vmatpush1.bf16.msra.mxu0 %v2615
        %3642 = vmatprep.subr.bf16.mxu0 %v2614
        %3643 = vmatpush1.bf16.msra.mxu0 %v2613
        %3644 = vmatprep.subr.bf16.mxu0 %v2612
        %3645 = vmatpush1.bf16.msra.mxu0 %v2611
        %3646 = vmatprep.subr.bf16.mxu0 %v2610
        %3647 = vmatpush1.bf16.msra.mxu0 %v2609
        %3648 = vmatprep.subr.bf16.mxu0 %v2608
        %3649 = vmatpush1.bf16.msra.mxu0 %v2607
        %3650 = vmatprep.subr.bf16.mxu0 %v2606
        %3651 = vmatpush1.bf16.msra.mxu0 %v2605
        %3652 = vmatprep.subr.bf16.mxu0 %v2604
        %3653 = vmatpush1.bf16.msra.mxu0 %v2603
        %3654 = vmatprep.subr.bf16.mxu0 %v2634
        %3655 = vmatpush2.bf16.msra.mxu0 %v2633
        %3656 = vmatprep.subr.bf16.mxu0 %v2632
        %3657 = vmatpush2.bf16.msra.mxu0 %v2631
        %3658 = vmatprep.subr.bf16.mxu0 %v2630
        %3659 = vmatpush2.bf16.msra.mxu0 %v2629
        %3660 = vmatprep.subr.bf16.mxu0 %v2628
        %3661 = vmatpush2.bf16.msra.mxu0 %v2627
        %3662 = vmatprep.subr.bf16.mxu0 %v2626
        %3663 = vmatpush2.bf16.msra.mxu0 %v2625
        %3664 = vmatprep.subr.bf16.mxu0 %v2624
        %3665 = vmatpush2.bf16.msra.mxu0 %v2623
        %3666 = vmatprep.subr.bf16.mxu0 %v2622
        %3667 = vmatpush2.bf16.msra.mxu0 %v2621
        %3668 = vmatprep.subr.bf16.mxu0 %v2620
        %3669 = vmatpush2.bf16.msra.mxu0 %v2619
        %3670 = vmatprep.mubr.bf16.mxu0 %v974
        %3671 = vmatmul.mubr.bf16.gmra.mxu0 %v973
        %v3672 = vpop.f32.mrf.mxu0
        %v3673 = vadd.f32 %v3630, %v3672
        %v3674 = vpop.f32.mrf.mxu0
        %v3675 = vadd.f32 %v3632, %v3674
        %v3676 = vpop.f32.mrf.mxu0
        %v3677 = vadd.f32 %v3634, %v3676
        %v3678 = vpop.f32.mrf.mxu0
        %v3679 = vadd.f32 %v3636, %v3678
        %3680 = vdwg.mxu0
        %3681 = vmatprep.subr.bf16.mxu0 %v2650
        %3682 = vmatpush1.bf16.msra.mxu0 %v2649
        %3683 = vmatprep.subr.bf16.mxu0 %v2648
        %3684 = vmatpush1.bf16.msra.mxu0 %v2647
        %3685 = vmatprep.subr.bf16.mxu0 %v2646
        %3686 = vmatpush1.bf16.msra.mxu0 %v2645
        %3687 = vmatprep.subr.bf16.mxu0 %v2644
        %3688 = vmatpush1.bf16.msra.mxu0 %v2643
        %3689 = vmatprep.subr.bf16.mxu0 %v2642
        %3690 = vmatpush1.bf16.msra.mxu0 %v2641
        %3691 = vmatprep.subr.bf16.mxu0 %v2640
        %3692 = vmatpush1.bf16.msra.mxu0 %v2639
        %3693 = vmatprep.subr.bf16.mxu0 %v2638
        %3694 = vmatpush1.bf16.msra.mxu0 %v2637
        %3695 = vmatprep.subr.bf16.mxu0 %v2636
        %3696 = vmatpush1.bf16.msra.mxu0 %v2635
        %3697 = vmatprep.subr.bf16.mxu0 %v2666
        %3698 = vmatpush2.bf16.msra.mxu0 %v2665
        %3699 = vmatprep.subr.bf16.mxu0 %v2664
        %3700 = vmatpush2.bf16.msra.mxu0 %v2663
        %3701 = vmatprep.subr.bf16.mxu0 %v2662
        %3702 = vmatpush2.bf16.msra.mxu0 %v2661
        %3703 = vmatprep.subr.bf16.mxu0 %v2660
        %3704 = vmatpush2.bf16.msra.mxu0 %v2659
        %3705 = vmatprep.subr.bf16.mxu0 %v2658
        %3706 = vmatpush2.bf16.msra.mxu0 %v2657
        %3707 = vmatprep.subr.bf16.mxu0 %v2656
        %3708 = vmatpush2.bf16.msra.mxu0 %v2655
        %3709 = vmatprep.subr.bf16.mxu0 %v2654
        %3710 = vmatpush2.bf16.msra.mxu0 %v2653
        %3711 = vmatprep.subr.bf16.mxu0 %v2652
        %3712 = vmatpush2.bf16.msra.mxu0 %v2651
        %3713 = vmatprep.mubr.bf16.mxu0 %v976
        %3714 = vmatmul.mubr.bf16.gmra.mxu0 %v975
        %v3715 = vpop.f32.mrf.mxu0
        %v3716 = vadd.f32 %v3673, %v3715
        %v3717 = vpop.f32.mrf.mxu0
        %v3718 = vadd.f32 %v3675, %v3717
        %v3719 = vpop.f32.mrf.mxu0
        %v3720 = vadd.f32 %v3677, %v3719
        %v3721 = vpop.f32.mrf.mxu0
        %v3722 = vadd.f32 %v3679, %v3721
        %3723 = vdwg.mxu0
        %3724 = vmatprep.subr.bf16.mxu0 %v2682
        %3725 = vmatpush1.bf16.msra.mxu0 %v2681
        %3726 = vmatprep.subr.bf16.mxu0 %v2680
        %3727 = vmatpush1.bf16.msra.mxu0 %v2679
        %3728 = vmatprep.subr.bf16.mxu0 %v2678
        %3729 = vmatpush1.bf16.msra.mxu0 %v2677
        %3730 = vmatprep.subr.bf16.mxu0 %v2676
        %3731 = vmatpush1.bf16.msra.mxu0 %v2675
        %3732 = vmatprep.subr.bf16.mxu0 %v2674
        %3733 = vmatpush1.bf16.msra.mxu0 %v2673
        %3734 = vmatprep.subr.bf16.mxu0 %v2672
        %3735 = vmatpush1.bf16.msra.mxu0 %v2671
        %3736 = vmatprep.subr.bf16.mxu0 %v2670
        %3737 = vmatpush1.bf16.msra.mxu0 %v2669
        %3738 = vmatprep.subr.bf16.mxu0 %v2668
        %3739 = vmatpush1.bf16.msra.mxu0 %v2667
        %3740 = vmatprep.subr.bf16.mxu0 %v2698
        %3741 = vmatpush2.bf16.msra.mxu0 %v2697
        %3742 = vmatprep.subr.bf16.mxu0 %v2696
        %3743 = vmatpush2.bf16.msra.mxu0 %v2695
        %3744 = vmatprep.subr.bf16.mxu0 %v2694
        %3745 = vmatpush2.bf16.msra.mxu0 %v2693
        %3746 = vmatprep.subr.bf16.mxu0 %v2692
        %3747 = vmatpush2.bf16.msra.mxu0 %v2691
        %3748 = vmatprep.subr.bf16.mxu0 %v2690
        %3749 = vmatpush2.bf16.msra.mxu0 %v2689
        %3750 = vmatprep.subr.bf16.mxu0 %v2688
        %3751 = vmatpush2.bf16.msra.mxu0 %v2687
        %3752 = vmatprep.subr.bf16.mxu0 %v2686
        %3753 = vmatpush2.bf16.msra.mxu0 %v2685
        %3754 = vmatprep.subr.bf16.mxu0 %v2684
        %3755 = vmatpush2.bf16.msra.mxu0 %v2683
        %3756 = vmatprep.mubr.bf16.mxu0 %v978
        %3757 = vmatmul.mubr.bf16.gmra.mxu0 %v977
        %v3758 = vpop.f32.mrf.mxu0
        %v3759 = vadd.f32 %v3716, %v3758
        %v3760 = vpop.f32.mrf.mxu0
        %v3761 = vadd.f32 %v3718, %v3760
        %v3762 = vpop.f32.mrf.mxu0
        %v3763 = vadd.f32 %v3720, %v3762
        %v3764 = vpop.f32.mrf.mxu0
        %v3765 = vadd.f32 %v3722, %v3764
        %3766 = vdwg.mxu0
        %3767 = vmatprep.subr.bf16.mxu0 %v2714
        %3768 = vmatpush1.bf16.msra.mxu0 %v2713
        %3769 = vmatprep.subr.bf16.mxu0 %v2712
        %3770 = vmatpush1.bf16.msra.mxu0 %v2711
        %3771 = vmatprep.subr.bf16.mxu0 %v2710
        %3772 = vmatpush1.bf16.msra.mxu0 %v2709
        %3773 = vmatprep.subr.bf16.mxu0 %v2708
        %3774 = vmatpush1.bf16.msra.mxu0 %v2707
        %3775 = vmatprep.subr.bf16.mxu0 %v2706
        %3776 = vmatpush1.bf16.msra.mxu0 %v2705
        %3777 = vmatprep.subr.bf16.mxu0 %v2704
        %3778 = vmatpush1.bf16.msra.mxu0 %v2703
        %3779 = vmatprep.subr.bf16.mxu0 %v2702
        %3780 = vmatpush1.bf16.msra.mxu0 %v2701
        %3781 = vmatprep.subr.bf16.mxu0 %v2700
        %3782 = vmatpush1.bf16.msra.mxu0 %v2699
        %3783 = vmatprep.subr.bf16.mxu0 %v2730
        %3784 = vmatpush2.bf16.msra.mxu0 %v2729
        %3785 = vmatprep.subr.bf16.mxu0 %v2728
        %3786 = vmatpush2.bf16.msra.mxu0 %v2727
        %3787 = vmatprep.subr.bf16.mxu0 %v2726
        %3788 = vmatpush2.bf16.msra.mxu0 %v2725
        %3789 = vmatprep.subr.bf16.mxu0 %v2724
        %3790 = vmatpush2.bf16.msra.mxu0 %v2723
        %3791 = vmatprep.subr.bf16.mxu0 %v2722
        %3792 = vmatpush2.bf16.msra.mxu0 %v2721
        %3793 = vmatprep.subr.bf16.mxu0 %v2720
        %3794 = vmatpush2.bf16.msra.mxu0 %v2719
        %3795 = vmatprep.subr.bf16.mxu0 %v2718
        %3796 = vmatpush2.bf16.msra.mxu0 %v2717
        %3797 = vmatprep.subr.bf16.mxu0 %v2716
        %3798 = vmatpush2.bf16.msra.mxu0 %v2715
        %3799 = vmatprep.mubr.bf16.mxu0 %v980
        %3800 = vmatmul.mubr.bf16.gmra.mxu0 %v979
        %v3801 = vpop.f32.mrf.mxu0
        %v3802 = vadd.f32 %v3759, %v3801
        %v3803 = vpop.f32.mrf.mxu0
        %v3804 = vadd.f32 %v3761, %v3803
        %v3805 = vpop.f32.mrf.mxu0
        %v3806 = vadd.f32 %v3763, %v3805
        %v3807 = vpop.f32.mrf.mxu0
        %v3808 = vadd.f32 %v3765, %v3807
        %3809 = vdwg.mxu0
        %3810 = vmatprep.subr.bf16.mxu0 %v2746
        %3811 = vmatpush1.bf16.msra.mxu0 %v2745
        %3812 = vmatprep.subr.bf16.mxu0 %v2744
        %3813 = vmatpush1.bf16.msra.mxu0 %v2743
        %3814 = vmatprep.subr.bf16.mxu0 %v2742
        %3815 = vmatpush1.bf16.msra.mxu0 %v2741
        %3816 = vmatprep.subr.bf16.mxu0 %v2740
        %3817 = vmatpush1.bf16.msra.mxu0 %v2739
        %3818 = vmatprep.subr.bf16.mxu0 %v2738
        %3819 = vmatpush1.bf16.msra.mxu0 %v2737
        %3820 = vmatprep.subr.bf16.mxu0 %v2736
        %3821 = vmatpush1.bf16.msra.mxu0 %v2735
        %3822 = vmatprep.subr.bf16.mxu0 %v2734
        %3823 = vmatpush1.bf16.msra.mxu0 %v2733
        %3824 = vmatprep.subr.bf16.mxu0 %v2732
        %3825 = vmatpush1.bf16.msra.mxu0 %v2731
        %3826 = vmatprep.subr.bf16.mxu0 %v2762
        %3827 = vmatpush2.bf16.msra.mxu0 %v2761
        %3828 = vmatprep.subr.bf16.mxu0 %v2760
        %3829 = vmatpush2.bf16.msra.mxu0 %v2759
        %3830 = vmatprep.subr.bf16.mxu0 %v2758
        %3831 = vmatpush2.bf16.msra.mxu0 %v2757
        %3832 = vmatprep.subr.bf16.mxu0 %v2756
        %3833 = vmatpush2.bf16.msra.mxu0 %v2755
        %3834 = vmatprep.subr.bf16.mxu0 %v2754
        %3835 = vmatpush2.bf16.msra.mxu0 %v2753
        %3836 = vmatprep.subr.bf16.mxu0 %v2752
        %3837 = vmatpush2.bf16.msra.mxu0 %v2751
        %3838 = vmatprep.subr.bf16.mxu0 %v2750
        %3839 = vmatpush2.bf16.msra.mxu0 %v2749
        %3840 = vmatprep.subr.bf16.mxu0 %v2748
        %3841 = vmatpush2.bf16.msra.mxu0 %v2747
        %3842 = vmatprep.mubr.bf16.mxu0 %v982
        %3843 = vmatmul.mubr.bf16.gmra.mxu0 %v981
        %v3844 = vpop.f32.mrf.mxu0
        %v3845 = vadd.f32 %v3802, %v3844
        %v3846 = vpop.f32.mrf.mxu0
        %v3847 = vadd.f32 %v3804, %v3846
        %v3848 = vpop.f32.mrf.mxu0
        %v3849 = vadd.f32 %v3806, %v3848
        %v3850 = vpop.f32.mrf.mxu0
        %v3851 = vadd.f32 %v3808, %v3850
        %3852 = vdwg.mxu0
        %3853 = vmatprep.subr.bf16.mxu0 %v2778
        %3854 = vmatpush1.bf16.msra.mxu0 %v2777
        %3855 = vmatprep.subr.bf16.mxu0 %v2776
        %3856 = vmatpush1.bf16.msra.mxu0 %v2775
        %3857 = vmatprep.subr.bf16.mxu0 %v2774
        %3858 = vmatpush1.bf16.msra.mxu0 %v2773
        %3859 = vmatprep.subr.bf16.mxu0 %v2772
        %3860 = vmatpush1.bf16.msra.mxu0 %v2771
        %3861 = vmatprep.subr.bf16.mxu0 %v2770
        %3862 = vmatpush1.bf16.msra.mxu0 %v2769
        %3863 = vmatprep.subr.bf16.mxu0 %v2768
        %3864 = vmatpush1.bf16.msra.mxu0 %v2767
        %3865 = vmatprep.subr.bf16.mxu0 %v2766
        %3866 = vmatpush1.bf16.msra.mxu0 %v2765
        %3867 = vmatprep.subr.bf16.mxu0 %v2764
        %3868 = vmatpush1.bf16.msra.mxu0 %v2763
        %3869 = vmatprep.subr.bf16.mxu0 %v2794
        %3870 = vmatpush2.bf16.msra.mxu0 %v2793
        %3871 = vmatprep.subr.bf16.mxu0 %v2792
        %3872 = vmatpush2.bf16.msra.mxu0 %v2791
        %3873 = vmatprep.subr.bf16.mxu0 %v2790
        %3874 = vmatpush2.bf16.msra.mxu0 %v2789
        %3875 = vmatprep.subr.bf16.mxu0 %v2788
        %3876 = vmatpush2.bf16.msra.mxu0 %v2787
        %3877 = vmatprep.subr.bf16.mxu0 %v2786
        %3878 = vmatpush2.bf16.msra.mxu0 %v2785
        %3879 = vmatprep.subr.bf16.mxu0 %v2784
        %3880 = vmatpush2.bf16.msra.mxu0 %v2783
        %3881 = vmatprep.subr.bf16.mxu0 %v2782
        %3882 = vmatpush2.bf16.msra.mxu0 %v2781
        %3883 = vmatprep.subr.bf16.mxu0 %v2780
        %3884 = vmatpush2.bf16.msra.mxu0 %v2779
        %3885 = vmatprep.mubr.bf16.mxu0 %v984
        %3886 = vmatmul.mubr.bf16.gmra.mxu0 %v983
        %v3887 = vpop.f32.mrf.mxu0
        %v3888 = vadd.f32 %v3845, %v3887
        %v3889 = vpop.f32.mrf.mxu0
        %v3890 = vadd.f32 %v3847, %v3889
        %v3891 = vpop.f32.mrf.mxu0
        %v3892 = vadd.f32 %v3849, %v3891
        %v3893 = vpop.f32.mrf.mxu0
        %v3894 = vadd.f32 %v3851, %v3893
        %3895 = vdwg.mxu0
        %3896 = vmatprep.subr.bf16.mxu0 %v2810
        %3897 = vmatpush1.bf16.msra.mxu0 %v2809
        %3898 = vmatprep.subr.bf16.mxu0 %v2808
        %3899 = vmatpush1.bf16.msra.mxu0 %v2807
        %3900 = vmatprep.subr.bf16.mxu0 %v2806
        %3901 = vmatpush1.bf16.msra.mxu0 %v2805
        %3902 = vmatprep.subr.bf16.mxu0 %v2804
        %3903 = vmatpush1.bf16.msra.mxu0 %v2803
        %3904 = vmatprep.subr.bf16.mxu0 %v2802
        %3905 = vmatpush1.bf16.msra.mxu0 %v2801
        %3906 = vmatprep.subr.bf16.mxu0 %v2800
        %3907 = vmatpush1.bf16.msra.mxu0 %v2799
        %3908 = vmatprep.subr.bf16.mxu0 %v2798
        %3909 = vmatpush1.bf16.msra.mxu0 %v2797
        %3910 = vmatprep.subr.bf16.mxu0 %v2796
        %3911 = vmatpush1.bf16.msra.mxu0 %v2795
        %3912 = vmatprep.subr.bf16.mxu0 %v2826
        %3913 = vmatpush2.bf16.msra.mxu0 %v2825
        %3914 = vmatprep.subr.bf16.mxu0 %v2824
        %3915 = vmatpush2.bf16.msra.mxu0 %v2823
        %3916 = vmatprep.subr.bf16.mxu0 %v2822
        %3917 = vmatpush2.bf16.msra.mxu0 %v2821
        %3918 = vmatprep.subr.bf16.mxu0 %v2820
        %3919 = vmatpush2.bf16.msra.mxu0 %v2819
        %3920 = vmatprep.subr.bf16.mxu0 %v2818
        %3921 = vmatpush2.bf16.msra.mxu0 %v2817
        %3922 = vmatprep.subr.bf16.mxu0 %v2816
        %3923 = vmatpush2.bf16.msra.mxu0 %v2815
        %3924 = vmatprep.subr.bf16.mxu0 %v2814
        %3925 = vmatpush2.bf16.msra.mxu0 %v2813
        %3926 = vmatprep.subr.bf16.mxu0 %v2812
        %3927 = vmatpush2.bf16.msra.mxu0 %v2811
        %3928 = vmatprep.mubr.bf16.mxu0 %v986
        %3929 = vmatmul.mubr.bf16.gmra.mxu0 %v985
        %v3930 = vpop.f32.mrf.mxu0
        %v3931 = vadd.f32 %v3888, %v3930
        %v3932 = vpop.f32.mrf.mxu0
        %v3933 = vadd.f32 %v3890, %v3932
        %v3934 = vpop.f32.mrf.mxu0
        %v3935 = vadd.f32 %v3892, %v3934
        %v3936 = vpop.f32.mrf.mxu0
        %v3937 = vadd.f32 %v3894, %v3936
        %3938 = vdwg.mxu0
        %3939 = vmatprep.subr.bf16.mxu0 %v2842
        %3940 = vmatpush1.bf16.msra.mxu0 %v2841
        %3941 = vmatprep.subr.bf16.mxu0 %v2840
        %3942 = vmatpush1.bf16.msra.mxu0 %v2839
        %3943 = vmatprep.subr.bf16.mxu0 %v2838
        %3944 = vmatpush1.bf16.msra.mxu0 %v2837
        %3945 = vmatprep.subr.bf16.mxu0 %v2836
        %3946 = vmatpush1.bf16.msra.mxu0 %v2835
        %3947 = vmatprep.subr.bf16.mxu0 %v2834
        %3948 = vmatpush1.bf16.msra.mxu0 %v2833
        %3949 = vmatprep.subr.bf16.mxu0 %v2832
        %3950 = vmatpush1.bf16.msra.mxu0 %v2831
        %3951 = vmatprep.subr.bf16.mxu0 %v2830
        %3952 = vmatpush1.bf16.msra.mxu0 %v2829
        %3953 = vmatprep.subr.bf16.mxu0 %v2828
        %3954 = vmatpush1.bf16.msra.mxu0 %v2827
        %3955 = vmatprep.subr.bf16.mxu0 %v2858
        %3956 = vmatpush2.bf16.msra.mxu0 %v2857
        %3957 = vmatprep.subr.bf16.mxu0 %v2856
        %3958 = vmatpush2.bf16.msra.mxu0 %v2855
        %3959 = vmatprep.subr.bf16.mxu0 %v2854
        %3960 = vmatpush2.bf16.msra.mxu0 %v2853
        %3961 = vmatprep.subr.bf16.mxu0 %v2852
        %3962 = vmatpush2.bf16.msra.mxu0 %v2851
        %3963 = vmatprep.subr.bf16.mxu0 %v2850
        %3964 = vmatpush2.bf16.msra.mxu0 %v2849
        %3965 = vmatprep.subr.bf16.mxu0 %v2848
        %3966 = vmatpush2.bf16.msra.mxu0 %v2847
        %3967 = vmatprep.subr.bf16.mxu0 %v2846
        %3968 = vmatpush2.bf16.msra.mxu0 %v2845
        %3969 = vmatprep.subr.bf16.mxu0 %v2844
        %3970 = vmatpush2.bf16.msra.mxu0 %v2843
        %3971 = vmatprep.mubr.bf16.mxu0 %v988
        %3972 = vmatmul.mubr.bf16.gmra.mxu0 %v987
        %v3973 = vpop.f32.mrf.mxu0
        %v3974 = vadd.f32 %v3931, %v3973
        %v3975 = vpop.f32.mrf.mxu0
        %v3976 = vadd.f32 %v3933, %v3975
        %v3977 = vpop.f32.mrf.mxu0
        %v3978 = vadd.f32 %v3935, %v3977
        %v3979 = vpop.f32.mrf.mxu0
        %v3980 = vadd.f32 %v3937, %v3979
        %3981 = vdwg.mxu0
        %3982 = vmatprep.subr.bf16.mxu0 %v2874
        %3983 = vmatpush1.bf16.msra.mxu0 %v2873
        %3984 = vmatprep.subr.bf16.mxu0 %v2872
        %3985 = vmatpush1.bf16.msra.mxu0 %v2871
        %3986 = vmatprep.subr.bf16.mxu0 %v2870
        %3987 = vmatpush1.bf16.msra.mxu0 %v2869
        %3988 = vmatprep.subr.bf16.mxu0 %v2868
        %3989 = vmatpush1.bf16.msra.mxu0 %v2867
        %3990 = vmatprep.subr.bf16.mxu0 %v2866
        %3991 = vmatpush1.bf16.msra.mxu0 %v2865
        %3992 = vmatprep.subr.bf16.mxu0 %v2864
        %3993 = vmatpush1.bf16.msra.mxu0 %v2863
        %3994 = vmatprep.subr.bf16.mxu0 %v2862
        %3995 = vmatpush1.bf16.msra.mxu0 %v2861
        %3996 = vmatprep.subr.bf16.mxu0 %v2860
        %3997 = vmatpush1.bf16.msra.mxu0 %v2859
        %3998 = vmatprep.subr.bf16.mxu0 %v2890
        %3999 = vmatpush2.bf16.msra.mxu0 %v2889
        %4000 = vmatprep.subr.bf16.mxu0 %v2888
        %4001 = vmatpush2.bf16.msra.mxu0 %v2887
        %4002 = vmatprep.subr.bf16.mxu0 %v2886
        %4003 = vmatpush2.bf16.msra.mxu0 %v2885
        %4004 = vmatprep.subr.bf16.mxu0 %v2884
        %4005 = vmatpush2.bf16.msra.mxu0 %v2883
        %4006 = vmatprep.subr.bf16.mxu0 %v2882
        %4007 = vmatpush2.bf16.msra.mxu0 %v2881
        %4008 = vmatprep.subr.bf16.mxu0 %v2880
        %4009 = vmatpush2.bf16.msra.mxu0 %v2879
        %4010 = vmatprep.subr.bf16.mxu0 %v2878
        %4011 = vmatpush2.bf16.msra.mxu0 %v2877
        %4012 = vmatprep.subr.bf16.mxu0 %v2876
        %4013 = vmatpush2.bf16.msra.mxu0 %v2875
        %4014 = vmatprep.mubr.bf16.mxu0 %v990
        %4015 = vmatmul.mubr.bf16.gmra.mxu0 %v989
        %v4016 = vpop.f32.mrf.mxu0
        %v4017 = vadd.f32 %v3974, %v4016
        %v4018 = vpop.f32.mrf.mxu0
        %v4019 = vadd.f32 %v3976, %v4018
        %v4020 = vpop.f32.mrf.mxu0
        %v4021 = vadd.f32 %v3978, %v4020
        %v4022 = vpop.f32.mrf.mxu0
        %v4023 = vadd.f32 %v3980, %v4022
        %4024 = vdwg.mxu0
        %4025 = vmatprep.subr.bf16.mxu0 %v2906
        %4026 = vmatpush1.bf16.msra.mxu0 %v2905
        %4027 = vmatprep.subr.bf16.mxu0 %v2904
        %4028 = vmatpush1.bf16.msra.mxu0 %v2903
        %4029 = vmatprep.subr.bf16.mxu0 %v2902
        %4030 = vmatpush1.bf16.msra.mxu0 %v2901
        %4031 = vmatprep.subr.bf16.mxu0 %v2900
        %4032 = vmatpush1.bf16.msra.mxu0 %v2899
        %4033 = vmatprep.subr.bf16.mxu0 %v2898
        %4034 = vmatpush1.bf16.msra.mxu0 %v2897
        %4035 = vmatprep.subr.bf16.mxu0 %v2896
        %4036 = vmatpush1.bf16.msra.mxu0 %v2895
        %4037 = vmatprep.subr.bf16.mxu0 %v2894
        %4038 = vmatpush1.bf16.msra.mxu0 %v2893
        %4039 = vmatprep.subr.bf16.mxu0 %v2892
        %4040 = vmatpush1.bf16.msra.mxu0 %v2891
        %4041 = vmatprep.subr.bf16.mxu0 %v2922
        %4042 = vmatpush2.bf16.msra.mxu0 %v2921
        %4043 = vmatprep.subr.bf16.mxu0 %v2920
        %4044 = vmatpush2.bf16.msra.mxu0 %v2919
        %4045 = vmatprep.subr.bf16.mxu0 %v2918
        %4046 = vmatpush2.bf16.msra.mxu0 %v2917
        %4047 = vmatprep.subr.bf16.mxu0 %v2916
        %4048 = vmatpush2.bf16.msra.mxu0 %v2915
        %4049 = vmatprep.subr.bf16.mxu0 %v2914
        %4050 = vmatpush2.bf16.msra.mxu0 %v2913
        %4051 = vmatprep.subr.bf16.mxu0 %v2912
        %4052 = vmatpush2.bf16.msra.mxu0 %v2911
        %4053 = vmatprep.subr.bf16.mxu0 %v2910
        %4054 = vmatpush2.bf16.msra.mxu0 %v2909
        %4055 = vmatprep.subr.bf16.mxu0 %v2908
        %4056 = vmatpush2.bf16.msra.mxu0 %v2907
        %4057 = vmatprep.mubr.bf16.mxu0 %v992
        %4058 = vmatmul.mubr.bf16.gmra.mxu0 %v991
        %v4059 = vpop.f32.mrf.mxu0
        %v4060 = vadd.f32 %v4017, %v4059
        %v4061 = vpop.f32.mrf.mxu0
        %v4062 = vadd.f32 %v4019, %v4061
        %v4063 = vpop.f32.mrf.mxu0
        %v4064 = vadd.f32 %v4021, %v4063
        %v4065 = vpop.f32.mrf.mxu0
        %v4066 = vadd.f32 %v4023, %v4065
        %4067 = vdwg.mxu0
        %4068 = vmatprep.subr.bf16.mxu0 %v2938
        %4069 = vmatpush1.bf16.msra.mxu0 %v2937
        %4070 = vmatprep.subr.bf16.mxu0 %v2936
        %4071 = vmatpush1.bf16.msra.mxu0 %v2935
        %4072 = vmatprep.subr.bf16.mxu0 %v2934
        %4073 = vmatpush1.bf16.msra.mxu0 %v2933
        %4074 = vmatprep.subr.bf16.mxu0 %v2932
        %4075 = vmatpush1.bf16.msra.mxu0 %v2931
        %4076 = vmatprep.subr.bf16.mxu0 %v2930
        %4077 = vmatpush1.bf16.msra.mxu0 %v2929
        %4078 = vmatprep.subr.bf16.mxu0 %v2928
        %4079 = vmatpush1.bf16.msra.mxu0 %v2927
        %4080 = vmatprep.subr.bf16.mxu0 %v2926
        %4081 = vmatpush1.bf16.msra.mxu0 %v2925
        %4082 = vmatprep.subr.bf16.mxu0 %v2924
        %4083 = vmatpush1.bf16.msra.mxu0 %v2923
        %4084 = vmatprep.subr.bf16.mxu0 %v2954
        %4085 = vmatpush2.bf16.msra.mxu0 %v2953
        %4086 = vmatprep.subr.bf16.mxu0 %v2952
        %4087 = vmatpush2.bf16.msra.mxu0 %v2951
        %4088 = vmatprep.subr.bf16.mxu0 %v2950
        %4089 = vmatpush2.bf16.msra.mxu0 %v2949
        %4090 = vmatprep.subr.bf16.mxu0 %v2948
        %4091 = vmatpush2.bf16.msra.mxu0 %v2947
        %4092 = vmatprep.subr.bf16.mxu0 %v2946
        %4093 = vmatpush2.bf16.msra.mxu0 %v2945
        %4094 = vmatprep.subr.bf16.mxu0 %v2944
        %4095 = vmatpush2.bf16.msra.mxu0 %v2943
        %4096 = vmatprep.subr.bf16.mxu0 %v2942
        %4097 = vmatpush2.bf16.msra.mxu0 %v2941
        %4098 = vmatprep.subr.bf16.mxu0 %v2940
        %4099 = vmatpush2.bf16.msra.mxu0 %v2939
        %4100 = vmatprep.mubr.bf16.mxu0 %v994
        %4101 = vmatmul.mubr.bf16.gmra.mxu0 %v993
        %v4102 = vpop.f32.mrf.mxu0
        %v4103 = vadd.f32 %v4060, %v4102
        %v4104 = vpop.f32.mrf.mxu0
        %v4105 = vadd.f32 %v4062, %v4104
        %v4106 = vpop.f32.mrf.mxu0
        %v4107 = vadd.f32 %v4064, %v4106
        %v4108 = vpop.f32.mrf.mxu0
        %v4109 = vadd.f32 %v4066, %v4108
        %4110 = vdwg.mxu0
        %4111 = vmatprep.subr.bf16.mxu0 %v2970
        %4112 = vmatpush1.bf16.msra.mxu0 %v2969
        %4113 = vmatprep.subr.bf16.mxu0 %v2968
        %4114 = vmatpush1.bf16.msra.mxu0 %v2967
        %4115 = vmatprep.subr.bf16.mxu0 %v2966
        %4116 = vmatpush1.bf16.msra.mxu0 %v2965
        %4117 = vmatprep.subr.bf16.mxu0 %v2964
        %4118 = vmatpush1.bf16.msra.mxu0 %v2963
        %4119 = vmatprep.subr.bf16.mxu0 %v2962
        %4120 = vmatpush1.bf16.msra.mxu0 %v2961
        %4121 = vmatprep.subr.bf16.mxu0 %v2960
        %4122 = vmatpush1.bf16.msra.mxu0 %v2959
        %4123 = vmatprep.subr.bf16.mxu0 %v2958
        %4124 = vmatpush1.bf16.msra.mxu0 %v2957
        %4125 = vmatprep.subr.bf16.mxu0 %v2956
        %4126 = vmatpush1.bf16.msra.mxu0 %v2955
        %4127 = vmatprep.subr.bf16.mxu0 %v2986
        %4128 = vmatpush2.bf16.msra.mxu0 %v2985
        %4129 = vmatprep.subr.bf16.mxu0 %v2984
        %4130 = vmatpush2.bf16.msra.mxu0 %v2983
        %4131 = vmatprep.subr.bf16.mxu0 %v2982
        %4132 = vmatpush2.bf16.msra.mxu0 %v2981
        %4133 = vmatprep.subr.bf16.mxu0 %v2980
        %4134 = vmatpush2.bf16.msra.mxu0 %v2979
        %4135 = vmatprep.subr.bf16.mxu0 %v2978
        %4136 = vmatpush2.bf16.msra.mxu0 %v2977
        %4137 = vmatprep.subr.bf16.mxu0 %v2976
        %4138 = vmatpush2.bf16.msra.mxu0 %v2975
        %4139 = vmatprep.subr.bf16.mxu0 %v2974
        %4140 = vmatpush2.bf16.msra.mxu0 %v2973
        %4141 = vmatprep.subr.bf16.mxu0 %v2972
        %4142 = vmatpush2.bf16.msra.mxu0 %v2971
        %4143 = vmatprep.mubr.bf16.mxu0 %v996
        %4144 = vmatmul.mubr.bf16.gmra.mxu0 %v995
        %v4145 = vpop.f32.mrf.mxu0
        %v4146 = vadd.f32 %v4103, %v4145
        %v4147 = vpop.f32.mrf.mxu0
        %v4148 = vadd.f32 %v4105, %v4147
        %v4149 = vpop.f32.mrf.mxu0
        %v4150 = vadd.f32 %v4107, %v4149
        %v4151 = vpop.f32.mrf.mxu0
        %v4152 = vadd.f32 %v4109, %v4151
        %4153 = vdwg.mxu0
        %4154 = vmatprep.subr.bf16.mxu0 %v3002
        %4155 = vmatpush1.bf16.msra.mxu0 %v3001
        %4156 = vmatprep.subr.bf16.mxu0 %v3000
        %4157 = vmatpush1.bf16.msra.mxu0 %v2999
        %4158 = vmatprep.subr.bf16.mxu0 %v2998
        %4159 = vmatpush1.bf16.msra.mxu0 %v2997
        %4160 = vmatprep.subr.bf16.mxu0 %v2996
        %4161 = vmatpush1.bf16.msra.mxu0 %v2995
        %4162 = vmatprep.subr.bf16.mxu0 %v2994
        %4163 = vmatpush1.bf16.msra.mxu0 %v2993
        %4164 = vmatprep.subr.bf16.mxu0 %v2992
        %4165 = vmatpush1.bf16.msra.mxu0 %v2991
        %4166 = vmatprep.subr.bf16.mxu0 %v2990
        %4167 = vmatpush1.bf16.msra.mxu0 %v2989
        %4168 = vmatprep.subr.bf16.mxu0 %v2988
        %4169 = vmatpush1.bf16.msra.mxu0 %v2987
        %4170 = vmatprep.subr.bf16.mxu0 %v3018
        %4171 = vmatpush2.bf16.msra.mxu0 %v3017
        %4172 = vmatprep.subr.bf16.mxu0 %v3016
        %4173 = vmatpush2.bf16.msra.mxu0 %v3015
        %4174 = vmatprep.subr.bf16.mxu0 %v3014
        %4175 = vmatpush2.bf16.msra.mxu0 %v3013
        %4176 = vmatprep.subr.bf16.mxu0 %v3012
        %4177 = vmatpush2.bf16.msra.mxu0 %v3011
        %4178 = vmatprep.subr.bf16.mxu0 %v3010
        %4179 = vmatpush2.bf16.msra.mxu0 %v3009
        %4180 = vmatprep.subr.bf16.mxu0 %v3008
        %4181 = vmatpush2.bf16.msra.mxu0 %v3007
        %4182 = vmatprep.subr.bf16.mxu0 %v3006
        %4183 = vmatpush2.bf16.msra.mxu0 %v3005
        %4184 = vmatprep.subr.bf16.mxu0 %v3004
        %4185 = vmatpush2.bf16.msra.mxu0 %v3003
        %4186 = vmatprep.mubr.bf16.mxu0 %v998
        %4187 = vmatmul.mubr.bf16.gmra.mxu0 %v997
        %v4188 = vpop.f32.mrf.mxu0
        %v4189 = vadd.f32 %v4146, %v4188
        %v4190 = vpop.f32.mrf.mxu0
        %v4191 = vadd.f32 %v4148, %v4190
        %v4192 = vpop.f32.mrf.mxu0
        %v4193 = vadd.f32 %v4150, %v4192
        %v4194 = vpop.f32.mrf.mxu0
        %v4195 = vadd.f32 %v4152, %v4194
        %4196 = vdwg.mxu0
        %4197 = vmatprep.subr.bf16.mxu0 %v3034
        %4198 = vmatpush1.bf16.msra.mxu0 %v3033
        %4199 = vmatprep.subr.bf16.mxu0 %v3032
        %4200 = vmatpush1.bf16.msra.mxu0 %v3031
        %4201 = vmatprep.subr.bf16.mxu0 %v3030
        %4202 = vmatpush1.bf16.msra.mxu0 %v3029
        %4203 = vmatprep.subr.bf16.mxu0 %v3028
        %4204 = vmatpush1.bf16.msra.mxu0 %v3027
        %4205 = vmatprep.subr.bf16.mxu0 %v3026
        %4206 = vmatpush1.bf16.msra.mxu0 %v3025
        %4207 = vmatprep.subr.bf16.mxu0 %v3024
        %4208 = vmatpush1.bf16.msra.mxu0 %v3023
        %4209 = vmatprep.subr.bf16.mxu0 %v3022
        %4210 = vmatpush1.bf16.msra.mxu0 %v3021
        %4211 = vmatprep.subr.bf16.mxu0 %v3020
        %4212 = vmatpush1.bf16.msra.mxu0 %v3019
        %4213 = vmatprep.subr.bf16.mxu0 %v3050
        %4214 = vmatpush2.bf16.msra.mxu0 %v3049
        %4215 = vmatprep.subr.bf16.mxu0 %v3048
        %4216 = vmatpush2.bf16.msra.mxu0 %v3047
        %4217 = vmatprep.subr.bf16.mxu0 %v3046
        %4218 = vmatpush2.bf16.msra.mxu0 %v3045
        %4219 = vmatprep.subr.bf16.mxu0 %v3044
        %4220 = vmatpush2.bf16.msra.mxu0 %v3043
        %4221 = vmatprep.subr.bf16.mxu0 %v3042
        %4222 = vmatpush2.bf16.msra.mxu0 %v3041
        %4223 = vmatprep.subr.bf16.mxu0 %v3040
        %4224 = vmatpush2.bf16.msra.mxu0 %v3039
        %4225 = vmatprep.subr.bf16.mxu0 %v3038
        %4226 = vmatpush2.bf16.msra.mxu0 %v3037
        %4227 = vmatprep.subr.bf16.mxu0 %v3036
        %4228 = vmatpush2.bf16.msra.mxu0 %v3035
        %4229 = vmatprep.mubr.bf16.mxu0 %v1000
        %4230 = vmatmul.mubr.bf16.gmra.mxu0 %v999
        %v4231 = vpop.f32.mrf.mxu0
        %v4232 = vadd.f32 %v4189, %v4231
        %v4233 = vpop.f32.mrf.mxu0
        %v4234 = vadd.f32 %v4191, %v4233
        %v4235 = vpop.f32.mrf.mxu0
        %v4236 = vadd.f32 %v4193, %v4235
        %v4237 = vpop.f32.mrf.mxu0
        %v4238 = vadd.f32 %v4195, %v4237
        %4239 = vdwg.mxu0
        %4240 = vmatprep.subr.bf16.mxu0 %v3066
        %4241 = vmatpush1.bf16.msra.mxu0 %v3065
        %4242 = vmatprep.subr.bf16.mxu0 %v3064
        %4243 = vmatpush1.bf16.msra.mxu0 %v3063
        %4244 = vmatprep.subr.bf16.mxu0 %v3062
        %4245 = vmatpush1.bf16.msra.mxu0 %v3061
        %4246 = vmatprep.subr.bf16.mxu0 %v3060
        %4247 = vmatpush1.bf16.msra.mxu0 %v3059
        %4248 = vmatprep.subr.bf16.mxu0 %v3058
        %4249 = vmatpush1.bf16.msra.mxu0 %v3057
        %4250 = vmatprep.subr.bf16.mxu0 %v3056
        %4251 = vmatpush1.bf16.msra.mxu0 %v3055
        %4252 = vmatprep.subr.bf16.mxu0 %v3054
        %4253 = vmatpush1.bf16.msra.mxu0 %v3053
        %4254 = vmatprep.subr.bf16.mxu0 %v3052
        %4255 = vmatpush1.bf16.msra.mxu0 %v3051
        %4256 = vmatprep.subr.bf16.mxu0 %v3082
        %4257 = vmatpush2.bf16.msra.mxu0 %v3081
        %4258 = vmatprep.subr.bf16.mxu0 %v3080
        %4259 = vmatpush2.bf16.msra.mxu0 %v3079
        %4260 = vmatprep.subr.bf16.mxu0 %v3078
        %4261 = vmatpush2.bf16.msra.mxu0 %v3077
        %4262 = vmatprep.subr.bf16.mxu0 %v3076
        %4263 = vmatpush2.bf16.msra.mxu0 %v3075
        %4264 = vmatprep.subr.bf16.mxu0 %v3074
        %4265 = vmatpush2.bf16.msra.mxu0 %v3073
        %4266 = vmatprep.subr.bf16.mxu0 %v3072
        %4267 = vmatpush2.bf16.msra.mxu0 %v3071
        %4268 = vmatprep.subr.bf16.mxu0 %v3070
        %4269 = vmatpush2.bf16.msra.mxu0 %v3069
        %4270 = vmatprep.subr.bf16.mxu0 %v3068
        %4271 = vmatpush2.bf16.msra.mxu0 %v3067
        %4272 = vmatprep.mubr.bf16.mxu0 %v1002
        %4273 = vmatmul.mubr.bf16.gmra.mxu0 %v1001
        %v4274 = vpop.f32.mrf.mxu0
        %v4275 = vadd.f32 %v4232, %v4274
        %v4276 = vpop.f32.mrf.mxu0
        %v4277 = vadd.f32 %v4234, %v4276
        %v4278 = vpop.f32.mrf.mxu0
        %v4279 = vadd.f32 %v4236, %v4278
        %v4280 = vpop.f32.mrf.mxu0
        %v4281 = vadd.f32 %v4238, %v4280
        %4282 = vdwg.mxu0
        %v4283 = vadd.f32 %v327, %v4275
        %v4284 = vadd.f32 %v328, %v4277
        %v4285 = vadd.f32 %v329, %v4279
        %v4286 = vadd.f32 %v330, %v4281
        %4287 = vst [vmem:[#allocation2] sm:$0xff] %v4283
        %4288 = vst [vmem:[#allocation2 + $0x8] sm:$0xff] %v4284
        %4289 = vst [vmem:[#allocation2 + $0x10] sm:$0xff] %v4285
        %4290 = vst [vmem:[#allocation2 + $0x18] sm:$0xff] %v4286
        %p4291 = scmp.eq.s32.totalorder %s16, 1
        // Predicated region
        $region68: #{discriminator_forward.7} parent=58 // pred_check
          %p4292 = pneg %p4291
        $region69: #{discriminator_forward.7} parent=58 // pred_check_branch
          %4294 = sbr.rel (%p4292) target = $region71
        $region70: #{discriminator_forward.7} parent=58 // pred_region
          %v4295 = vld [vmem:[#allocation2] sm:$0xff]
          %v4296 = vld [vmem:[#allocation2 + $0x8] sm:$0xff]
          %v4297 = vld [vmem:[#allocation2 + $0x10] sm:$0xff]
          %v4298 = vld [vmem:[#allocation2 + $0x18] sm:$0xff]
          %v4299 = vld [vmem:[%s2] sm:$0x3]
          %v4301 = vlaneseq
          %v4302 = vshrl.u32 %v4301, 7
          %v4303 = vsub.s32 0, %v4302
          %v4304 = vrot.slane %v4299, %v4303
          %v4305 = vlaneseq
          %v4306 = vshrl.u32 %v4305, 7
          %v4307 = vsub.s32 1, %v4306
          %v4308 = vrot.slane %v4299, %v4307
          %v4311 = vadd.f32 %v4295, %v4304
          %v4312 = vadd.f32 %v4296, %v4308
          %v4313 = vadd.f32 %v4297, %v4304
          %v4314 = vadd.f32 %v4298, %v4308
          %vm4315 = vcmp.gt.f32.partialorder %v4311, 0.0
          %vm4316 = vcmp.gt.f32.partialorder %v4312, 0.0
          %vm4317 = vcmp.gt.f32.partialorder %v4313, 0.0
          %vm4318 = vcmp.gt.f32.partialorder %v4314, 0.0
          %v4319 = vmul.f32 %v4311, 0.2
          %v4320 = vmul.f32 %v4312, 0.2
          %v4321 = vmul.f32 %v4313, 0.2
          %v4322 = vmul.f32 %v4314, 0.2
          %v4323 = vsel %vm4315, %v4311, %v4319
          %v4324 = vsel %vm4316, %v4312, %v4320
          %v4325 = vsel %vm4317, %v4313, %v4321
          %v4326 = vsel %vm4318, %v4314, %v4322
          %v4327 = vpack.c.bf16 %v4325, %v4323
          %v4328 = vpack.c.bf16 %v4326, %v4324
          %v4329 = vld [vmem:[%s3] sm:$0xf]
          %v4330 = vld [vmem:[%s3 + $0x4] sm:$0xf]
          %v4331 = vld [vmem:[%s3 + $0x8] sm:$0xf]
          %v4332 = vld [vmem:[%s3 + $0xc] sm:$0xf]
          %v4333 = vld [vmem:[%s3 + $0x10] sm:$0xf]
          %v4334 = vld [vmem:[%s3 + $0x14] sm:$0xf]
          %v4335 = vld [vmem:[%s3 + $0x18] sm:$0xf]
          %v4336 = vld [vmem:[%s3 + $0x1c] sm:$0xf]
          %v4337 = vld [vmem:[%s3 + $0x20] sm:$0xf]
          %v4338 = vld [vmem:[%s3 + $0x24] sm:$0xf]
          %v4339 = vld [vmem:[%s3 + $0x28] sm:$0xf]
          %v4340 = vld [vmem:[%s3 + $0x2c] sm:$0xf]
          %v4341 = vld [vmem:[%s3 + $0x30] sm:$0xf]
          %v4342 = vld [vmem:[%s3 + $0x34] sm:$0xf]
          %v4343 = vld [vmem:[%s3 + $0x38] sm:$0xf]
          %v4344 = vld [vmem:[%s3 + $0x3c] sm:$0xf]
          %v4345 = vld [vmem:[%s3 + $0x40] sm:$0xf]
          %v4346 = vld [vmem:[%s3 + $0x44] sm:$0xf]
          %v4347 = vld [vmem:[%s3 + $0x48] sm:$0xf]
          %v4348 = vld [vmem:[%s3 + $0x4c] sm:$0xf]
          %v4349 = vld [vmem:[%s3 + $0x50] sm:$0xf]
          %v4350 = vld [vmem:[%s3 + $0x54] sm:$0xf]
          %v4351 = vld [vmem:[%s3 + $0x58] sm:$0xf]
          %v4352 = vld [vmem:[%s3 + $0x5c] sm:$0xf]
          %v4353 = vld [vmem:[%s3 + $0x60] sm:$0xf]
          %v4354 = vld [vmem:[%s3 + $0x64] sm:$0xf]
          %v4355 = vld [vmem:[%s3 + $0x68] sm:$0xf]
          %v4356 = vld [vmem:[%s3 + $0x6c] sm:$0xf]
          %v4357 = vld [vmem:[%s3 + $0x70] sm:$0xf]
          %v4358 = vld [vmem:[%s3 + $0x74] sm:$0xf]
          %v4359 = vld [vmem:[%s3 + $0x78] sm:$0xf]
          %v4360 = vld [vmem:[%s3 + $0x7c] sm:$0xf]
          %v4361 = vld [vmem:[%s4] sm:$0x1]
          %v4363 = vlaneseq
          %v4364 = vshrl.u32 %v4363, 7
          %v4365 = vsub.s32 0, %v4364
          %v4366 = vrot.slane %v4361, %v4365
          %v4400 = vunpack.c.l.b16 %v4329
          %v4401 = vunpack.c.l.b16 %v4330
          %v4402 = vunpack.c.l.b16 %v4331
          %v4403 = vunpack.c.l.b16 %v4332
          %v4404 = vunpack.c.l.b16 %v4333
          %v4405 = vunpack.c.l.b16 %v4334
          %v4406 = vunpack.c.l.b16 %v4335
          %v4407 = vunpack.c.l.b16 %v4336
          %v4408 = vunpack.c.l.b16 %v4337
          %v4409 = vunpack.c.l.b16 %v4338
          %v4410 = vunpack.c.l.b16 %v4339
          %v4411 = vunpack.c.l.b16 %v4340
          %v4412 = vunpack.c.l.b16 %v4341
          %v4413 = vunpack.c.l.b16 %v4342
          %v4414 = vunpack.c.l.b16 %v4343
          %v4415 = vunpack.c.l.b16 %v4344
          %v4416 = vunpack.c.l.b16 %v4345
          %v4417 = vunpack.c.l.b16 %v4346
          %v4418 = vunpack.c.l.b16 %v4347
          %v4419 = vunpack.c.l.b16 %v4348
          %v4420 = vunpack.c.l.b16 %v4349
          %v4421 = vunpack.c.l.b16 %v4350
          %v4422 = vunpack.c.l.b16 %v4351
          %v4423 = vunpack.c.l.b16 %v4352
          %v4424 = vunpack.c.l.b16 %v4353
          %v4425 = vunpack.c.l.b16 %v4354
          %v4426 = vunpack.c.l.b16 %v4355
          %v4427 = vunpack.c.l.b16 %v4356
          %v4428 = vunpack.c.l.b16 %v4357
          %v4429 = vunpack.c.l.b16 %v4358
          %v4430 = vunpack.c.l.b16 %v4359
          %v4431 = vunpack.c.l.b16 %v4360
          %v4432 = vpack.c.b16 %v4401, %v4400
          %v4433 = vpack.c.b16 %v4403, %v4402
          %v4434 = vpack.c.b16 %v4405, %v4404
          %v4435 = vpack.c.b16 %v4407, %v4406
          %v4436 = vpack.c.b16 %v4409, %v4408
          %v4437 = vpack.c.b16 %v4411, %v4410
          %v4438 = vpack.c.b16 %v4413, %v4412
          %v4439 = vpack.c.b16 %v4415, %v4414
          %v4440 = vpack.c.b16 %v4417, %v4416
          %v4441 = vpack.c.b16 %v4419, %v4418
          %v4442 = vpack.c.b16 %v4421, %v4420
          %v4443 = vpack.c.b16 %v4423, %v4422
          %v4444 = vpack.c.b16 %v4425, %v4424
          %v4445 = vpack.c.b16 %v4427, %v4426
          %v4446 = vpack.c.b16 %v4429, %v4428
          %v4447 = vpack.c.b16 %v4431, %v4430
          %4464 = vmatprep.subr.bf16.mxu0 0
          %4465 = vmatpush1.bf16.msra.mxu0 %v4439
          %4466 = vmatprep.subr.bf16.mxu0 0
          %4467 = vmatpush1.bf16.msra.mxu0 %v4438
          %4468 = vmatprep.subr.bf16.mxu0 0
          %4469 = vmatpush1.bf16.msra.mxu0 %v4437
          %4470 = vmatprep.subr.bf16.mxu0 0
          %4471 = vmatpush1.bf16.msra.mxu0 %v4436
          %4472 = vmatprep.subr.bf16.mxu0 0
          %4473 = vmatpush1.bf16.msra.mxu0 %v4435
          %4474 = vmatprep.subr.bf16.mxu0 0
          %4475 = vmatpush1.bf16.msra.mxu0 %v4434
          %4476 = vmatprep.subr.bf16.mxu0 0
          %4477 = vmatpush1.bf16.msra.mxu0 %v4433
          %4478 = vmatprep.subr.bf16.mxu0 0
          %4479 = vmatpush1.bf16.msra.mxu0 %v4432
          %4480 = vmatprep.subr.bf16.mxu0 0
          %4481 = vmatpush2.bf16.msra.mxu0 %v4447
          %4482 = vmatprep.subr.bf16.mxu0 0
          %4483 = vmatpush2.bf16.msra.mxu0 %v4446
          %4484 = vmatprep.subr.bf16.mxu0 0
          %4485 = vmatpush2.bf16.msra.mxu0 %v4445
          %4486 = vmatprep.subr.bf16.mxu0 0
          %4487 = vmatpush2.bf16.msra.mxu0 %v4444
          %4488 = vmatprep.subr.bf16.mxu0 0
          %4489 = vmatpush2.bf16.msra.mxu0 %v4443
          %4490 = vmatprep.subr.bf16.mxu0 0
          %4491 = vmatpush2.bf16.msra.mxu0 %v4442
          %4492 = vmatprep.subr.bf16.mxu0 0
          %4493 = vmatpush2.bf16.msra.mxu0 %v4441
          %4494 = vmatprep.subr.bf16.mxu0 0
          %4495 = vmatpush2.bf16.msra.mxu0 %v4440
          %4496 = vmatprep.mubr.bf16.mxu0 %v4328
          %4497 = vmatmul.mubr.bf16.gmra.mxu0 %v4327
          %v4498 = vpop.f32.mrf.mxu0
          %v4499 = vadd.f32 %v4366, %v4498
          %v4500 = vpop.f32.mrf.mxu0
          %v4501 = vpop.f32.mrf.mxu0
          %v4502 = vadd.f32 %v4366, %v4501
          %v4503 = vpop.f32.mrf.mxu0
          %4504 = vdwg.mxu0
          %4505 = vst [vmem:[%s5] sm:$0xff] %v4499
          %4506 = vst [vmem:[%s5 + $0x8] sm:$0xff] %v4502
        $region71: #{discriminator_forward.7} parent=58 // pred_fallthru
          _
        // Predicated region
        $region72: #{discriminator_forward.7} parent=58 // pred_check
          %p4507 = pneg %p144
        $region73: #{discriminator_forward.7} parent=58 // pred_check_branch
          %4509 = sbr.rel (%p4507) target = $region75
        $region74: #{discriminator_forward.7} parent=58 // pred_region
          _
        $region75: #{discriminator_forward.7} parent=58 // pred_fallthru
          _
        // Predicated region
        $region76: #{discriminator_forward.7} parent=58 // pred_check
          %p4510 = pneg %p144
        $region77: #{discriminator_forward.7} parent=58 // pred_check_branch
          %4512 = sbr.rel (%p4510) target = $region79
        $region78: #{discriminator_forward.7} parent=58 // pred_region
          _
        $region79: #{discriminator_forward.7} parent=58 // pred_fallthru
          _
      $region59: #{discriminator_forward.7} parent=5 // pred_fallthru
        _
      %p4513 = scmp.le.s32.totalorder 2, %s11
      // Predicated region
      $region80: #{discriminator_forward.7} parent=5 // pred_check
        %p4514 = pneg %p4513
      $region81: #{discriminator_forward.7} parent=5 // pred_check_branch
        %4516 = sbr.rel (%p4514) target = $region83
      $region82: #{discriminator_forward.7} parent=5 // pred_region
        %s4517 = ssub.s32 %s11, 2
      $region83: #{discriminator_forward.7} parent=5 // pred_fallthru
        _
    $region6: #{discriminator_forward.7} parent=1 // loop_footer
      %s15 = sadd.s32 1, %s11
    $region7: #{discriminator_forward.7} parent=1 // loop_footer_branch
      %10 = sbr.rel target = $region3
    $region8: #{discriminator_forward.7} parent=1 // loop_exit
      _

</llo_original>
